<compile_context>
chip_gen: v5e
topology: v5e:2x2
jax: 0.10.0
libtpu: 0.0.40
codegen_flags: <defaults>
</compile_context>

<pallas_src>
from functools import partial

import jax
import jax.numpy as jnp
from jax.experimental import pallas as pl
from jax.experimental.pallas import tpu as pltpu

LANE = 128
CFG = [16, "M", 32, "M", 64, "M", 512]   # mini VGG feature config, ends in 512
NUM_CLASSES = 16
IN_CHANNELS = 3
SPATIAL = 16

VMEM_SPEC = pl.BlockSpec(memory_space=pltpu.MemorySpace.VMEM)


def _round_up(x, m):
    return (x + m - 1) // m * m


# ------------------------------ kernel helpers ------------------------------ #

def _layer_norm(h, g, b, eps=1e-5):
    mu = jnp.mean(h, axis=-1, keepdims=True)
    var = jnp.mean(jnp.square(h - mu), axis=-1, keepdims=True)
    return (h - mu) * jax.lax.rsqrt(var + eps) * g + b


def _maxpool2(y):
    """2x2 max pool, stride 2.  y: (N, H, W, C) f32."""
    n, h, w, c = y.shape
    y = jnp.max(y.reshape(n, h // 2, 2, w, c), axis=2)
    y = jnp.max(y.reshape(n, h // 2, w // 2, 2, c), axis=3)
    return y


def _store_padded(pad_ref, y):
    """Write y into the interior of pad_ref and zero its 1-px halo."""
    n, h, w, c = y.shape
    pad_ref[...] = jnp.zeros(pad_ref.shape, pad_ref.dtype)
    pad_ref[:, 1:h + 1, 1:w + 1, :] = y.astype(pad_ref.dtype)


def _conv3x3_relu(pad_ref, w_ref, b_ref):
    """3x3 conv (stride 1, pad 1) + bias + ReLU as 9 accumulating MXU dots.

    pad_ref: (N, H+2, W+2, C) f32 scratch with zero halo.
    w_ref:   (9, C, Cout) bf16.   b_ref: (1, Cout) f32.
    Returns (N*H*W, Cout) f32, post-ReLU.
    """
    n, hp, wp, c = pad_ref.shape
    h, w = hp - 2, wp - 2
    cout = w_ref.shape[2]
    acc = jnp.zeros((n * h * w, cout), jnp.float32)
    for kh in range(3):
        for kw in range(3):
            tap = pad_ref[:, kh:kh + h, kw:kw + w, :].reshape(n * h * w, c)
            acc = acc + jnp.dot(tap.astype(jnp.bfloat16), w_ref[kh * 3 + kw],
                                preferred_element_type=jnp.float32)
    return jnp.maximum(acc + b_ref[...], 0.0)


# ----------------------------- fused VGG kernel ----------------------------- #

def _vgg_fused_kernel(x0_ref,
                      w0_ref, b0_ref,
                      w1_ref, b1_ref,
                      w2_ref, b2_ref,
                      w3_ref, b3_ref,
                      wf1_ref, bf1_ref, g1_ref, be1_ref,
                      wf2_ref, bf2_ref, g2_ref, be2_ref,
                      wf3_ref, bf3_ref,
                      o_ref,
                      pad1_ref, pad2_ref, pad3_ref):
    n = o_ref.shape[0]
    h1 = pad1_ref.shape[1] - 2          # spatial after 1st pool (8)
    h2 = pad2_ref.shape[1] - 2          # after 2nd pool (4)
    h3 = pad3_ref.shape[1] - 2          # after 3rd pool (2)
    s = 2 * h1                          # input spatial (16)

    # --- Stage 0: (wrapper im2col, K padded 27->128) conv + ReLU + maxpool ---
    h = jnp.dot(x0_ref[...], w0_ref[...], preferred_element_type=jnp.float32)
    h = jnp.maximum(h + b0_ref[...], 0.0)                      # (N*16*16, 128)
    h = _maxpool2(h.reshape(n, s, s, w0_ref.shape[1]))         # (N, 8, 8, 128)
    _store_padded(pad1_ref, h)

    # --- Stage 1: conv 16->32 (lane padded) + ReLU + maxpool ---
    h = _conv3x3_relu(pad1_ref, w1_ref, b1_ref)                # (N*64, 128)
    h = _maxpool2(h.reshape(n, h1, h1, w1_ref.shape[2]))       # (N, 4, 4, 128)
    _store_padded(pad2_ref, h)

    # --- Stage 2: conv 32->64 (lane padded) + ReLU + maxpool ---
    h = _conv3x3_relu(pad2_ref, w2_ref, b2_ref)                # (N*16, 128)
    h = _maxpool2(h.reshape(n, h2, h2, w2_ref.shape[2]))       # (N, 2, 2, 128)
    _store_padded(pad3_ref, h)

    # --- Stage 3: conv 64->512 + ReLU, fused AdaptiveAvgPool2d((1,1)) ---
    h = _conv3x3_relu(pad3_ref, w3_ref, b3_ref)                # (N*4, 512)
    feats = jnp.mean(h.reshape(n, h3 * h3, w3_ref.shape[2]), axis=1)   # (N, 512)

    # --- Classifier: Linear -> LayerNorm -> ReLU -> (Dropout=id), x2, Linear ---
    z = jnp.dot(feats.astype(jnp.bfloat16), wf1_ref[...],
                preferred_element_type=jnp.float32) + bf1_ref[...]
    z = jnp.maximum(_layer_norm(z, g1_ref[...], be1_ref[...]), 0.0)
    z = jnp.dot(z.astype(jnp.bfloat16), wf2_ref[...],
                preferred_element_type=jnp.float32) + bf2_ref[...]
    z = jnp.maximum(_layer_norm(z, g2_ref[...], be2_ref[...]), 0.0)
    o_ref[...] = jnp.dot(z.astype(jnp.bfloat16), wf3_ref[...],
                         preferred_element_type=jnp.float32) + bf3_ref[...]


# ------------------------------ JAX wrappers -------------------------------- #

def init_params(key, cfg=CFG, in_channels=IN_CHANNELS, num_classes=NUM_CLASSES):
    """Logical (unpadded) parameters, mirroring the PyTorch module's init."""
    params = {"convs": []}
    c = in_channels
    for v in cfg:
        if v == "M":
            continue
        key, sub = jax.random.split(key)
        std = (2.0 / (v * 3 * 3)) ** 0.5       # kaiming_normal_(fan_out, relu)
        w = jax.random.normal(sub, (3, 3, c, v), jnp.float32) * std
        b = jnp.zeros((1, v), jnp.float32)
        params["convs"].append((w, b))
        c = v

    def linear(k, fan_in, fan_out):
        # nn.init.normal_(weight, 0, 0.01); bias = 0.  Stored as (in, out).
        w = jax.random.normal(k, (fan_in, fan_out), jnp.float32) * 0.01
        return w, jnp.zeros((1, fan_out), jnp.float32)

    key, k1, k2, k3 = jax.random.split(key, 4)
    w1, b1 = linear(k1, 512, 512)
    w2, b2 = linear(k2, 512, 512)
    w3, b3 = linear(k3, 512, num_classes)
    params["classifier"] = {
        "w1": w1, "b1": b1,
        "g1": jnp.ones((1, 512), jnp.float32), "be1": jnp.zeros((1, 512), jnp.float32),
        "w2": w2, "b2": b2,
        "g2": jnp.ones((1, 512), jnp.float32), "be2": jnp.zeros((1, 512), jnp.float32),
        "w3": w3, "b3": b3,
    }
    return params


def pack_params(params, num_classes=NUM_CLASSES):
    """Lane-pad channels, fold the first conv's 9 taps into a single (128,128)
    matrix, repack later convs as (9, Cin_p, Cout_p), cast matmul weights to
    bf16 (zero padding leaves the math unchanged)."""
    packed = {}

    # Stage 0: K = 9*Cin (27) padded once to 128, Cout 16 -> 128.
    w, b = params["convs"][0]
    _, _, cin, cout = w.shape
    k_real, cout_p = 9 * cin, _round_up(cout, LANE)
    w0 = w.reshape(k_real, cout)
    w0 = jnp.pad(w0, ((0, LANE - k_real), (0, cout_p - cout))).astype(jnp.bfloat16)
    b0 = jnp.pad(b, ((0, 0), (0, cout_p - cout)))
    packed["w0"], packed["b0"] = w0, b0

    # Stages 1..: (3,3,Cin,Cout) -> (9, Cin_p, Cout_p), per-tap dots in-kernel.
    for i, (w, b) in enumerate(params["convs"][1:], start=1):
        _, _, cin, cout = w.shape
        cin_p, cout_p = _round_up(cin, LANE), _round_up(cout, LANE)
        wp = jnp.zeros((3, 3, cin_p, cout_p), jnp.float32).at[:, :, :cin, :cout].set(w)
        packed[f"w{i}"] = wp.reshape(9, cin_p, cout_p).astype(jnp.bfloat16)
        packed[f"b{i}"] = jnp.zeros((1, cout_p), jnp.float32).at[:, :cout].set(b)

    c = params["classifier"]
    ncls_p = _round_up(num_classes, LANE)
    w3 = jnp.zeros((512, ncls_p), jnp.float32).at[:, :num_classes].set(c["w3"])
    b3 = jnp.zeros((1, ncls_p), jnp.float32).at[:, :num_classes].set(c["b3"])
    packed["cls"] = {
        "w1": c["w1"].astype(jnp.bfloat16), "b1": c["b1"],
        "g1": c["g1"], "be1": c["be1"],
        "w2": c["w2"].astype(jnp.bfloat16), "b2": c["b2"],
        "g2": c["g2"], "be2": c["be2"],
        "w3": w3.astype(jnp.bfloat16), "b3": b3,
    }
    return packed


def vgg_forward(x_nchw, packed, num_classes=NUM_CLASSES):
    n, cin, hh, ww = x_nchw.shape

    # Wrapper-side im2col of the tiny raw input at true Cin (K=27 padded once to
    # 128); everything downstream is a single fused Pallas call.
    x = jnp.transpose(x_nchw, (0, 2, 3, 1)).astype(jnp.float32)          # NHWC
    xp = jnp.pad(x, ((0, 0), (1, 1), (1, 1), (0, 0)))
    cols = [xp[:, kh:kh + hh, kw:kw + ww, :] for kh in range(3) for kw in range(3)]
    patches = jnp.concatenate(cols, axis=-1).reshape(n * hh * ww, 9 * cin)
    k0 = packed["w0"].shape[0]
    patches = jnp.pad(patches, ((0, 0), (0, k0 - 9 * cin))).astype(jnp.bfloat16)

    c = packed["cls"]
    args = (patches,
            packed["w0"], packed["b0"],
            packed["w1"], packed["b1"],
            packed["w2"], packed["b2"],
            packed["w3"], packed["b3"],
            c["w1"], c["b1"], c["g1"], c["be1"],
            c["w2"], c["b2"], c["g2"], c["be2"],
            c["w3"], c["b3"])

    c1 = packed["w0"].shape[1]      # padded channel widths of the pooled buffers
    c2 = packed["w1"].shape[2]
    c3 = packed["w2"].shape[2]
    ncls_p = c["w3"].shape[1]

    logits = pl.pallas_call(
        _vgg_fused_kernel,
        out_shape=jax.ShapeDtypeStruct((n, ncls_p), jnp.float32),
        in_specs=[VMEM_SPEC] * len(args),
        out_specs=VMEM_SPEC,
        scratch_shapes=[
            pltpu.VMEM((n, hh // 2 + 2, ww // 2 + 2, c1), jnp.float32),
            pltpu.VMEM((n, hh // 4 + 2, ww // 4 + 2, c2), jnp.float32),
            pltpu.VMEM((n, hh // 8 + 2, ww // 8 + 2, c3), jnp.float32),
        ],
    )(*args)
    return logits[:, :num_classes]


if __name__ == "__main__":
    key = jax.random.PRNGKey(0)
    key, pkey, xkey = jax.random.split(key, 3)

    params = init_params(pkey)
    packed = pack_params(params)

    # PyTorch-convention NCHW input: batch=2, channels=3, 16x16 spatial.
    x = jax.random.normal(xkey, (2, IN_CHANNELS, SPATIAL, SPATIAL), jnp.float32)

    fwd = jax.jit(vgg_forward)
    out = jax.block_until_ready(fwd(x, packed))

    assert out.shape == (2, NUM_CLASSES), out.shape
    assert bool(jnp.all(jnp.isfinite(out)))
    print("KERNEL_OK")
</pallas_src>

<mosaic_0001>
module attributes {stable_mosaic.version = 11 : i64} {
  func.func @_vgg_fused_kernel(%arg0: memref<512x128xbf16, #tpu.memory_space<vmem>>, %arg1: memref<128x128xbf16, #tpu.memory_space<vmem>>, %arg2: memref<1x128xf32, #tpu.memory_space<vmem>>, %arg3: memref<9x128x128xbf16, #tpu.memory_space<vmem>>, %arg4: memref<1x128xf32, #tpu.memory_space<vmem>>, %arg5: memref<9x128x128xbf16, #tpu.memory_space<vmem>>, %arg6: memref<1x128xf32, #tpu.memory_space<vmem>>, %arg7: memref<9x128x512xbf16, #tpu.memory_space<vmem>>, %arg8: memref<1x512xf32, #tpu.memory_space<vmem>>, %arg9: memref<512x512xbf16, #tpu.memory_space<vmem>>, %arg10: memref<1x512xf32, #tpu.memory_space<vmem>>, %arg11: memref<1x512xf32, #tpu.memory_space<vmem>>, %arg12: memref<1x512xf32, #tpu.memory_space<vmem>>, %arg13: memref<512x512xbf16, #tpu.memory_space<vmem>>, %arg14: memref<1x512xf32, #tpu.memory_space<vmem>>, %arg15: memref<1x512xf32, #tpu.memory_space<vmem>>, %arg16: memref<1x512xf32, #tpu.memory_space<vmem>>, %arg17: memref<512x128xbf16, #tpu.memory_space<vmem>>, %arg18: memref<1x128xf32, #tpu.memory_space<vmem>>, %arg19: memref<2x128xf32, #tpu.memory_space<vmem>>, %arg20: memref<2x10x10x128xf32, #tpu.memory_space<vmem>>, %arg21: memref<2x6x6x128xf32, #tpu.memory_space<vmem>>, %arg22: memref<2x4x4x128xf32, #tpu.memory_space<vmem>>) attributes {dimension_semantics = [], scalar_prefetch = 0 : i64, scratch_operands = 3 : i64, tpu.core_type = #tpu.core_type<tc>} {
    %c0 = arith.constant 0 : index
    %c0_0 = arith.constant 0 : index
    %0 = vector.load %arg0[%c0, %c0_0] : memref<512x128xbf16, #tpu.memory_space<vmem>>, vector<512x128xbf16>
    %c0_1 = arith.constant 0 : index
    %c0_2 = arith.constant 0 : index
    %1 = vector.load %arg1[%c0_1, %c0_2] : memref<128x128xbf16, #tpu.memory_space<vmem>>, vector<128x128xbf16>
    %cst = arith.constant dense<0.000000e+00> : vector<512x128xf32>
    %2 = tpu.matmul %0, %1, %cst {dimension_numbers = #tpu.dot_dimension_numbers<[1], [0], [0], [1], [0, 0, 1, 1], [], []>} : vector<512x128xbf16>, vector<128x128xbf16>, vector<512x128xf32> -> vector<512x128xf32>
    %c0_3 = arith.constant 0 : index
    %c0_4 = arith.constant 0 : index
    %3 = vector.load %arg2[%c0_3, %c0_4] : memref<1x128xf32, #tpu.memory_space<vmem>>, vector<1x128xf32>
    %4 = vector.broadcast %3 : vector<1x128xf32> to vector<512x128xf32>
    %5 = arith.addf %2, %4 : vector<512x128xf32>
    %cst_5 = arith.constant 0.000000e+00 : f32
    %6 = vector.broadcast %cst_5 : f32 to vector<512x128xf32>
    %7 = arith.maximumf %5, %6 : vector<512x128xf32>
    %8 = vector.shape_cast %7 : vector<512x128xf32> to vector<2x16x16x128xf32>
    %9 = vector.shape_cast %8 : vector<2x16x16x128xf32> to vector<2x8x2x16x128xf32>
    %cst_6 = arith.constant dense<0xFF800000> : vector<2x8x16x128xf32>
    %10 = vector.multi_reduction <maximumf>, %9, %cst_6 [2] : vector<2x8x2x16x128xf32> to vector<2x8x16x128xf32>
    %11 = vector.shape_cast %10 : vector<2x8x16x128xf32> to vector<2x8x8x2x128xf32>
    %cst_7 = arith.constant dense<0xFF800000> : vector<2x8x8x128xf32>
    %12 = vector.multi_reduction <maximumf>, %11, %cst_7 [3] : vector<2x8x8x2x128xf32> to vector<2x8x8x128xf32>
    %cst_8 = arith.constant 0.000000e+00 : f32
    %13 = vector.broadcast %cst_8 : f32 to vector<2x10x10x128xf32>
    %c0_9 = arith.constant 0 : index
    %c0_10 = arith.constant 0 : index
    %c0_11 = arith.constant 0 : index
    %c0_12 = arith.constant 0 : index
    %14 = vector.load %arg20[%c0_9, %c0_10, %c0_11, %c0_12] : memref<2x10x10x128xf32, #tpu.memory_space<vmem>>, vector<2x10x10x128xf32>
    tpu.vector_store %arg20[%c0_9, %c0_10, %c0_11, %c0_12], %13 {strides = array<i32>} : memref<2x10x10x128xf32, #tpu.memory_space<vmem>>, vector<2x10x10x128xf32>,
    %c0_13 = arith.constant 0 : index
    %c1 = arith.constant 1 : index
    %c1_14 = arith.constant 1 : index
    %c0_15 = arith.constant 0 : index
    %15 = vector.load %arg20[%c0_13, %c1, %c1_14, %c0_15] : memref<2x10x10x128xf32, #tpu.memory_space<vmem>>, vector<2x8x8x128xf32>
    tpu.vector_store %arg20[%c0_13, %c1, %c1_14, %c0_15], %12 {strides = array<i32>} : memref<2x10x10x128xf32, #tpu.memory_space<vmem>>, vector<2x8x8x128xf32>,
    %cst_16 = arith.constant 0.000000e+00 : f32
    %16 = vector.broadcast %cst_16 : f32 to vector<128x128xf32>
    %c0_17 = arith.constant 0 : index
    %c0_18 = arith.constant 0 : index
    %c0_19 = arith.constant 0 : index
    %c0_20 = arith.constant 0 : index
    %17 = vector.load %arg20[%c0_17, %c0_18, %c0_19, %c0_20] : memref<2x10x10x128xf32, #tpu.memory_space<vmem>>, vector<2x8x8x128xf32>
    %18 = vector.shape_cast %17 : vector<2x8x8x128xf32> to vector<128x128xf32>
    %19 = arith.truncf %18 : vector<128x128xf32> to vector<128x128xbf16>
    %c0_21 = arith.constant 0 : index
    %c0_22 = arith.constant 0 : index
    %c0_23 = arith.constant 0 : index
    %20 = vector.load %arg3[%c0_21, %c0_22, %c0_23] : memref<9x128x128xbf16, #tpu.memory_space<vmem>>, vector<1x128x128xbf16>
    %21 = vector.shape_cast %20 : vector<1x128x128xbf16> to vector<128x128xbf16>
    %cst_24 = arith.constant dense<0.000000e+00> : vector<128x128xf32>
    %22 = tpu.matmul %19, %21, %cst_24 {dimension_numbers = #tpu.dot_dimension_numbers<[1], [0], [0], [1], [0, 0, 1, 1], [], []>} : vector<128x128xbf16>, vector<128x128xbf16>, vector<128x128xf32> -> vector<128x128xf32>
    %23 = arith.addf %16, %22 : vector<128x128xf32>
    %c0_25 = arith.constant 0 : index
    %c0_26 = arith.constant 0 : index
    %c1_27 = arith.constant 1 : index
    %c0_28 = arith.constant 0 : index
    %24 = vector.load %arg20[%c0_25, %c0_26, %c1_27, %c0_28] : memref<2x10x10x128xf32, #tpu.memory_space<vmem>>, vector<2x8x8x128xf32>
    %25 = vector.shape_cast %24 : vector<2x8x8x128xf32> to vector<128x128xf32>
    %26 = arith.truncf %25 : vector<128x128xf32> to vector<128x128xbf16>
    %c1_29 = arith.constant 1 : index
    %c0_30 = arith.constant 0 : index
    %c0_31 = arith.constant 0 : index
    %27 = vector.load %arg3[%c1_29, %c0_30, %c0_31] : memref<9x128x128xbf16, #tpu.memory_space<vmem>>, vector<1x128x128xbf16>
    %28 = vector.shape_cast %27 : vector<1x128x128xbf16> to vector<128x128xbf16>
    %cst_32 = arith.constant dense<0.000000e+00> : vector<128x128xf32>
    %29 = tpu.matmul %26, %28, %cst_32 {dimension_numbers = #tpu.dot_dimension_numbers<[1], [0], [0], [1], [0, 0, 1, 1], [], []>} : vector<128x128xbf16>, vector<128x128xbf16>, vector<128x128xf32> -> vector<128x128xf32>
    %30 = arith.addf %23, %29 : vector<128x128xf32>
    %c0_33 = arith.constant 0 : index
    %c0_34 = arith.constant 0 : index
    %c2 = arith.constant 2 : index
    %c0_35 = arith.constant 0 : index
    %31 = vector.load %arg20[%c0_33, %c0_34, %c2, %c0_35] : memref<2x10x10x128xf32, #tpu.memory_space<vmem>>, vector<2x8x8x128xf32>
    %32 = vector.shape_cast %31 : vector<2x8x8x128xf32> to vector<128x128xf32>
    %33 = arith.truncf %32 : vector<128x128xf32> to vector<128x128xbf16>
    %c2_36 = arith.constant 2 : index
    %c0_37 = arith.constant 0 : index
    %c0_38 = arith.constant 0 : index
    %34 = vector.load %arg3[%c2_36, %c0_37, %c0_38] : memref<9x128x128xbf16, #tpu.memory_space<vmem>>, vector<1x128x128xbf16>
    %35 = vector.shape_cast %34 : vector<1x128x128xbf16> to vector<128x128xbf16>
    %cst_39 = arith.constant dense<0.000000e+00> : vector<128x128xf32>
    %36 = tpu.matmul %33, %35, %cst_39 {dimension_numbers = #tpu.dot_dimension_numbers<[1], [0], [0], [1], [0, 0, 1, 1], [], []>} : vector<128x128xbf16>, vector<128x128xbf16>, vector<128x128xf32> -> vector<128x128xf32>
    %37 = arith.addf %30, %36 : vector<128x128xf32>
    %c0_40 = arith.constant 0 : index
    %c1_41 = arith.constant 1 : index
    %c0_42 = arith.constant 0 : index
    %c0_43 = arith.constant 0 : index
    %38 = vector.load %arg20[%c0_40, %c1_41, %c0_42, %c0_43] : memref<2x10x10x128xf32, #tpu.memory_space<vmem>>, vector<2x8x8x128xf32>
    %39 = vector.shape_cast %38 : vector<2x8x8x128xf32> to vector<128x128xf32>
    %40 = arith.truncf %39 : vector<128x128xf32> to vector<128x128xbf16>
    %c3 = arith.constant 3 : index
    %c0_44 = arith.constant 0 : index
    %c0_45 = arith.constant 0 : index
    %41 = vector.load %arg3[%c3, %c0_44, %c0_45] : memref<9x128x128xbf16, #tpu.memory_space<vmem>>, vector<1x128x128xbf16>
    %42 = vector.shape_cast %41 : vector<1x128x128xbf16> to vector<128x128xbf16>
    %cst_46 = arith.constant dense<0.000000e+00> : vector<128x128xf32>
    %43 = tpu.matmul %40, %42, %cst_46 {dimension_numbers = #tpu.dot_dimension_numbers<[1], [0], [0], [1], [0, 0, 1, 1], [], []>} : vector<128x128xbf16>, vector<128x128xbf16>, vector<128x128xf32> -> vector<128x128xf32>
    %44 = arith.addf %37, %43 : vector<128x128xf32>
    %c0_47 = arith.constant 0 : index
    %c1_48 = arith.constant 1 : index
    %c1_49 = arith.constant 1 : index
    %c0_50 = arith.constant 0 : index
    %45 = vector.load %arg20[%c0_47, %c1_48, %c1_49, %c0_50] : memref<2x10x10x128xf32, #tpu.memory_space<vmem>>, vector<2x8x8x128xf32>
    %46 = vector.shape_cast %45 : vector<2x8x8x128xf32> to vector<128x128xf32>
    %47 = arith.truncf %46 : vector<128x128xf32> to vector<128x128xbf16>
    %c4 = arith.constant 4 : index
    %c0_51 = arith.constant 0 : index
    %c0_52 = arith.constant 0 : index
    %48 = vector.load %arg3[%c4, %c0_51, %c0_52] : memref<9x128x128xbf16, #tpu.memory_space<vmem>>, vector<1x128x128xbf16>
    %49 = vector.shape_cast %48 : vector<1x128x128xbf16> to vector<128x128xbf16>
    %cst_53 = arith.constant dense<0.000000e+00> : vector<128x128xf32>
    %50 = tpu.matmul %47, %49, %cst_53 {dimension_numbers = #tpu.dot_dimension_numbers<[1], [0], [0], [1], [0, 0, 1, 1], [], []>} : vector<128x128xbf16>, vector<128x128xbf16>, vector<128x128xf32> -> vector<128x128xf32>
    %51 = arith.addf %44, %50 : vector<128x128xf32>
    %c0_54 = arith.constant 0 : index
    %c1_55 = arith.constant 1 : index
    %c2_56 = arith.constant 2 : index
    %c0_57 = arith.constant 0 : index
    %52 = vector.load %arg20[%c0_54, %c1_55, %c2_56, %c0_57] : memref<2x10x10x128xf32, #tpu.memory_space<vmem>>, vector<2x8x8x128xf32>
    %53 = vector.shape_cast %52 : vector<2x8x8x128xf32> to vector<128x128xf32>
    %54 = arith.truncf %53 : vector<128x128xf32> to vector<128x128xbf16>
    %c5 = arith.constant 5 : index
    %c0_58 = arith.constant 0 : index
    %c0_59 = arith.constant 0 : index
    %55 = vector.load %arg3[%c5, %c0_58, %c0_59] : memref<9x128x128xbf16, #tpu.memory_space<vmem>>, vector<1x128x128xbf16>
    %56 = vector.shape_cast %55 : vector<1x128x128xbf16> to vector<128x128xbf16>
    %cst_60 = arith.constant dense<0.000000e+00> : vector<128x128xf32>
    %57 = tpu.matmul %54, %56, %cst_60 {dimension_numbers = #tpu.dot_dimension_numbers<[1], [0], [0], [1], [0, 0, 1, 1], [], []>} : vector<128x128xbf16>, vector<128x128xbf16>, vector<128x128xf32> -> vector<128x128xf32>
    %58 = arith.addf %51, %57 : vector<128x128xf32>
    %c0_61 = arith.constant 0 : index
    %c2_62 = arith.constant 2 : index
    %c0_63 = arith.constant 0 : index
    %c0_64 = arith.constant 0 : index
    %59 = vector.load %arg20[%c0_61, %c2_62, %c0_63, %c0_64] : memref<2x10x10x128xf32, #tpu.memory_space<vmem>>, vector<2x8x8x128xf32>
    %60 = vector.shape_cast %59 : vector<2x8x8x128xf32> to vector<128x128xf32>
    %61 = arith.truncf %60 : vector<128x128xf32> to vector<128x128xbf16>
    %c6 = arith.constant 6 : index
    %c0_65 = arith.constant 0 : index
    %c0_66 = arith.constant 0 : index
    %62 = vector.load %arg3[%c6, %c0_65, %c0_66] : memref<9x128x128xbf16, #tpu.memory_space<vmem>>, vector<1x128x128xbf16>
    %63 = vector.shape_cast %62 : vector<1x128x128xbf16> to vector<128x128xbf16>
    %cst_67 = arith.constant dense<0.000000e+00> : vector<128x128xf32>
    %64 = tpu.matmul %61, %63, %cst_67 {dimension_numbers = #tpu.dot_dimension_numbers<[1], [0], [0], [1], [0, 0, 1, 1], [], []>} : vector<128x128xbf16>, vector<128x128xbf16>, vector<128x128xf32> -> vector<128x128xf32>
    %65 = arith.addf %58, %64 : vector<128x128xf32>
    %c0_68 = arith.constant 0 : index
    %c2_69 = arith.constant 2 : index
    %c1_70 = arith.constant 1 : index
    %c0_71 = arith.constant 0 : index
    %66 = vector.load %arg20[%c0_68, %c2_69, %c1_70, %c0_71] : memref<2x10x10x128xf32, #tpu.memory_space<vmem>>, vector<2x8x8x128xf32>
    %67 = vector.shape_cast %66 : vector<2x8x8x128xf32> to vector<128x128xf32>
    %68 = arith.truncf %67 : vector<128x128xf32> to vector<128x128xbf16>
    %c7 = arith.constant 7 : index
    %c0_72 = arith.constant 0 : index
    %c0_73 = arith.constant 0 : index
    %69 = vector.load %arg3[%c7, %c0_72, %c0_73] : memref<9x128x128xbf16, #tpu.memory_space<vmem>>, vector<1x128x128xbf16>
    %70 = vector.shape_cast %69 : vector<1x128x128xbf16> to vector<128x128xbf16>
    %cst_74 = arith.constant dense<0.000000e+00> : vector<128x128xf32>
    %71 = tpu.matmul %68, %70, %cst_74 {dimension_numbers = #tpu.dot_dimension_numbers<[1], [0], [0], [1], [0, 0, 1, 1], [], []>} : vector<128x128xbf16>, vector<128x128xbf16>, vector<128x128xf32> -> vector<128x128xf32>
    %72 = arith.addf %65, %71 : vector<128x128xf32>
    %c0_75 = arith.constant 0 : index
    %c2_76 = arith.constant 2 : index
    %c2_77 = arith.constant 2 : index
    %c0_78 = arith.constant 0 : index
    %73 = vector.load %arg20[%c0_75, %c2_76, %c2_77, %c0_78] : memref<2x10x10x128xf32, #tpu.memory_space<vmem>>, vector<2x8x8x128xf32>
    %74 = vector.shape_cast %73 : vector<2x8x8x128xf32> to vector<128x128xf32>
    %75 = arith.truncf %74 : vector<128x128xf32> to vector<128x128xbf16>
    %c8 = arith.constant 8 : index
    %c0_79 = arith.constant 0 : index
    %c0_80 = arith.constant 0 : index
    %76 = vector.load %arg3[%c8, %c0_79, %c0_80] : memref<9x128x128xbf16, #tpu.memory_space<vmem>>, vector<1x128x128xbf16>
    %77 = vector.shape_cast %76 : vector<1x128x128xbf16> to vector<128x128xbf16>
    %cst_81 = arith.constant dense<0.000000e+00> : vector<128x128xf32>
    %78 = tpu.matmul %75, %77, %cst_81 {dimension_numbers = #tpu.dot_dimension_numbers<[1], [0], [0], [1], [0, 0, 1, 1], [], []>} : vector<128x128xbf16>, vector<128x128xbf16>, vector<128x128xf32> -> vector<128x128xf32>
    %79 = arith.addf %72, %78 : vector<128x128xf32>
    %c0_82 = arith.constant 0 : index
    %c0_83 = arith.constant 0 : index
    %80 = vector.load %arg4[%c0_82, %c0_83] : memref<1x128xf32, #tpu.memory_space<vmem>>, vector<1x128xf32>
    %81 = vector.broadcast %80 : vector<1x128xf32> to vector<128x128xf32>
    %82 = arith.addf %79, %81 : vector<128x128xf32>
    %cst_84 = arith.constant 0.000000e+00 : f32
    %83 = vector.broadcast %cst_84 : f32 to vector<128x128xf32>
    %84 = arith.maximumf %82, %83 : vector<128x128xf32>
    %85 = vector.shape_cast %84 : vector<128x128xf32> to vector<2x8x8x128xf32>
    %86 = vector.shape_cast %85 : vector<2x8x8x128xf32> to vector<2x4x2x8x128xf32>
    %cst_85 = arith.constant dense<0xFF800000> : vector<2x4x8x128xf32>
    %87 = vector.multi_reduction <maximumf>, %86, %cst_85 [2] : vector<2x4x2x8x128xf32> to vector<2x4x8x128xf32>
    %88 = vector.shape_cast %87 : vector<2x4x8x128xf32> to vector<2x4x4x2x128xf32>
    %cst_86 = arith.constant dense<0xFF800000> : vector<2x4x4x128xf32>
    %89 = vector.multi_reduction <maximumf>, %88, %cst_86 [3] : vector<2x4x4x2x128xf32> to vector<2x4x4x128xf32>
    %cst_87 = arith.constant 0.000000e+00 : f32
    %90 = vector.broadcast %cst_87 : f32 to vector<2x6x6x128xf32>
    %c0_88 = arith.constant 0 : index
    %c0_89 = arith.constant 0 : index
    %c0_90 = arith.constant 0 : index
    %c0_91 = arith.constant 0 : index
    %91 = vector.load %arg21[%c0_88, %c0_89, %c0_90, %c0_91] : memref<2x6x6x128xf32, #tpu.memory_space<vmem>>, vector<2x6x6x128xf32>
    tpu.vector_store %arg21[%c0_88, %c0_89, %c0_90, %c0_91], %90 {strides = array<i32>} : memref<2x6x6x128xf32, #tpu.memory_space<vmem>>, vector<2x6x6x128xf32>,
    %c0_92 = arith.constant 0 : index
    %c1_93 = arith.constant 1 : index
    %c1_94 = arith.constant 1 : index
    %c0_95 = arith.constant 0 : index
    %92 = vector.load %arg21[%c0_92, %c1_93, %c1_94, %c0_95] : memref<2x6x6x128xf32, #tpu.memory_space<vmem>>, vector<2x4x4x128xf32>
    tpu.vector_store %arg21[%c0_92, %c1_93, %c1_94, %c0_95], %89 {strides = array<i32>} : memref<2x6x6x128xf32, #tpu.memory_space<vmem>>, vector<2x4x4x128xf32>,
    %cst_96 = arith.constant 0.000000e+00 : f32
    %93 = vector.broadcast %cst_96 : f32 to vector<32x128xf32>
    %c0_97 = arith.constant 0 : index
    %c0_98 = arith.constant 0 : index
    %c0_99 = arith.constant 0 : index
    %c0_100 = arith.constant 0 : index
    %94 = vector.load %arg21[%c0_97, %c0_98, %c0_99, %c0_100] : memref<2x6x6x128xf32, #tpu.memory_space<vmem>>, vector<2x4x4x128xf32>
    %95 = vector.shape_cast %94 : vector<2x4x4x128xf32> to vector<32x128xf32>
    %96 = arith.truncf %95 : vector<32x128xf32> to vector<32x128xbf16>
    %c0_101 = arith.constant 0 : index
    %c0_102 = arith.constant 0 : index
    %c0_103 = arith.constant 0 : index
    %97 = vector.load %arg5[%c0_101, %c0_102, %c0_103] : memref<9x128x128xbf16, #tpu.memory_space<vmem>>, vector<1x128x128xbf16>
    %98 = vector.shape_cast %97 : vector<1x128x128xbf16> to vector<128x128xbf16>
    %cst_104 = arith.constant dense<0.000000e+00> : vector<32x128xf32>
    %99 = tpu.matmul %96, %98, %cst_104 {dimension_numbers = #tpu.dot_dimension_numbers<[1], [0], [0], [1], [0, 0, 1, 1], [], []>} : vector<32x128xbf16>, vector<128x128xbf16>, vector<32x128xf32> -> vector<32x128xf32>
    %100 = arith.addf %93, %99 : vector<32x128xf32>
    %c0_105 = arith.constant 0 : index
    %c0_106 = arith.constant 0 : index
    %c1_107 = arith.constant 1 : index
    %c0_108 = arith.constant 0 : index
    %101 = vector.load %arg21[%c0_105, %c0_106, %c1_107, %c0_108] : memref<2x6x6x128xf32, #tpu.memory_space<vmem>>, vector<2x4x4x128xf32>
    %102 = vector.shape_cast %101 : vector<2x4x4x128xf32> to vector<32x128xf32>
    %103 = arith.truncf %102 : vector<32x128xf32> to vector<32x128xbf16>
    %c1_109 = arith.constant 1 : index
    %c0_110 = arith.constant 0 : index
    %c0_111 = arith.constant 0 : index
    %104 = vector.load %arg5[%c1_109, %c0_110, %c0_111] : memref<9x128x128xbf16, #tpu.memory_space<vmem>>, vector<1x128x128xbf16>
    %105 = vector.shape_cast %104 : vector<1x128x128xbf16> to vector<128x128xbf16>
    %cst_112 = arith.constant dense<0.000000e+00> : vector<32x128xf32>
    %106 = tpu.matmul %103, %105, %cst_112 {dimension_numbers = #tpu.dot_dimension_numbers<[1], [0], [0], [1], [0, 0, 1, 1], [], []>} : vector<32x128xbf16>, vector<128x128xbf16>, vector<32x128xf32> -> vector<32x128xf32>
    %107 = arith.addf %100, %106 : vector<32x128xf32>
    %c0_113 = arith.constant 0 : index
    %c0_114 = arith.constant 0 : index
    %c2_115 = arith.constant 2 : index
    %c0_116 = arith.constant 0 : index
    %108 = vector.load %arg21[%c0_113, %c0_114, %c2_115, %c0_116] : memref<2x6x6x128xf32, #tpu.memory_space<vmem>>, vector<2x4x4x128xf32>
    %109 = vector.shape_cast %108 : vector<2x4x4x128xf32> to vector<32x128xf32>
    %110 = arith.truncf %109 : vector<32x128xf32> to vector<32x128xbf16>
    %c2_117 = arith.constant 2 : index
    %c0_118 = arith.constant 0 : index
    %c0_119 = arith.constant 0 : index
    %111 = vector.load %arg5[%c2_117, %c0_118, %c0_119] : memref<9x128x128xbf16, #tpu.memory_space<vmem>>, vector<1x128x128xbf16>
    %112 = vector.shape_cast %111 : vector<1x128x128xbf16> to vector<128x128xbf16>
    %cst_120 = arith.constant dense<0.000000e+00> : vector<32x128xf32>
    %113 = tpu.matmul %110, %112, %cst_120 {dimension_numbers = #tpu.dot_dimension_numbers<[1], [0], [0], [1], [0, 0, 1, 1], [], []>} : vector<32x128xbf16>, vector<128x128xbf16>, vector<32x128xf32> -> vector<32x128xf32>
    %114 = arith.addf %107, %113 : vector<32x128xf32>
    %c0_121 = arith.constant 0 : index
    %c1_122 = arith.constant 1 : index
    %c0_123 = arith.constant 0 : index
    %c0_124 = arith.constant 0 : index
    %115 = vector.load %arg21[%c0_121, %c1_122, %c0_123, %c0_124] : memref<2x6x6x128xf32, #tpu.memory_space<vmem>>, vector<2x4x4x128xf32>
    %116 = vector.shape_cast %115 : vector<2x4x4x128xf32> to vector<32x128xf32>
    %117 = arith.truncf %116 : vector<32x128xf32> to vector<32x128xbf16>
    %c3_125 = arith.constant 3 : index
    %c0_126 = arith.constant 0 : index
    %c0_127 = arith.constant 0 : index
    %118 = vector.load %arg5[%c3_125, %c0_126, %c0_127] : memref<9x128x128xbf16, #tpu.memory_space<vmem>>, vector<1x128x128xbf16>
    %119 = vector.shape_cast %118 : vector<1x128x128xbf16> to vector<128x128xbf16>
    %cst_128 = arith.constant dense<0.000000e+00> : vector<32x128xf32>
    %120 = tpu.matmul %117, %119, %cst_128 {dimension_numbers = #tpu.dot_dimension_numbers<[1], [0], [0], [1], [0, 0, 1, 1], [], []>} : vector<32x128xbf16>, vector<128x128xbf16>, vector<32x128xf32> -> vector<32x128xf32>
    %121 = arith.addf %114, %120 : vector<32x128xf32>
    %c0_129 = arith.constant 0 : index
    %c1_130 = arith.constant 1 : index
    %c1_131 = arith.constant 1 : index
    %c0_132 = arith.constant 0 : index
    %122 = vector.load %arg21[%c0_129, %c1_130, %c1_131, %c0_132] : memref<2x6x6x128xf32, #tpu.memory_space<vmem>>, vector<2x4x4x128xf32>
    %123 = vector.shape_cast %122 : vector<2x4x4x128xf32> to vector<32x128xf32>
    %124 = arith.truncf %123 : vector<32x128xf32> to vector<32x128xbf16>
    %c4_133 = arith.constant 4 : index
    %c0_134 = arith.constant 0 : index
    %c0_135 = arith.constant 0 : index
    %125 = vector.load %arg5[%c4_133, %c0_134, %c0_135] : memref<9x128x128xbf16, #tpu.memory_space<vmem>>, vector<1x128x128xbf16>
    %126 = vector.shape_cast %125 : vector<1x128x128xbf16> to vector<128x128xbf16>
    %cst_136 = arith.constant dense<0.000000e+00> : vector<32x128xf32>
    %127 = tpu.matmul %124, %126, %cst_136 {dimension_numbers = #tpu.dot_dimension_numbers<[1], [0], [0], [1], [0, 0, 1, 1], [], []>} : vector<32x128xbf16>, vector<128x128xbf16>, vector<32x128xf32> -> vector<32x128xf32>
    %128 = arith.addf %121, %127 : vector<32x128xf32>
    %c0_137 = arith.constant 0 : index
    %c1_138 = arith.constant 1 : index
    %c2_139 = arith.constant 2 : index
    %c0_140 = arith.constant 0 : index
    %129 = vector.load %arg21[%c0_137, %c1_138, %c2_139, %c0_140] : memref<2x6x6x128xf32, #tpu.memory_space<vmem>>, vector<2x4x4x128xf32>
    %130 = vector.shape_cast %129 : vector<2x4x4x128xf32> to vector<32x128xf32>
    %131 = arith.truncf %130 : vector<32x128xf32> to vector<32x128xbf16>
    %c5_141 = arith.constant 5 : index
    %c0_142 = arith.constant 0 : index
    %c0_143 = arith.constant 0 : index
    %132 = vector.load %arg5[%c5_141, %c0_142, %c0_143] : memref<9x128x128xbf16, #tpu.memory_space<vmem>>, vector<1x128x128xbf16>
    %133 = vector.shape_cast %132 : vector<1x128x128xbf16> to vector<128x128xbf16>
    %cst_144 = arith.constant dense<0.000000e+00> : vector<32x128xf32>
    %134 = tpu.matmul %131, %133, %cst_144 {dimension_numbers = #tpu.dot_dimension_numbers<[1], [0], [0], [1], [0, 0, 1, 1], [], []>} : vector<32x128xbf16>, vector<128x128xbf16>, vector<32x128xf32> -> vector<32x128xf32>
    %135 = arith.addf %128, %134 : vector<32x128xf32>
    %c0_145 = arith.constant 0 : index
    %c2_146 = arith.constant 2 : index
    %c0_147 = arith.constant 0 : index
    %c0_148 = arith.constant 0 : index
    %136 = vector.load %arg21[%c0_145, %c2_146, %c0_147, %c0_148] : memref<2x6x6x128xf32, #tpu.memory_space<vmem>>, vector<2x4x4x128xf32>
    %137 = vector.shape_cast %136 : vector<2x4x4x128xf32> to vector<32x128xf32>
    %138 = arith.truncf %137 : vector<32x128xf32> to vector<32x128xbf16>
    %c6_149 = arith.constant 6 : index
    %c0_150 = arith.constant 0 : index
    %c0_151 = arith.constant 0 : index
    %139 = vector.load %arg5[%c6_149, %c0_150, %c0_151] : memref<9x128x128xbf16, #tpu.memory_space<vmem>>, vector<1x128x128xbf16>
    %140 = vector.shape_cast %139 : vector<1x128x128xbf16> to vector<128x128xbf16>
    %cst_152 = arith.constant dense<0.000000e+00> : vector<32x128xf32>
    %141 = tpu.matmul %138, %140, %cst_152 {dimension_numbers = #tpu.dot_dimension_numbers<[1], [0], [0], [1], [0, 0, 1, 1], [], []>} : vector<32x128xbf16>, vector<128x128xbf16>, vector<32x128xf32> -> vector<32x128xf32>
    %142 = arith.addf %135, %141 : vector<32x128xf32>
    %c0_153 = arith.constant 0 : index
    %c2_154 = arith.constant 2 : index
    %c1_155 = arith.constant 1 : index
    %c0_156 = arith.constant 0 : index
    %143 = vector.load %arg21[%c0_153, %c2_154, %c1_155, %c0_156] : memref<2x6x6x128xf32, #tpu.memory_space<vmem>>, vector<2x4x4x128xf32>
    %144 = vector.shape_cast %143 : vector<2x4x4x128xf32> to vector<32x128xf32>
    %145 = arith.truncf %144 : vector<32x128xf32> to vector<32x128xbf16>
    %c7_157 = arith.constant 7 : index
    %c0_158 = arith.constant 0 : index
    %c0_159 = arith.constant 0 : index
    %146 = vector.load %arg5[%c7_157, %c0_158, %c0_159] : memref<9x128x128xbf16, #tpu.memory_space<vmem>>, vector<1x128x128xbf16>
    %147 = vector.shape_cast %146 : vector<1x128x128xbf16> to vector<128x128xbf16>
    %cst_160 = arith.constant dense<0.000000e+00> : vector<32x128xf32>
    %148 = tpu.matmul %145, %147, %cst_160 {dimension_numbers = #tpu.dot_dimension_numbers<[1], [0], [0], [1], [0, 0, 1, 1], [], []>} : vector<32x128xbf16>, vector<128x128xbf16>, vector<32x128xf32> -> vector<32x128xf32>
    %149 = arith.addf %142, %148 : vector<32x128xf32>
    %c0_161 = arith.constant 0 : index
    %c2_162 = arith.constant 2 : index
    %c2_163 = arith.constant 2 : index
    %c0_164 = arith.constant 0 : index
    %150 = vector.load %arg21[%c0_161, %c2_162, %c2_163, %c0_164] : memref<2x6x6x128xf32, #tpu.memory_space<vmem>>, vector<2x4x4x128xf32>
    %151 = vector.shape_cast %150 : vector<2x4x4x128xf32> to vector<32x128xf32>
    %152 = arith.truncf %151 : vector<32x128xf32> to vector<32x128xbf16>
    %c8_165 = arith.constant 8 : index
    %c0_166 = arith.constant 0 : index
    %c0_167 = arith.constant 0 : index
    %153 = vector.load %arg5[%c8_165, %c0_166, %c0_167] : memref<9x128x128xbf16, #tpu.memory_space<vmem>>, vector<1x128x128xbf16>
    %154 = vector.shape_cast %153 : vector<1x128x128xbf16> to vector<128x128xbf16>
    %cst_168 = arith.constant dense<0.000000e+00> : vector<32x128xf32>
    %155 = tpu.matmul %152, %154, %cst_168 {dimension_numbers = #tpu.dot_dimension_numbers<[1], [0], [0], [1], [0, 0, 1, 1], [], []>} : vector<32x128xbf16>, vector<128x128xbf16>, vector<32x128xf32> -> vector<32x128xf32>
    %156 = arith.addf %149, %155 : vector<32x128xf32>
    %c0_169 = arith.constant 0 : index
    %c0_170 = arith.constant 0 : index
    %157 = vector.load %arg6[%c0_169, %c0_170] : memref<1x128xf32, #tpu.memory_space<vmem>>, vector<1x128xf32>
    %158 = vector.broadcast %157 : vector<1x128xf32> to vector<32x128xf32>
    %159 = arith.addf %156, %158 : vector<32x128xf32>
    %cst_171 = arith.constant 0.000000e+00 : f32
    %160 = vector.broadcast %cst_171 : f32 to vector<32x128xf32>
    %161 = arith.maximumf %159, %160 : vector<32x128xf32>
    %162 = vector.shape_cast %161 : vector<32x128xf32> to vector<2x4x4x128xf32>
    %163 = vector.shape_cast %162 : vector<2x4x4x128xf32> to vector<2x2x2x4x128xf32>
    %cst_172 = arith.constant dense<0xFF800000> : vector<2x2x4x128xf32>
    %164 = vector.multi_reduction <maximumf>, %163, %cst_172 [2] : vector<2x2x2x4x128xf32> to vector<2x2x4x128xf32>
    %165 = vector.shape_cast %164 : vector<2x2x4x128xf32> to vector<2x2x2x2x128xf32>
    %cst_173 = arith.constant dense<0xFF800000> : vector<2x2x2x128xf32>
    %166 = vector.multi_reduction <maximumf>, %165, %cst_173 [3] : vector<2x2x2x2x128xf32> to vector<2x2x2x128xf32>
    %cst_174 = arith.constant 0.000000e+00 : f32
    %167 = vector.broadcast %cst_174 : f32 to vector<2x4x4x128xf32>
    %c0_175 = arith.constant 0 : index
    %c0_176 = arith.constant 0 : index
    %c0_177 = arith.constant 0 : index
    %c0_178 = arith.constant 0 : index
    %168 = vector.load %arg22[%c0_175, %c0_176, %c0_177, %c0_178] : memref<2x4x4x128xf32, #tpu.memory_space<vmem>>, vector<2x4x4x128xf32>
    tpu.vector_store %arg22[%c0_175, %c0_176, %c0_177, %c0_178], %167 {strides = array<i32>} : memref<2x4x4x128xf32, #tpu.memory_space<vmem>>, vector<2x4x4x128xf32>,
    %c0_179 = arith.constant 0 : index
    %c1_180 = arith.constant 1 : index
    %c1_181 = arith.constant 1 : index
    %c0_182 = arith.constant 0 : index
    %169 = vector.load %arg22[%c0_179, %c1_180, %c1_181, %c0_182] : memref<2x4x4x128xf32, #tpu.memory_space<vmem>>, vector<2x2x2x128xf32>
    tpu.vector_store %arg22[%c0_179, %c1_180, %c1_181, %c0_182], %166 {strides = array<i32>} : memref<2x4x4x128xf32, #tpu.memory_space<vmem>>, vector<2x2x2x128xf32>,
    %cst_183 = arith.constant 0.000000e+00 : f32
    %170 = vector.broadcast %cst_183 : f32 to vector<8x512xf32>
    %c0_184 = arith.constant 0 : index
    %c0_185 = arith.constant 0 : index
    %c0_186 = arith.constant 0 : index
    %c0_187 = arith.constant 0 : index
    %171 = vector.load %arg22[%c0_184, %c0_185, %c0_186, %c0_187] : memref<2x4x4x128xf32, #tpu.memory_space<vmem>>, vector<2x2x2x128xf32>
    %172 = vector.shape_cast %171 : vector<2x2x2x128xf32> to vector<8x128xf32>
    %173 = arith.truncf %172 : vector<8x128xf32> to vector<8x128xbf16>
    %c0_188 = arith.constant 0 : index
    %c0_189 = arith.constant 0 : index
    %c0_190 = arith.constant 0 : index
    %174 = vector.load %arg7[%c0_188, %c0_189, %c0_190] : memref<9x128x512xbf16, #tpu.memory_space<vmem>>, vector<1x128x512xbf16>
    %175 = vector.shape_cast %174 : vector<1x128x512xbf16> to vector<128x512xbf16>
    %cst_191 = arith.constant dense<0.000000e+00> : vector<8x512xf32>
    %176 = tpu.matmul %173, %175, %cst_191 {dimension_numbers = #tpu.dot_dimension_numbers<[1], [0], [0], [1], [0, 0, 1, 1], [], []>} : vector<8x128xbf16>, vector<128x512xbf16>, vector<8x512xf32> -> vector<8x512xf32>
    %177 = arith.addf %170, %176 : vector<8x512xf32>
    %c0_192 = arith.constant 0 : index
    %c0_193 = arith.constant 0 : index
    %c1_194 = arith.constant 1 : index
    %c0_195 = arith.constant 0 : index
    %178 = vector.load %arg22[%c0_192, %c0_193, %c1_194, %c0_195] : memref<2x4x4x128xf32, #tpu.memory_space<vmem>>, vector<2x2x2x128xf32>
    %179 = vector.shape_cast %178 : vector<2x2x2x128xf32> to vector<8x128xf32>
    %180 = arith.truncf %179 : vector<8x128xf32> to vector<8x128xbf16>
    %c1_196 = arith.constant 1 : index
    %c0_197 = arith.constant 0 : index
    %c0_198 = arith.constant 0 : index
    %181 = vector.load %arg7[%c1_196, %c0_197, %c0_198] : memref<9x128x512xbf16, #tpu.memory_space<vmem>>, vector<1x128x512xbf16>
    %182 = vector.shape_cast %181 : vector<1x128x512xbf16> to vector<128x512xbf16>
    %cst_199 = arith.constant dense<0.000000e+00> : vector<8x512xf32>
    %183 = tpu.matmul %180, %182, %cst_199 {dimension_numbers = #tpu.dot_dimension_numbers<[1], [0], [0], [1], [0, 0, 1, 1], [], []>} : vector<8x128xbf16>, vector<128x512xbf16>, vector<8x512xf32> -> vector<8x512xf32>
    %184 = arith.addf %177, %183 : vector<8x512xf32>
    %c0_200 = arith.constant 0 : index
    %c0_201 = arith.constant 0 : index
    %c2_202 = arith.constant 2 : index
    %c0_203 = arith.constant 0 : index
    %185 = vector.load %arg22[%c0_200, %c0_201, %c2_202, %c0_203] : memref<2x4x4x128xf32, #tpu.memory_space<vmem>>, vector<2x2x2x128xf32>
    %186 = vector.shape_cast %185 : vector<2x2x2x128xf32> to vector<8x128xf32>
    %187 = arith.truncf %186 : vector<8x128xf32> to vector<8x128xbf16>
    %c2_204 = arith.constant 2 : index
    %c0_205 = arith.constant 0 : index
    %c0_206 = arith.constant 0 : index
    %188 = vector.load %arg7[%c2_204, %c0_205, %c0_206] : memref<9x128x512xbf16, #tpu.memory_space<vmem>>, vector<1x128x512xbf16>
    %189 = vector.shape_cast %188 : vector<1x128x512xbf16> to vector<128x512xbf16>
    %cst_207 = arith.constant dense<0.000000e+00> : vector<8x512xf32>
    %190 = tpu.matmul %187, %189, %cst_207 {dimension_numbers = #tpu.dot_dimension_numbers<[1], [0], [0], [1], [0, 0, 1, 1], [], []>} : vector<8x128xbf16>, vector<128x512xbf16>, vector<8x512xf32> -> vector<8x512xf32>
    %191 = arith.addf %184, %190 : vector<8x512xf32>
    %c0_208 = arith.constant 0 : index
    %c1_209 = arith.constant 1 : index
    %c0_210 = arith.constant 0 : index
    %c0_211 = arith.constant 0 : index
    %192 = vector.load %arg22[%c0_208, %c1_209, %c0_210, %c0_211] : memref<2x4x4x128xf32, #tpu.memory_space<vmem>>, vector<2x2x2x128xf32>
    %193 = vector.shape_cast %192 : vector<2x2x2x128xf32> to vector<8x128xf32>
    %194 = arith.truncf %193 : vector<8x128xf32> to vector<8x128xbf16>
    %c3_212 = arith.constant 3 : index
    %c0_213 = arith.constant 0 : index
    %c0_214 = arith.constant 0 : index
    %195 = vector.load %arg7[%c3_212, %c0_213, %c0_214] : memref<9x128x512xbf16, #tpu.memory_space<vmem>>, vector<1x128x512xbf16>
    %196 = vector.shape_cast %195 : vector<1x128x512xbf16> to vector<128x512xbf16>
    %cst_215 = arith.constant dense<0.000000e+00> : vector<8x512xf32>
    %197 = tpu.matmul %194, %196, %cst_215 {dimension_numbers = #tpu.dot_dimension_numbers<[1], [0], [0], [1], [0, 0, 1, 1], [], []>} : vector<8x128xbf16>, vector<128x512xbf16>, vector<8x512xf32> -> vector<8x512xf32>
    %198 = arith.addf %191, %197 : vector<8x512xf32>
    %c0_216 = arith.constant 0 : index
    %c1_217 = arith.constant 1 : index
    %c1_218 = arith.constant 1 : index
    %c0_219 = arith.constant 0 : index
    %199 = vector.load %arg22[%c0_216, %c1_217, %c1_218, %c0_219] : memref<2x4x4x128xf32, #tpu.memory_space<vmem>>, vector<2x2x2x128xf32>
    %200 = vector.shape_cast %199 : vector<2x2x2x128xf32> to vector<8x128xf32>
    %201 = arith.truncf %200 : vector<8x128xf32> to vector<8x128xbf16>
    %c4_220 = arith.constant 4 : index
    %c0_221 = arith.constant 0 : index
    %c0_222 = arith.constant 0 : index
    %202 = vector.load %arg7[%c4_220, %c0_221, %c0_222] : memref<9x128x512xbf16, #tpu.memory_space<vmem>>, vector<1x128x512xbf16>
    %203 = vector.shape_cast %202 : vector<1x128x512xbf16> to vector<128x512xbf16>
    %cst_223 = arith.constant dense<0.000000e+00> : vector<8x512xf32>
    %204 = tpu.matmul %201, %203, %cst_223 {dimension_numbers = #tpu.dot_dimension_numbers<[1], [0], [0], [1], [0, 0, 1, 1], [], []>} : vector<8x128xbf16>, vector<128x512xbf16>, vector<8x512xf32> -> vector<8x512xf32>
    %205 = arith.addf %198, %204 : vector<8x512xf32>
    %c0_224 = arith.constant 0 : index
    %c1_225 = arith.constant 1 : index
    %c2_226 = arith.constant 2 : index
    %c0_227 = arith.constant 0 : index
    %206 = vector.load %arg22[%c0_224, %c1_225, %c2_226, %c0_227] : memref<2x4x4x128xf32, #tpu.memory_space<vmem>>, vector<2x2x2x128xf32>
    %207 = vector.shape_cast %206 : vector<2x2x2x128xf32> to vector<8x128xf32>
    %208 = arith.truncf %207 : vector<8x128xf32> to vector<8x128xbf16>
    %c5_228 = arith.constant 5 : index
    %c0_229 = arith.constant 0 : index
    %c0_230 = arith.constant 0 : index
    %209 = vector.load %arg7[%c5_228, %c0_229, %c0_230] : memref<9x128x512xbf16, #tpu.memory_space<vmem>>, vector<1x128x512xbf16>
    %210 = vector.shape_cast %209 : vector<1x128x512xbf16> to vector<128x512xbf16>
    %cst_231 = arith.constant dense<0.000000e+00> : vector<8x512xf32>
    %211 = tpu.matmul %208, %210, %cst_231 {dimension_numbers = #tpu.dot_dimension_numbers<[1], [0], [0], [1], [0, 0, 1, 1], [], []>} : vector<8x128xbf16>, vector<128x512xbf16>, vector<8x512xf32> -> vector<8x512xf32>
    %212 = arith.addf %205, %211 : vector<8x512xf32>
    %c0_232 = arith.constant 0 : index
    %c2_233 = arith.constant 2 : index
    %c0_234 = arith.constant 0 : index
    %c0_235 = arith.constant 0 : index
    %213 = vector.load %arg22[%c0_232, %c2_233, %c0_234, %c0_235] : memref<2x4x4x128xf32, #tpu.memory_space<vmem>>, vector<2x2x2x128xf32>
    %214 = vector.shape_cast %213 : vector<2x2x2x128xf32> to vector<8x128xf32>
    %215 = arith.truncf %214 : vector<8x128xf32> to vector<8x128xbf16>
    %c6_236 = arith.constant 6 : index
    %c0_237 = arith.constant 0 : index
    %c0_238 = arith.constant 0 : index
    %216 = vector.load %arg7[%c6_236, %c0_237, %c0_238] : memref<9x128x512xbf16, #tpu.memory_space<vmem>>, vector<1x128x512xbf16>
    %217 = vector.shape_cast %216 : vector<1x128x512xbf16> to vector<128x512xbf16>
    %cst_239 = arith.constant dense<0.000000e+00> : vector<8x512xf32>
    %218 = tpu.matmul %215, %217, %cst_239 {dimension_numbers = #tpu.dot_dimension_numbers<[1], [0], [0], [1], [0, 0, 1, 1], [], []>} : vector<8x128xbf16>, vector<128x512xbf16>, vector<8x512xf32> -> vector<8x512xf32>
    %219 = arith.addf %212, %218 : vector<8x512xf32>
    %c0_240 = arith.constant 0 : index
    %c2_241 = arith.constant 2 : index
    %c1_242 = arith.constant 1 : index
    %c0_243 = arith.constant 0 : index
    %220 = vector.load %arg22[%c0_240, %c2_241, %c1_242, %c0_243] : memref<2x4x4x128xf32, #tpu.memory_space<vmem>>, vector<2x2x2x128xf32>
    %221 = vector.shape_cast %220 : vector<2x2x2x128xf32> to vector<8x128xf32>
    %222 = arith.truncf %221 : vector<8x128xf32> to vector<8x128xbf16>
    %c7_244 = arith.constant 7 : index
    %c0_245 = arith.constant 0 : index
    %c0_246 = arith.constant 0 : index
    %223 = vector.load %arg7[%c7_244, %c0_245, %c0_246] : memref<9x128x512xbf16, #tpu.memory_space<vmem>>, vector<1x128x512xbf16>
    %224 = vector.shape_cast %223 : vector<1x128x512xbf16> to vector<128x512xbf16>
    %cst_247 = arith.constant dense<0.000000e+00> : vector<8x512xf32>
    %225 = tpu.matmul %222, %224, %cst_247 {dimension_numbers = #tpu.dot_dimension_numbers<[1], [0], [0], [1], [0, 0, 1, 1], [], []>} : vector<8x128xbf16>, vector<128x512xbf16>, vector<8x512xf32> -> vector<8x512xf32>
    %226 = arith.addf %219, %225 : vector<8x512xf32>
    %c0_248 = arith.constant 0 : index
    %c2_249 = arith.constant 2 : index
    %c2_250 = arith.constant 2 : index
    %c0_251 = arith.constant 0 : index
    %227 = vector.load %arg22[%c0_248, %c2_249, %c2_250, %c0_251] : memref<2x4x4x128xf32, #tpu.memory_space<vmem>>, vector<2x2x2x128xf32>
    %228 = vector.shape_cast %227 : vector<2x2x2x128xf32> to vector<8x128xf32>
    %229 = arith.truncf %228 : vector<8x128xf32> to vector<8x128xbf16>
    %c8_252 = arith.constant 8 : index
    %c0_253 = arith.constant 0 : index
    %c0_254 = arith.constant 0 : index
    %230 = vector.load %arg7[%c8_252, %c0_253, %c0_254] : memref<9x128x512xbf16, #tpu.memory_space<vmem>>, vector<1x128x512xbf16>
    %231 = vector.shape_cast %230 : vector<1x128x512xbf16> to vector<128x512xbf16>
    %cst_255 = arith.constant dense<0.000000e+00> : vector<8x512xf32>
    %232 = tpu.matmul %229, %231, %cst_255 {dimension_numbers = #tpu.dot_dimension_numbers<[1], [0], [0], [1], [0, 0, 1, 1], [], []>} : vector<8x128xbf16>, vector<128x512xbf16>, vector<8x512xf32> -> vector<8x512xf32>
    %233 = arith.addf %226, %232 : vector<8x512xf32>
    %c0_256 = arith.constant 0 : index
    %c0_257 = arith.constant 0 : index
    %234 = vector.load %arg8[%c0_256, %c0_257] : memref<1x512xf32, #tpu.memory_space<vmem>>, vector<1x512xf32>
    %235 = vector.broadcast %234 : vector<1x512xf32> to vector<8x512xf32>
    %236 = arith.addf %233, %235 : vector<8x512xf32>
    %cst_258 = arith.constant 0.000000e+00 : f32
    %237 = vector.broadcast %cst_258 : f32 to vector<8x512xf32>
    %238 = arith.maximumf %236, %237 : vector<8x512xf32>
    %239 = vector.shape_cast %238 : vector<8x512xf32> to vector<2x4x512xf32>
    %cst_259 = arith.constant dense<0.000000e+00> : vector<2x512xf32>
    %240 = vector.multi_reduction <add>, %239, %cst_259 [1] : vector<2x4x512xf32> to vector<2x512xf32>
    %cst_260 = arith.constant 4.000000e+00 : f32
    %241 = vector.broadcast %cst_260 : f32 to vector<2x512xf32>
    %242 = arith.divf %240, %241 : vector<2x512xf32>
    %243 = arith.truncf %242 : vector<2x512xf32> to vector<2x512xbf16>
    %c0_261 = arith.constant 0 : index
    %c0_262 = arith.constant 0 : index
    %244 = vector.load %arg9[%c0_261, %c0_262] : memref<512x512xbf16, #tpu.memory_space<vmem>>, vector<512x512xbf16>
    %cst_263 = arith.constant dense<0.000000e+00> : vector<2x512xf32>
    %245 = tpu.matmul %243, %244, %cst_263 {dimension_numbers = #tpu.dot_dimension_numbers<[1], [0], [0], [1], [0, 0, 1, 1], [], []>} : vector<2x512xbf16>, vector<512x512xbf16>, vector<2x512xf32> -> vector<2x512xf32>
    %c0_264 = arith.constant 0 : index
    %c0_265 = arith.constant 0 : index
    %246 = vector.load %arg10[%c0_264, %c0_265] : memref<1x512xf32, #tpu.memory_space<vmem>>, vector<1x512xf32>
    %247 = vector.broadcast %246 : vector<1x512xf32> to vector<2x512xf32>
    %248 = arith.addf %245, %247 : vector<2x512xf32>
    %c0_266 = arith.constant 0 : index
    %c0_267 = arith.constant 0 : index
    %249 = vector.load %arg11[%c0_266, %c0_267] : memref<1x512xf32, #tpu.memory_space<vmem>>, vector<1x512xf32>
    %c0_268 = arith.constant 0 : index
    %c0_269 = arith.constant 0 : index
    %250 = vector.load %arg12[%c0_268, %c0_269] : memref<1x512xf32, #tpu.memory_space<vmem>>, vector<1x512xf32>
    %cst_270 = arith.constant dense<0.000000e+00> : vector<2xf32>
    %251 = vector.multi_reduction <add>, %248, %cst_270 [1] : vector<2x512xf32> to vector<2xf32>
    %252 = vector.shape_cast %251 : vector<2xf32> to vector<2x1xf32>
    %cst_271 = arith.constant 5.120000e+02 : f32
    %253 = vector.broadcast %cst_271 : f32 to vector<2x1xf32>
    %254 = arith.divf %252, %253 : vector<2x1xf32>
    %255 = vector.broadcast %254 : vector<2x1xf32> to vector<2x512xf32>
    %256 = arith.subf %248, %255 : vector<2x512xf32>
    %257 = arith.mulf %256, %256 : vector<2x512xf32>
    %cst_272 = arith.constant dense<0.000000e+00> : vector<2xf32>
    %258 = vector.multi_reduction <add>, %257, %cst_272 [1] : vector<2x512xf32> to vector<2xf32>
    %259 = vector.shape_cast %258 : vector<2xf32> to vector<2x1xf32>
    %cst_273 = arith.constant 5.120000e+02 : f32
    %260 = vector.broadcast %cst_273 : f32 to vector<2x1xf32>
    %261 = arith.divf %259, %260 : vector<2x1xf32>
    %262 = vector.broadcast %254 : vector<2x1xf32> to vector<2x512xf32>
    %263 = arith.subf %248, %262 : vector<2x512xf32>
    %cst_274 = arith.constant 9.99999974E-6 : f32
    %264 = vector.broadcast %cst_274 : f32 to vector<2x1xf32>
    %265 = arith.addf %261, %264 : vector<2x1xf32>
    %266 = math.rsqrt %265 : vector<2x1xf32>
    %267 = vector.broadcast %266 : vector<2x1xf32> to vector<2x512xf32>
    %268 = arith.mulf %263, %267 : vector<2x512xf32>
    %269 = vector.broadcast %249 : vector<1x512xf32> to vector<2x512xf32>
    %270 = arith.mulf %268, %269 : vector<2x512xf32>
    %271 = vector.broadcast %250 : vector<1x512xf32> to vector<2x512xf32>
    %272 = arith.addf %270, %271 : vector<2x512xf32>
    %cst_275 = arith.constant 0.000000e+00 : f32
    %273 = vector.broadcast %cst_275 : f32 to vector<2x512xf32>
    %274 = arith.maximumf %272, %273 : vector<2x512xf32>
    %275 = arith.truncf %274 : vector<2x512xf32> to vector<2x512xbf16>
    %c0_276 = arith.constant 0 : index
    %c0_277 = arith.constant 0 : index
    %276 = vector.load %arg13[%c0_276, %c0_277] : memref<512x512xbf16, #tpu.memory_space<vmem>>, vector<512x512xbf16>
    %cst_278 = arith.constant dense<0.000000e+00> : vector<2x512xf32>
    %277 = tpu.matmul %275, %276, %cst_278 {dimension_numbers = #tpu.dot_dimension_numbers<[1], [0], [0], [1], [0, 0, 1, 1], [], []>} : vector<2x512xbf16>, vector<512x512xbf16>, vector<2x512xf32> -> vector<2x512xf32>
    %c0_279 = arith.constant 0 : index
    %c0_280 = arith.constant 0 : index
    %278 = vector.load %arg14[%c0_279, %c0_280] : memref<1x512xf32, #tpu.memory_space<vmem>>, vector<1x512xf32>
    %279 = vector.broadcast %278 : vector<1x512xf32> to vector<2x512xf32>
    %280 = arith.addf %277, %279 : vector<2x512xf32>
    %c0_281 = arith.constant 0 : index
    %c0_282 = arith.constant 0 : index
    %281 = vector.load %arg15[%c0_281, %c0_282] : memref<1x512xf32, #tpu.memory_space<vmem>>, vector<1x512xf32>
    %c0_283 = arith.constant 0 : index
    %c0_284 = arith.constant 0 : index
    %282 = vector.load %arg16[%c0_283, %c0_284] : memref<1x512xf32, #tpu.memory_space<vmem>>, vector<1x512xf32>
    %cst_285 = arith.constant dense<0.000000e+00> : vector<2xf32>
    %283 = vector.multi_reduction <add>, %280, %cst_285 [1] : vector<2x512xf32> to vector<2xf32>
    %284 = vector.shape_cast %283 : vector<2xf32> to vector<2x1xf32>
    %cst_286 = arith.constant 5.120000e+02 : f32
    %285 = vector.broadcast %cst_286 : f32 to vector<2x1xf32>
    %286 = arith.divf %284, %285 : vector<2x1xf32>
    %287 = vector.broadcast %286 : vector<2x1xf32> to vector<2x512xf32>
    %288 = arith.subf %280, %287 : vector<2x512xf32>
    %289 = arith.mulf %288, %288 : vector<2x512xf32>
    %cst_287 = arith.constant dense<0.000000e+00> : vector<2xf32>
    %290 = vector.multi_reduction <add>, %289, %cst_287 [1] : vector<2x512xf32> to vector<2xf32>
    %291 = vector.shape_cast %290 : vector<2xf32> to vector<2x1xf32>
    %cst_288 = arith.constant 5.120000e+02 : f32
    %292 = vector.broadcast %cst_288 : f32 to vector<2x1xf32>
    %293 = arith.divf %291, %292 : vector<2x1xf32>
    %294 = vector.broadcast %286 : vector<2x1xf32> to vector<2x512xf32>
    %295 = arith.subf %280, %294 : vector<2x512xf32>
    %cst_289 = arith.constant 9.99999974E-6 : f32
    %296 = vector.broadcast %cst_289 : f32 to vector<2x1xf32>
    %297 = arith.addf %293, %296 : vector<2x1xf32>
    %298 = math.rsqrt %297 : vector<2x1xf32>
    %299 = vector.broadcast %298 : vector<2x1xf32> to vector<2x512xf32>
    %300 = arith.mulf %295, %299 : vector<2x512xf32>
    %301 = vector.broadcast %281 : vector<1x512xf32> to vector<2x512xf32>
    %302 = arith.mulf %300, %301 : vector<2x512xf32>
    %303 = vector.broadcast %282 : vector<1x512xf32> to vector<2x512xf32>
    %304 = arith.addf %302, %303 : vector<2x512xf32>
    %cst_290 = arith.constant 0.000000e+00 : f32
    %305 = vector.broadcast %cst_290 : f32 to vector<2x512xf32>
    %306 = arith.maximumf %304, %305 : vector<2x512xf32>
    %307 = arith.truncf %306 : vector<2x512xf32> to vector<2x512xbf16>
    %c0_291 = arith.constant 0 : index
    %c0_292 = arith.constant 0 : index
    %308 = vector.load %arg17[%c0_291, %c0_292] : memref<512x128xbf16, #tpu.memory_space<vmem>>, vector<512x128xbf16>
    %cst_293 = arith.constant dense<0.000000e+00> : vector<2x128xf32>
    %309 = tpu.matmul %307, %308, %cst_293 {dimension_numbers = #tpu.dot_dimension_numbers<[1], [0], [0], [1], [0, 0, 1, 1], [], []>} : vector<2x512xbf16>, vector<512x128xbf16>, vector<2x128xf32> -> vector<2x128xf32>
    %c0_294 = arith.constant 0 : index
    %c0_295 = arith.constant 0 : index
    %310 = vector.load %arg18[%c0_294, %c0_295] : memref<1x128xf32, #tpu.memory_space<vmem>>, vector<1x128xf32>
    %311 = vector.broadcast %310 : vector<1x128xf32> to vector<2x128xf32>
    %312 = arith.addf %309, %311 : vector<2x128xf32>
    %c0_296 = arith.constant 0 : index
    %c0_297 = arith.constant 0 : index
    %313 = vector.load %arg19[%c0_296, %c0_297] : memref<2x128xf32, #tpu.memory_space<vmem>>, vector<2x128xf32>
    tpu.vector_store %arg19[%c0_296, %c0_297], %312 {strides = array<i32>} : memref<2x128xf32, #tpu.memory_space<vmem>>, vector<2x128xf32>,
    return
  }
}

</mosaic_0001>

<llo_original>
// kernel: vgg_forward.1
$region0: #{vgg_forward.1}
  #allocation0 [shape = 'u32[]', space=smem, size = 0x4, offset = 0x4, fixed_abs, tag = 'smem constant byte address 0x4 - core index']
  #allocation1 [shape = 'u32[72,128]{1,0:T(1,128)}', space=vmem, size = 0x9000, scoped, tag = 'internal scratch']
  #allocation2 [shape = 'f32[2,10,10,128]{3,2,1,0:T(8,128)}', space=vmem, size = 0x28000, scoped, tag = 'scratch operand']
  #allocation3 [shape = 'f32[2,6,6,128]{3,2,1,0:T(8,128)}', space=vmem, size = 0xc000, scoped, tag = 'scratch operand']
  #allocation4 [shape = 'f32[2,4,4,128]{3,2,1,0:T(4,128)}', space=vmem, size = 0x4000, scoped, tag = 'scratch operand']
  %s0 = inlined_call_operand.vmem [shape: bf16[512,128], index: 0, kind: input, shape index: {}]
  %s1 = inlined_call_operand.hbm [shape: bf16[128,128], index: 1, kind: input, shape index: {}]
  %s2 = inlined_call_operand.hbm [shape: f32[1,128], index: 2, kind: input, shape index: {}]
  %s3 = inlined_call_operand.hbm [shape: bf16[9,128,128], index: 3, kind: input, shape index: {}]
  %s4 = inlined_call_operand.hbm [shape: f32[1,128], index: 4, kind: input, shape index: {}]
  %s5 = inlined_call_operand.hbm [shape: bf16[9,128,128], index: 5, kind: input, shape index: {}]
  %s6 = inlined_call_operand.hbm [shape: f32[1,128], index: 6, kind: input, shape index: {}]
  %s7 = inlined_call_operand.hbm [shape: bf16[9,128,512], index: 7, kind: input, shape index: {}]
  %s8 = inlined_call_operand.hbm [shape: f32[1,512], index: 8, kind: input, shape index: {}]
  %s9 = inlined_call_operand.hbm [shape: bf16[512,512], index: 9, kind: input, shape index: {}]
  %s10 = inlined_call_operand.hbm [shape: f32[1,512], index: 10, kind: input, shape index: {}]
  %s11 = inlined_call_operand.hbm [shape: f32[1,512], index: 11, kind: input, shape index: {}]
  %s12 = inlined_call_operand.hbm [shape: f32[1,512], index: 12, kind: input, shape index: {}]
  %s13 = inlined_call_operand.hbm [shape: bf16[512,512], index: 13, kind: input, shape index: {}]
  %s14 = inlined_call_operand.hbm [shape: f32[1,512], index: 14, kind: input, shape index: {}]
  %s15 = inlined_call_operand.hbm [shape: f32[1,512], index: 15, kind: input, shape index: {}]
  %s16 = inlined_call_operand.hbm [shape: f32[1,512], index: 16, kind: input, shape index: {}]
  %s17 = inlined_call_operand.hbm [shape: bf16[512,128], index: 17, kind: input, shape index: {}]
  %s18 = inlined_call_operand.hbm [shape: f32[1,128], index: 18, kind: input, shape index: {}]
  %s19 = inlined_call_operand.hbm [shape: f32[2,128], index: 19, kind: output, shape index: {}]
  %s20 = sld [smem:[#allocation0]]
  $region158: #{vgg_forward.1} parent=0
    _
  %s22 = ssub.s32 1, %s20
  %s23 = scalar_select 0, %s22, %s20
  $region1: #{vgg_forward.1} parent=0
    #allocation5 [shape = 'u8[32768]{0}', space=vmem, size = 0x8000, scoped, tag = 'input window, operand 1, single buffered']
    #allocation6 [shape = 's32[1]{0}', space=sflag, size = 0x4, scoped, tag = 'scoped memory for vgg_forward.1']
    #allocation7 [shape = 's32[1]{0}', space=sflag, size = 0x4, scoped, tag = 'scoped memory for vgg_forward.1']
    #allocation8 [shape = 'u8[512]{0}', space=vmem, size = 0x400, scoped, tag = 'input window, operand 2, single buffered']
    #allocation9 [shape = 's32[1]{0}', space=sflag, size = 0x4, scoped, tag = 'scoped memory for vgg_forward.1']
    #allocation10 [shape = 'u8[294912]{0}', space=vmem, size = 0x48000, scoped, tag = 'input window, operand 3, single buffered']
    #allocation11 [shape = 'u8[512]{0}', space=vmem, size = 0x400, scoped, tag = 'input window, operand 4, single buffered']
    #allocation12 [shape = 's32[1]{0}', space=sflag, size = 0x4, scoped, tag = 'scoped memory for vgg_forward.1']
    #allocation13 [shape = 'u8[294912]{0}', space=vmem, size = 0x48000, scoped, tag = 'input window, operand 5, single buffered']
    #allocation14 [shape = 'u8[512]{0}', space=vmem, size = 0x400, scoped, tag = 'input window, operand 6, single buffered']
    #allocation15 [shape = 's32[1]{0}', space=sflag, size = 0x4, scoped, tag = 'scoped memory for vgg_forward.1']
    #allocation16 [shape = 'u8[1179648]{0}', space=vmem, size = 0x120000, scoped, tag = 'input window, operand 7, single buffered']
    #allocation17 [shape = 'u8[2048]{0}', space=vmem, size = 0x800, scoped, tag = 'input window, operand 8, single buffered']
    #allocation18 [shape = 's32[1]{0}', space=sflag, size = 0x4, scoped, tag = 'scoped memory for vgg_forward.1']
    #allocation19 [shape = 'u8[524288]{0}', space=vmem, size = 0x80000, scoped, tag = 'input window, operand 9, single buffered']
    #allocation20 [shape = 'u8[2048]{0}', space=vmem, size = 0x800, scoped, tag = 'input window, operand 10, single buffered']
    #allocation21 [shape = 's32[1]{0}', space=sflag, size = 0x4, scoped, tag = 'scoped memory for vgg_forward.1']
    #allocation22 [shape = 'u8[2048]{0}', space=vmem, size = 0x800, scoped, tag = 'input window, operand 11, single buffered']
    #allocation23 [shape = 'u8[2048]{0}', space=vmem, size = 0x800, scoped, tag = 'input window, operand 12, single buffered']
    #allocation24 [shape = 's32[1]{0}', space=sflag, size = 0x4, scoped, tag = 'scoped memory for vgg_forward.1']
    #allocation25 [shape = 'u8[524288]{0}', space=vmem, size = 0x80000, scoped, tag = 'input window, operand 13, single buffered']
    #allocation26 [shape = 'u8[2048]{0}', space=vmem, size = 0x800, scoped, tag = 'input window, operand 14, single buffered']
    #allocation27 [shape = 's32[1]{0}', space=sflag, size = 0x4, scoped, tag = 'scoped memory for vgg_forward.1']
    #allocation28 [shape = 'u8[2048]{0}', space=vmem, size = 0x800, scoped, tag = 'input window, operand 15, single buffered']
    #allocation29 [shape = 'u8[2048]{0}', space=vmem, size = 0x800, scoped, tag = 'input window, operand 16, single buffered']
    #allocation30 [shape = 's32[1]{0}', space=sflag, size = 0x4, scoped, tag = 'scoped memory for vgg_forward.1']
    #allocation31 [shape = 'u8[131072]{0}', space=vmem, size = 0x20000, scoped, tag = 'input window, operand 17, single buffered']
    #allocation32 [shape = 'u8[512]{0}', space=vmem, size = 0x400, scoped, tag = 'input window, operand 18, single buffered']
    #allocation33 [shape = 's32[1]{0}', space=sflag, size = 0x4, scoped, tag = 'scoped memory for vgg_forward.1']
    #allocation34 [shape = 'u8[1024]{0}', space=vmem, size = 0x400, scoped, tag = 'output window, operand 0, single buffered']
    %24 = vsyncpa [#allocation6], 0
    %25 = vsyncpa [#allocation9], 0
    %26 = vsyncpa [#allocation12], 0
    %27 = vsyncpa [#allocation15], 0
    %28 = vsyncpa [#allocation18], 0
    %29 = vsyncpa [#allocation21], 0
    %30 = vsyncpa [#allocation24], 0
    %31 = vsyncpa [#allocation27], 0
    %32 = vsyncpa [#allocation30], 0
    %33 = vsyncpa [#allocation33], 0
    %34 = vsyncpa [#allocation7], 0
    // Predicated region
    $region2: #{vgg_forward.1} parent=1 // pred_check
      _
    $region3: #{vgg_forward.1} parent=1 // pred_check_branch
      %36 = sbr.rel (0) target = $region5
    $region4: #{vgg_forward.1} parent=1 // pred_region
      _
    $region5: #{vgg_forward.1} parent=1 // pred_fallthru
      _
    // Predicated region
    $region6: #{vgg_forward.1} parent=1 // pred_check
      _
    $region7: #{vgg_forward.1} parent=1 // pred_check_branch
      %38 = sbr.rel (0) target = $region9
    $region8: #{vgg_forward.1} parent=1 // pred_region
      %40 = vsyncadd [#allocation6], 0
      %s41 = sshll.u32 %s1, 4
      %s42 = int_to_ptr.hbm [resolvable:$true] %s41
      %s43 = sshll.u32 [#allocation5], 4
      %s44 = int_to_ptr.vmem [resolvable:$true] %s43
      %49 = dma.hbm_to_vmem [thread:$0]  %s42, 1024, %s44, [#allocation6], 64, 64, 4
    $region9: #{vgg_forward.1} parent=1 // pred_fallthru
      _
    // Predicated region
    $region10: #{vgg_forward.1} parent=1 // pred_check
      _
    $region11: #{vgg_forward.1} parent=1 // pred_check_branch
      %51 = sbr.rel (0) target = $region13
    $region12: #{vgg_forward.1} parent=1 // pred_region
      %53 = vsyncadd [#allocation9], 0
      %s55 = sshll.u32 %s2, 4
      %s56 = int_to_ptr.hbm [resolvable:$true] %s55
      %s57 = sshll.u32 [#allocation8], 4
      %s58 = int_to_ptr.vmem [resolvable:$true] %s57
      %60 = dma.hbm_to_vmem [thread:$0]  %s56, 16, %s58, [#allocation9]
    $region13: #{vgg_forward.1} parent=1 // pred_fallthru
      _
    // Predicated region
    $region14: #{vgg_forward.1} parent=1 // pred_check
      _
    $region15: #{vgg_forward.1} parent=1 // pred_check_branch
      %62 = sbr.rel (0) target = $region17
    $region16: #{vgg_forward.1} parent=1 // pred_region
      %64 = vsyncadd [#allocation9], 0
      %s65 = sshll.u32 %s3, 4
      %s66 = int_to_ptr.hbm [resolvable:$true] %s65
      %s67 = sshll.u32 [#allocation10], 4
      %s68 = int_to_ptr.vmem [resolvable:$true] %s67
      %73 = dma.hbm_to_vmem [thread:$0]  %s66, 9216, %s68, [#allocation9], 64, 64, 4
    $region17: #{vgg_forward.1} parent=1 // pred_fallthru
      _
    // Predicated region
    $region18: #{vgg_forward.1} parent=1 // pred_check
      _
    $region19: #{vgg_forward.1} parent=1 // pred_check_branch
      %75 = sbr.rel (0) target = $region21
    $region20: #{vgg_forward.1} parent=1 // pred_region
      %77 = vsyncadd [#allocation12], 0
      %s79 = sshll.u32 %s4, 4
      %s80 = int_to_ptr.hbm [resolvable:$true] %s79
      %s81 = sshll.u32 [#allocation11], 4
      %s82 = int_to_ptr.vmem [resolvable:$true] %s81
      %84 = dma.hbm_to_vmem [thread:$0]  %s80, 16, %s82, [#allocation12]
    $region21: #{vgg_forward.1} parent=1 // pred_fallthru
      _
    // Predicated region
    $region22: #{vgg_forward.1} parent=1 // pred_check
      _
    $region23: #{vgg_forward.1} parent=1 // pred_check_branch
      %86 = sbr.rel (0) target = $region25
    $region24: #{vgg_forward.1} parent=1 // pred_region
      %88 = vsyncadd [#allocation12], 0
      %s89 = sshll.u32 %s5, 4
      %s90 = int_to_ptr.hbm [resolvable:$true] %s89
      %s91 = sshll.u32 [#allocation13], 4
      %s92 = int_to_ptr.vmem [resolvable:$true] %s91
      %97 = dma.hbm_to_vmem [thread:$0]  %s90, 9216, %s92, [#allocation12], 64, 64, 4
    $region25: #{vgg_forward.1} parent=1 // pred_fallthru
      _
    // Predicated region
    $region26: #{vgg_forward.1} parent=1 // pred_check
      _
    $region27: #{vgg_forward.1} parent=1 // pred_check_branch
      %99 = sbr.rel (0) target = $region29
    $region28: #{vgg_forward.1} parent=1 // pred_region
      %101 = vsyncadd [#allocation15], 0
      %s103 = sshll.u32 %s6, 4
      %s104 = int_to_ptr.hbm [resolvable:$true] %s103
      %s105 = sshll.u32 [#allocation14], 4
      %s106 = int_to_ptr.vmem [resolvable:$true] %s105
      %108 = dma.hbm_to_vmem [thread:$0]  %s104, 16, %s106, [#allocation15]
    $region29: #{vgg_forward.1} parent=1 // pred_fallthru
      _
    // Predicated region
    $region30: #{vgg_forward.1} parent=1 // pred_check
      _
    $region31: #{vgg_forward.1} parent=1 // pred_check_branch
      %110 = sbr.rel (0) target = $region33
    $region32: #{vgg_forward.1} parent=1 // pred_region
      %112 = vsyncadd [#allocation15], 0
      %s113 = sshll.u32 %s7, 4
      %s114 = int_to_ptr.hbm [resolvable:$true] %s113
      %s115 = sshll.u32 [#allocation16], 4
      %s116 = int_to_ptr.vmem [resolvable:$true] %s115
      %121 = dma.hbm_to_vmem [thread:$0]  %s114, 36864, %s116, [#allocation15], 256, 256, 16
    $region33: #{vgg_forward.1} parent=1 // pred_fallthru
      _
    // Predicated region
    $region34: #{vgg_forward.1} parent=1 // pred_check
      _
    $region35: #{vgg_forward.1} parent=1 // pred_check_branch
      %123 = sbr.rel (0) target = $region37
    $region36: #{vgg_forward.1} parent=1 // pred_region
      %125 = vsyncadd [#allocation18], 0
      %s127 = sshll.u32 %s8, 4
      %s128 = int_to_ptr.hbm [resolvable:$true] %s127
      %s129 = sshll.u32 [#allocation17], 4
      %s130 = int_to_ptr.vmem [resolvable:$true] %s129
      %132 = dma.hbm_to_vmem [thread:$0]  %s128, 64, %s130, [#allocation18]
    $region37: #{vgg_forward.1} parent=1 // pred_fallthru
      _
    // Predicated region
    $region38: #{vgg_forward.1} parent=1 // pred_check
      _
    $region39: #{vgg_forward.1} parent=1 // pred_check_branch
      %134 = sbr.rel (0) target = $region41
    $region40: #{vgg_forward.1} parent=1 // pred_region
      %136 = vsyncadd [#allocation18], 0
      %s137 = sshll.u32 %s9, 4
      %s138 = int_to_ptr.hbm [resolvable:$true] %s137
      %s139 = sshll.u32 [#allocation19], 4
      %s140 = int_to_ptr.vmem [resolvable:$true] %s139
      %145 = dma.hbm_to_vmem [thread:$0]  %s138, 16384, %s140, [#allocation18], 256, 256, 16
    $region41: #{vgg_forward.1} parent=1 // pred_fallthru
      _
    // Predicated region
    $region42: #{vgg_forward.1} parent=1 // pred_check
      _
    $region43: #{vgg_forward.1} parent=1 // pred_check_branch
      %147 = sbr.rel (0) target = $region45
    $region44: #{vgg_forward.1} parent=1 // pred_region
      %149 = vsyncadd [#allocation21], 0
      %s151 = sshll.u32 %s10, 4
      %s152 = int_to_ptr.hbm [resolvable:$true] %s151
      %s153 = sshll.u32 [#allocation20], 4
      %s154 = int_to_ptr.vmem [resolvable:$true] %s153
      %156 = dma.hbm_to_vmem [thread:$0]  %s152, 64, %s154, [#allocation21]
    $region45: #{vgg_forward.1} parent=1 // pred_fallthru
      _
    // Predicated region
    $region46: #{vgg_forward.1} parent=1 // pred_check
      _
    $region47: #{vgg_forward.1} parent=1 // pred_check_branch
      %158 = sbr.rel (0) target = $region49
    $region48: #{vgg_forward.1} parent=1 // pred_region
      %160 = vsyncadd [#allocation21], 0
      %s162 = sshll.u32 %s11, 4
      %s163 = int_to_ptr.hbm [resolvable:$true] %s162
      %s164 = sshll.u32 [#allocation22], 4
      %s165 = int_to_ptr.vmem [resolvable:$true] %s164
      %167 = dma.hbm_to_vmem [thread:$0]  %s163, 64, %s165, [#allocation21]
    $region49: #{vgg_forward.1} parent=1 // pred_fallthru
      _
    // Predicated region
    $region50: #{vgg_forward.1} parent=1 // pred_check
      _
    $region51: #{vgg_forward.1} parent=1 // pred_check_branch
      %169 = sbr.rel (0) target = $region53
    $region52: #{vgg_forward.1} parent=1 // pred_region
      %171 = vsyncadd [#allocation24], 0
      %s173 = sshll.u32 %s12, 4
      %s174 = int_to_ptr.hbm [resolvable:$true] %s173
      %s175 = sshll.u32 [#allocation23], 4
      %s176 = int_to_ptr.vmem [resolvable:$true] %s175
      %178 = dma.hbm_to_vmem [thread:$0]  %s174, 64, %s176, [#allocation24]
    $region53: #{vgg_forward.1} parent=1 // pred_fallthru
      _
    // Predicated region
    $region54: #{vgg_forward.1} parent=1 // pred_check
      _
    $region55: #{vgg_forward.1} parent=1 // pred_check_branch
      %180 = sbr.rel (0) target = $region57
    $region56: #{vgg_forward.1} parent=1 // pred_region
      %182 = vsyncadd [#allocation24], 0
      %s183 = sshll.u32 %s13, 4
      %s184 = int_to_ptr.hbm [resolvable:$true] %s183
      %s185 = sshll.u32 [#allocation25], 4
      %s186 = int_to_ptr.vmem [resolvable:$true] %s185
      %191 = dma.hbm_to_vmem [thread:$0]  %s184, 16384, %s186, [#allocation24], 256, 256, 16
    $region57: #{vgg_forward.1} parent=1 // pred_fallthru
      _
    // Predicated region
    $region58: #{vgg_forward.1} parent=1 // pred_check
      _
    $region59: #{vgg_forward.1} parent=1 // pred_check_branch
      %193 = sbr.rel (0) target = $region61
    $region60: #{vgg_forward.1} parent=1 // pred_region
      %195 = vsyncadd [#allocation27], 0
      %s197 = sshll.u32 %s14, 4
      %s198 = int_to_ptr.hbm [resolvable:$true] %s197
      %s199 = sshll.u32 [#allocation26], 4
      %s200 = int_to_ptr.vmem [resolvable:$true] %s199
      %202 = dma.hbm_to_vmem [thread:$0]  %s198, 64, %s200, [#allocation27]
    $region61: #{vgg_forward.1} parent=1 // pred_fallthru
      _
    // Predicated region
    $region62: #{vgg_forward.1} parent=1 // pred_check
      _
    $region63: #{vgg_forward.1} parent=1 // pred_check_branch
      %204 = sbr.rel (0) target = $region65
    $region64: #{vgg_forward.1} parent=1 // pred_region
      %206 = vsyncadd [#allocation27], 0
      %s208 = sshll.u32 %s15, 4
      %s209 = int_to_ptr.hbm [resolvable:$true] %s208
      %s210 = sshll.u32 [#allocation28], 4
      %s211 = int_to_ptr.vmem [resolvable:$true] %s210
      %213 = dma.hbm_to_vmem [thread:$0]  %s209, 64, %s211, [#allocation27]
    $region65: #{vgg_forward.1} parent=1 // pred_fallthru
      _
    // Predicated region
    $region66: #{vgg_forward.1} parent=1 // pred_check
      _
    $region67: #{vgg_forward.1} parent=1 // pred_check_branch
      %215 = sbr.rel (0) target = $region69
    $region68: #{vgg_forward.1} parent=1 // pred_region
      %217 = vsyncadd [#allocation30], 0
      %s219 = sshll.u32 %s16, 4
      %s220 = int_to_ptr.hbm [resolvable:$true] %s219
      %s221 = sshll.u32 [#allocation29], 4
      %s222 = int_to_ptr.vmem [resolvable:$true] %s221
      %224 = dma.hbm_to_vmem [thread:$0]  %s220, 64, %s222, [#allocation30]
    $region69: #{vgg_forward.1} parent=1 // pred_fallthru
      _
    // Predicated region
    $region70: #{vgg_forward.1} parent=1 // pred_check
      _
    $region71: #{vgg_forward.1} parent=1 // pred_check_branch
      %226 = sbr.rel (0) target = $region73
    $region72: #{vgg_forward.1} parent=1 // pred_region
      %228 = vsyncadd [#allocation30], 0
      %s229 = sshll.u32 %s17, 4
      %s230 = int_to_ptr.hbm [resolvable:$true] %s229
      %s231 = sshll.u32 [#allocation31], 4
      %s232 = int_to_ptr.vmem [resolvable:$true] %s231
      %237 = dma.hbm_to_vmem [thread:$0]  %s230, 4096, %s232, [#allocation30], 64, 64, 4
    $region73: #{vgg_forward.1} parent=1 // pred_fallthru
      _
    // Predicated region
    $region74: #{vgg_forward.1} parent=1 // pred_check
      _
    $region75: #{vgg_forward.1} parent=1 // pred_check_branch
      %239 = sbr.rel (0) target = $region77
    $region76: #{vgg_forward.1} parent=1 // pred_region
      %241 = vsyncadd [#allocation33], 0
      %s243 = sshll.u32 %s18, 4
      %s244 = int_to_ptr.hbm [resolvable:$true] %s243
      %s245 = sshll.u32 [#allocation32], 4
      %s246 = int_to_ptr.vmem [resolvable:$true] %s245
      %248 = dma.hbm_to_vmem [thread:$0]  %s244, 16, %s246, [#allocation33]
    $region77: #{vgg_forward.1} parent=1 // pred_fallthru
      _
    // Predicated region
    $region78: #{vgg_forward.1} parent=1 // pred_check
      _
    $region79: #{vgg_forward.1} parent=1 // pred_check_branch
      %250 = sbr.rel (0) target = $region81
    $region80: #{vgg_forward.1} parent=1 // pred_region
      %252 = dma.done [#allocation6], 1024
    $region81: #{vgg_forward.1} parent=1 // pred_fallthru
      _
    // Predicated region
    $region82: #{vgg_forward.1} parent=1 // pred_check
      _
    $region83: #{vgg_forward.1} parent=1 // pred_check_branch
      %254 = sbr.rel (0) target = $region85
    $region84: #{vgg_forward.1} parent=1 // pred_region
      %256 = dma.done [#allocation9], 16
    $region85: #{vgg_forward.1} parent=1 // pred_fallthru
      _
    // Predicated region
    $region86: #{vgg_forward.1} parent=1 // pred_check
      _
    $region87: #{vgg_forward.1} parent=1 // pred_check_branch
      %258 = sbr.rel (0) target = $region89
    $region88: #{vgg_forward.1} parent=1 // pred_region
      %260 = dma.done [#allocation9], 9216
    $region89: #{vgg_forward.1} parent=1 // pred_fallthru
      _
    // Predicated region
    $region90: #{vgg_forward.1} parent=1 // pred_check
      _
    $region91: #{vgg_forward.1} parent=1 // pred_check_branch
      %262 = sbr.rel (0) target = $region93
    $region92: #{vgg_forward.1} parent=1 // pred_region
      %264 = dma.done [#allocation12], 16
    $region93: #{vgg_forward.1} parent=1 // pred_fallthru
      _
    // Predicated region
    $region94: #{vgg_forward.1} parent=1 // pred_check
      _
    $region95: #{vgg_forward.1} parent=1 // pred_check_branch
      %266 = sbr.rel (0) target = $region97
    $region96: #{vgg_forward.1} parent=1 // pred_region
      %268 = dma.done [#allocation12], 9216
    $region97: #{vgg_forward.1} parent=1 // pred_fallthru
      _
    // Predicated region
    $region98: #{vgg_forward.1} parent=1 // pred_check
      _
    $region99: #{vgg_forward.1} parent=1 // pred_check_branch
      %270 = sbr.rel (0) target = $region101
    $region100: #{vgg_forward.1} parent=1 // pred_region
      %272 = dma.done [#allocation15], 16
    $region101: #{vgg_forward.1} parent=1 // pred_fallthru
      _
    // Predicated region
    $region102: #{vgg_forward.1} parent=1 // pred_check
      _
    $region103: #{vgg_forward.1} parent=1 // pred_check_branch
      %274 = sbr.rel (0) target = $region105
    $region104: #{vgg_forward.1} parent=1 // pred_region
      %276 = dma.done [#allocation15], 36864
    $region105: #{vgg_forward.1} parent=1 // pred_fallthru
      _
    // Predicated region
    $region106: #{vgg_forward.1} parent=1 // pred_check
      _
    $region107: #{vgg_forward.1} parent=1 // pred_check_branch
      %278 = sbr.rel (0) target = $region109
    $region108: #{vgg_forward.1} parent=1 // pred_region
      %280 = dma.done [#allocation18], 64
    $region109: #{vgg_forward.1} parent=1 // pred_fallthru
      _
    // Predicated region
    $region110: #{vgg_forward.1} parent=1 // pred_check
      _
    $region111: #{vgg_forward.1} parent=1 // pred_check_branch
      %282 = sbr.rel (0) target = $region113
    $region112: #{vgg_forward.1} parent=1 // pred_region
      %284 = dma.done [#allocation18], 16384
    $region113: #{vgg_forward.1} parent=1 // pred_fallthru
      _
    // Predicated region
    $region114: #{vgg_forward.1} parent=1 // pred_check
      _
    $region115: #{vgg_forward.1} parent=1 // pred_check_branch
      %286 = sbr.rel (0) target = $region117
    $region116: #{vgg_forward.1} parent=1 // pred_region
      %288 = dma.done [#allocation21], 64
    $region117: #{vgg_forward.1} parent=1 // pred_fallthru
      _
    // Predicated region
    $region118: #{vgg_forward.1} parent=1 // pred_check
      _
    $region119: #{vgg_forward.1} parent=1 // pred_check_branch
      %290 = sbr.rel (0) target = $region121
    $region120: #{vgg_forward.1} parent=1 // pred_region
      %292 = dma.done [#allocation21], 64
    $region121: #{vgg_forward.1} parent=1 // pred_fallthru
      _
    // Predicated region
    $region122: #{vgg_forward.1} parent=1 // pred_check
      _
    $region123: #{vgg_forward.1} parent=1 // pred_check_branch
      %294 = sbr.rel (0) target = $region125
    $region124: #{vgg_forward.1} parent=1 // pred_region
      %296 = dma.done [#allocation24], 64
    $region125: #{vgg_forward.1} parent=1 // pred_fallthru
      _
    // Predicated region
    $region126: #{vgg_forward.1} parent=1 // pred_check
      _
    $region127: #{vgg_forward.1} parent=1 // pred_check_branch
      %298 = sbr.rel (0) target = $region129
    $region128: #{vgg_forward.1} parent=1 // pred_region
      %300 = dma.done [#allocation24], 16384
    $region129: #{vgg_forward.1} parent=1 // pred_fallthru
      _
    // Predicated region
    $region130: #{vgg_forward.1} parent=1 // pred_check
      _
    $region131: #{vgg_forward.1} parent=1 // pred_check_branch
      %302 = sbr.rel (0) target = $region133
    $region132: #{vgg_forward.1} parent=1 // pred_region
      %304 = dma.done [#allocation27], 64
    $region133: #{vgg_forward.1} parent=1 // pred_fallthru
      _
    // Predicated region
    $region134: #{vgg_forward.1} parent=1 // pred_check
      _
    $region135: #{vgg_forward.1} parent=1 // pred_check_branch
      %306 = sbr.rel (0) target = $region137
    $region136: #{vgg_forward.1} parent=1 // pred_region
      %308 = dma.done [#allocation27], 64
    $region137: #{vgg_forward.1} parent=1 // pred_fallthru
      _
    // Predicated region
    $region138: #{vgg_forward.1} parent=1 // pred_check
      _
    $region139: #{vgg_forward.1} parent=1 // pred_check_branch
      %310 = sbr.rel (0) target = $region141
    $region140: #{vgg_forward.1} parent=1 // pred_region
      %312 = dma.done [#allocation30], 64
    $region141: #{vgg_forward.1} parent=1 // pred_fallthru
      _
    // Predicated region
    $region142: #{vgg_forward.1} parent=1 // pred_check
      _
    $region143: #{vgg_forward.1} parent=1 // pred_check_branch
      %314 = sbr.rel (0) target = $region145
    $region144: #{vgg_forward.1} parent=1 // pred_region
      %316 = dma.done [#allocation30], 4096
    $region145: #{vgg_forward.1} parent=1 // pred_fallthru
      _
    // Predicated region
    $region146: #{vgg_forward.1} parent=1 // pred_check
      _
    $region147: #{vgg_forward.1} parent=1 // pred_check_branch
      %318 = sbr.rel (0) target = $region149
    $region148: #{vgg_forward.1} parent=1 // pred_region
      %320 = dma.done [#allocation33], 16
    $region149: #{vgg_forward.1} parent=1 // pred_fallthru
      _
    %v321 = vld [vmem:[%s0] sm:$0xf]
    %v322 = vld [vmem:[%s0 + $0x4] sm:$0xf]
    %v323 = vld [vmem:[%s0 + $0x8] sm:$0xf]
    %v324 = vld [vmem:[%s0 + $0xc] sm:$0xf]
    %v325 = vld [vmem:[%s0 + $0x10] sm:$0xf]
    %v326 = vld [vmem:[%s0 + $0x14] sm:$0xf]
    %v327 = vld [vmem:[%s0 + $0x18] sm:$0xf]
    %v328 = vld [vmem:[%s0 + $0x1c] sm:$0xf]
    %v329 = vld [vmem:[%s0 + $0x20] sm:$0xf]
    %v330 = vld [vmem:[%s0 + $0x24] sm:$0xf]
    %v331 = vld [vmem:[%s0 + $0x28] sm:$0xf]
    %v332 = vld [vmem:[%s0 + $0x2c] sm:$0xf]
    %v333 = vld [vmem:[%s0 + $0x30] sm:$0xf]
    %v334 = vld [vmem:[%s0 + $0x34] sm:$0xf]
    %v335 = vld [vmem:[%s0 + $0x38] sm:$0xf]
    %v336 = vld [vmem:[%s0 + $0x3c] sm:$0xf]
    %v337 = vld [vmem:[%s0 + $0x40] sm:$0xf]
    %v338 = vld [vmem:[%s0 + $0x44] sm:$0xf]
    %v339 = vld [vmem:[%s0 + $0x48] sm:$0xf]
    %v340 = vld [vmem:[%s0 + $0x4c] sm:$0xf]
    %v341 = vld [vmem:[%s0 + $0x50] sm:$0xf]
    %v342 = vld [vmem:[%s0 + $0x54] sm:$0xf]
    %v343 = vld [vmem:[%s0 + $0x58] sm:$0xf]
    %v344 = vld [vmem:[%s0 + $0x5c] sm:$0xf]
    %v345 = vld [vmem:[%s0 + $0x60] sm:$0xf]
    %v346 = vld [vmem:[%s0 + $0x64] sm:$0xf]
    %v347 = vld [vmem:[%s0 + $0x68] sm:$0xf]
    %v348 = vld [vmem:[%s0 + $0x6c] sm:$0xf]
    %v349 = vld [vmem:[%s0 + $0x70] sm:$0xf]
    %v350 = vld [vmem:[%s0 + $0x74] sm:$0xf]
    %v351 = vld [vmem:[%s0 + $0x78] sm:$0xf]
    %v352 = vld [vmem:[%s0 + $0x7c] sm:$0xf]
    %v353 = vld [vmem:[%s0 + $0x80] sm:$0xf]
    %v354 = vld [vmem:[%s0 + $0x84] sm:$0xf]
    %v355 = vld [vmem:[%s0 + $0x88] sm:$0xf]
    %v356 = vld [vmem:[%s0 + $0x8c] sm:$0xf]
    %v357 = vld [vmem:[%s0 + $0x90] sm:$0xf]
    %v358 = vld [vmem:[%s0 + $0x94] sm:$0xf]
    %v359 = vld [vmem:[%s0 + $0x98] sm:$0xf]
    %v360 = vld [vmem:[%s0 + $0x9c] sm:$0xf]
    %v361 = vld [vmem:[%s0 + $0xa0] sm:$0xf]
    %v362 = vld [vmem:[%s0 + $0xa4] sm:$0xf]
    %v363 = vld [vmem:[%s0 + $0xa8] sm:$0xf]
    %v364 = vld [vmem:[%s0 + $0xac] sm:$0xf]
    %v365 = vld [vmem:[%s0 + $0xb0] sm:$0xf]
    %v366 = vld [vmem:[%s0 + $0xb4] sm:$0xf]
    %v367 = vld [vmem:[%s0 + $0xb8] sm:$0xf]
    %v368 = vld [vmem:[%s0 + $0xbc] sm:$0xf]
    %v369 = vld [vmem:[%s0 + $0xc0] sm:$0xf]
    %v370 = vld [vmem:[%s0 + $0xc4] sm:$0xf]
    %v371 = vld [vmem:[%s0 + $0xc8] sm:$0xf]
    %v372 = vld [vmem:[%s0 + $0xcc] sm:$0xf]
    %v373 = vld [vmem:[%s0 + $0xd0] sm:$0xf]
    %v374 = vld [vmem:[%s0 + $0xd4] sm:$0xf]
    %v375 = vld [vmem:[%s0 + $0xd8] sm:$0xf]
    %v376 = vld [vmem:[%s0 + $0xdc] sm:$0xf]
    %v377 = vld [vmem:[%s0 + $0xe0] sm:$0xf]
    %v378 = vld [vmem:[%s0 + $0xe4] sm:$0xf]
    %v379 = vld [vmem:[%s0 + $0xe8] sm:$0xf]
    %v380 = vld [vmem:[%s0 + $0xec] sm:$0xf]
    %v381 = vld [vmem:[%s0 + $0xf0] sm:$0xf]
    %v382 = vld [vmem:[%s0 + $0xf4] sm:$0xf]
    %v383 = vld [vmem:[%s0 + $0xf8] sm:$0xf]
    %v384 = vld [vmem:[%s0 + $0xfc] sm:$0xf]
    %v385 = vld [vmem:[#allocation5] sm:$0xf]
    %v386 = vld [vmem:[#allocation5 + $0x4] sm:$0xf]
    %v387 = vld [vmem:[#allocation5 + $0x8] sm:$0xf]
    %v388 = vld [vmem:[#allocation5 + $0xc] sm:$0xf]
    %v389 = vld [vmem:[#allocation5 + $0x10] sm:$0xf]
    %v390 = vld [vmem:[#allocation5 + $0x14] sm:$0xf]
    %v391 = vld [vmem:[#allocation5 + $0x18] sm:$0xf]
    %v392 = vld [vmem:[#allocation5 + $0x1c] sm:$0xf]
    %v393 = vld [vmem:[#allocation5 + $0x20] sm:$0xf]
    %v394 = vld [vmem:[#allocation5 + $0x24] sm:$0xf]
    %v395 = vld [vmem:[#allocation5 + $0x28] sm:$0xf]
    %v396 = vld [vmem:[#allocation5 + $0x2c] sm:$0xf]
    %v397 = vld [vmem:[#allocation5 + $0x30] sm:$0xf]
    %v398 = vld [vmem:[#allocation5 + $0x34] sm:$0xf]
    %v399 = vld [vmem:[#allocation5 + $0x38] sm:$0xf]
    %v400 = vld [vmem:[#allocation5 + $0x3c] sm:$0xf]
    %v401 = vld [vmem:[#allocation8] sm:$0x1]
    %v403 = vperm.slane %v401, 0
    %v469 = vunpack.c.l.b16 %v321
    %v470 = vunpack.c.l.b16 %v322
    %v471 = vunpack.c.l.b16 %v323
    %v472 = vunpack.c.l.b16 %v324
    %v473 = vunpack.c.l.b16 %v325
    %v474 = vunpack.c.l.b16 %v326
    %v475 = vunpack.c.l.b16 %v327
    %v476 = vunpack.c.l.b16 %v328
    %v477 = vunpack.c.l.b16 %v329
    %v478 = vunpack.c.l.b16 %v330
    %v479 = vunpack.c.l.b16 %v331
    %v480 = vunpack.c.l.b16 %v332
    %v481 = vunpack.c.l.b16 %v333
    %v482 = vunpack.c.l.b16 %v334
    %v483 = vunpack.c.l.b16 %v335
    %v484 = vunpack.c.l.b16 %v336
    %v485 = vunpack.c.l.b16 %v337
    %v486 = vunpack.c.l.b16 %v338
    %v487 = vunpack.c.l.b16 %v339
    %v488 = vunpack.c.l.b16 %v340
    %v489 = vunpack.c.l.b16 %v341
    %v490 = vunpack.c.l.b16 %v342
    %v491 = vunpack.c.l.b16 %v343
    %v492 = vunpack.c.l.b16 %v344
    %v493 = vunpack.c.l.b16 %v345
    %v494 = vunpack.c.l.b16 %v346
    %v495 = vunpack.c.l.b16 %v347
    %v496 = vunpack.c.l.b16 %v348
    %v497 = vunpack.c.l.b16 %v349
    %v498 = vunpack.c.l.b16 %v350
    %v499 = vunpack.c.l.b16 %v351
    %v500 = vunpack.c.l.b16 %v352
    %v501 = vunpack.c.l.b16 %v353
    %v502 = vunpack.c.l.b16 %v354
    %v503 = vunpack.c.l.b16 %v355
    %v504 = vunpack.c.l.b16 %v356
    %v505 = vunpack.c.l.b16 %v357
    %v506 = vunpack.c.l.b16 %v358
    %v507 = vunpack.c.l.b16 %v359
    %v508 = vunpack.c.l.b16 %v360
    %v509 = vunpack.c.l.b16 %v361
    %v510 = vunpack.c.l.b16 %v362
    %v511 = vunpack.c.l.b16 %v363
    %v512 = vunpack.c.l.b16 %v364
    %v513 = vunpack.c.l.b16 %v365
    %v514 = vunpack.c.l.b16 %v366
    %v515 = vunpack.c.l.b16 %v367
    %v516 = vunpack.c.l.b16 %v368
    %v517 = vunpack.c.l.b16 %v369
    %v518 = vunpack.c.l.b16 %v370
    %v519 = vunpack.c.l.b16 %v371
    %v520 = vunpack.c.l.b16 %v372
    %v521 = vunpack.c.l.b16 %v373
    %v522 = vunpack.c.l.b16 %v374
    %v523 = vunpack.c.l.b16 %v375
    %v524 = vunpack.c.l.b16 %v376
    %v525 = vunpack.c.l.b16 %v377
    %v526 = vunpack.c.l.b16 %v378
    %v527 = vunpack.c.l.b16 %v379
    %v528 = vunpack.c.l.b16 %v380
    %v529 = vunpack.c.l.b16 %v381
    %v530 = vunpack.c.l.b16 %v382
    %v531 = vunpack.c.l.b16 %v383
    %v532 = vunpack.c.l.b16 %v384
    %v533 = vpack.c.b16 %v470, %v469
    %v534 = vpack.c.b16 %v472, %v471
    %v535 = vpack.c.b16 %v474, %v473
    %v536 = vpack.c.b16 %v476, %v475
    %v537 = vpack.c.b16 %v478, %v477
    %v538 = vpack.c.b16 %v480, %v479
    %v539 = vpack.c.b16 %v482, %v481
    %v540 = vpack.c.b16 %v484, %v483
    %v541 = vpack.c.b16 %v486, %v485
    %v542 = vpack.c.b16 %v488, %v487
    %v543 = vpack.c.b16 %v490, %v489
    %v544 = vpack.c.b16 %v492, %v491
    %v545 = vpack.c.b16 %v494, %v493
    %v546 = vpack.c.b16 %v496, %v495
    %v547 = vpack.c.b16 %v498, %v497
    %v548 = vpack.c.b16 %v500, %v499
    %v549 = vpack.c.b16 %v502, %v501
    %v550 = vpack.c.b16 %v504, %v503
    %v551 = vpack.c.b16 %v506, %v505
    %v552 = vpack.c.b16 %v508, %v507
    %v553 = vpack.c.b16 %v510, %v509
    %v554 = vpack.c.b16 %v512, %v511
    %v555 = vpack.c.b16 %v514, %v513
    %v556 = vpack.c.b16 %v516, %v515
    %v557 = vpack.c.b16 %v518, %v517
    %v558 = vpack.c.b16 %v520, %v519
    %v559 = vpack.c.b16 %v522, %v521
    %v560 = vpack.c.b16 %v524, %v523
    %v561 = vpack.c.b16 %v526, %v525
    %v562 = vpack.c.b16 %v528, %v527
    %v563 = vpack.c.b16 %v530, %v529
    %v564 = vpack.c.b16 %v532, %v531
    %v613 = vunpack.c.l.b16 %v385
    %v614 = vunpack.c.l.b16 %v386
    %v615 = vunpack.c.l.b16 %v387
    %v616 = vunpack.c.l.b16 %v388
    %v617 = vunpack.c.l.b16 %v389
    %v618 = vunpack.c.l.b16 %v390
    %v619 = vunpack.c.l.b16 %v391
    %v620 = vunpack.c.l.b16 %v392
    %v621 = vunpack.c.l.b16 %v393
    %v622 = vunpack.c.l.b16 %v394
    %v623 = vunpack.c.l.b16 %v395
    %v624 = vunpack.c.l.b16 %v396
    %v625 = vunpack.c.l.b16 %v397
    %v626 = vunpack.c.l.b16 %v398
    %v627 = vunpack.c.l.b16 %v399
    %v628 = vunpack.c.l.b16 %v400
    %v629 = vpack.c.b16 %v614, %v613
    %v630 = vpack.c.b16 %v616, %v615
    %v631 = vpack.c.b16 %v618, %v617
    %v632 = vpack.c.b16 %v620, %v619
    %v633 = vpack.c.b16 %v622, %v621
    %v634 = vpack.c.b16 %v624, %v623
    %v635 = vpack.c.b16 %v626, %v625
    %v636 = vpack.c.b16 %v628, %v627
    %645 = vmatpush.bf16.msra.mxu0 %v636
    %646 = vmatpush.bf16.msra.mxu0 %v635
    %647 = vmatpush.bf16.msra.mxu0 %v634
    %648 = vmatpush.bf16.msra.mxu0 %v633
    %649 = vmatpush.bf16.msra.mxu0 %v632
    %650 = vmatpush.bf16.msra.mxu0 %v631
    %651 = vmatpush.bf16.msra.mxu0 %v630
    %652 = vmatpush.bf16.msra.mxu0 %v629
    %653 = vmatmul.bf16.gmra.mxu0 %v533
    %v654 = vpop.f32.mrf.mxu0
    %v655 = vadd.f32 %v403, %v654
    %v656 = vpop.f32.mrf.mxu0
    %v657 = vadd.f32 %v403, %v656
    %658 = vmatmul.bf16.gmra.mxu0 %v534
    %v659 = vpop.f32.mrf.mxu0
    %v660 = vadd.f32 %v403, %v659
    %v661 = vpop.f32.mrf.mxu0
    %v662 = vadd.f32 %v403, %v661
    %663 = vmatmul.bf16.gmra.mxu0 %v535
    %v664 = vpop.f32.mrf.mxu0
    %v665 = vadd.f32 %v403, %v664
    %v666 = vpop.f32.mrf.mxu0
    %v667 = vadd.f32 %v403, %v666
    %668 = vmatmul.bf16.gmra.mxu0 %v536
    %v669 = vpop.f32.mrf.mxu0
    %v670 = vadd.f32 %v403, %v669
    %v671 = vpop.f32.mrf.mxu0
    %v672 = vadd.f32 %v403, %v671
    %673 = vmatmul.bf16.gmra.mxu0 %v537
    %v674 = vpop.f32.mrf.mxu0
    %v675 = vadd.f32 %v403, %v674
    %v676 = vpop.f32.mrf.mxu0
    %v677 = vadd.f32 %v403, %v676
    %678 = vmatmul.bf16.gmra.mxu0 %v538
    %v679 = vpop.f32.mrf.mxu0
    %v680 = vadd.f32 %v403, %v679
    %v681 = vpop.f32.mrf.mxu0
    %v682 = vadd.f32 %v403, %v681
    %683 = vmatmul.bf16.gmra.mxu0 %v539
    %v684 = vpop.f32.mrf.mxu0
    %v685 = vadd.f32 %v403, %v684
    %v686 = vpop.f32.mrf.mxu0
    %v687 = vadd.f32 %v403, %v686
    %688 = vmatmul.bf16.gmra.mxu0 %v540
    %v689 = vpop.f32.mrf.mxu0
    %v690 = vadd.f32 %v403, %v689
    %v691 = vpop.f32.mrf.mxu0
    %v692 = vadd.f32 %v403, %v691
    %693 = vmatmul.bf16.gmra.mxu0 %v541
    %v694 = vpop.f32.mrf.mxu0
    %v695 = vadd.f32 %v403, %v694
    %v696 = vpop.f32.mrf.mxu0
    %v697 = vadd.f32 %v403, %v696
    %698 = vmatmul.bf16.gmra.mxu0 %v542
    %v699 = vpop.f32.mrf.mxu0
    %v700 = vadd.f32 %v403, %v699
    %v701 = vpop.f32.mrf.mxu0
    %v702 = vadd.f32 %v403, %v701
    %703 = vmatmul.bf16.gmra.mxu0 %v543
    %v704 = vpop.f32.mrf.mxu0
    %v705 = vadd.f32 %v403, %v704
    %v706 = vpop.f32.mrf.mxu0
    %v707 = vadd.f32 %v403, %v706
    %708 = vmatmul.bf16.gmra.mxu0 %v544
    %v709 = vpop.f32.mrf.mxu0
    %v710 = vadd.f32 %v403, %v709
    %v711 = vpop.f32.mrf.mxu0
    %v712 = vadd.f32 %v403, %v711
    %713 = vmatmul.bf16.gmra.mxu0 %v545
    %v714 = vpop.f32.mrf.mxu0
    %v715 = vadd.f32 %v403, %v714
    %v716 = vpop.f32.mrf.mxu0
    %v717 = vadd.f32 %v403, %v716
    %718 = vmatmul.bf16.gmra.mxu0 %v546
    %v719 = vpop.f32.mrf.mxu0
    %v720 = vadd.f32 %v403, %v719
    %v721 = vpop.f32.mrf.mxu0
    %v722 = vadd.f32 %v403, %v721
    %723 = vmatmul.bf16.gmra.mxu0 %v547
    %v724 = vpop.f32.mrf.mxu0
    %v725 = vadd.f32 %v403, %v724
    %v726 = vpop.f32.mrf.mxu0
    %v727 = vadd.f32 %v403, %v726
    %728 = vmatmul.bf16.gmra.mxu0 %v548
    %v729 = vpop.f32.mrf.mxu0
    %v730 = vadd.f32 %v403, %v729
    %v731 = vpop.f32.mrf.mxu0
    %v732 = vadd.f32 %v403, %v731
    %733 = vmatmul.bf16.gmra.mxu0 %v549
    %v734 = vpop.f32.mrf.mxu0
    %v735 = vadd.f32 %v403, %v734
    %v736 = vpop.f32.mrf.mxu0
    %v737 = vadd.f32 %v403, %v736
    %738 = vmatmul.bf16.gmra.mxu0 %v550
    %v739 = vpop.f32.mrf.mxu0
    %v740 = vadd.f32 %v403, %v739
    %v741 = vpop.f32.mrf.mxu0
    %v742 = vadd.f32 %v403, %v741
    %743 = vmatmul.bf16.gmra.mxu0 %v551
    %v744 = vpop.f32.mrf.mxu0
    %v745 = vadd.f32 %v403, %v744
    %v746 = vpop.f32.mrf.mxu0
    %v747 = vadd.f32 %v403, %v746
    %748 = vmatmul.bf16.gmra.mxu0 %v552
    %v749 = vpop.f32.mrf.mxu0
    %v750 = vadd.f32 %v403, %v749
    %v751 = vpop.f32.mrf.mxu0
    %v752 = vadd.f32 %v403, %v751
    %753 = vmatmul.bf16.gmra.mxu0 %v553
    %v754 = vpop.f32.mrf.mxu0
    %v755 = vadd.f32 %v403, %v754
    %v756 = vpop.f32.mrf.mxu0
    %v757 = vadd.f32 %v403, %v756
    %758 = vmatmul.bf16.gmra.mxu0 %v554
    %v759 = vpop.f32.mrf.mxu0
    %v760 = vadd.f32 %v403, %v759
    %v761 = vpop.f32.mrf.mxu0
    %v762 = vadd.f32 %v403, %v761
    %763 = vmatmul.bf16.gmra.mxu0 %v555
    %v764 = vpop.f32.mrf.mxu0
    %v765 = vadd.f32 %v403, %v764
    %v766 = vpop.f32.mrf.mxu0
    %v767 = vadd.f32 %v403, %v766
    %768 = vmatmul.bf16.gmra.mxu0 %v556
    %v769 = vpop.f32.mrf.mxu0
    %v770 = vadd.f32 %v403, %v769
    %v771 = vpop.f32.mrf.mxu0
    %v772 = vadd.f32 %v403, %v771
    %773 = vmatmul.bf16.gmra.mxu0 %v557
    %v774 = vpop.f32.mrf.mxu0
    %v775 = vadd.f32 %v403, %v774
    %v776 = vpop.f32.mrf.mxu0
    %v777 = vadd.f32 %v403, %v776
    %778 = vmatmul.bf16.gmra.mxu0 %v558
    %v779 = vpop.f32.mrf.mxu0
    %v780 = vadd.f32 %v403, %v779
    %v781 = vpop.f32.mrf.mxu0
    %v782 = vadd.f32 %v403, %v781
    %783 = vmatmul.bf16.gmra.mxu0 %v559
    %v784 = vpop.f32.mrf.mxu0
    %v785 = vadd.f32 %v403, %v784
    %v786 = vpop.f32.mrf.mxu0
    %v787 = vadd.f32 %v403, %v786
    %788 = vmatmul.bf16.gmra.mxu0 %v560
    %v789 = vpop.f32.mrf.mxu0
    %v790 = vadd.f32 %v403, %v789
    %v791 = vpop.f32.mrf.mxu0
    %v792 = vadd.f32 %v403, %v791
    %793 = vmatmul.bf16.gmra.mxu0 %v561
    %v794 = vpop.f32.mrf.mxu0
    %v795 = vadd.f32 %v403, %v794
    %v796 = vpop.f32.mrf.mxu0
    %v797 = vadd.f32 %v403, %v796
    %798 = vmatmul.bf16.gmra.mxu0 %v562
    %v799 = vpop.f32.mrf.mxu0
    %v800 = vadd.f32 %v403, %v799
    %v801 = vpop.f32.mrf.mxu0
    %v802 = vadd.f32 %v403, %v801
    %803 = vmatmul.bf16.gmra.mxu0 %v563
    %v804 = vpop.f32.mrf.mxu0
    %v805 = vadd.f32 %v403, %v804
    %v806 = vpop.f32.mrf.mxu0
    %v807 = vadd.f32 %v403, %v806
    %808 = vmatmul.bf16.gmra.mxu0 %v564
    %v809 = vpop.f32.mrf.mxu0
    %v810 = vadd.f32 %v403, %v809
    %v811 = vpop.f32.mrf.mxu0
    %v812 = vadd.f32 %v403, %v811
    %813 = vdwg.mxu0
    %v814 = vmax.f32 %v655, 0.0
    %v815 = vmax.f32 %v657, 0.0
    %v816 = vmax.f32 %v660, 0.0
    %v817 = vmax.f32 %v662, 0.0
    %v818 = vmax.f32 %v665, 0.0
    %v819 = vmax.f32 %v667, 0.0
    %v820 = vmax.f32 %v670, 0.0
    %v821 = vmax.f32 %v672, 0.0
    %v822 = vmax.f32 %v675, 0.0
    %v823 = vmax.f32 %v677, 0.0
    %v824 = vmax.f32 %v680, 0.0
    %v825 = vmax.f32 %v682, 0.0
    %v826 = vmax.f32 %v685, 0.0
    %v827 = vmax.f32 %v687, 0.0
    %v828 = vmax.f32 %v690, 0.0
    %v829 = vmax.f32 %v692, 0.0
    %v830 = vmax.f32 %v695, 0.0
    %v831 = vmax.f32 %v697, 0.0
    %v832 = vmax.f32 %v700, 0.0
    %v833 = vmax.f32 %v702, 0.0
    %v834 = vmax.f32 %v705, 0.0
    %v835 = vmax.f32 %v707, 0.0
    %v836 = vmax.f32 %v710, 0.0
    %v837 = vmax.f32 %v712, 0.0
    %v838 = vmax.f32 %v715, 0.0
    %v839 = vmax.f32 %v717, 0.0
    %v840 = vmax.f32 %v720, 0.0
    %v841 = vmax.f32 %v722, 0.0
    %v842 = vmax.f32 %v725, 0.0
    %v843 = vmax.f32 %v727, 0.0
    %v844 = vmax.f32 %v730, 0.0
    %v845 = vmax.f32 %v732, 0.0
    %v846 = vmax.f32 %v735, 0.0
    %v847 = vmax.f32 %v737, 0.0
    %v848 = vmax.f32 %v740, 0.0
    %v849 = vmax.f32 %v742, 0.0
    %v850 = vmax.f32 %v745, 0.0
    %v851 = vmax.f32 %v747, 0.0
    %v852 = vmax.f32 %v750, 0.0
    %v853 = vmax.f32 %v752, 0.0
    %v854 = vmax.f32 %v755, 0.0
    %v855 = vmax.f32 %v757, 0.0
    %v856 = vmax.f32 %v760, 0.0
    %v857 = vmax.f32 %v762, 0.0
    %v858 = vmax.f32 %v765, 0.0
    %v859 = vmax.f32 %v767, 0.0
    %v860 = vmax.f32 %v770, 0.0
    %v861 = vmax.f32 %v772, 0.0
    %v862 = vmax.f32 %v775, 0.0
    %v863 = vmax.f32 %v777, 0.0
    %v864 = vmax.f32 %v780, 0.0
    %v865 = vmax.f32 %v782, 0.0
    %v866 = vmax.f32 %v785, 0.0
    %v867 = vmax.f32 %v787, 0.0
    %v868 = vmax.f32 %v790, 0.0
    %v869 = vmax.f32 %v792, 0.0
    %v870 = vmax.f32 %v795, 0.0
    %v871 = vmax.f32 %v797, 0.0
    %v872 = vmax.f32 %v800, 0.0
    %v873 = vmax.f32 %v802, 0.0
    %v874 = vmax.f32 %v805, 0.0
    %v875 = vmax.f32 %v807, 0.0
    %v876 = vmax.f32 %v810, 0.0
    %v877 = vmax.f32 %v812, 0.0
    %v878 = vmax.f32 %v814, %v816
    %v879 = vmax.f32 %v815, %v817
    %v880 = vmax.f32 %v818, %v820
    %v881 = vmax.f32 %v819, %v821
    %v882 = vmax.f32 %v822, %v824
    %v883 = vmax.f32 %v823, %v825
    %v884 = vmax.f32 %v826, %v828
    %v885 = vmax.f32 %v827, %v829
    %v886 = vmax.f32 %v830, %v832
    %v887 = vmax.f32 %v831, %v833
    %v888 = vmax.f32 %v834, %v836
    %v889 = vmax.f32 %v835, %v837
    %v890 = vmax.f32 %v838, %v840
    %v891 = vmax.f32 %v839, %v841
    %v892 = vmax.f32 %v842, %v844
    %v893 = vmax.f32 %v843, %v845
    %v894 = vmax.f32 %v846, %v848
    %v895 = vmax.f32 %v847, %v849
    %v896 = vmax.f32 %v850, %v852
    %v897 = vmax.f32 %v851, %v853
    %v898 = vmax.f32 %v854, %v856
    %v899 = vmax.f32 %v855, %v857
    %v900 = vmax.f32 %v858, %v860
    %v901 = vmax.f32 %v859, %v861
    %v902 = vmax.f32 %v862, %v864
    %v903 = vmax.f32 %v863, %v865
    %v904 = vmax.f32 %v866, %v868
    %v905 = vmax.f32 %v867, %v869
    %v906 = vmax.f32 %v870, %v872
    %v907 = vmax.f32 %v871, %v873
    %v908 = vmax.f32 %v874, %v876
    %v909 = vmax.f32 %v875, %v877
    %v942 = vrot.slane %v878, 2
    %v943 = vrot.slane %v878, 4
    %v944 = vrot.slane %v878, 6
    %v945 = vrot.slane %v879, 2
    %v946 = vrot.slane %v879, 4
    %v947 = vrot.slane %v879, 6
    %v948 = vrot.slane %v880, 2
    %v949 = vrot.slane %v880, 4
    %v950 = vrot.slane %v880, 6
    %v951 = vrot.slane %v881, 2
    %v952 = vrot.slane %v881, 4
    %v953 = vrot.slane %v881, 6
    %v954 = vrot.slane %v882, 2
    %v955 = vrot.slane %v882, 4
    %v956 = vrot.slane %v882, 6
    %v957 = vrot.slane %v883, 2
    %v958 = vrot.slane %v883, 4
    %v959 = vrot.slane %v883, 6
    %v960 = vrot.slane %v884, 2
    %v961 = vrot.slane %v884, 4
    %v962 = vrot.slane %v884, 6
    %v963 = vrot.slane %v885, 2
    %v964 = vrot.slane %v885, 4
    %v965 = vrot.slane %v885, 6
    %v966 = vrot.slane %v886, 2
    %v967 = vrot.slane %v886, 4
    %v968 = vrot.slane %v886, 6
    %v969 = vrot.slane %v887, 2
    %v970 = vrot.slane %v887, 4
    %v971 = vrot.slane %v887, 6
    %v972 = vrot.slane %v888, 2
    %v973 = vrot.slane %v888, 4
    %v974 = vrot.slane %v888, 6
    %v975 = vrot.slane %v889, 2
    %v976 = vrot.slane %v889, 4
    %v977 = vrot.slane %v889, 6
    %v978 = vrot.slane %v890, 2
    %v979 = vrot.slane %v890, 4
    %v980 = vrot.slane %v890, 6
    %v981 = vrot.slane %v891, 2
    %v982 = vrot.slane %v891, 4
    %v983 = vrot.slane %v891, 6
    %v984 = vrot.slane %v892, 2
    %v985 = vrot.slane %v892, 4
    %v986 = vrot.slane %v892, 6
    %v987 = vrot.slane %v893, 2
    %v988 = vrot.slane %v893, 4
    %v989 = vrot.slane %v893, 6
    %v990 = vrot.slane %v894, 2
    %v991 = vrot.slane %v894, 4
    %v992 = vrot.slane %v894, 6
    %v993 = vrot.slane %v895, 2
    %v994 = vrot.slane %v895, 4
    %v995 = vrot.slane %v895, 6
    %v996 = vrot.slane %v896, 2
    %v997 = vrot.slane %v896, 4
    %v998 = vrot.slane %v896, 6
    %v999 = vrot.slane %v897, 2
    %v1000 = vrot.slane %v897, 4
    %v1001 = vrot.slane %v897, 6
    %v1002 = vrot.slane %v898, 2
    %v1003 = vrot.slane %v898, 4
    %v1004 = vrot.slane %v898, 6
    %v1005 = vrot.slane %v899, 2
    %v1006 = vrot.slane %v899, 4
    %v1007 = vrot.slane %v899, 6
    %v1008 = vrot.slane %v900, 2
    %v1009 = vrot.slane %v900, 4
    %v1010 = vrot.slane %v900, 6
    %v1011 = vrot.slane %v901, 2
    %v1012 = vrot.slane %v901, 4
    %v1013 = vrot.slane %v901, 6
    %v1014 = vrot.slane %v902, 2
    %v1015 = vrot.slane %v902, 4
    %v1016 = vrot.slane %v902, 6
    %v1017 = vrot.slane %v903, 2
    %v1018 = vrot.slane %v903, 4
    %v1019 = vrot.slane %v903, 6
    %v1020 = vrot.slane %v904, 2
    %v1021 = vrot.slane %v904, 4
    %v1022 = vrot.slane %v904, 6
    %v1023 = vrot.slane %v905, 2
    %v1024 = vrot.slane %v905, 4
    %v1025 = vrot.slane %v905, 6
    %v1026 = vrot.slane %v906, 2
    %v1027 = vrot.slane %v906, 4
    %v1028 = vrot.slane %v906, 6
    %v1029 = vrot.slane %v907, 2
    %v1030 = vrot.slane %v907, 4
    %v1031 = vrot.slane %v907, 6
    %v1032 = vrot.slane %v908, 2
    %v1033 = vrot.slane %v908, 4
    %v1034 = vrot.slane %v908, 6
    %v1035 = vrot.slane %v909, 2
    %v1036 = vrot.slane %v909, 4
    %v1037 = vrot.slane %v909, 6
    %vm1134 = vcmask 1041408
    %v1135 = vsel %vm1134, %v878, -inf
    %v1136 = vrot.slane %v1135, 4
    %v1137 = vmax.f32 %v1135, %v1136
    %v1138 = vrot.slane %v1137, 2
    %v1139 = vmax.f32 %v1137, %v1138
    %v1140 = vrot.slane %v1139, 1
    %v1141 = vmax.f32 %v1139, %v1140
    %v1142 = vsel %vm1134, %v942, -inf
    %v1143 = vrot.slane %v1142, 4
    %v1144 = vmax.f32 %v1142, %v1143
    %v1145 = vrot.slane %v1144, 2
    %v1146 = vmax.f32 %v1144, %v1145
    %v1147 = vrot.slane %v1146, 1
    %v1148 = vmax.f32 %v1146, %v1147
    %v1149 = vsel %vm1134, %v943, -inf
    %v1150 = vrot.slane %v1149, 4
    %v1151 = vmax.f32 %v1149, %v1150
    %v1152 = vrot.slane %v1151, 2
    %v1153 = vmax.f32 %v1151, %v1152
    %v1154 = vrot.slane %v1153, 1
    %v1155 = vmax.f32 %v1153, %v1154
    %v1156 = vsel %vm1134, %v944, -inf
    %v1157 = vrot.slane %v1156, 4
    %v1158 = vmax.f32 %v1156, %v1157
    %v1159 = vrot.slane %v1158, 2
    %v1160 = vmax.f32 %v1158, %v1159
    %v1161 = vrot.slane %v1160, 1
    %v1162 = vmax.f32 %v1160, %v1161
    %v1163 = vsel %vm1134, %v879, -inf
    %v1164 = vrot.slane %v1163, 4
    %v1165 = vmax.f32 %v1163, %v1164
    %v1166 = vrot.slane %v1165, 2
    %v1167 = vmax.f32 %v1165, %v1166
    %v1168 = vrot.slane %v1167, 1
    %v1169 = vmax.f32 %v1167, %v1168
    %v1170 = vsel %vm1134, %v945, -inf
    %v1171 = vrot.slane %v1170, 4
    %v1172 = vmax.f32 %v1170, %v1171
    %v1173 = vrot.slane %v1172, 2
    %v1174 = vmax.f32 %v1172, %v1173
    %v1175 = vrot.slane %v1174, 1
    %v1176 = vmax.f32 %v1174, %v1175
    %v1177 = vsel %vm1134, %v946, -inf
    %v1178 = vrot.slane %v1177, 4
    %v1179 = vmax.f32 %v1177, %v1178
    %v1180 = vrot.slane %v1179, 2
    %v1181 = vmax.f32 %v1179, %v1180
    %v1182 = vrot.slane %v1181, 1
    %v1183 = vmax.f32 %v1181, %v1182
    %v1184 = vsel %vm1134, %v947, -inf
    %v1185 = vrot.slane %v1184, 4
    %v1186 = vmax.f32 %v1184, %v1185
    %v1187 = vrot.slane %v1186, 2
    %v1188 = vmax.f32 %v1186, %v1187
    %v1189 = vrot.slane %v1188, 1
    %v1190 = vmax.f32 %v1188, %v1189
    %v1191 = vsel %vm1134, %v880, -inf
    %v1192 = vrot.slane %v1191, 4
    %v1193 = vmax.f32 %v1191, %v1192
    %v1194 = vrot.slane %v1193, 2
    %v1195 = vmax.f32 %v1193, %v1194
    %v1196 = vrot.slane %v1195, 1
    %v1197 = vmax.f32 %v1195, %v1196
    %v1198 = vsel %vm1134, %v948, -inf
    %v1199 = vrot.slane %v1198, 4
    %v1200 = vmax.f32 %v1198, %v1199
    %v1201 = vrot.slane %v1200, 2
    %v1202 = vmax.f32 %v1200, %v1201
    %v1203 = vrot.slane %v1202, 1
    %v1204 = vmax.f32 %v1202, %v1203
    %v1205 = vsel %vm1134, %v949, -inf
    %v1206 = vrot.slane %v1205, 4
    %v1207 = vmax.f32 %v1205, %v1206
    %v1208 = vrot.slane %v1207, 2
    %v1209 = vmax.f32 %v1207, %v1208
    %v1210 = vrot.slane %v1209, 1
    %v1211 = vmax.f32 %v1209, %v1210
    %v1212 = vsel %vm1134, %v950, -inf
    %v1213 = vrot.slane %v1212, 4
    %v1214 = vmax.f32 %v1212, %v1213
    %v1215 = vrot.slane %v1214, 2
    %v1216 = vmax.f32 %v1214, %v1215
    %v1217 = vrot.slane %v1216, 1
    %v1218 = vmax.f32 %v1216, %v1217
    %v1219 = vsel %vm1134, %v881, -inf
    %v1220 = vrot.slane %v1219, 4
    %v1221 = vmax.f32 %v1219, %v1220
    %v1222 = vrot.slane %v1221, 2
    %v1223 = vmax.f32 %v1221, %v1222
    %v1224 = vrot.slane %v1223, 1
    %v1225 = vmax.f32 %v1223, %v1224
    %v1226 = vsel %vm1134, %v951, -inf
    %v1227 = vrot.slane %v1226, 4
    %v1228 = vmax.f32 %v1226, %v1227
    %v1229 = vrot.slane %v1228, 2
    %v1230 = vmax.f32 %v1228, %v1229
    %v1231 = vrot.slane %v1230, 1
    %v1232 = vmax.f32 %v1230, %v1231
    %v1233 = vsel %vm1134, %v952, -inf
    %v1234 = vrot.slane %v1233, 4
    %v1235 = vmax.f32 %v1233, %v1234
    %v1236 = vrot.slane %v1235, 2
    %v1237 = vmax.f32 %v1235, %v1236
    %v1238 = vrot.slane %v1237, 1
    %v1239 = vmax.f32 %v1237, %v1238
    %v1240 = vsel %vm1134, %v953, -inf
    %v1241 = vrot.slane %v1240, 4
    %v1242 = vmax.f32 %v1240, %v1241
    %v1243 = vrot.slane %v1242, 2
    %v1244 = vmax.f32 %v1242, %v1243
    %v1245 = vrot.slane %v1244, 1
    %v1246 = vmax.f32 %v1244, %v1245
    %v1247 = vsel %vm1134, %v882, -inf
    %v1248 = vrot.slane %v1247, 4
    %v1249 = vmax.f32 %v1247, %v1248
    %v1250 = vrot.slane %v1249, 2
    %v1251 = vmax.f32 %v1249, %v1250
    %v1252 = vrot.slane %v1251, 1
    %v1253 = vmax.f32 %v1251, %v1252
    %v1254 = vsel %vm1134, %v954, -inf
    %v1255 = vrot.slane %v1254, 4
    %v1256 = vmax.f32 %v1254, %v1255
    %v1257 = vrot.slane %v1256, 2
    %v1258 = vmax.f32 %v1256, %v1257
    %v1259 = vrot.slane %v1258, 1
    %v1260 = vmax.f32 %v1258, %v1259
    %v1261 = vsel %vm1134, %v955, -inf
    %v1262 = vrot.slane %v1261, 4
    %v1263 = vmax.f32 %v1261, %v1262
    %v1264 = vrot.slane %v1263, 2
    %v1265 = vmax.f32 %v1263, %v1264
    %v1266 = vrot.slane %v1265, 1
    %v1267 = vmax.f32 %v1265, %v1266
    %v1268 = vsel %vm1134, %v956, -inf
    %v1269 = vrot.slane %v1268, 4
    %v1270 = vmax.f32 %v1268, %v1269
    %v1271 = vrot.slane %v1270, 2
    %v1272 = vmax.f32 %v1270, %v1271
    %v1273 = vrot.slane %v1272, 1
    %v1274 = vmax.f32 %v1272, %v1273
    %v1275 = vsel %vm1134, %v883, -inf
    %v1276 = vrot.slane %v1275, 4
    %v1277 = vmax.f32 %v1275, %v1276
    %v1278 = vrot.slane %v1277, 2
    %v1279 = vmax.f32 %v1277, %v1278
    %v1280 = vrot.slane %v1279, 1
    %v1281 = vmax.f32 %v1279, %v1280
    %v1282 = vsel %vm1134, %v957, -inf
    %v1283 = vrot.slane %v1282, 4
    %v1284 = vmax.f32 %v1282, %v1283
    %v1285 = vrot.slane %v1284, 2
    %v1286 = vmax.f32 %v1284, %v1285
    %v1287 = vrot.slane %v1286, 1
    %v1288 = vmax.f32 %v1286, %v1287
    %v1289 = vsel %vm1134, %v958, -inf
    %v1290 = vrot.slane %v1289, 4
    %v1291 = vmax.f32 %v1289, %v1290
    %v1292 = vrot.slane %v1291, 2
    %v1293 = vmax.f32 %v1291, %v1292
    %v1294 = vrot.slane %v1293, 1
    %v1295 = vmax.f32 %v1293, %v1294
    %v1296 = vsel %vm1134, %v959, -inf
    %v1297 = vrot.slane %v1296, 4
    %v1298 = vmax.f32 %v1296, %v1297
    %v1299 = vrot.slane %v1298, 2
    %v1300 = vmax.f32 %v1298, %v1299
    %v1301 = vrot.slane %v1300, 1
    %v1302 = vmax.f32 %v1300, %v1301
    %v1303 = vsel %vm1134, %v884, -inf
    %v1304 = vrot.slane %v1303, 4
    %v1305 = vmax.f32 %v1303, %v1304
    %v1306 = vrot.slane %v1305, 2
    %v1307 = vmax.f32 %v1305, %v1306
    %v1308 = vrot.slane %v1307, 1
    %v1309 = vmax.f32 %v1307, %v1308
    %v1310 = vsel %vm1134, %v960, -inf
    %v1311 = vrot.slane %v1310, 4
    %v1312 = vmax.f32 %v1310, %v1311
    %v1313 = vrot.slane %v1312, 2
    %v1314 = vmax.f32 %v1312, %v1313
    %v1315 = vrot.slane %v1314, 1
    %v1316 = vmax.f32 %v1314, %v1315
    %v1317 = vsel %vm1134, %v961, -inf
    %v1318 = vrot.slane %v1317, 4
    %v1319 = vmax.f32 %v1317, %v1318
    %v1320 = vrot.slane %v1319, 2
    %v1321 = vmax.f32 %v1319, %v1320
    %v1322 = vrot.slane %v1321, 1
    %v1323 = vmax.f32 %v1321, %v1322
    %v1324 = vsel %vm1134, %v962, -inf
    %v1325 = vrot.slane %v1324, 4
    %v1326 = vmax.f32 %v1324, %v1325
    %v1327 = vrot.slane %v1326, 2
    %v1328 = vmax.f32 %v1326, %v1327
    %v1329 = vrot.slane %v1328, 1
    %v1330 = vmax.f32 %v1328, %v1329
    %v1331 = vsel %vm1134, %v885, -inf
    %v1332 = vrot.slane %v1331, 4
    %v1333 = vmax.f32 %v1331, %v1332
    %v1334 = vrot.slane %v1333, 2
    %v1335 = vmax.f32 %v1333, %v1334
    %v1336 = vrot.slane %v1335, 1
    %v1337 = vmax.f32 %v1335, %v1336
    %v1338 = vsel %vm1134, %v963, -inf
    %v1339 = vrot.slane %v1338, 4
    %v1340 = vmax.f32 %v1338, %v1339
    %v1341 = vrot.slane %v1340, 2
    %v1342 = vmax.f32 %v1340, %v1341
    %v1343 = vrot.slane %v1342, 1
    %v1344 = vmax.f32 %v1342, %v1343
    %v1345 = vsel %vm1134, %v964, -inf
    %v1346 = vrot.slane %v1345, 4
    %v1347 = vmax.f32 %v1345, %v1346
    %v1348 = vrot.slane %v1347, 2
    %v1349 = vmax.f32 %v1347, %v1348
    %v1350 = vrot.slane %v1349, 1
    %v1351 = vmax.f32 %v1349, %v1350
    %v1352 = vsel %vm1134, %v965, -inf
    %v1353 = vrot.slane %v1352, 4
    %v1354 = vmax.f32 %v1352, %v1353
    %v1355 = vrot.slane %v1354, 2
    %v1356 = vmax.f32 %v1354, %v1355
    %v1357 = vrot.slane %v1356, 1
    %v1358 = vmax.f32 %v1356, %v1357
    %v1359 = vsel %vm1134, %v886, -inf
    %v1360 = vrot.slane %v1359, 4
    %v1361 = vmax.f32 %v1359, %v1360
    %v1362 = vrot.slane %v1361, 2
    %v1363 = vmax.f32 %v1361, %v1362
    %v1364 = vrot.slane %v1363, 1
    %v1365 = vmax.f32 %v1363, %v1364
    %v1366 = vsel %vm1134, %v966, -inf
    %v1367 = vrot.slane %v1366, 4
    %v1368 = vmax.f32 %v1366, %v1367
    %v1369 = vrot.slane %v1368, 2
    %v1370 = vmax.f32 %v1368, %v1369
    %v1371 = vrot.slane %v1370, 1
    %v1372 = vmax.f32 %v1370, %v1371
    %v1373 = vsel %vm1134, %v967, -inf
    %v1374 = vrot.slane %v1373, 4
    %v1375 = vmax.f32 %v1373, %v1374
    %v1376 = vrot.slane %v1375, 2
    %v1377 = vmax.f32 %v1375, %v1376
    %v1378 = vrot.slane %v1377, 1
    %v1379 = vmax.f32 %v1377, %v1378
    %v1380 = vsel %vm1134, %v968, -inf
    %v1381 = vrot.slane %v1380, 4
    %v1382 = vmax.f32 %v1380, %v1381
    %v1383 = vrot.slane %v1382, 2
    %v1384 = vmax.f32 %v1382, %v1383
    %v1385 = vrot.slane %v1384, 1
    %v1386 = vmax.f32 %v1384, %v1385
    %v1387 = vsel %vm1134, %v887, -inf
    %v1388 = vrot.slane %v1387, 4
    %v1389 = vmax.f32 %v1387, %v1388
    %v1390 = vrot.slane %v1389, 2
    %v1391 = vmax.f32 %v1389, %v1390
    %v1392 = vrot.slane %v1391, 1
    %v1393 = vmax.f32 %v1391, %v1392
    %v1394 = vsel %vm1134, %v969, -inf
    %v1395 = vrot.slane %v1394, 4
    %v1396 = vmax.f32 %v1394, %v1395
    %v1397 = vrot.slane %v1396, 2
    %v1398 = vmax.f32 %v1396, %v1397
    %v1399 = vrot.slane %v1398, 1
    %v1400 = vmax.f32 %v1398, %v1399
    %v1401 = vsel %vm1134, %v970, -inf
    %v1402 = vrot.slane %v1401, 4
    %v1403 = vmax.f32 %v1401, %v1402
    %v1404 = vrot.slane %v1403, 2
    %v1405 = vmax.f32 %v1403, %v1404
    %v1406 = vrot.slane %v1405, 1
    %v1407 = vmax.f32 %v1405, %v1406
    %v1408 = vsel %vm1134, %v971, -inf
    %v1409 = vrot.slane %v1408, 4
    %v1410 = vmax.f32 %v1408, %v1409
    %v1411 = vrot.slane %v1410, 2
    %v1412 = vmax.f32 %v1410, %v1411
    %v1413 = vrot.slane %v1412, 1
    %v1414 = vmax.f32 %v1412, %v1413
    %v1415 = vsel %vm1134, %v888, -inf
    %v1416 = vrot.slane %v1415, 4
    %v1417 = vmax.f32 %v1415, %v1416
    %v1418 = vrot.slane %v1417, 2
    %v1419 = vmax.f32 %v1417, %v1418
    %v1420 = vrot.slane %v1419, 1
    %v1421 = vmax.f32 %v1419, %v1420
    %v1422 = vsel %vm1134, %v972, -inf
    %v1423 = vrot.slane %v1422, 4
    %v1424 = vmax.f32 %v1422, %v1423
    %v1425 = vrot.slane %v1424, 2
    %v1426 = vmax.f32 %v1424, %v1425
    %v1427 = vrot.slane %v1426, 1
    %v1428 = vmax.f32 %v1426, %v1427
    %v1429 = vsel %vm1134, %v973, -inf
    %v1430 = vrot.slane %v1429, 4
    %v1431 = vmax.f32 %v1429, %v1430
    %v1432 = vrot.slane %v1431, 2
    %v1433 = vmax.f32 %v1431, %v1432
    %v1434 = vrot.slane %v1433, 1
    %v1435 = vmax.f32 %v1433, %v1434
    %v1436 = vsel %vm1134, %v974, -inf
    %v1437 = vrot.slane %v1436, 4
    %v1438 = vmax.f32 %v1436, %v1437
    %v1439 = vrot.slane %v1438, 2
    %v1440 = vmax.f32 %v1438, %v1439
    %v1441 = vrot.slane %v1440, 1
    %v1442 = vmax.f32 %v1440, %v1441
    %v1443 = vsel %vm1134, %v889, -inf
    %v1444 = vrot.slane %v1443, 4
    %v1445 = vmax.f32 %v1443, %v1444
    %v1446 = vrot.slane %v1445, 2
    %v1447 = vmax.f32 %v1445, %v1446
    %v1448 = vrot.slane %v1447, 1
    %v1449 = vmax.f32 %v1447, %v1448
    %v1450 = vsel %vm1134, %v975, -inf
    %v1451 = vrot.slane %v1450, 4
    %v1452 = vmax.f32 %v1450, %v1451
    %v1453 = vrot.slane %v1452, 2
    %v1454 = vmax.f32 %v1452, %v1453
    %v1455 = vrot.slane %v1454, 1
    %v1456 = vmax.f32 %v1454, %v1455
    %v1457 = vsel %vm1134, %v976, -inf
    %v1458 = vrot.slane %v1457, 4
    %v1459 = vmax.f32 %v1457, %v1458
    %v1460 = vrot.slane %v1459, 2
    %v1461 = vmax.f32 %v1459, %v1460
    %v1462 = vrot.slane %v1461, 1
    %v1463 = vmax.f32 %v1461, %v1462
    %v1464 = vsel %vm1134, %v977, -inf
    %v1465 = vrot.slane %v1464, 4
    %v1466 = vmax.f32 %v1464, %v1465
    %v1467 = vrot.slane %v1466, 2
    %v1468 = vmax.f32 %v1466, %v1467
    %v1469 = vrot.slane %v1468, 1
    %v1470 = vmax.f32 %v1468, %v1469
    %v1471 = vsel %vm1134, %v890, -inf
    %v1472 = vrot.slane %v1471, 4
    %v1473 = vmax.f32 %v1471, %v1472
    %v1474 = vrot.slane %v1473, 2
    %v1475 = vmax.f32 %v1473, %v1474
    %v1476 = vrot.slane %v1475, 1
    %v1477 = vmax.f32 %v1475, %v1476
    %v1478 = vsel %vm1134, %v978, -inf
    %v1479 = vrot.slane %v1478, 4
    %v1480 = vmax.f32 %v1478, %v1479
    %v1481 = vrot.slane %v1480, 2
    %v1482 = vmax.f32 %v1480, %v1481
    %v1483 = vrot.slane %v1482, 1
    %v1484 = vmax.f32 %v1482, %v1483
    %v1485 = vsel %vm1134, %v979, -inf
    %v1486 = vrot.slane %v1485, 4
    %v1487 = vmax.f32 %v1485, %v1486
    %v1488 = vrot.slane %v1487, 2
    %v1489 = vmax.f32 %v1487, %v1488
    %v1490 = vrot.slane %v1489, 1
    %v1491 = vmax.f32 %v1489, %v1490
    %v1492 = vsel %vm1134, %v980, -inf
    %v1493 = vrot.slane %v1492, 4
    %v1494 = vmax.f32 %v1492, %v1493
    %v1495 = vrot.slane %v1494, 2
    %v1496 = vmax.f32 %v1494, %v1495
    %v1497 = vrot.slane %v1496, 1
    %v1498 = vmax.f32 %v1496, %v1497
    %v1499 = vsel %vm1134, %v891, -inf
    %v1500 = vrot.slane %v1499, 4
    %v1501 = vmax.f32 %v1499, %v1500
    %v1502 = vrot.slane %v1501, 2
    %v1503 = vmax.f32 %v1501, %v1502
    %v1504 = vrot.slane %v1503, 1
    %v1505 = vmax.f32 %v1503, %v1504
    %v1506 = vsel %vm1134, %v981, -inf
    %v1507 = vrot.slane %v1506, 4
    %v1508 = vmax.f32 %v1506, %v1507
    %v1509 = vrot.slane %v1508, 2
    %v1510 = vmax.f32 %v1508, %v1509
    %v1511 = vrot.slane %v1510, 1
    %v1512 = vmax.f32 %v1510, %v1511
    %v1513 = vsel %vm1134, %v982, -inf
    %v1514 = vrot.slane %v1513, 4
    %v1515 = vmax.f32 %v1513, %v1514
    %v1516 = vrot.slane %v1515, 2
    %v1517 = vmax.f32 %v1515, %v1516
    %v1518 = vrot.slane %v1517, 1
    %v1519 = vmax.f32 %v1517, %v1518
    %v1520 = vsel %vm1134, %v983, -inf
    %v1521 = vrot.slane %v1520, 4
    %v1522 = vmax.f32 %v1520, %v1521
    %v1523 = vrot.slane %v1522, 2
    %v1524 = vmax.f32 %v1522, %v1523
    %v1525 = vrot.slane %v1524, 1
    %v1526 = vmax.f32 %v1524, %v1525
    %v1527 = vsel %vm1134, %v892, -inf
    %v1528 = vrot.slane %v1527, 4
    %v1529 = vmax.f32 %v1527, %v1528
    %v1530 = vrot.slane %v1529, 2
    %v1531 = vmax.f32 %v1529, %v1530
    %v1532 = vrot.slane %v1531, 1
    %v1533 = vmax.f32 %v1531, %v1532
    %v1534 = vsel %vm1134, %v984, -inf
    %v1535 = vrot.slane %v1534, 4
    %v1536 = vmax.f32 %v1534, %v1535
    %v1537 = vrot.slane %v1536, 2
    %v1538 = vmax.f32 %v1536, %v1537
    %v1539 = vrot.slane %v1538, 1
    %v1540 = vmax.f32 %v1538, %v1539
    %v1541 = vsel %vm1134, %v985, -inf
    %v1542 = vrot.slane %v1541, 4
    %v1543 = vmax.f32 %v1541, %v1542
    %v1544 = vrot.slane %v1543, 2
    %v1545 = vmax.f32 %v1543, %v1544
    %v1546 = vrot.slane %v1545, 1
    %v1547 = vmax.f32 %v1545, %v1546
    %v1548 = vsel %vm1134, %v986, -inf
    %v1549 = vrot.slane %v1548, 4
    %v1550 = vmax.f32 %v1548, %v1549
    %v1551 = vrot.slane %v1550, 2
    %v1552 = vmax.f32 %v1550, %v1551
    %v1553 = vrot.slane %v1552, 1
    %v1554 = vmax.f32 %v1552, %v1553
    %v1555 = vsel %vm1134, %v893, -inf
    %v1556 = vrot.slane %v1555, 4
    %v1557 = vmax.f32 %v1555, %v1556
    %v1558 = vrot.slane %v1557, 2
    %v1559 = vmax.f32 %v1557, %v1558
    %v1560 = vrot.slane %v1559, 1
    %v1561 = vmax.f32 %v1559, %v1560
    %v1562 = vsel %vm1134, %v987, -inf
    %v1563 = vrot.slane %v1562, 4
    %v1564 = vmax.f32 %v1562, %v1563
    %v1565 = vrot.slane %v1564, 2
    %v1566 = vmax.f32 %v1564, %v1565
    %v1567 = vrot.slane %v1566, 1
    %v1568 = vmax.f32 %v1566, %v1567
    %v1569 = vsel %vm1134, %v988, -inf
    %v1570 = vrot.slane %v1569, 4
    %v1571 = vmax.f32 %v1569, %v1570
    %v1572 = vrot.slane %v1571, 2
    %v1573 = vmax.f32 %v1571, %v1572
    %v1574 = vrot.slane %v1573, 1
    %v1575 = vmax.f32 %v1573, %v1574
    %v1576 = vsel %vm1134, %v989, -inf
    %v1577 = vrot.slane %v1576, 4
    %v1578 = vmax.f32 %v1576, %v1577
    %v1579 = vrot.slane %v1578, 2
    %v1580 = vmax.f32 %v1578, %v1579
    %v1581 = vrot.slane %v1580, 1
    %v1582 = vmax.f32 %v1580, %v1581
    %v1583 = vsel %vm1134, %v894, -inf
    %v1584 = vrot.slane %v1583, 4
    %v1585 = vmax.f32 %v1583, %v1584
    %v1586 = vrot.slane %v1585, 2
    %v1587 = vmax.f32 %v1585, %v1586
    %v1588 = vrot.slane %v1587, 1
    %v1589 = vmax.f32 %v1587, %v1588
    %v1590 = vsel %vm1134, %v990, -inf
    %v1591 = vrot.slane %v1590, 4
    %v1592 = vmax.f32 %v1590, %v1591
    %v1593 = vrot.slane %v1592, 2
    %v1594 = vmax.f32 %v1592, %v1593
    %v1595 = vrot.slane %v1594, 1
    %v1596 = vmax.f32 %v1594, %v1595
    %v1597 = vsel %vm1134, %v991, -inf
    %v1598 = vrot.slane %v1597, 4
    %v1599 = vmax.f32 %v1597, %v1598
    %v1600 = vrot.slane %v1599, 2
    %v1601 = vmax.f32 %v1599, %v1600
    %v1602 = vrot.slane %v1601, 1
    %v1603 = vmax.f32 %v1601, %v1602
    %v1604 = vsel %vm1134, %v992, -inf
    %v1605 = vrot.slane %v1604, 4
    %v1606 = vmax.f32 %v1604, %v1605
    %v1607 = vrot.slane %v1606, 2
    %v1608 = vmax.f32 %v1606, %v1607
    %v1609 = vrot.slane %v1608, 1
    %v1610 = vmax.f32 %v1608, %v1609
    %v1611 = vsel %vm1134, %v895, -inf
    %v1612 = vrot.slane %v1611, 4
    %v1613 = vmax.f32 %v1611, %v1612
    %v1614 = vrot.slane %v1613, 2
    %v1615 = vmax.f32 %v1613, %v1614
    %v1616 = vrot.slane %v1615, 1
    %v1617 = vmax.f32 %v1615, %v1616
    %v1618 = vsel %vm1134, %v993, -inf
    %v1619 = vrot.slane %v1618, 4
    %v1620 = vmax.f32 %v1618, %v1619
    %v1621 = vrot.slane %v1620, 2
    %v1622 = vmax.f32 %v1620, %v1621
    %v1623 = vrot.slane %v1622, 1
    %v1624 = vmax.f32 %v1622, %v1623
    %v1625 = vsel %vm1134, %v994, -inf
    %v1626 = vrot.slane %v1625, 4
    %v1627 = vmax.f32 %v1625, %v1626
    %v1628 = vrot.slane %v1627, 2
    %v1629 = vmax.f32 %v1627, %v1628
    %v1630 = vrot.slane %v1629, 1
    %v1631 = vmax.f32 %v1629, %v1630
    %v1632 = vsel %vm1134, %v995, -inf
    %v1633 = vrot.slane %v1632, 4
    %v1634 = vmax.f32 %v1632, %v1633
    %v1635 = vrot.slane %v1634, 2
    %v1636 = vmax.f32 %v1634, %v1635
    %v1637 = vrot.slane %v1636, 1
    %v1638 = vmax.f32 %v1636, %v1637
    %v1639 = vsel %vm1134, %v896, -inf
    %v1640 = vrot.slane %v1639, 4
    %v1641 = vmax.f32 %v1639, %v1640
    %v1642 = vrot.slane %v1641, 2
    %v1643 = vmax.f32 %v1641, %v1642
    %v1644 = vrot.slane %v1643, 1
    %v1645 = vmax.f32 %v1643, %v1644
    %v1646 = vsel %vm1134, %v996, -inf
    %v1647 = vrot.slane %v1646, 4
    %v1648 = vmax.f32 %v1646, %v1647
    %v1649 = vrot.slane %v1648, 2
    %v1650 = vmax.f32 %v1648, %v1649
    %v1651 = vrot.slane %v1650, 1
    %v1652 = vmax.f32 %v1650, %v1651
    %v1653 = vsel %vm1134, %v997, -inf
    %v1654 = vrot.slane %v1653, 4
    %v1655 = vmax.f32 %v1653, %v1654
    %v1656 = vrot.slane %v1655, 2
    %v1657 = vmax.f32 %v1655, %v1656
    %v1658 = vrot.slane %v1657, 1
    %v1659 = vmax.f32 %v1657, %v1658
    %v1660 = vsel %vm1134, %v998, -inf
    %v1661 = vrot.slane %v1660, 4
    %v1662 = vmax.f32 %v1660, %v1661
    %v1663 = vrot.slane %v1662, 2
    %v1664 = vmax.f32 %v1662, %v1663
    %v1665 = vrot.slane %v1664, 1
    %v1666 = vmax.f32 %v1664, %v1665
    %v1667 = vsel %vm1134, %v897, -inf
    %v1668 = vrot.slane %v1667, 4
    %v1669 = vmax.f32 %v1667, %v1668
    %v1670 = vrot.slane %v1669, 2
    %v1671 = vmax.f32 %v1669, %v1670
    %v1672 = vrot.slane %v1671, 1
    %v1673 = vmax.f32 %v1671, %v1672
    %v1674 = vsel %vm1134, %v999, -inf
    %v1675 = vrot.slane %v1674, 4
    %v1676 = vmax.f32 %v1674, %v1675
    %v1677 = vrot.slane %v1676, 2
    %v1678 = vmax.f32 %v1676, %v1677
    %v1679 = vrot.slane %v1678, 1
    %v1680 = vmax.f32 %v1678, %v1679
    %v1681 = vsel %vm1134, %v1000, -inf
    %v1682 = vrot.slane %v1681, 4
    %v1683 = vmax.f32 %v1681, %v1682
    %v1684 = vrot.slane %v1683, 2
    %v1685 = vmax.f32 %v1683, %v1684
    %v1686 = vrot.slane %v1685, 1
    %v1687 = vmax.f32 %v1685, %v1686
    %v1688 = vsel %vm1134, %v1001, -inf
    %v1689 = vrot.slane %v1688, 4
    %v1690 = vmax.f32 %v1688, %v1689
    %v1691 = vrot.slane %v1690, 2
    %v1692 = vmax.f32 %v1690, %v1691
    %v1693 = vrot.slane %v1692, 1
    %v1694 = vmax.f32 %v1692, %v1693
    %v1695 = vsel %vm1134, %v898, -inf
    %v1696 = vrot.slane %v1695, 4
    %v1697 = vmax.f32 %v1695, %v1696
    %v1698 = vrot.slane %v1697, 2
    %v1699 = vmax.f32 %v1697, %v1698
    %v1700 = vrot.slane %v1699, 1
    %v1701 = vmax.f32 %v1699, %v1700
    %v1702 = vsel %vm1134, %v1002, -inf
    %v1703 = vrot.slane %v1702, 4
    %v1704 = vmax.f32 %v1702, %v1703
    %v1705 = vrot.slane %v1704, 2
    %v1706 = vmax.f32 %v1704, %v1705
    %v1707 = vrot.slane %v1706, 1
    %v1708 = vmax.f32 %v1706, %v1707
    %v1709 = vsel %vm1134, %v1003, -inf
    %v1710 = vrot.slane %v1709, 4
    %v1711 = vmax.f32 %v1709, %v1710
    %v1712 = vrot.slane %v1711, 2
    %v1713 = vmax.f32 %v1711, %v1712
    %v1714 = vrot.slane %v1713, 1
    %v1715 = vmax.f32 %v1713, %v1714
    %v1716 = vsel %vm1134, %v1004, -inf
    %v1717 = vrot.slane %v1716, 4
    %v1718 = vmax.f32 %v1716, %v1717
    %v1719 = vrot.slane %v1718, 2
    %v1720 = vmax.f32 %v1718, %v1719
    %v1721 = vrot.slane %v1720, 1
    %v1722 = vmax.f32 %v1720, %v1721
    %v1723 = vsel %vm1134, %v899, -inf
    %v1724 = vrot.slane %v1723, 4
    %v1725 = vmax.f32 %v1723, %v1724
    %v1726 = vrot.slane %v1725, 2
    %v1727 = vmax.f32 %v1725, %v1726
    %v1728 = vrot.slane %v1727, 1
    %v1729 = vmax.f32 %v1727, %v1728
    %v1730 = vsel %vm1134, %v1005, -inf
    %v1731 = vrot.slane %v1730, 4
    %v1732 = vmax.f32 %v1730, %v1731
    %v1733 = vrot.slane %v1732, 2
    %v1734 = vmax.f32 %v1732, %v1733
    %v1735 = vrot.slane %v1734, 1
    %v1736 = vmax.f32 %v1734, %v1735
    %v1737 = vsel %vm1134, %v1006, -inf
    %v1738 = vrot.slane %v1737, 4
    %v1739 = vmax.f32 %v1737, %v1738
    %v1740 = vrot.slane %v1739, 2
    %v1741 = vmax.f32 %v1739, %v1740
    %v1742 = vrot.slane %v1741, 1
    %v1743 = vmax.f32 %v1741, %v1742
    %v1744 = vsel %vm1134, %v1007, -inf
    %v1745 = vrot.slane %v1744, 4
    %v1746 = vmax.f32 %v1744, %v1745
    %v1747 = vrot.slane %v1746, 2
    %v1748 = vmax.f32 %v1746, %v1747
    %v1749 = vrot.slane %v1748, 1
    %v1750 = vmax.f32 %v1748, %v1749
    %v1751 = vsel %vm1134, %v900, -inf
    %v1752 = vrot.slane %v1751, 4
    %v1753 = vmax.f32 %v1751, %v1752
    %v1754 = vrot.slane %v1753, 2
    %v1755 = vmax.f32 %v1753, %v1754
    %v1756 = vrot.slane %v1755, 1
    %v1757 = vmax.f32 %v1755, %v1756
    %v1758 = vsel %vm1134, %v1008, -inf
    %v1759 = vrot.slane %v1758, 4
    %v1760 = vmax.f32 %v1758, %v1759
    %v1761 = vrot.slane %v1760, 2
    %v1762 = vmax.f32 %v1760, %v1761
    %v1763 = vrot.slane %v1762, 1
    %v1764 = vmax.f32 %v1762, %v1763
    %v1765 = vsel %vm1134, %v1009, -inf
    %v1766 = vrot.slane %v1765, 4
    %v1767 = vmax.f32 %v1765, %v1766
    %v1768 = vrot.slane %v1767, 2
    %v1769 = vmax.f32 %v1767, %v1768
    %v1770 = vrot.slane %v1769, 1
    %v1771 = vmax.f32 %v1769, %v1770
    %v1772 = vsel %vm1134, %v1010, -inf
    %v1773 = vrot.slane %v1772, 4
    %v1774 = vmax.f32 %v1772, %v1773
    %v1775 = vrot.slane %v1774, 2
    %v1776 = vmax.f32 %v1774, %v1775
    %v1777 = vrot.slane %v1776, 1
    %v1778 = vmax.f32 %v1776, %v1777
    %v1779 = vsel %vm1134, %v901, -inf
    %v1780 = vrot.slane %v1779, 4
    %v1781 = vmax.f32 %v1779, %v1780
    %v1782 = vrot.slane %v1781, 2
    %v1783 = vmax.f32 %v1781, %v1782
    %v1784 = vrot.slane %v1783, 1
    %v1785 = vmax.f32 %v1783, %v1784
    %v1786 = vsel %vm1134, %v1011, -inf
    %v1787 = vrot.slane %v1786, 4
    %v1788 = vmax.f32 %v1786, %v1787
    %v1789 = vrot.slane %v1788, 2
    %v1790 = vmax.f32 %v1788, %v1789
    %v1791 = vrot.slane %v1790, 1
    %v1792 = vmax.f32 %v1790, %v1791
    %v1793 = vsel %vm1134, %v1012, -inf
    %v1794 = vrot.slane %v1793, 4
    %v1795 = vmax.f32 %v1793, %v1794
    %v1796 = vrot.slane %v1795, 2
    %v1797 = vmax.f32 %v1795, %v1796
    %v1798 = vrot.slane %v1797, 1
    %v1799 = vmax.f32 %v1797, %v1798
    %v1800 = vsel %vm1134, %v1013, -inf
    %v1801 = vrot.slane %v1800, 4
    %v1802 = vmax.f32 %v1800, %v1801
    %v1803 = vrot.slane %v1802, 2
    %v1804 = vmax.f32 %v1802, %v1803
    %v1805 = vrot.slane %v1804, 1
    %v1806 = vmax.f32 %v1804, %v1805
    %v1807 = vsel %vm1134, %v902, -inf
    %v1808 = vrot.slane %v1807, 4
    %v1809 = vmax.f32 %v1807, %v1808
    %v1810 = vrot.slane %v1809, 2
    %v1811 = vmax.f32 %v1809, %v1810
    %v1812 = vrot.slane %v1811, 1
    %v1813 = vmax.f32 %v1811, %v1812
    %v1814 = vsel %vm1134, %v1014, -inf
    %v1815 = vrot.slane %v1814, 4
    %v1816 = vmax.f32 %v1814, %v1815
    %v1817 = vrot.slane %v1816, 2
    %v1818 = vmax.f32 %v1816, %v1817
    %v1819 = vrot.slane %v1818, 1
    %v1820 = vmax.f32 %v1818, %v1819
    %v1821 = vsel %vm1134, %v1015, -inf
    %v1822 = vrot.slane %v1821, 4
    %v1823 = vmax.f32 %v1821, %v1822
    %v1824 = vrot.slane %v1823, 2
    %v1825 = vmax.f32 %v1823, %v1824
    %v1826 = vrot.slane %v1825, 1
    %v1827 = vmax.f32 %v1825, %v1826
    %v1828 = vsel %vm1134, %v1016, -inf
    %v1829 = vrot.slane %v1828, 4
    %v1830 = vmax.f32 %v1828, %v1829
    %v1831 = vrot.slane %v1830, 2
    %v1832 = vmax.f32 %v1830, %v1831
    %v1833 = vrot.slane %v1832, 1
    %v1834 = vmax.f32 %v1832, %v1833
    %v1835 = vsel %vm1134, %v903, -inf
    %v1836 = vrot.slane %v1835, 4
    %v1837 = vmax.f32 %v1835, %v1836
    %v1838 = vrot.slane %v1837, 2
    %v1839 = vmax.f32 %v1837, %v1838
    %v1840 = vrot.slane %v1839, 1
    %v1841 = vmax.f32 %v1839, %v1840
    %v1842 = vsel %vm1134, %v1017, -inf
    %v1843 = vrot.slane %v1842, 4
    %v1844 = vmax.f32 %v1842, %v1843
    %v1845 = vrot.slane %v1844, 2
    %v1846 = vmax.f32 %v1844, %v1845
    %v1847 = vrot.slane %v1846, 1
    %v1848 = vmax.f32 %v1846, %v1847
    %v1849 = vsel %vm1134, %v1018, -inf
    %v1850 = vrot.slane %v1849, 4
    %v1851 = vmax.f32 %v1849, %v1850
    %v1852 = vrot.slane %v1851, 2
    %v1853 = vmax.f32 %v1851, %v1852
    %v1854 = vrot.slane %v1853, 1
    %v1855 = vmax.f32 %v1853, %v1854
    %v1856 = vsel %vm1134, %v1019, -inf
    %v1857 = vrot.slane %v1856, 4
    %v1858 = vmax.f32 %v1856, %v1857
    %v1859 = vrot.slane %v1858, 2
    %v1860 = vmax.f32 %v1858, %v1859
    %v1861 = vrot.slane %v1860, 1
    %v1862 = vmax.f32 %v1860, %v1861
    %v1863 = vsel %vm1134, %v904, -inf
    %v1864 = vrot.slane %v1863, 4
    %v1865 = vmax.f32 %v1863, %v1864
    %v1866 = vrot.slane %v1865, 2
    %v1867 = vmax.f32 %v1865, %v1866
    %v1868 = vrot.slane %v1867, 1
    %v1869 = vmax.f32 %v1867, %v1868
    %v1870 = vsel %vm1134, %v1020, -inf
    %v1871 = vrot.slane %v1870, 4
    %v1872 = vmax.f32 %v1870, %v1871
    %v1873 = vrot.slane %v1872, 2
    %v1874 = vmax.f32 %v1872, %v1873
    %v1875 = vrot.slane %v1874, 1
    %v1876 = vmax.f32 %v1874, %v1875
    %v1877 = vsel %vm1134, %v1021, -inf
    %v1878 = vrot.slane %v1877, 4
    %v1879 = vmax.f32 %v1877, %v1878
    %v1880 = vrot.slane %v1879, 2
    %v1881 = vmax.f32 %v1879, %v1880
    %v1882 = vrot.slane %v1881, 1
    %v1883 = vmax.f32 %v1881, %v1882
    %v1884 = vsel %vm1134, %v1022, -inf
    %v1885 = vrot.slane %v1884, 4
    %v1886 = vmax.f32 %v1884, %v1885
    %v1887 = vrot.slane %v1886, 2
    %v1888 = vmax.f32 %v1886, %v1887
    %v1889 = vrot.slane %v1888, 1
    %v1890 = vmax.f32 %v1888, %v1889
    %v1891 = vsel %vm1134, %v905, -inf
    %v1892 = vrot.slane %v1891, 4
    %v1893 = vmax.f32 %v1891, %v1892
    %v1894 = vrot.slane %v1893, 2
    %v1895 = vmax.f32 %v1893, %v1894
    %v1896 = vrot.slane %v1895, 1
    %v1897 = vmax.f32 %v1895, %v1896
    %v1898 = vsel %vm1134, %v1023, -inf
    %v1899 = vrot.slane %v1898, 4
    %v1900 = vmax.f32 %v1898, %v1899
    %v1901 = vrot.slane %v1900, 2
    %v1902 = vmax.f32 %v1900, %v1901
    %v1903 = vrot.slane %v1902, 1
    %v1904 = vmax.f32 %v1902, %v1903
    %v1905 = vsel %vm1134, %v1024, -inf
    %v1906 = vrot.slane %v1905, 4
    %v1907 = vmax.f32 %v1905, %v1906
    %v1908 = vrot.slane %v1907, 2
    %v1909 = vmax.f32 %v1907, %v1908
    %v1910 = vrot.slane %v1909, 1
    %v1911 = vmax.f32 %v1909, %v1910
    %v1912 = vsel %vm1134, %v1025, -inf
    %v1913 = vrot.slane %v1912, 4
    %v1914 = vmax.f32 %v1912, %v1913
    %v1915 = vrot.slane %v1914, 2
    %v1916 = vmax.f32 %v1914, %v1915
    %v1917 = vrot.slane %v1916, 1
    %v1918 = vmax.f32 %v1916, %v1917
    %v1919 = vsel %vm1134, %v906, -inf
    %v1920 = vrot.slane %v1919, 4
    %v1921 = vmax.f32 %v1919, %v1920
    %v1922 = vrot.slane %v1921, 2
    %v1923 = vmax.f32 %v1921, %v1922
    %v1924 = vrot.slane %v1923, 1
    %v1925 = vmax.f32 %v1923, %v1924
    %v1926 = vsel %vm1134, %v1026, -inf
    %v1927 = vrot.slane %v1926, 4
    %v1928 = vmax.f32 %v1926, %v1927
    %v1929 = vrot.slane %v1928, 2
    %v1930 = vmax.f32 %v1928, %v1929
    %v1931 = vrot.slane %v1930, 1
    %v1932 = vmax.f32 %v1930, %v1931
    %v1933 = vsel %vm1134, %v1027, -inf
    %v1934 = vrot.slane %v1933, 4
    %v1935 = vmax.f32 %v1933, %v1934
    %v1936 = vrot.slane %v1935, 2
    %v1937 = vmax.f32 %v1935, %v1936
    %v1938 = vrot.slane %v1937, 1
    %v1939 = vmax.f32 %v1937, %v1938
    %v1940 = vsel %vm1134, %v1028, -inf
    %v1941 = vrot.slane %v1940, 4
    %v1942 = vmax.f32 %v1940, %v1941
    %v1943 = vrot.slane %v1942, 2
    %v1944 = vmax.f32 %v1942, %v1943
    %v1945 = vrot.slane %v1944, 1
    %v1946 = vmax.f32 %v1944, %v1945
    %v1947 = vsel %vm1134, %v907, -inf
    %v1948 = vrot.slane %v1947, 4
    %v1949 = vmax.f32 %v1947, %v1948
    %v1950 = vrot.slane %v1949, 2
    %v1951 = vmax.f32 %v1949, %v1950
    %v1952 = vrot.slane %v1951, 1
    %v1953 = vmax.f32 %v1951, %v1952
    %v1954 = vsel %vm1134, %v1029, -inf
    %v1955 = vrot.slane %v1954, 4
    %v1956 = vmax.f32 %v1954, %v1955
    %v1957 = vrot.slane %v1956, 2
    %v1958 = vmax.f32 %v1956, %v1957
    %v1959 = vrot.slane %v1958, 1
    %v1960 = vmax.f32 %v1958, %v1959
    %v1961 = vsel %vm1134, %v1030, -inf
    %v1962 = vrot.slane %v1961, 4
    %v1963 = vmax.f32 %v1961, %v1962
    %v1964 = vrot.slane %v1963, 2
    %v1965 = vmax.f32 %v1963, %v1964
    %v1966 = vrot.slane %v1965, 1
    %v1967 = vmax.f32 %v1965, %v1966
    %v1968 = vsel %vm1134, %v1031, -inf
    %v1969 = vrot.slane %v1968, 4
    %v1970 = vmax.f32 %v1968, %v1969
    %v1971 = vrot.slane %v1970, 2
    %v1972 = vmax.f32 %v1970, %v1971
    %v1973 = vrot.slane %v1972, 1
    %v1974 = vmax.f32 %v1972, %v1973
    %v1975 = vsel %vm1134, %v908, -inf
    %v1976 = vrot.slane %v1975, 4
    %v1977 = vmax.f32 %v1975, %v1976
    %v1978 = vrot.slane %v1977, 2
    %v1979 = vmax.f32 %v1977, %v1978
    %v1980 = vrot.slane %v1979, 1
    %v1981 = vmax.f32 %v1979, %v1980
    %v1982 = vsel %vm1134, %v1032, -inf
    %v1983 = vrot.slane %v1982, 4
    %v1984 = vmax.f32 %v1982, %v1983
    %v1985 = vrot.slane %v1984, 2
    %v1986 = vmax.f32 %v1984, %v1985
    %v1987 = vrot.slane %v1986, 1
    %v1988 = vmax.f32 %v1986, %v1987
    %v1989 = vsel %vm1134, %v1033, -inf
    %v1990 = vrot.slane %v1989, 4
    %v1991 = vmax.f32 %v1989, %v1990
    %v1992 = vrot.slane %v1991, 2
    %v1993 = vmax.f32 %v1991, %v1992
    %v1994 = vrot.slane %v1993, 1
    %v1995 = vmax.f32 %v1993, %v1994
    %v1996 = vsel %vm1134, %v1034, -inf
    %v1997 = vrot.slane %v1996, 4
    %v1998 = vmax.f32 %v1996, %v1997
    %v1999 = vrot.slane %v1998, 2
    %v2000 = vmax.f32 %v1998, %v1999
    %v2001 = vrot.slane %v2000, 1
    %v2002 = vmax.f32 %v2000, %v2001
    %v2003 = vsel %vm1134, %v909, -inf
    %v2004 = vrot.slane %v2003, 4
    %v2005 = vmax.f32 %v2003, %v2004
    %v2006 = vrot.slane %v2005, 2
    %v2007 = vmax.f32 %v2005, %v2006
    %v2008 = vrot.slane %v2007, 1
    %v2009 = vmax.f32 %v2007, %v2008
    %v2010 = vsel %vm1134, %v1035, -inf
    %v2011 = vrot.slane %v2010, 4
    %v2012 = vmax.f32 %v2010, %v2011
    %v2013 = vrot.slane %v2012, 2
    %v2014 = vmax.f32 %v2012, %v2013
    %v2015 = vrot.slane %v2014, 1
    %v2016 = vmax.f32 %v2014, %v2015
    %v2017 = vsel %vm1134, %v1036, -inf
    %v2018 = vrot.slane %v2017, 4
    %v2019 = vmax.f32 %v2017, %v2018
    %v2020 = vrot.slane %v2019, 2
    %v2021 = vmax.f32 %v2019, %v2020
    %v2022 = vrot.slane %v2021, 1
    %v2023 = vmax.f32 %v2021, %v2022
    %v2024 = vsel %vm1134, %v1037, -inf
    %v2025 = vrot.slane %v2024, 4
    %v2026 = vmax.f32 %v2024, %v2025
    %v2027 = vrot.slane %v2026, 2
    %v2028 = vmax.f32 %v2026, %v2027
    %v2029 = vrot.slane %v2028, 1
    %v2030 = vmax.f32 %v2028, %v2029
    %2031 = vst [vmem:[#allocation2] sm:$0xff] 0.0
    %2032 = vst [vmem:[#allocation2 + $0x8] sm:$0x3] 0.0
    %2033 = vst [vmem:[#allocation2 + $0x10] sm:$0xff] 0.0
    %2034 = vst [vmem:[#allocation2 + $0x18] sm:$0x3] 0.0
    %2035 = vst [vmem:[#allocation2 + $0x20] sm:$0xff] 0.0
    %2036 = vst [vmem:[#allocation2 + $0x28] sm:$0x3] 0.0
    %2037 = vst [vmem:[#allocation2 + $0x30] sm:$0xff] 0.0
    %2038 = vst [vmem:[#allocation2 + $0x38] sm:$0x3] 0.0
    %2039 = vst [vmem:[#allocation2 + $0x40] sm:$0xff] 0.0
    %2040 = vst [vmem:[#allocation2 + $0x48] sm:$0x3] 0.0
    %2041 = vst [vmem:[#allocation2 + $0x50] sm:$0xff] 0.0
    %2042 = vst [vmem:[#allocation2 + $0x58] sm:$0x3] 0.0
    %2043 = vst [vmem:[#allocation2 + $0x60] sm:$0xff] 0.0
    %2044 = vst [vmem:[#allocation2 + $0x68] sm:$0x3] 0.0
    %2045 = vst [vmem:[#allocation2 + $0x70] sm:$0xff] 0.0
    %2046 = vst [vmem:[#allocation2 + $0x78] sm:$0x3] 0.0
    %2047 = vst [vmem:[#allocation2 + $0x80] sm:$0xff] 0.0
    %2048 = vst [vmem:[#allocation2 + $0x88] sm:$0x3] 0.0
    %2049 = vst [vmem:[#allocation2 + $0x90] sm:$0xff] 0.0
    %2050 = vst [vmem:[#allocation2 + $0x98] sm:$0x3] 0.0
    %2051 = vst [vmem:[#allocation2 + $0xa0] sm:$0xff] 0.0
    %2052 = vst [vmem:[#allocation2 + $0xa8] sm:$0x3] 0.0
    %2053 = vst [vmem:[#allocation2 + $0xb0] sm:$0xff] 0.0
    %2054 = vst [vmem:[#allocation2 + $0xb8] sm:$0x3] 0.0
    %2055 = vst [vmem:[#allocation2 + $0xc0] sm:$0xff] 0.0
    %2056 = vst [vmem:[#allocation2 + $0xc8] sm:$0x3] 0.0
    %2057 = vst [vmem:[#allocation2 + $0xd0] sm:$0xff] 0.0
    %2058 = vst [vmem:[#allocation2 + $0xd8] sm:$0x3] 0.0
    %2059 = vst [vmem:[#allocation2 + $0xe0] sm:$0xff] 0.0
    %2060 = vst [vmem:[#allocation2 + $0xe8] sm:$0x3] 0.0
    %2061 = vst [vmem:[#allocation2 + $0xf0] sm:$0xff] 0.0
    %2062 = vst [vmem:[#allocation2 + $0xf8] sm:$0x3] 0.0
    %2063 = vst [vmem:[#allocation2 + $0x100] sm:$0xff] 0.0
    %2064 = vst [vmem:[#allocation2 + $0x108] sm:$0x3] 0.0
    %2065 = vst [vmem:[#allocation2 + $0x110] sm:$0xff] 0.0
    %2066 = vst [vmem:[#allocation2 + $0x118] sm:$0x3] 0.0
    %2067 = vst [vmem:[#allocation2 + $0x120] sm:$0xff] 0.0
    %2068 = vst [vmem:[#allocation2 + $0x128] sm:$0x3] 0.0
    %2069 = vst [vmem:[#allocation2 + $0x130] sm:$0xff] 0.0
    %2070 = vst [vmem:[#allocation2 + $0x138] sm:$0x3] 0.0
    %vm2199 = vcmask 1041409
    %v2200 = vsel %vm2199, %v1148, %v1141
    %vm2201 = vcmask 1042434
    %v2202 = vsel %vm2201, %v1155, %v2200
    %vm2203 = vcmask 1043459
    %v2204 = vsel %vm2203, %v1162, %v2202
    %vm2205 = vcmask 1044484
    %v2206 = vsel %vm2205, %v1169, %v2204
    %vm2207 = vcmask 1045509
    %v2208 = vsel %vm2207, %v1176, %v2206
    %vm2209 = vcmask 1046534
    %v2210 = vsel %vm2209, %v1183, %v2208
    %vm2211 = vcmask 1047559
    %v2212 = vsel %vm2211, %v1190, %v2210
    %v2213 = vsel %vm2199, %v1204, %v1197
    %v2214 = vsel %vm2201, %v1211, %v2213
    %v2215 = vsel %vm2203, %v1218, %v2214
    %v2216 = vsel %vm2205, %v1225, %v2215
    %v2217 = vsel %vm2207, %v1232, %v2216
    %v2218 = vsel %vm2209, %v1239, %v2217
    %v2219 = vsel %vm2211, %v1246, %v2218
    %v2220 = vsel %vm2199, %v1260, %v1253
    %v2221 = vsel %vm2201, %v1267, %v2220
    %v2222 = vsel %vm2203, %v1274, %v2221
    %v2223 = vsel %vm2205, %v1281, %v2222
    %v2224 = vsel %vm2207, %v1288, %v2223
    %v2225 = vsel %vm2209, %v1295, %v2224
    %v2226 = vsel %vm2211, %v1302, %v2225
    %v2227 = vsel %vm2199, %v1316, %v1309
    %v2228 = vsel %vm2201, %v1323, %v2227
    %v2229 = vsel %vm2203, %v1330, %v2228
    %v2230 = vsel %vm2205, %v1337, %v2229
    %v2231 = vsel %vm2207, %v1344, %v2230
    %v2232 = vsel %vm2209, %v1351, %v2231
    %v2233 = vsel %vm2211, %v1358, %v2232
    %v2234 = vsel %vm2199, %v1372, %v1365
    %v2235 = vsel %vm2201, %v1379, %v2234
    %v2236 = vsel %vm2203, %v1386, %v2235
    %v2237 = vsel %vm2205, %v1393, %v2236
    %v2238 = vsel %vm2207, %v1400, %v2237
    %v2239 = vsel %vm2209, %v1407, %v2238
    %v2240 = vsel %vm2211, %v1414, %v2239
    %v2241 = vsel %vm2199, %v1428, %v1421
    %v2242 = vsel %vm2201, %v1435, %v2241
    %v2243 = vsel %vm2203, %v1442, %v2242
    %v2244 = vsel %vm2205, %v1449, %v2243
    %v2245 = vsel %vm2207, %v1456, %v2244
    %v2246 = vsel %vm2209, %v1463, %v2245
    %v2247 = vsel %vm2211, %v1470, %v2246
    %v2248 = vsel %vm2199, %v1484, %v1477
    %v2249 = vsel %vm2201, %v1491, %v2248
    %v2250 = vsel %vm2203, %v1498, %v2249
    %v2251 = vsel %vm2205, %v1505, %v2250
    %v2252 = vsel %vm2207, %v1512, %v2251
    %v2253 = vsel %vm2209, %v1519, %v2252
    %v2254 = vsel %vm2211, %v1526, %v2253
    %v2255 = vsel %vm2199, %v1540, %v1533
    %v2256 = vsel %vm2201, %v1547, %v2255
    %v2257 = vsel %vm2203, %v1554, %v2256
    %v2258 = vsel %vm2205, %v1561, %v2257
    %v2259 = vsel %vm2207, %v1568, %v2258
    %v2260 = vsel %vm2209, %v1575, %v2259
    %v2261 = vsel %vm2211, %v1582, %v2260
    %v2262 = vsel %vm2199, %v1596, %v1589
    %v2263 = vsel %vm2201, %v1603, %v2262
    %v2264 = vsel %vm2203, %v1610, %v2263
    %v2265 = vsel %vm2205, %v1617, %v2264
    %v2266 = vsel %vm2207, %v1624, %v2265
    %v2267 = vsel %vm2209, %v1631, %v2266
    %v2268 = vsel %vm2211, %v1638, %v2267
    %v2269 = vsel %vm2199, %v1652, %v1645
    %v2270 = vsel %vm2201, %v1659, %v2269
    %v2271 = vsel %vm2203, %v1666, %v2270
    %v2272 = vsel %vm2205, %v1673, %v2271
    %v2273 = vsel %vm2207, %v1680, %v2272
    %v2274 = vsel %vm2209, %v1687, %v2273
    %v2275 = vsel %vm2211, %v1694, %v2274
    %v2276 = vsel %vm2199, %v1708, %v1701
    %v2277 = vsel %vm2201, %v1715, %v2276
    %v2278 = vsel %vm2203, %v1722, %v2277
    %v2279 = vsel %vm2205, %v1729, %v2278
    %v2280 = vsel %vm2207, %v1736, %v2279
    %v2281 = vsel %vm2209, %v1743, %v2280
    %v2282 = vsel %vm2211, %v1750, %v2281
    %v2283 = vsel %vm2199, %v1764, %v1757
    %v2284 = vsel %vm2201, %v1771, %v2283
    %v2285 = vsel %vm2203, %v1778, %v2284
    %v2286 = vsel %vm2205, %v1785, %v2285
    %v2287 = vsel %vm2207, %v1792, %v2286
    %v2288 = vsel %vm2209, %v1799, %v2287
    %v2289 = vsel %vm2211, %v1806, %v2288
    %v2290 = vsel %vm2199, %v1820, %v1813
    %v2291 = vsel %vm2201, %v1827, %v2290
    %v2292 = vsel %vm2203, %v1834, %v2291
    %v2293 = vsel %vm2205, %v1841, %v2292
    %v2294 = vsel %vm2207, %v1848, %v2293
    %v2295 = vsel %vm2209, %v1855, %v2294
    %v2296 = vsel %vm2211, %v1862, %v2295
    %v2297 = vsel %vm2199, %v1876, %v1869
    %v2298 = vsel %vm2201, %v1883, %v2297
    %v2299 = vsel %vm2203, %v1890, %v2298
    %v2300 = vsel %vm2205, %v1897, %v2299
    %v2301 = vsel %vm2207, %v1904, %v2300
    %v2302 = vsel %vm2209, %v1911, %v2301
    %v2303 = vsel %vm2211, %v1918, %v2302
    %v2304 = vsel %vm2199, %v1932, %v1925
    %v2305 = vsel %vm2201, %v1939, %v2304
    %v2306 = vsel %vm2203, %v1946, %v2305
    %v2307 = vsel %vm2205, %v1953, %v2306
    %v2308 = vsel %vm2207, %v1960, %v2307
    %v2309 = vsel %vm2209, %v1967, %v2308
    %v2310 = vsel %vm2211, %v1974, %v2309
    %v2311 = vsel %vm2199, %v1988, %v1981
    %v2312 = vsel %vm2201, %v1995, %v2311
    %v2313 = vsel %vm2203, %v2002, %v2312
    %v2314 = vsel %vm2205, %v2009, %v2313
    %v2315 = vsel %vm2207, %v2016, %v2314
    %v2316 = vsel %vm2209, %v2023, %v2315
    %v2317 = vsel %vm2211, %v2030, %v2316
    %s2334 = scalar_lea.vmem [#allocation2], 16
    %2335 = vst [vmem:[%s2334 + $0x1] sm:$0xff] %v2212
    %2336 = vst [vmem:[%s2334 + $0x11] sm:$0xff] %v2219
    %2337 = vst [vmem:[%s2334 + $0x21] sm:$0xff] %v2226
    %2338 = vst [vmem:[%s2334 + $0x31] sm:$0xff] %v2233
    %2339 = vst [vmem:[%s2334 + $0x41] sm:$0xff] %v2240
    %2340 = vst [vmem:[%s2334 + $0x51] sm:$0xff] %v2247
    %2341 = vst [vmem:[%s2334 + $0x61] sm:$0xff] %v2254
    %2342 = vst [vmem:[%s2334 + $0x71] sm:$0xff] %v2261
    %2343 = vst [vmem:[%s2334 + $0xa1] sm:$0xff] %v2268
    %2344 = vst [vmem:[%s2334 + $0xb1] sm:$0xff] %v2275
    %2345 = vst [vmem:[%s2334 + $0xc1] sm:$0xff] %v2282
    %2346 = vst [vmem:[%s2334 + $0xd1] sm:$0xff] %v2289
    %2347 = vst [vmem:[%s2334 + $0xe1] sm:$0xff] %v2296
    %2348 = vst [vmem:[%s2334 + $0xf1] sm:$0xff] %v2303
    %2349 = vst [vmem:[%s2334 + $0x101] sm:$0xff] %v2310
    %2350 = vst [vmem:[%s2334 + $0x111] sm:$0xff] %v2317
    %v2351 = vld [vmem:[#allocation2] sm:$0xff]
    %v2352 = vld [vmem:[#allocation2 + $0x10] sm:$0xff]
    %v2353 = vld [vmem:[#allocation2 + $0x20] sm:$0xff]
    %v2354 = vld [vmem:[#allocation2 + $0x30] sm:$0xff]
    %v2355 = vld [vmem:[#allocation2 + $0x40] sm:$0xff]
    %v2356 = vld [vmem:[#allocation2 + $0x50] sm:$0xff]
    %v2357 = vld [vmem:[#allocation2 + $0x60] sm:$0xff]
    %v2358 = vld [vmem:[#allocation2 + $0x70] sm:$0xff]
    %v2359 = vld [vmem:[#allocation2 + $0xa0] sm:$0xff]
    %v2360 = vld [vmem:[#allocation2 + $0xb0] sm:$0xff]
    %v2361 = vld [vmem:[#allocation2 + $0xc0] sm:$0xff]
    %v2362 = vld [vmem:[#allocation2 + $0xd0] sm:$0xff]
    %v2363 = vld [vmem:[#allocation2 + $0xe0] sm:$0xff]
    %v2364 = vld [vmem:[#allocation2 + $0xf0] sm:$0xff]
    %v2365 = vld [vmem:[#allocation2 + $0x100] sm:$0xff]
    %v2366 = vld [vmem:[#allocation2 + $0x110] sm:$0xff]
    %v2367 = vpack.c.bf16 %v2352, %v2351
    %v2368 = vpack.c.bf16 %v2354, %v2353
    %v2369 = vpack.c.bf16 %v2356, %v2355
    %v2370 = vpack.c.bf16 %v2358, %v2357
    %v2371 = vpack.c.bf16 %v2360, %v2359
    %v2372 = vpack.c.bf16 %v2362, %v2361
    %v2373 = vpack.c.bf16 %v2364, %v2363
    %v2374 = vpack.c.bf16 %v2366, %v2365
    %v2375 = vld [vmem:[#allocation10] sm:$0xf]
    %v2376 = vld [vmem:[#allocation10 + $0x4] sm:$0xf]
    %v2377 = vld [vmem:[#allocation10 + $0x8] sm:$0xf]
    %v2378 = vld [vmem:[#allocation10 + $0xc] sm:$0xf]
    %v2379 = vld [vmem:[#allocation10 + $0x10] sm:$0xf]
    %v2380 = vld [vmem:[#allocation10 + $0x14] sm:$0xf]
    %v2381 = vld [vmem:[#allocation10 + $0x18] sm:$0xf]
    %v2382 = vld [vmem:[#allocation10 + $0x1c] sm:$0xf]
    %v2383 = vld [vmem:[#allocation10 + $0x20] sm:$0xf]
    %v2384 = vld [vmem:[#allocation10 + $0x24] sm:$0xf]
    %v2385 = vld [vmem:[#allocation10 + $0x28] sm:$0xf]
    %v2386 = vld [vmem:[#allocation10 + $0x2c] sm:$0xf]
    %v2387 = vld [vmem:[#allocation10 + $0x30] sm:$0xf]
    %v2388 = vld [vmem:[#allocation10 + $0x34] sm:$0xf]
    %v2389 = vld [vmem:[#allocation10 + $0x38] sm:$0xf]
    %v2390 = vld [vmem:[#allocation10 + $0x3c] sm:$0xf]
    %v2391 = vld [vmem:[#allocation2 + $0x1] sm:$0xff]
    %v2392 = vld [vmem:[#allocation2 + $0x11] sm:$0xff]
    %v2393 = vld [vmem:[#allocation2 + $0x21] sm:$0xff]
    %v2394 = vld [vmem:[#allocation2 + $0x31] sm:$0xff]
    %v2395 = vld [vmem:[#allocation2 + $0x41] sm:$0xff]
    %v2396 = vld [vmem:[#allocation2 + $0x51] sm:$0xff]
    %v2397 = vld [vmem:[#allocation2 + $0x61] sm:$0xff]
    %v2398 = vld [vmem:[#allocation2 + $0x71] sm:$0xff]
    %v2399 = vld [vmem:[#allocation2 + $0xa1] sm:$0xff]
    %v2400 = vld [vmem:[#allocation2 + $0xb1] sm:$0xff]
    %v2401 = vld [vmem:[#allocation2 + $0xc1] sm:$0xff]
    %v2402 = vld [vmem:[#allocation2 + $0xd1] sm:$0xff]
    %v2403 = vld [vmem:[#allocation2 + $0xe1] sm:$0xff]
    %v2404 = vld [vmem:[#allocation2 + $0xf1] sm:$0xff]
    %v2405 = vld [vmem:[#allocation2 + $0x101] sm:$0xff]
    %v2406 = vld [vmem:[#allocation2 + $0x111] sm:$0xff]
    %v2407 = vpack.c.bf16 %v2392, %v2391
    %v2408 = vpack.c.bf16 %v2394, %v2393
    %v2409 = vpack.c.bf16 %v2396, %v2395
    %v2410 = vpack.c.bf16 %v2398, %v2397
    %v2411 = vpack.c.bf16 %v2400, %v2399
    %v2412 = vpack.c.bf16 %v2402, %v2401
    %v2413 = vpack.c.bf16 %v2404, %v2403
    %v2414 = vpack.c.bf16 %v2406, %v2405
    %s2415 = scalar_lea.vmem [#allocation10], 64
    %v2416 = vld [vmem:[%s2415] sm:$0xf]
    %v2417 = vld [vmem:[%s2415 + $0x4] sm:$0xf]
    %v2418 = vld [vmem:[%s2415 + $0x8] sm:$0xf]
    %v2419 = vld [vmem:[%s2415 + $0xc] sm:$0xf]
    %v2420 = vld [vmem:[%s2415 + $0x10] sm:$0xf]
    %v2421 = vld [vmem:[%s2415 + $0x14] sm:$0xf]
    %v2422 = vld [vmem:[%s2415 + $0x18] sm:$0xf]
    %v2423 = vld [vmem:[%s2415 + $0x1c] sm:$0xf]
    %v2424 = vld [vmem:[%s2415 + $0x20] sm:$0xf]
    %v2425 = vld [vmem:[%s2415 + $0x24] sm:$0xf]
    %v2426 = vld [vmem:[%s2415 + $0x28] sm:$0xf]
    %v2427 = vld [vmem:[%s2415 + $0x2c] sm:$0xf]
    %v2428 = vld [vmem:[%s2415 + $0x30] sm:$0xf]
    %v2429 = vld [vmem:[%s2415 + $0x34] sm:$0xf]
    %v2430 = vld [vmem:[%s2415 + $0x38] sm:$0xf]
    %v2431 = vld [vmem:[%s2415 + $0x3c] sm:$0xf]
    %v2448 = vunpack.c.l.b16 %v2416
    %v2449 = vunpack.c.l.b16 %v2417
    %v2450 = vunpack.c.l.b16 %v2418
    %v2451 = vunpack.c.l.b16 %v2419
    %v2452 = vunpack.c.l.b16 %v2420
    %v2453 = vunpack.c.l.b16 %v2421
    %v2454 = vunpack.c.l.b16 %v2422
    %v2455 = vunpack.c.l.b16 %v2423
    %v2456 = vunpack.c.l.b16 %v2424
    %v2457 = vunpack.c.l.b16 %v2425
    %v2458 = vunpack.c.l.b16 %v2426
    %v2459 = vunpack.c.l.b16 %v2427
    %v2460 = vunpack.c.l.b16 %v2428
    %v2461 = vunpack.c.l.b16 %v2429
    %v2462 = vunpack.c.l.b16 %v2430
    %v2463 = vunpack.c.l.b16 %v2431
    %v2464 = vpack.c.b16 %v2449, %v2448
    %v2465 = vpack.c.b16 %v2451, %v2450
    %v2466 = vpack.c.b16 %v2453, %v2452
    %v2467 = vpack.c.b16 %v2455, %v2454
    %v2468 = vpack.c.b16 %v2457, %v2456
    %v2469 = vpack.c.b16 %v2459, %v2458
    %v2470 = vpack.c.b16 %v2461, %v2460
    %v2471 = vpack.c.b16 %v2463, %v2462
    %2480 = vmatpush.bf16.msra.mxu0 %v2471
    %2481 = vmatpush.bf16.msra.mxu0 %v2470
    %2482 = vmatpush.bf16.msra.mxu0 %v2469
    %2483 = vmatpush.bf16.msra.mxu0 %v2468
    %2484 = vmatpush.bf16.msra.mxu0 %v2467
    %2485 = vmatpush.bf16.msra.mxu0 %v2466
    %2486 = vmatpush.bf16.msra.mxu0 %v2465
    %2487 = vmatpush.bf16.msra.mxu0 %v2464
    %2488 = vmatmul.bf16.gmra.mxu0 %v2407
    %v2489 = vpop.f32.mrf.mxu0
    %v2490 = vadd.f32 0.0, %v2489
    %v2491 = vpop.f32.mrf.mxu0
    %v2492 = vadd.f32 0.0, %v2491
    %2493 = vmatmul.bf16.gmra.mxu0 %v2408
    %v2494 = vpop.f32.mrf.mxu0
    %v2495 = vadd.f32 0.0, %v2494
    %v2496 = vpop.f32.mrf.mxu0
    %v2497 = vadd.f32 0.0, %v2496
    %2498 = vmatmul.bf16.gmra.mxu0 %v2409
    %v2499 = vpop.f32.mrf.mxu0
    %v2500 = vadd.f32 0.0, %v2499
    %v2501 = vpop.f32.mrf.mxu0
    %v2502 = vadd.f32 0.0, %v2501
    %2503 = vmatmul.bf16.gmra.mxu0 %v2410
    %v2504 = vpop.f32.mrf.mxu0
    %v2505 = vadd.f32 0.0, %v2504
    %v2506 = vpop.f32.mrf.mxu0
    %v2507 = vadd.f32 0.0, %v2506
    %2508 = vmatmul.bf16.gmra.mxu0 %v2411
    %v2509 = vpop.f32.mrf.mxu0
    %v2510 = vadd.f32 0.0, %v2509
    %v2511 = vpop.f32.mrf.mxu0
    %v2512 = vadd.f32 0.0, %v2511
    %2513 = vmatmul.bf16.gmra.mxu0 %v2412
    %v2514 = vpop.f32.mrf.mxu0
    %v2515 = vadd.f32 0.0, %v2514
    %v2516 = vpop.f32.mrf.mxu0
    %v2517 = vadd.f32 0.0, %v2516
    %2518 = vmatmul.bf16.gmra.mxu0 %v2413
    %v2519 = vpop.f32.mrf.mxu0
    %v2520 = vadd.f32 0.0, %v2519
    %v2521 = vpop.f32.mrf.mxu0
    %v2522 = vadd.f32 0.0, %v2521
    %2523 = vmatmul.bf16.gmra.mxu0 %v2414
    %v2524 = vpop.f32.mrf.mxu0
    %v2525 = vadd.f32 0.0, %v2524
    %v2526 = vpop.f32.mrf.mxu0
    %v2527 = vadd.f32 0.0, %v2526
    %2528 = vdwg.mxu0
    %v2545 = vunpack.c.l.b16 %v2375
    %v2546 = vunpack.c.l.b16 %v2376
    %v2547 = vunpack.c.l.b16 %v2377
    %v2548 = vunpack.c.l.b16 %v2378
    %v2549 = vunpack.c.l.b16 %v2379
    %v2550 = vunpack.c.l.b16 %v2380
    %v2551 = vunpack.c.l.b16 %v2381
    %v2552 = vunpack.c.l.b16 %v2382
    %v2553 = vunpack.c.l.b16 %v2383
    %v2554 = vunpack.c.l.b16 %v2384
    %v2555 = vunpack.c.l.b16 %v2385
    %v2556 = vunpack.c.l.b16 %v2386
    %v2557 = vunpack.c.l.b16 %v2387
    %v2558 = vunpack.c.l.b16 %v2388
    %v2559 = vunpack.c.l.b16 %v2389
    %v2560 = vunpack.c.l.b16 %v2390
    %v2561 = vpack.c.b16 %v2546, %v2545
    %v2562 = vpack.c.b16 %v2548, %v2547
    %v2563 = vpack.c.b16 %v2550, %v2549
    %v2564 = vpack.c.b16 %v2552, %v2551
    %v2565 = vpack.c.b16 %v2554, %v2553
    %v2566 = vpack.c.b16 %v2556, %v2555
    %v2567 = vpack.c.b16 %v2558, %v2557
    %v2568 = vpack.c.b16 %v2560, %v2559
    %2577 = vmatpush.bf16.msra.mxu0 %v2568
    %2578 = vmatpush.bf16.msra.mxu0 %v2567
    %2579 = vmatpush.bf16.msra.mxu0 %v2566
    %2580 = vmatpush.bf16.msra.mxu0 %v2565
    %2581 = vmatpush.bf16.msra.mxu0 %v2564
    %2582 = vmatpush.bf16.msra.mxu0 %v2563
    %2583 = vmatpush.bf16.msra.mxu0 %v2562
    %2584 = vmatpush.bf16.msra.mxu0 %v2561
    %2585 = vmatmul.bf16.gmra.mxu0 %v2367
    %v2586 = vpop.f32.mrf.mxu0
    %v2587 = vadd.f32 %v2490, %v2586
    %v2588 = vpop.f32.mrf.mxu0
    %v2589 = vadd.f32 %v2492, %v2588
    %2590 = vmatmul.bf16.gmra.mxu0 %v2368
    %v2591 = vpop.f32.mrf.mxu0
    %v2592 = vadd.f32 %v2495, %v2591
    %v2593 = vpop.f32.mrf.mxu0
    %v2594 = vadd.f32 %v2497, %v2593
    %2595 = vmatmul.bf16.gmra.mxu0 %v2369
    %v2596 = vpop.f32.mrf.mxu0
    %v2597 = vadd.f32 %v2500, %v2596
    %v2598 = vpop.f32.mrf.mxu0
    %v2599 = vadd.f32 %v2502, %v2598
    %2600 = vmatmul.bf16.gmra.mxu0 %v2370
    %v2601 = vpop.f32.mrf.mxu0
    %v2602 = vadd.f32 %v2505, %v2601
    %v2603 = vpop.f32.mrf.mxu0
    %v2604 = vadd.f32 %v2507, %v2603
    %2605 = vmatmul.bf16.gmra.mxu0 %v2371
    %v2606 = vpop.f32.mrf.mxu0
    %v2607 = vadd.f32 %v2510, %v2606
    %v2608 = vpop.f32.mrf.mxu0
    %v2609 = vadd.f32 %v2512, %v2608
    %2610 = vmatmul.bf16.gmra.mxu0 %v2372
    %v2611 = vpop.f32.mrf.mxu0
    %v2612 = vadd.f32 %v2515, %v2611
    %v2613 = vpop.f32.mrf.mxu0
    %v2614 = vadd.f32 %v2517, %v2613
    %2615 = vmatmul.bf16.gmra.mxu0 %v2373
    %v2616 = vpop.f32.mrf.mxu0
    %v2617 = vadd.f32 %v2520, %v2616
    %v2618 = vpop.f32.mrf.mxu0
    %v2619 = vadd.f32 %v2522, %v2618
    %2620 = vmatmul.bf16.gmra.mxu0 %v2374
    %v2621 = vpop.f32.mrf.mxu0
    %v2622 = vadd.f32 %v2525, %v2621
    %v2623 = vpop.f32.mrf.mxu0
    %v2624 = vadd.f32 %v2527, %v2623
    %2625 = vdwg.mxu0
    %v2626 = vld [vmem:[#allocation2 + $0x2] sm:$0xff]
    %v2627 = vld [vmem:[#allocation2 + $0x12] sm:$0xff]
    %v2628 = vld [vmem:[#allocation2 + $0x22] sm:$0xff]
    %v2629 = vld [vmem:[#allocation2 + $0x32] sm:$0xff]
    %v2630 = vld [vmem:[#allocation2 + $0x42] sm:$0xff]
    %v2631 = vld [vmem:[#allocation2 + $0x52] sm:$0xff]
    %v2632 = vld [vmem:[#allocation2 + $0x62] sm:$0xff]
    %v2633 = vld [vmem:[#allocation2 + $0x72] sm:$0xff]
    %v2634 = vld [vmem:[#allocation2 + $0xa2] sm:$0xff]
    %v2635 = vld [vmem:[#allocation2 + $0xb2] sm:$0xff]
    %v2636 = vld [vmem:[#allocation2 + $0xc2] sm:$0xff]
    %v2637 = vld [vmem:[#allocation2 + $0xd2] sm:$0xff]
    %v2638 = vld [vmem:[#allocation2 + $0xe2] sm:$0xff]
    %v2639 = vld [vmem:[#allocation2 + $0xf2] sm:$0xff]
    %v2640 = vld [vmem:[#allocation2 + $0x102] sm:$0xff]
    %v2641 = vld [vmem:[#allocation2 + $0x112] sm:$0xff]
    %v2642 = vpack.c.bf16 %v2627, %v2626
    %v2643 = vpack.c.bf16 %v2629, %v2628
    %v2644 = vpack.c.bf16 %v2631, %v2630
    %v2645 = vpack.c.bf16 %v2633, %v2632
    %v2646 = vpack.c.bf16 %v2635, %v2634
    %v2647 = vpack.c.bf16 %v2637, %v2636
    %v2648 = vpack.c.bf16 %v2639, %v2638
    %v2649 = vpack.c.bf16 %v2641, %v2640
    %s2650 = scalar_lea.vmem [#allocation10], 128
    %v2651 = vld [vmem:[%s2650] sm:$0xf]
    %v2652 = vld [vmem:[%s2650 + $0x4] sm:$0xf]
    %v2653 = vld [vmem:[%s2650 + $0x8] sm:$0xf]
    %v2654 = vld [vmem:[%s2650 + $0xc] sm:$0xf]
    %v2655 = vld [vmem:[%s2650 + $0x10] sm:$0xf]
    %v2656 = vld [vmem:[%s2650 + $0x14] sm:$0xf]
    %v2657 = vld [vmem:[%s2650 + $0x18] sm:$0xf]
    %v2658 = vld [vmem:[%s2650 + $0x1c] sm:$0xf]
    %v2659 = vld [vmem:[%s2650 + $0x20] sm:$0xf]
    %v2660 = vld [vmem:[%s2650 + $0x24] sm:$0xf]
    %v2661 = vld [vmem:[%s2650 + $0x28] sm:$0xf]
    %v2662 = vld [vmem:[%s2650 + $0x2c] sm:$0xf]
    %v2663 = vld [vmem:[%s2650 + $0x30] sm:$0xf]
    %v2664 = vld [vmem:[%s2650 + $0x34] sm:$0xf]
    %v2665 = vld [vmem:[%s2650 + $0x38] sm:$0xf]
    %v2666 = vld [vmem:[%s2650 + $0x3c] sm:$0xf]
    %v2683 = vunpack.c.l.b16 %v2651
    %v2684 = vunpack.c.l.b16 %v2652
    %v2685 = vunpack.c.l.b16 %v2653
    %v2686 = vunpack.c.l.b16 %v2654
    %v2687 = vunpack.c.l.b16 %v2655
    %v2688 = vunpack.c.l.b16 %v2656
    %v2689 = vunpack.c.l.b16 %v2657
    %v2690 = vunpack.c.l.b16 %v2658
    %v2691 = vunpack.c.l.b16 %v2659
    %v2692 = vunpack.c.l.b16 %v2660
    %v2693 = vunpack.c.l.b16 %v2661
    %v2694 = vunpack.c.l.b16 %v2662
    %v2695 = vunpack.c.l.b16 %v2663
    %v2696 = vunpack.c.l.b16 %v2664
    %v2697 = vunpack.c.l.b16 %v2665
    %v2698 = vunpack.c.l.b16 %v2666
    %v2699 = vpack.c.b16 %v2684, %v2683
    %v2700 = vpack.c.b16 %v2686, %v2685
    %v2701 = vpack.c.b16 %v2688, %v2687
    %v2702 = vpack.c.b16 %v2690, %v2689
    %v2703 = vpack.c.b16 %v2692, %v2691
    %v2704 = vpack.c.b16 %v2694, %v2693
    %v2705 = vpack.c.b16 %v2696, %v2695
    %v2706 = vpack.c.b16 %v2698, %v2697
    %2715 = vmatpush.bf16.msra.mxu0 %v2706
    %2716 = vmatpush.bf16.msra.mxu0 %v2705
    %2717 = vmatpush.bf16.msra.mxu0 %v2704
    %2718 = vmatpush.bf16.msra.mxu0 %v2703
    %2719 = vmatpush.bf16.msra.mxu0 %v2702
    %2720 = vmatpush.bf16.msra.mxu0 %v2701
    %2721 = vmatpush.bf16.msra.mxu0 %v2700
    %2722 = vmatpush.bf16.msra.mxu0 %v2699
    %2723 = vmatmul.bf16.gmra.mxu0 %v2642
    %v2724 = vpop.f32.mrf.mxu0
    %v2725 = vadd.f32 0.0, %v2724
    %v2726 = vpop.f32.mrf.mxu0
    %v2727 = vadd.f32 0.0, %v2726
    %2728 = vmatmul.bf16.gmra.mxu0 %v2643
    %v2729 = vpop.f32.mrf.mxu0
    %v2730 = vadd.f32 0.0, %v2729
    %v2731 = vpop.f32.mrf.mxu0
    %v2732 = vadd.f32 0.0, %v2731
    %2733 = vmatmul.bf16.gmra.mxu0 %v2644
    %v2734 = vpop.f32.mrf.mxu0
    %v2735 = vadd.f32 0.0, %v2734
    %v2736 = vpop.f32.mrf.mxu0
    %v2737 = vadd.f32 0.0, %v2736
    %2738 = vmatmul.bf16.gmra.mxu0 %v2645
    %v2739 = vpop.f32.mrf.mxu0
    %v2740 = vadd.f32 0.0, %v2739
    %v2741 = vpop.f32.mrf.mxu0
    %v2742 = vadd.f32 0.0, %v2741
    %2743 = vmatmul.bf16.gmra.mxu0 %v2646
    %v2744 = vpop.f32.mrf.mxu0
    %v2745 = vadd.f32 0.0, %v2744
    %v2746 = vpop.f32.mrf.mxu0
    %v2747 = vadd.f32 0.0, %v2746
    %2748 = vmatmul.bf16.gmra.mxu0 %v2647
    %v2749 = vpop.f32.mrf.mxu0
    %v2750 = vadd.f32 0.0, %v2749
    %v2751 = vpop.f32.mrf.mxu0
    %v2752 = vadd.f32 0.0, %v2751
    %2753 = vmatmul.bf16.gmra.mxu0 %v2648
    %v2754 = vpop.f32.mrf.mxu0
    %v2755 = vadd.f32 0.0, %v2754
    %v2756 = vpop.f32.mrf.mxu0
    %v2757 = vadd.f32 0.0, %v2756
    %2758 = vmatmul.bf16.gmra.mxu0 %v2649
    %v2759 = vpop.f32.mrf.mxu0
    %v2760 = vadd.f32 0.0, %v2759
    %v2761 = vpop.f32.mrf.mxu0
    %v2762 = vadd.f32 0.0, %v2761
    %2763 = vdwg.mxu0
    %v2764 = vadd.f32 %v2587, %v2725
    %v2765 = vadd.f32 %v2589, %v2727
    %v2766 = vadd.f32 %v2592, %v2730
    %v2767 = vadd.f32 %v2594, %v2732
    %v2768 = vadd.f32 %v2597, %v2735
    %v2769 = vadd.f32 %v2599, %v2737
    %v2770 = vadd.f32 %v2602, %v2740
    %v2771 = vadd.f32 %v2604, %v2742
    %v2772 = vadd.f32 %v2607, %v2745
    %v2773 = vadd.f32 %v2609, %v2747
    %v2774 = vadd.f32 %v2612, %v2750
    %v2775 = vadd.f32 %v2614, %v2752
    %v2776 = vadd.f32 %v2617, %v2755
    %v2777 = vadd.f32 %v2619, %v2757
    %v2778 = vadd.f32 %v2622, %v2760
    %v2779 = vadd.f32 %v2624, %v2762
    %v2780 = vld [vmem:[%s2334] sm:$0xff]
    %v2781 = vld [vmem:[%s2334 + $0x10] sm:$0xff]
    %v2782 = vld [vmem:[%s2334 + $0x20] sm:$0xff]
    %v2783 = vld [vmem:[%s2334 + $0x30] sm:$0xff]
    %v2784 = vld [vmem:[%s2334 + $0x40] sm:$0xff]
    %v2785 = vld [vmem:[%s2334 + $0x50] sm:$0xff]
    %v2786 = vld [vmem:[%s2334 + $0x60] sm:$0xff]
    %v2787 = vld [vmem:[%s2334 + $0x70] sm:$0xff]
    %v2788 = vld [vmem:[%s2334 + $0xa0] sm:$0xff]
    %v2789 = vld [vmem:[%s2334 + $0xb0] sm:$0xff]
    %v2790 = vld [vmem:[%s2334 + $0xc0] sm:$0xff]
    %v2791 = vld [vmem:[%s2334 + $0xd0] sm:$0xff]
    %v2792 = vld [vmem:[%s2334 + $0xe0] sm:$0xff]
    %v2793 = vld [vmem:[%s2334 + $0xf0] sm:$0xff]
    %v2794 = vld [vmem:[%s2334 + $0x100] sm:$0xff]
    %v2795 = vld [vmem:[%s2334 + $0x110] sm:$0xff]
    %v2796 = vpack.c.bf16 %v2781, %v2780
    %v2797 = vpack.c.bf16 %v2783, %v2782
    %v2798 = vpack.c.bf16 %v2785, %v2784
    %v2799 = vpack.c.bf16 %v2787, %v2786
    %v2800 = vpack.c.bf16 %v2789, %v2788
    %v2801 = vpack.c.bf16 %v2791, %v2790
    %v2802 = vpack.c.bf16 %v2793, %v2792
    %v2803 = vpack.c.bf16 %v2795, %v2794
    %s2804 = scalar_lea.vmem [#allocation10], 192
    %v2805 = vld [vmem:[%s2804] sm:$0xf]
    %v2806 = vld [vmem:[%s2804 + $0x4] sm:$0xf]
    %v2807 = vld [vmem:[%s2804 + $0x8] sm:$0xf]
    %v2808 = vld [vmem:[%s2804 + $0xc] sm:$0xf]
    %v2809 = vld [vmem:[%s2804 + $0x10] sm:$0xf]
    %v2810 = vld [vmem:[%s2804 + $0x14] sm:$0xf]
    %v2811 = vld [vmem:[%s2804 + $0x18] sm:$0xf]
    %v2812 = vld [vmem:[%s2804 + $0x1c] sm:$0xf]
    %v2813 = vld [vmem:[%s2804 + $0x20] sm:$0xf]
    %v2814 = vld [vmem:[%s2804 + $0x24] sm:$0xf]
    %v2815 = vld [vmem:[%s2804 + $0x28] sm:$0xf]
    %v2816 = vld [vmem:[%s2804 + $0x2c] sm:$0xf]
    %v2817 = vld [vmem:[%s2804 + $0x30] sm:$0xf]
    %v2818 = vld [vmem:[%s2804 + $0x34] sm:$0xf]
    %v2819 = vld [vmem:[%s2804 + $0x38] sm:$0xf]
    %v2820 = vld [vmem:[%s2804 + $0x3c] sm:$0xf]
    %v2837 = vunpack.c.l.b16 %v2805
    %v2838 = vunpack.c.l.b16 %v2806
    %v2839 = vunpack.c.l.b16 %v2807
    %v2840 = vunpack.c.l.b16 %v2808
    %v2841 = vunpack.c.l.b16 %v2809
    %v2842 = vunpack.c.l.b16 %v2810
    %v2843 = vunpack.c.l.b16 %v2811
    %v2844 = vunpack.c.l.b16 %v2812
    %v2845 = vunpack.c.l.b16 %v2813
    %v2846 = vunpack.c.l.b16 %v2814
    %v2847 = vunpack.c.l.b16 %v2815
    %v2848 = vunpack.c.l.b16 %v2816
    %v2849 = vunpack.c.l.b16 %v2817
    %v2850 = vunpack.c.l.b16 %v2818
    %v2851 = vunpack.c.l.b16 %v2819
    %v2852 = vunpack.c.l.b16 %v2820
    %v2853 = vpack.c.b16 %v2838, %v2837
    %v2854 = vpack.c.b16 %v2840, %v2839
    %v2855 = vpack.c.b16 %v2842, %v2841
    %v2856 = vpack.c.b16 %v2844, %v2843
    %v2857 = vpack.c.b16 %v2846, %v2845
    %v2858 = vpack.c.b16 %v2848, %v2847
    %v2859 = vpack.c.b16 %v2850, %v2849
    %v2860 = vpack.c.b16 %v2852, %v2851
    %2869 = vmatpush.bf16.msra.mxu0 %v2860
    %2870 = vmatpush.bf16.msra.mxu0 %v2859
    %2871 = vmatpush.bf16.msra.mxu0 %v2858
    %2872 = vmatpush.bf16.msra.mxu0 %v2857
    %2873 = vmatpush.bf16.msra.mxu0 %v2856
    %2874 = vmatpush.bf16.msra.mxu0 %v2855
    %2875 = vmatpush.bf16.msra.mxu0 %v2854
    %2876 = vmatpush.bf16.msra.mxu0 %v2853
    %2877 = vmatmul.bf16.gmra.mxu0 %v2796
    %v2878 = vpop.f32.mrf.mxu0
    %v2879 = vadd.f32 0.0, %v2878
    %v2880 = vpop.f32.mrf.mxu0
    %v2881 = vadd.f32 0.0, %v2880
    %2882 = vmatmul.bf16.gmra.mxu0 %v2797
    %v2883 = vpop.f32.mrf.mxu0
    %v2884 = vadd.f32 0.0, %v2883
    %v2885 = vpop.f32.mrf.mxu0
    %v2886 = vadd.f32 0.0, %v2885
    %2887 = vmatmul.bf16.gmra.mxu0 %v2798
    %v2888 = vpop.f32.mrf.mxu0
    %v2889 = vadd.f32 0.0, %v2888
    %v2890 = vpop.f32.mrf.mxu0
    %v2891 = vadd.f32 0.0, %v2890
    %2892 = vmatmul.bf16.gmra.mxu0 %v2799
    %v2893 = vpop.f32.mrf.mxu0
    %v2894 = vadd.f32 0.0, %v2893
    %v2895 = vpop.f32.mrf.mxu0
    %v2896 = vadd.f32 0.0, %v2895
    %2897 = vmatmul.bf16.gmra.mxu0 %v2800
    %v2898 = vpop.f32.mrf.mxu0
    %v2899 = vadd.f32 0.0, %v2898
    %v2900 = vpop.f32.mrf.mxu0
    %v2901 = vadd.f32 0.0, %v2900
    %2902 = vmatmul.bf16.gmra.mxu0 %v2801
    %v2903 = vpop.f32.mrf.mxu0
    %v2904 = vadd.f32 0.0, %v2903
    %v2905 = vpop.f32.mrf.mxu0
    %v2906 = vadd.f32 0.0, %v2905
    %2907 = vmatmul.bf16.gmra.mxu0 %v2802
    %v2908 = vpop.f32.mrf.mxu0
    %v2909 = vadd.f32 0.0, %v2908
    %v2910 = vpop.f32.mrf.mxu0
    %v2911 = vadd.f32 0.0, %v2910
    %2912 = vmatmul.bf16.gmra.mxu0 %v2803
    %v2913 = vpop.f32.mrf.mxu0
    %v2914 = vadd.f32 0.0, %v2913
    %v2915 = vpop.f32.mrf.mxu0
    %v2916 = vadd.f32 0.0, %v2915
    %2917 = vdwg.mxu0
    %v2918 = vadd.f32 %v2764, %v2879
    %v2919 = vadd.f32 %v2765, %v2881
    %v2920 = vadd.f32 %v2766, %v2884
    %v2921 = vadd.f32 %v2767, %v2886
    %v2922 = vadd.f32 %v2768, %v2889
    %v2923 = vadd.f32 %v2769, %v2891
    %v2924 = vadd.f32 %v2770, %v2894
    %v2925 = vadd.f32 %v2771, %v2896
    %v2926 = vadd.f32 %v2772, %v2899
    %v2927 = vadd.f32 %v2773, %v2901
    %v2928 = vadd.f32 %v2774, %v2904
    %v2929 = vadd.f32 %v2775, %v2906
    %v2930 = vadd.f32 %v2776, %v2909
    %v2931 = vadd.f32 %v2777, %v2911
    %v2932 = vadd.f32 %v2778, %v2914
    %v2933 = vadd.f32 %v2779, %v2916
    %v2934 = vld [vmem:[%s2334 + $0x1] sm:$0xff]
    %v2935 = vld [vmem:[%s2334 + $0x11] sm:$0xff]
    %v2936 = vld [vmem:[%s2334 + $0x21] sm:$0xff]
    %v2937 = vld [vmem:[%s2334 + $0x31] sm:$0xff]
    %v2938 = vld [vmem:[%s2334 + $0x41] sm:$0xff]
    %v2939 = vld [vmem:[%s2334 + $0x51] sm:$0xff]
    %v2940 = vld [vmem:[%s2334 + $0x61] sm:$0xff]
    %v2941 = vld [vmem:[%s2334 + $0x71] sm:$0xff]
    %v2942 = vld [vmem:[%s2334 + $0xa1] sm:$0xff]
    %v2943 = vld [vmem:[%s2334 + $0xb1] sm:$0xff]
    %v2944 = vld [vmem:[%s2334 + $0xc1] sm:$0xff]
    %v2945 = vld [vmem:[%s2334 + $0xd1] sm:$0xff]
    %v2946 = vld [vmem:[%s2334 + $0xe1] sm:$0xff]
    %v2947 = vld [vmem:[%s2334 + $0xf1] sm:$0xff]
    %v2948 = vld [vmem:[%s2334 + $0x101] sm:$0xff]
    %v2949 = vld [vmem:[%s2334 + $0x111] sm:$0xff]
    %v2950 = vpack.c.bf16 %v2935, %v2934
    %v2951 = vpack.c.bf16 %v2937, %v2936
    %v2952 = vpack.c.bf16 %v2939, %v2938
    %v2953 = vpack.c.bf16 %v2941, %v2940
    %v2954 = vpack.c.bf16 %v2943, %v2942
    %v2955 = vpack.c.bf16 %v2945, %v2944
    %v2956 = vpack.c.bf16 %v2947, %v2946
    %v2957 = vpack.c.bf16 %v2949, %v2948
    %s2958 = scalar_lea.vmem [#allocation10], 256
    %v2959 = vld [vmem:[%s2958] sm:$0xf]
    %v2960 = vld [vmem:[%s2958 + $0x4] sm:$0xf]
    %v2961 = vld [vmem:[%s2958 + $0x8] sm:$0xf]
    %v2962 = vld [vmem:[%s2958 + $0xc] sm:$0xf]
    %v2963 = vld [vmem:[%s2958 + $0x10] sm:$0xf]
    %v2964 = vld [vmem:[%s2958 + $0x14] sm:$0xf]
    %v2965 = vld [vmem:[%s2958 + $0x18] sm:$0xf]
    %v2966 = vld [vmem:[%s2958 + $0x1c] sm:$0xf]
    %v2967 = vld [vmem:[%s2958 + $0x20] sm:$0xf]
    %v2968 = vld [vmem:[%s2958 + $0x24] sm:$0xf]
    %v2969 = vld [vmem:[%s2958 + $0x28] sm:$0xf]
    %v2970 = vld [vmem:[%s2958 + $0x2c] sm:$0xf]
    %v2971 = vld [vmem:[%s2958 + $0x30] sm:$0xf]
    %v2972 = vld [vmem:[%s2958 + $0x34] sm:$0xf]
    %v2973 = vld [vmem:[%s2958 + $0x38] sm:$0xf]
    %v2974 = vld [vmem:[%s2958 + $0x3c] sm:$0xf]
    %v2991 = vunpack.c.l.b16 %v2959
    %v2992 = vunpack.c.l.b16 %v2960
    %v2993 = vunpack.c.l.b16 %v2961
    %v2994 = vunpack.c.l.b16 %v2962
    %v2995 = vunpack.c.l.b16 %v2963
    %v2996 = vunpack.c.l.b16 %v2964
    %v2997 = vunpack.c.l.b16 %v2965
    %v2998 = vunpack.c.l.b16 %v2966
    %v2999 = vunpack.c.l.b16 %v2967
    %v3000 = vunpack.c.l.b16 %v2968
    %v3001 = vunpack.c.l.b16 %v2969
    %v3002 = vunpack.c.l.b16 %v2970
    %v3003 = vunpack.c.l.b16 %v2971
    %v3004 = vunpack.c.l.b16 %v2972
    %v3005 = vunpack.c.l.b16 %v2973
    %v3006 = vunpack.c.l.b16 %v2974
    %v3007 = vpack.c.b16 %v2992, %v2991
    %v3008 = vpack.c.b16 %v2994, %v2993
    %v3009 = vpack.c.b16 %v2996, %v2995
    %v3010 = vpack.c.b16 %v2998, %v2997
    %v3011 = vpack.c.b16 %v3000, %v2999
    %v3012 = vpack.c.b16 %v3002, %v3001
    %v3013 = vpack.c.b16 %v3004, %v3003
    %v3014 = vpack.c.b16 %v3006, %v3005
    %3023 = vmatpush.bf16.msra.mxu0 %v3014
    %3024 = vmatpush.bf16.msra.mxu0 %v3013
    %3025 = vmatpush.bf16.msra.mxu0 %v3012
    %3026 = vmatpush.bf16.msra.mxu0 %v3011
    %3027 = vmatpush.bf16.msra.mxu0 %v3010
    %3028 = vmatpush.bf16.msra.mxu0 %v3009
    %3029 = vmatpush.bf16.msra.mxu0 %v3008
    %3030 = vmatpush.bf16.msra.mxu0 %v3007
    %3031 = vmatmul.bf16.gmra.mxu0 %v2950
    %v3032 = vpop.f32.mrf.mxu0
    %v3033 = vadd.f32 0.0, %v3032
    %v3034 = vpop.f32.mrf.mxu0
    %v3035 = vadd.f32 0.0, %v3034
    %3036 = vmatmul.bf16.gmra.mxu0 %v2951
    %v3037 = vpop.f32.mrf.mxu0
    %v3038 = vadd.f32 0.0, %v3037
    %v3039 = vpop.f32.mrf.mxu0
    %v3040 = vadd.f32 0.0, %v3039
    %3041 = vmatmul.bf16.gmra.mxu0 %v2952
    %v3042 = vpop.f32.mrf.mxu0
    %v3043 = vadd.f32 0.0, %v3042
    %v3044 = vpop.f32.mrf.mxu0
    %v3045 = vadd.f32 0.0, %v3044
    %3046 = vmatmul.bf16.gmra.mxu0 %v2953
    %v3047 = vpop.f32.mrf.mxu0
    %v3048 = vadd.f32 0.0, %v3047
    %v3049 = vpop.f32.mrf.mxu0
    %v3050 = vadd.f32 0.0, %v3049
    %3051 = vmatmul.bf16.gmra.mxu0 %v2954
    %v3052 = vpop.f32.mrf.mxu0
    %v3053 = vadd.f32 0.0, %v3052
    %v3054 = vpop.f32.mrf.mxu0
    %v3055 = vadd.f32 0.0, %v3054
    %3056 = vmatmul.bf16.gmra.mxu0 %v2955
    %v3057 = vpop.f32.mrf.mxu0
    %v3058 = vadd.f32 0.0, %v3057
    %v3059 = vpop.f32.mrf.mxu0
    %v3060 = vadd.f32 0.0, %v3059
    %3061 = vmatmul.bf16.gmra.mxu0 %v2956
    %v3062 = vpop.f32.mrf.mxu0
    %v3063 = vadd.f32 0.0, %v3062
    %v3064 = vpop.f32.mrf.mxu0
    %v3065 = vadd.f32 0.0, %v3064
    %3066 = vmatmul.bf16.gmra.mxu0 %v2957
    %v3067 = vpop.f32.mrf.mxu0
    %v3068 = vadd.f32 0.0, %v3067
    %v3069 = vpop.f32.mrf.mxu0
    %v3070 = vadd.f32 0.0, %v3069
    %3071 = vdwg.mxu0
    %v3072 = vadd.f32 %v2918, %v3033
    %v3073 = vadd.f32 %v2919, %v3035
    %v3074 = vadd.f32 %v2920, %v3038
    %v3075 = vadd.f32 %v2921, %v3040
    %v3076 = vadd.f32 %v2922, %v3043
    %v3077 = vadd.f32 %v2923, %v3045
    %v3078 = vadd.f32 %v2924, %v3048
    %v3079 = vadd.f32 %v2925, %v3050
    %v3080 = vadd.f32 %v2926, %v3053
    %v3081 = vadd.f32 %v2927, %v3055
    %v3082 = vadd.f32 %v2928, %v3058
    %v3083 = vadd.f32 %v2929, %v3060
    %v3084 = vadd.f32 %v2930, %v3063
    %v3085 = vadd.f32 %v2931, %v3065
    %v3086 = vadd.f32 %v2932, %v3068
    %v3087 = vadd.f32 %v2933, %v3070
    %v3088 = vld [vmem:[%s2334 + $0x2] sm:$0xff]
    %v3089 = vld [vmem:[%s2334 + $0x12] sm:$0xff]
    %v3090 = vld [vmem:[%s2334 + $0x22] sm:$0xff]
    %v3091 = vld [vmem:[%s2334 + $0x32] sm:$0xff]
    %v3092 = vld [vmem:[%s2334 + $0x42] sm:$0xff]
    %v3093 = vld [vmem:[%s2334 + $0x52] sm:$0xff]
    %v3094 = vld [vmem:[%s2334 + $0x62] sm:$0xff]
    %v3095 = vld [vmem:[%s2334 + $0x72] sm:$0xff]
    %v3096 = vld [vmem:[%s2334 + $0xa2] sm:$0xff]
    %v3097 = vld [vmem:[%s2334 + $0xb2] sm:$0xff]
    %v3098 = vld [vmem:[%s2334 + $0xc2] sm:$0xff]
    %v3099 = vld [vmem:[%s2334 + $0xd2] sm:$0xff]
    %v3100 = vld [vmem:[%s2334 + $0xe2] sm:$0xff]
    %v3101 = vld [vmem:[%s2334 + $0xf2] sm:$0xff]
    %v3102 = vld [vmem:[%s2334 + $0x102] sm:$0xff]
    %v3103 = vld [vmem:[%s2334 + $0x112] sm:$0xff]
    %v3104 = vpack.c.bf16 %v3089, %v3088
    %v3105 = vpack.c.bf16 %v3091, %v3090
    %v3106 = vpack.c.bf16 %v3093, %v3092
    %v3107 = vpack.c.bf16 %v3095, %v3094
    %v3108 = vpack.c.bf16 %v3097, %v3096
    %v3109 = vpack.c.bf16 %v3099, %v3098
    %v3110 = vpack.c.bf16 %v3101, %v3100
    %v3111 = vpack.c.bf16 %v3103, %v3102
    %s3112 = scalar_lea.vmem [#allocation10], 320
    %v3113 = vld [vmem:[%s3112] sm:$0xf]
    %v3114 = vld [vmem:[%s3112 + $0x4] sm:$0xf]
    %v3115 = vld [vmem:[%s3112 + $0x8] sm:$0xf]
    %v3116 = vld [vmem:[%s3112 + $0xc] sm:$0xf]
    %v3117 = vld [vmem:[%s3112 + $0x10] sm:$0xf]
    %v3118 = vld [vmem:[%s3112 + $0x14] sm:$0xf]
    %v3119 = vld [vmem:[%s3112 + $0x18] sm:$0xf]
    %v3120 = vld [vmem:[%s3112 + $0x1c] sm:$0xf]
    %v3121 = vld [vmem:[%s3112 + $0x20] sm:$0xf]
    %v3122 = vld [vmem:[%s3112 + $0x24] sm:$0xf]
    %v3123 = vld [vmem:[%s3112 + $0x28] sm:$0xf]
    %v3124 = vld [vmem:[%s3112 + $0x2c] sm:$0xf]
    %v3125 = vld [vmem:[%s3112 + $0x30] sm:$0xf]
    %v3126 = vld [vmem:[%s3112 + $0x34] sm:$0xf]
    %v3127 = vld [vmem:[%s3112 + $0x38] sm:$0xf]
    %v3128 = vld [vmem:[%s3112 + $0x3c] sm:$0xf]
    %v3145 = vunpack.c.l.b16 %v3113
    %v3146 = vunpack.c.l.b16 %v3114
    %v3147 = vunpack.c.l.b16 %v3115
    %v3148 = vunpack.c.l.b16 %v3116
    %v3149 = vunpack.c.l.b16 %v3117
    %v3150 = vunpack.c.l.b16 %v3118
    %v3151 = vunpack.c.l.b16 %v3119
    %v3152 = vunpack.c.l.b16 %v3120
    %v3153 = vunpack.c.l.b16 %v3121
    %v3154 = vunpack.c.l.b16 %v3122
    %v3155 = vunpack.c.l.b16 %v3123
    %v3156 = vunpack.c.l.b16 %v3124
    %v3157 = vunpack.c.l.b16 %v3125
    %v3158 = vunpack.c.l.b16 %v3126
    %v3159 = vunpack.c.l.b16 %v3127
    %v3160 = vunpack.c.l.b16 %v3128
    %v3161 = vpack.c.b16 %v3146, %v3145
    %v3162 = vpack.c.b16 %v3148, %v3147
    %v3163 = vpack.c.b16 %v3150, %v3149
    %v3164 = vpack.c.b16 %v3152, %v3151
    %v3165 = vpack.c.b16 %v3154, %v3153
    %v3166 = vpack.c.b16 %v3156, %v3155
    %v3167 = vpack.c.b16 %v3158, %v3157
    %v3168 = vpack.c.b16 %v3160, %v3159
    %3177 = vmatpush.bf16.msra.mxu0 %v3168
    %3178 = vmatpush.bf16.msra.mxu0 %v3167
    %3179 = vmatpush.bf16.msra.mxu0 %v3166
    %3180 = vmatpush.bf16.msra.mxu0 %v3165
    %3181 = vmatpush.bf16.msra.mxu0 %v3164
    %3182 = vmatpush.bf16.msra.mxu0 %v3163
    %3183 = vmatpush.bf16.msra.mxu0 %v3162
    %3184 = vmatpush.bf16.msra.mxu0 %v3161
    %3185 = vmatmul.bf16.gmra.mxu0 %v3104
    %v3186 = vpop.f32.mrf.mxu0
    %v3187 = vadd.f32 0.0, %v3186
    %v3188 = vpop.f32.mrf.mxu0
    %v3189 = vadd.f32 0.0, %v3188
    %3190 = vmatmul.bf16.gmra.mxu0 %v3105
    %v3191 = vpop.f32.mrf.mxu0
    %v3192 = vadd.f32 0.0, %v3191
    %v3193 = vpop.f32.mrf.mxu0
    %v3194 = vadd.f32 0.0, %v3193
    %3195 = vmatmul.bf16.gmra.mxu0 %v3106
    %v3196 = vpop.f32.mrf.mxu0
    %v3197 = vadd.f32 0.0, %v3196
    %v3198 = vpop.f32.mrf.mxu0
    %v3199 = vadd.f32 0.0, %v3198
    %3200 = vmatmul.bf16.gmra.mxu0 %v3107
    %v3201 = vpop.f32.mrf.mxu0
    %v3202 = vadd.f32 0.0, %v3201
    %v3203 = vpop.f32.mrf.mxu0
    %v3204 = vadd.f32 0.0, %v3203
    %3205 = vmatmul.bf16.gmra.mxu0 %v3108
    %v3206 = vpop.f32.mrf.mxu0
    %v3207 = vadd.f32 0.0, %v3206
    %v3208 = vpop.f32.mrf.mxu0
    %v3209 = vadd.f32 0.0, %v3208
    %3210 = vmatmul.bf16.gmra.mxu0 %v3109
    %v3211 = vpop.f32.mrf.mxu0
    %v3212 = vadd.f32 0.0, %v3211
    %v3213 = vpop.f32.mrf.mxu0
    %v3214 = vadd.f32 0.0, %v3213
    %3215 = vmatmul.bf16.gmra.mxu0 %v3110
    %v3216 = vpop.f32.mrf.mxu0
    %v3217 = vadd.f32 0.0, %v3216
    %v3218 = vpop.f32.mrf.mxu0
    %v3219 = vadd.f32 0.0, %v3218
    %3220 = vmatmul.bf16.gmra.mxu0 %v3111
    %v3221 = vpop.f32.mrf.mxu0
    %v3222 = vadd.f32 0.0, %v3221
    %v3223 = vpop.f32.mrf.mxu0
    %v3224 = vadd.f32 0.0, %v3223
    %3225 = vdwg.mxu0
    %v3226 = vadd.f32 %v3072, %v3187
    %v3227 = vadd.f32 %v3073, %v3189
    %v3228 = vadd.f32 %v3074, %v3192
    %v3229 = vadd.f32 %v3075, %v3194
    %v3230 = vadd.f32 %v3076, %v3197
    %v3231 = vadd.f32 %v3077, %v3199
    %v3232 = vadd.f32 %v3078, %v3202
    %v3233 = vadd.f32 %v3079, %v3204
    %v3234 = vadd.f32 %v3080, %v3207
    %v3235 = vadd.f32 %v3081, %v3209
    %v3236 = vadd.f32 %v3082, %v3212
    %v3237 = vadd.f32 %v3083, %v3214
    %v3238 = vadd.f32 %v3084, %v3217
    %v3239 = vadd.f32 %v3085, %v3219
    %v3240 = vadd.f32 %v3086, %v3222
    %v3241 = vadd.f32 %v3087, %v3224
    %s3242 = scalar_lea.vmem [#allocation2], 32
    %v3243 = vld [vmem:[%s3242] sm:$0xff]
    %v3244 = vld [vmem:[%s3242 + $0x10] sm:$0xff]
    %v3245 = vld [vmem:[%s3242 + $0x20] sm:$0xff]
    %v3246 = vld [vmem:[%s3242 + $0x30] sm:$0xff]
    %v3247 = vld [vmem:[%s3242 + $0x40] sm:$0xff]
    %v3248 = vld [vmem:[%s3242 + $0x50] sm:$0xff]
    %v3249 = vld [vmem:[%s3242 + $0x60] sm:$0xff]
    %v3250 = vld [vmem:[%s3242 + $0x70] sm:$0xff]
    %v3251 = vld [vmem:[%s3242 + $0xa0] sm:$0xff]
    %v3252 = vld [vmem:[%s3242 + $0xb0] sm:$0xff]
    %v3253 = vld [vmem:[%s3242 + $0xc0] sm:$0xff]
    %v3254 = vld [vmem:[%s3242 + $0xd0] sm:$0xff]
    %v3255 = vld [vmem:[%s3242 + $0xe0] sm:$0xff]
    %v3256 = vld [vmem:[%s3242 + $0xf0] sm:$0xff]
    %v3257 = vld [vmem:[%s3242 + $0x100] sm:$0xff]
    %v3258 = vld [vmem:[%s3242 + $0x110] sm:$0xff]
    %v3259 = vpack.c.bf16 %v3244, %v3243
    %v3260 = vpack.c.bf16 %v3246, %v3245
    %v3261 = vpack.c.bf16 %v3248, %v3247
    %v3262 = vpack.c.bf16 %v3250, %v3249
    %v3263 = vpack.c.bf16 %v3252, %v3251
    %v3264 = vpack.c.bf16 %v3254, %v3253
    %v3265 = vpack.c.bf16 %v3256, %v3255
    %v3266 = vpack.c.bf16 %v3258, %v3257
    %s3267 = scalar_lea.vmem [#allocation10], 384
    %v3268 = vld [vmem:[%s3267] sm:$0xf]
    %v3269 = vld [vmem:[%s3267 + $0x4] sm:$0xf]
    %v3270 = vld [vmem:[%s3267 + $0x8] sm:$0xf]
    %v3271 = vld [vmem:[%s3267 + $0xc] sm:$0xf]
    %v3272 = vld [vmem:[%s3267 + $0x10] sm:$0xf]
    %v3273 = vld [vmem:[%s3267 + $0x14] sm:$0xf]
    %v3274 = vld [vmem:[%s3267 + $0x18] sm:$0xf]
    %v3275 = vld [vmem:[%s3267 + $0x1c] sm:$0xf]
    %v3276 = vld [vmem:[%s3267 + $0x20] sm:$0xf]
    %v3277 = vld [vmem:[%s3267 + $0x24] sm:$0xf]
    %v3278 = vld [vmem:[%s3267 + $0x28] sm:$0xf]
    %v3279 = vld [vmem:[%s3267 + $0x2c] sm:$0xf]
    %v3280 = vld [vmem:[%s3267 + $0x30] sm:$0xf]
    %v3281 = vld [vmem:[%s3267 + $0x34] sm:$0xf]
    %v3282 = vld [vmem:[%s3267 + $0x38] sm:$0xf]
    %v3283 = vld [vmem:[%s3267 + $0x3c] sm:$0xf]
    %v3300 = vunpack.c.l.b16 %v3268
    %v3301 = vunpack.c.l.b16 %v3269
    %v3302 = vunpack.c.l.b16 %v3270
    %v3303 = vunpack.c.l.b16 %v3271
    %v3304 = vunpack.c.l.b16 %v3272
    %v3305 = vunpack.c.l.b16 %v3273
    %v3306 = vunpack.c.l.b16 %v3274
    %v3307 = vunpack.c.l.b16 %v3275
    %v3308 = vunpack.c.l.b16 %v3276
    %v3309 = vunpack.c.l.b16 %v3277
    %v3310 = vunpack.c.l.b16 %v3278
    %v3311 = vunpack.c.l.b16 %v3279
    %v3312 = vunpack.c.l.b16 %v3280
    %v3313 = vunpack.c.l.b16 %v3281
    %v3314 = vunpack.c.l.b16 %v3282
    %v3315 = vunpack.c.l.b16 %v3283
    %v3316 = vpack.c.b16 %v3301, %v3300
    %v3317 = vpack.c.b16 %v3303, %v3302
    %v3318 = vpack.c.b16 %v3305, %v3304
    %v3319 = vpack.c.b16 %v3307, %v3306
    %v3320 = vpack.c.b16 %v3309, %v3308
    %v3321 = vpack.c.b16 %v3311, %v3310
    %v3322 = vpack.c.b16 %v3313, %v3312
    %v3323 = vpack.c.b16 %v3315, %v3314
    %3332 = vmatpush.bf16.msra.mxu0 %v3323
    %3333 = vmatpush.bf16.msra.mxu0 %v3322
    %3334 = vmatpush.bf16.msra.mxu0 %v3321
    %3335 = vmatpush.bf16.msra.mxu0 %v3320
    %3336 = vmatpush.bf16.msra.mxu0 %v3319
    %3337 = vmatpush.bf16.msra.mxu0 %v3318
    %3338 = vmatpush.bf16.msra.mxu0 %v3317
    %3339 = vmatpush.bf16.msra.mxu0 %v3316
    %3340 = vmatmul.bf16.gmra.mxu0 %v3259
    %v3341 = vpop.f32.mrf.mxu0
    %v3342 = vadd.f32 0.0, %v3341
    %v3343 = vpop.f32.mrf.mxu0
    %v3344 = vadd.f32 0.0, %v3343
    %3345 = vmatmul.bf16.gmra.mxu0 %v3260
    %v3346 = vpop.f32.mrf.mxu0
    %v3347 = vadd.f32 0.0, %v3346
    %v3348 = vpop.f32.mrf.mxu0
    %v3349 = vadd.f32 0.0, %v3348
    %3350 = vmatmul.bf16.gmra.mxu0 %v3261
    %v3351 = vpop.f32.mrf.mxu0
    %v3352 = vadd.f32 0.0, %v3351
    %v3353 = vpop.f32.mrf.mxu0
    %v3354 = vadd.f32 0.0, %v3353
    %3355 = vmatmul.bf16.gmra.mxu0 %v3262
    %v3356 = vpop.f32.mrf.mxu0
    %v3357 = vadd.f32 0.0, %v3356
    %v3358 = vpop.f32.mrf.mxu0
    %v3359 = vadd.f32 0.0, %v3358
    %3360 = vmatmul.bf16.gmra.mxu0 %v3263
    %v3361 = vpop.f32.mrf.mxu0
    %v3362 = vadd.f32 0.0, %v3361
    %v3363 = vpop.f32.mrf.mxu0
    %v3364 = vadd.f32 0.0, %v3363
    %3365 = vmatmul.bf16.gmra.mxu0 %v3264
    %v3366 = vpop.f32.mrf.mxu0
    %v3367 = vadd.f32 0.0, %v3366
    %v3368 = vpop.f32.mrf.mxu0
    %v3369 = vadd.f32 0.0, %v3368
    %3370 = vmatmul.bf16.gmra.mxu0 %v3265
    %v3371 = vpop.f32.mrf.mxu0
    %v3372 = vadd.f32 0.0, %v3371
    %v3373 = vpop.f32.mrf.mxu0
    %v3374 = vadd.f32 0.0, %v3373
    %3375 = vmatmul.bf16.gmra.mxu0 %v3266
    %v3376 = vpop.f32.mrf.mxu0
    %v3377 = vadd.f32 0.0, %v3376
    %v3378 = vpop.f32.mrf.mxu0
    %v3379 = vadd.f32 0.0, %v3378
    %3380 = vdwg.mxu0
    %v3381 = vadd.f32 %v3226, %v3342
    %v3382 = vadd.f32 %v3227, %v3344
    %v3383 = vadd.f32 %v3228, %v3347
    %v3384 = vadd.f32 %v3229, %v3349
    %v3385 = vadd.f32 %v3230, %v3352
    %v3386 = vadd.f32 %v3231, %v3354
    %v3387 = vadd.f32 %v3232, %v3357
    %v3388 = vadd.f32 %v3233, %v3359
    %v3389 = vadd.f32 %v3234, %v3362
    %v3390 = vadd.f32 %v3235, %v3364
    %v3391 = vadd.f32 %v3236, %v3367
    %v3392 = vadd.f32 %v3237, %v3369
    %v3393 = vadd.f32 %v3238, %v3372
    %v3394 = vadd.f32 %v3239, %v3374
    %v3395 = vadd.f32 %v3240, %v3377
    %v3396 = vadd.f32 %v3241, %v3379
    %v3397 = vld [vmem:[%s3242 + $0x1] sm:$0xff]
    %v3398 = vld [vmem:[%s3242 + $0x11] sm:$0xff]
    %v3399 = vld [vmem:[%s3242 + $0x21] sm:$0xff]
    %v3400 = vld [vmem:[%s3242 + $0x31] sm:$0xff]
    %v3401 = vld [vmem:[%s3242 + $0x41] sm:$0xff]
    %v3402 = vld [vmem:[%s3242 + $0x51] sm:$0xff]
    %v3403 = vld [vmem:[%s3242 + $0x61] sm:$0xff]
    %v3404 = vld [vmem:[%s3242 + $0x71] sm:$0xff]
    %v3405 = vld [vmem:[%s3242 + $0xa1] sm:$0xff]
    %v3406 = vld [vmem:[%s3242 + $0xb1] sm:$0xff]
    %v3407 = vld [vmem:[%s3242 + $0xc1] sm:$0xff]
    %v3408 = vld [vmem:[%s3242 + $0xd1] sm:$0xff]
    %v3409 = vld [vmem:[%s3242 + $0xe1] sm:$0xff]
    %v3410 = vld [vmem:[%s3242 + $0xf1] sm:$0xff]
    %v3411 = vld [vmem:[%s3242 + $0x101] sm:$0xff]
    %v3412 = vld [vmem:[%s3242 + $0x111] sm:$0xff]
    %v3413 = vpack.c.bf16 %v3398, %v3397
    %v3414 = vpack.c.bf16 %v3400, %v3399
    %v3415 = vpack.c.bf16 %v3402, %v3401
    %v3416 = vpack.c.bf16 %v3404, %v3403
    %v3417 = vpack.c.bf16 %v3406, %v3405
    %v3418 = vpack.c.bf16 %v3408, %v3407
    %v3419 = vpack.c.bf16 %v3410, %v3409
    %v3420 = vpack.c.bf16 %v3412, %v3411
    %s3421 = scalar_lea.vmem [#allocation10], 448
    %v3422 = vld [vmem:[%s3421] sm:$0xf]
    %v3423 = vld [vmem:[%s3421 + $0x4] sm:$0xf]
    %v3424 = vld [vmem:[%s3421 + $0x8] sm:$0xf]
    %v3425 = vld [vmem:[%s3421 + $0xc] sm:$0xf]
    %v3426 = vld [vmem:[%s3421 + $0x10] sm:$0xf]
    %v3427 = vld [vmem:[%s3421 + $0x14] sm:$0xf]
    %v3428 = vld [vmem:[%s3421 + $0x18] sm:$0xf]
    %v3429 = vld [vmem:[%s3421 + $0x1c] sm:$0xf]
    %v3430 = vld [vmem:[%s3421 + $0x20] sm:$0xf]
    %v3431 = vld [vmem:[%s3421 + $0x24] sm:$0xf]
    %v3432 = vld [vmem:[%s3421 + $0x28] sm:$0xf]
    %v3433 = vld [vmem:[%s3421 + $0x2c] sm:$0xf]
    %v3434 = vld [vmem:[%s3421 + $0x30] sm:$0xf]
    %v3435 = vld [vmem:[%s3421 + $0x34] sm:$0xf]
    %v3436 = vld [vmem:[%s3421 + $0x38] sm:$0xf]
    %v3437 = vld [vmem:[%s3421 + $0x3c] sm:$0xf]
    %v3454 = vunpack.c.l.b16 %v3422
    %v3455 = vunpack.c.l.b16 %v3423
    %v3456 = vunpack.c.l.b16 %v3424
    %v3457 = vunpack.c.l.b16 %v3425
    %v3458 = vunpack.c.l.b16 %v3426
    %v3459 = vunpack.c.l.b16 %v3427
    %v3460 = vunpack.c.l.b16 %v3428
    %v3461 = vunpack.c.l.b16 %v3429
    %v3462 = vunpack.c.l.b16 %v3430
    %v3463 = vunpack.c.l.b16 %v3431
    %v3464 = vunpack.c.l.b16 %v3432
    %v3465 = vunpack.c.l.b16 %v3433
    %v3466 = vunpack.c.l.b16 %v3434
    %v3467 = vunpack.c.l.b16 %v3435
    %v3468 = vunpack.c.l.b16 %v3436
    %v3469 = vunpack.c.l.b16 %v3437
    %v3470 = vpack.c.b16 %v3455, %v3454
    %v3471 = vpack.c.b16 %v3457, %v3456
    %v3472 = vpack.c.b16 %v3459, %v3458
    %v3473 = vpack.c.b16 %v3461, %v3460
    %v3474 = vpack.c.b16 %v3463, %v3462
    %v3475 = vpack.c.b16 %v3465, %v3464
    %v3476 = vpack.c.b16 %v3467, %v3466
    %v3477 = vpack.c.b16 %v3469, %v3468
    %3486 = vmatpush.bf16.msra.mxu0 %v3477
    %3487 = vmatpush.bf16.msra.mxu0 %v3476
    %3488 = vmatpush.bf16.msra.mxu0 %v3475
    %3489 = vmatpush.bf16.msra.mxu0 %v3474
    %3490 = vmatpush.bf16.msra.mxu0 %v3473
    %3491 = vmatpush.bf16.msra.mxu0 %v3472
    %3492 = vmatpush.bf16.msra.mxu0 %v3471
    %3493 = vmatpush.bf16.msra.mxu0 %v3470
    %3494 = vmatmul.bf16.gmra.mxu0 %v3413
    %v3495 = vpop.f32.mrf.mxu0
    %v3496 = vadd.f32 0.0, %v3495
    %v3497 = vpop.f32.mrf.mxu0
    %v3498 = vadd.f32 0.0, %v3497
    %3499 = vmatmul.bf16.gmra.mxu0 %v3414
    %v3500 = vpop.f32.mrf.mxu0
    %v3501 = vadd.f32 0.0, %v3500
    %v3502 = vpop.f32.mrf.mxu0
    %v3503 = vadd.f32 0.0, %v3502
    %3504 = vmatmul.bf16.gmra.mxu0 %v3415
    %v3505 = vpop.f32.mrf.mxu0
    %v3506 = vadd.f32 0.0, %v3505
    %v3507 = vpop.f32.mrf.mxu0
    %v3508 = vadd.f32 0.0, %v3507
    %3509 = vmatmul.bf16.gmra.mxu0 %v3416
    %v3510 = vpop.f32.mrf.mxu0
    %v3511 = vadd.f32 0.0, %v3510
    %v3512 = vpop.f32.mrf.mxu0
    %v3513 = vadd.f32 0.0, %v3512
    %3514 = vmatmul.bf16.gmra.mxu0 %v3417
    %v3515 = vpop.f32.mrf.mxu0
    %v3516 = vadd.f32 0.0, %v3515
    %v3517 = vpop.f32.mrf.mxu0
    %v3518 = vadd.f32 0.0, %v3517
    %3519 = vmatmul.bf16.gmra.mxu0 %v3418
    %v3520 = vpop.f32.mrf.mxu0
    %v3521 = vadd.f32 0.0, %v3520
    %v3522 = vpop.f32.mrf.mxu0
    %v3523 = vadd.f32 0.0, %v3522
    %3524 = vmatmul.bf16.gmra.mxu0 %v3419
    %v3525 = vpop.f32.mrf.mxu0
    %v3526 = vadd.f32 0.0, %v3525
    %v3527 = vpop.f32.mrf.mxu0
    %v3528 = vadd.f32 0.0, %v3527
    %3529 = vmatmul.bf16.gmra.mxu0 %v3420
    %v3530 = vpop.f32.mrf.mxu0
    %v3531 = vadd.f32 0.0, %v3530
    %v3532 = vpop.f32.mrf.mxu0
    %v3533 = vadd.f32 0.0, %v3532
    %3534 = vdwg.mxu0
    %v3535 = vadd.f32 %v3381, %v3496
    %v3536 = vadd.f32 %v3382, %v3498
    %v3537 = vadd.f32 %v3383, %v3501
    %v3538 = vadd.f32 %v3384, %v3503
    %v3539 = vadd.f32 %v3385, %v3506
    %v3540 = vadd.f32 %v3386, %v3508
    %v3541 = vadd.f32 %v3387, %v3511
    %v3542 = vadd.f32 %v3388, %v3513
    %v3543 = vadd.f32 %v3389, %v3516
    %v3544 = vadd.f32 %v3390, %v3518
    %v3545 = vadd.f32 %v3391, %v3521
    %v3546 = vadd.f32 %v3392, %v3523
    %v3547 = vadd.f32 %v3393, %v3526
    %v3548 = vadd.f32 %v3394, %v3528
    %v3549 = vadd.f32 %v3395, %v3531
    %v3550 = vadd.f32 %v3396, %v3533
    %v3551 = vld [vmem:[%s3242 + $0x2] sm:$0xff]
    %v3552 = vld [vmem:[%s3242 + $0x12] sm:$0xff]
    %v3553 = vld [vmem:[%s3242 + $0x22] sm:$0xff]
    %v3554 = vld [vmem:[%s3242 + $0x32] sm:$0xff]
    %v3555 = vld [vmem:[%s3242 + $0x42] sm:$0xff]
    %v3556 = vld [vmem:[%s3242 + $0x52] sm:$0xff]
    %v3557 = vld [vmem:[%s3242 + $0x62] sm:$0xff]
    %v3558 = vld [vmem:[%s3242 + $0x72] sm:$0xff]
    %v3559 = vld [vmem:[%s3242 + $0xa2] sm:$0xff]
    %v3560 = vld [vmem:[%s3242 + $0xb2] sm:$0xff]
    %v3561 = vld [vmem:[%s3242 + $0xc2] sm:$0xff]
    %v3562 = vld [vmem:[%s3242 + $0xd2] sm:$0xff]
    %v3563 = vld [vmem:[%s3242 + $0xe2] sm:$0xff]
    %v3564 = vld [vmem:[%s3242 + $0xf2] sm:$0xff]
    %v3565 = vld [vmem:[%s3242 + $0x102] sm:$0xff]
    %v3566 = vld [vmem:[%s3242 + $0x112] sm:$0xff]
    %v3567 = vpack.c.bf16 %v3552, %v3551
    %v3568 = vpack.c.bf16 %v3554, %v3553
    %v3569 = vpack.c.bf16 %v3556, %v3555
    %v3570 = vpack.c.bf16 %v3558, %v3557
    %v3571 = vpack.c.bf16 %v3560, %v3559
    %v3572 = vpack.c.bf16 %v3562, %v3561
    %v3573 = vpack.c.bf16 %v3564, %v3563
    %v3574 = vpack.c.bf16 %v3566, %v3565
    %s3575 = scalar_lea.vmem [#allocation10], 512
    %v3576 = vld [vmem:[%s3575] sm:$0xf]
    %v3577 = vld [vmem:[%s3575 + $0x4] sm:$0xf]
    %v3578 = vld [vmem:[%s3575 + $0x8] sm:$0xf]
    %v3579 = vld [vmem:[%s3575 + $0xc] sm:$0xf]
    %v3580 = vld [vmem:[%s3575 + $0x10] sm:$0xf]
    %v3581 = vld [vmem:[%s3575 + $0x14] sm:$0xf]
    %v3582 = vld [vmem:[%s3575 + $0x18] sm:$0xf]
    %v3583 = vld [vmem:[%s3575 + $0x1c] sm:$0xf]
    %v3584 = vld [vmem:[%s3575 + $0x20] sm:$0xf]
    %v3585 = vld [vmem:[%s3575 + $0x24] sm:$0xf]
    %v3586 = vld [vmem:[%s3575 + $0x28] sm:$0xf]
    %v3587 = vld [vmem:[%s3575 + $0x2c] sm:$0xf]
    %v3588 = vld [vmem:[%s3575 + $0x30] sm:$0xf]
    %v3589 = vld [vmem:[%s3575 + $0x34] sm:$0xf]
    %v3590 = vld [vmem:[%s3575 + $0x38] sm:$0xf]
    %v3591 = vld [vmem:[%s3575 + $0x3c] sm:$0xf]
    %v3608 = vunpack.c.l.b16 %v3576
    %v3609 = vunpack.c.l.b16 %v3577
    %v3610 = vunpack.c.l.b16 %v3578
    %v3611 = vunpack.c.l.b16 %v3579
    %v3612 = vunpack.c.l.b16 %v3580
    %v3613 = vunpack.c.l.b16 %v3581
    %v3614 = vunpack.c.l.b16 %v3582
    %v3615 = vunpack.c.l.b16 %v3583
    %v3616 = vunpack.c.l.b16 %v3584
    %v3617 = vunpack.c.l.b16 %v3585
    %v3618 = vunpack.c.l.b16 %v3586
    %v3619 = vunpack.c.l.b16 %v3587
    %v3620 = vunpack.c.l.b16 %v3588
    %v3621 = vunpack.c.l.b16 %v3589
    %v3622 = vunpack.c.l.b16 %v3590
    %v3623 = vunpack.c.l.b16 %v3591
    %v3624 = vpack.c.b16 %v3609, %v3608
    %v3625 = vpack.c.b16 %v3611, %v3610
    %v3626 = vpack.c.b16 %v3613, %v3612
    %v3627 = vpack.c.b16 %v3615, %v3614
    %v3628 = vpack.c.b16 %v3617, %v3616
    %v3629 = vpack.c.b16 %v3619, %v3618
    %v3630 = vpack.c.b16 %v3621, %v3620
    %v3631 = vpack.c.b16 %v3623, %v3622
    %3640 = vmatpush.bf16.msra.mxu0 %v3631
    %3641 = vmatpush.bf16.msra.mxu0 %v3630
    %3642 = vmatpush.bf16.msra.mxu0 %v3629
    %3643 = vmatpush.bf16.msra.mxu0 %v3628
    %3644 = vmatpush.bf16.msra.mxu0 %v3627
    %3645 = vmatpush.bf16.msra.mxu0 %v3626
    %3646 = vmatpush.bf16.msra.mxu0 %v3625
    %3647 = vmatpush.bf16.msra.mxu0 %v3624
    %3648 = vmatmul.bf16.gmra.mxu0 %v3567
    %v3649 = vpop.f32.mrf.mxu0
    %v3650 = vadd.f32 0.0, %v3649
    %v3651 = vpop.f32.mrf.mxu0
    %v3652 = vadd.f32 0.0, %v3651
    %3653 = vmatmul.bf16.gmra.mxu0 %v3568
    %v3654 = vpop.f32.mrf.mxu0
    %v3655 = vadd.f32 0.0, %v3654
    %v3656 = vpop.f32.mrf.mxu0
    %v3657 = vadd.f32 0.0, %v3656
    %3658 = vmatmul.bf16.gmra.mxu0 %v3569
    %v3659 = vpop.f32.mrf.mxu0
    %v3660 = vadd.f32 0.0, %v3659
    %v3661 = vpop.f32.mrf.mxu0
    %v3662 = vadd.f32 0.0, %v3661
    %3663 = vmatmul.bf16.gmra.mxu0 %v3570
    %v3664 = vpop.f32.mrf.mxu0
    %v3665 = vadd.f32 0.0, %v3664
    %v3666 = vpop.f32.mrf.mxu0
    %v3667 = vadd.f32 0.0, %v3666
    %3668 = vmatmul.bf16.gmra.mxu0 %v3571
    %v3669 = vpop.f32.mrf.mxu0
    %v3670 = vadd.f32 0.0, %v3669
    %v3671 = vpop.f32.mrf.mxu0
    %v3672 = vadd.f32 0.0, %v3671
    %3673 = vmatmul.bf16.gmra.mxu0 %v3572
    %v3674 = vpop.f32.mrf.mxu0
    %v3675 = vadd.f32 0.0, %v3674
    %v3676 = vpop.f32.mrf.mxu0
    %v3677 = vadd.f32 0.0, %v3676
    %3678 = vmatmul.bf16.gmra.mxu0 %v3573
    %v3679 = vpop.f32.mrf.mxu0
    %v3680 = vadd.f32 0.0, %v3679
    %v3681 = vpop.f32.mrf.mxu0
    %v3682 = vadd.f32 0.0, %v3681
    %3683 = vmatmul.bf16.gmra.mxu0 %v3574
    %v3684 = vpop.f32.mrf.mxu0
    %v3685 = vadd.f32 0.0, %v3684
    %v3686 = vpop.f32.mrf.mxu0
    %v3687 = vadd.f32 0.0, %v3686
    %3688 = vdwg.mxu0
    %v3689 = vadd.f32 %v3535, %v3650
    %v3690 = vadd.f32 %v3536, %v3652
    %v3691 = vadd.f32 %v3537, %v3655
    %v3692 = vadd.f32 %v3538, %v3657
    %v3693 = vadd.f32 %v3539, %v3660
    %v3694 = vadd.f32 %v3540, %v3662
    %v3695 = vadd.f32 %v3541, %v3665
    %v3696 = vadd.f32 %v3542, %v3667
    %v3697 = vadd.f32 %v3543, %v3670
    %v3698 = vadd.f32 %v3544, %v3672
    %v3699 = vadd.f32 %v3545, %v3675
    %v3700 = vadd.f32 %v3546, %v3677
    %v3701 = vadd.f32 %v3547, %v3680
    %v3702 = vadd.f32 %v3548, %v3682
    %v3703 = vadd.f32 %v3549, %v3685
    %v3704 = vadd.f32 %v3550, %v3687
    %v3705 = vld [vmem:[#allocation11] sm:$0x1]
    %v3707 = vperm.slane %v3705, 0
    %v3709 = vadd.f32 %v3689, %v3707
    %v3710 = vadd.f32 %v3690, %v3707
    %v3711 = vadd.f32 %v3691, %v3707
    %v3712 = vadd.f32 %v3692, %v3707
    %v3713 = vadd.f32 %v3693, %v3707
    %v3714 = vadd.f32 %v3694, %v3707
    %v3715 = vadd.f32 %v3695, %v3707
    %v3716 = vadd.f32 %v3696, %v3707
    %v3717 = vadd.f32 %v3697, %v3707
    %v3718 = vadd.f32 %v3698, %v3707
    %v3719 = vadd.f32 %v3699, %v3707
    %v3720 = vadd.f32 %v3700, %v3707
    %v3721 = vadd.f32 %v3701, %v3707
    %v3722 = vadd.f32 %v3702, %v3707
    %v3723 = vadd.f32 %v3703, %v3707
    %v3724 = vadd.f32 %v3704, %v3707
    %v3725 = vmax.f32 %v3709, 0.0
    %v3726 = vmax.f32 %v3710, 0.0
    %v3727 = vmax.f32 %v3711, 0.0
    %v3728 = vmax.f32 %v3712, 0.0
    %v3729 = vmax.f32 %v3713, 0.0
    %v3730 = vmax.f32 %v3714, 0.0
    %v3731 = vmax.f32 %v3715, 0.0
    %v3732 = vmax.f32 %v3716, 0.0
    %v3733 = vmax.f32 %v3717, 0.0
    %v3734 = vmax.f32 %v3718, 0.0
    %v3735 = vmax.f32 %v3719, 0.0
    %v3736 = vmax.f32 %v3720, 0.0
    %v3737 = vmax.f32 %v3721, 0.0
    %v3738 = vmax.f32 %v3722, 0.0
    %v3739 = vmax.f32 %v3723, 0.0
    %v3740 = vmax.f32 %v3724, 0.0
    %v3741 = vmax.f32 %v3725, %v3726
    %v3742 = vmax.f32 %v3727, %v3728
    %v3743 = vmax.f32 %v3729, %v3730
    %v3744 = vmax.f32 %v3731, %v3732
    %v3745 = vmax.f32 %v3733, %v3734
    %v3746 = vmax.f32 %v3735, %v3736
    %v3747 = vmax.f32 %v3737, %v3738
    %v3748 = vmax.f32 %v3739, %v3740
    %v3757 = vrot.slane %v3741, 2
    %v3758 = vrot.slane %v3741, 4
    %v3759 = vrot.slane %v3741, 6
    %v3760 = vrot.slane %v3742, 2
    %v3761 = vrot.slane %v3742, 4
    %v3762 = vrot.slane %v3742, 6
    %v3763 = vrot.slane %v3743, 2
    %v3764 = vrot.slane %v3743, 4
    %v3765 = vrot.slane %v3743, 6
    %v3766 = vrot.slane %v3744, 2
    %v3767 = vrot.slane %v3744, 4
    %v3768 = vrot.slane %v3744, 6
    %v3769 = vrot.slane %v3745, 2
    %v3770 = vrot.slane %v3745, 4
    %v3771 = vrot.slane %v3745, 6
    %v3772 = vrot.slane %v3746, 2
    %v3773 = vrot.slane %v3746, 4
    %v3774 = vrot.slane %v3746, 6
    %v3775 = vrot.slane %v3747, 2
    %v3776 = vrot.slane %v3747, 4
    %v3777 = vrot.slane %v3747, 6
    %v3778 = vrot.slane %v3748, 2
    %v3779 = vrot.slane %v3748, 4
    %v3780 = vrot.slane %v3748, 6
    %v3805 = vsel %vm1134, %v3741, -inf
    %v3806 = vrot.slane %v3805, 4
    %v3807 = vmax.f32 %v3805, %v3806
    %v3808 = vrot.slane %v3807, 2
    %v3809 = vmax.f32 %v3807, %v3808
    %v3810 = vrot.slane %v3809, 1
    %v3811 = vmax.f32 %v3809, %v3810
    %v3812 = vsel %vm1134, %v3757, -inf
    %v3813 = vrot.slane %v3812, 4
    %v3814 = vmax.f32 %v3812, %v3813
    %v3815 = vrot.slane %v3814, 2
    %v3816 = vmax.f32 %v3814, %v3815
    %v3817 = vrot.slane %v3816, 1
    %v3818 = vmax.f32 %v3816, %v3817
    %v3819 = vsel %vm1134, %v3758, -inf
    %v3820 = vrot.slane %v3819, 4
    %v3821 = vmax.f32 %v3819, %v3820
    %v3822 = vrot.slane %v3821, 2
    %v3823 = vmax.f32 %v3821, %v3822
    %v3824 = vrot.slane %v3823, 1
    %v3825 = vmax.f32 %v3823, %v3824
    %v3826 = vsel %vm1134, %v3759, -inf
    %v3827 = vrot.slane %v3826, 4
    %v3828 = vmax.f32 %v3826, %v3827
    %v3829 = vrot.slane %v3828, 2
    %v3830 = vmax.f32 %v3828, %v3829
    %v3831 = vrot.slane %v3830, 1
    %v3832 = vmax.f32 %v3830, %v3831
    %v3833 = vsel %vm1134, %v3742, -inf
    %v3834 = vrot.slane %v3833, 4
    %v3835 = vmax.f32 %v3833, %v3834
    %v3836 = vrot.slane %v3835, 2
    %v3837 = vmax.f32 %v3835, %v3836
    %v3838 = vrot.slane %v3837, 1
    %v3839 = vmax.f32 %v3837, %v3838
    %v3840 = vsel %vm1134, %v3760, -inf
    %v3841 = vrot.slane %v3840, 4
    %v3842 = vmax.f32 %v3840, %v3841
    %v3843 = vrot.slane %v3842, 2
    %v3844 = vmax.f32 %v3842, %v3843
    %v3845 = vrot.slane %v3844, 1
    %v3846 = vmax.f32 %v3844, %v3845
    %v3847 = vsel %vm1134, %v3761, -inf
    %v3848 = vrot.slane %v3847, 4
    %v3849 = vmax.f32 %v3847, %v3848
    %v3850 = vrot.slane %v3849, 2
    %v3851 = vmax.f32 %v3849, %v3850
    %v3852 = vrot.slane %v3851, 1
    %v3853 = vmax.f32 %v3851, %v3852
    %v3854 = vsel %vm1134, %v3762, -inf
    %v3855 = vrot.slane %v3854, 4
    %v3856 = vmax.f32 %v3854, %v3855
    %v3857 = vrot.slane %v3856, 2
    %v3858 = vmax.f32 %v3856, %v3857
    %v3859 = vrot.slane %v3858, 1
    %v3860 = vmax.f32 %v3858, %v3859
    %v3861 = vsel %vm1134, %v3743, -inf
    %v3862 = vrot.slane %v3861, 4
    %v3863 = vmax.f32 %v3861, %v3862
    %v3864 = vrot.slane %v3863, 2
    %v3865 = vmax.f32 %v3863, %v3864
    %v3866 = vrot.slane %v3865, 1
    %v3867 = vmax.f32 %v3865, %v3866
    %v3868 = vsel %vm1134, %v3763, -inf
    %v3869 = vrot.slane %v3868, 4
    %v3870 = vmax.f32 %v3868, %v3869
    %v3871 = vrot.slane %v3870, 2
    %v3872 = vmax.f32 %v3870, %v3871
    %v3873 = vrot.slane %v3872, 1
    %v3874 = vmax.f32 %v3872, %v3873
    %v3875 = vsel %vm1134, %v3764, -inf
    %v3876 = vrot.slane %v3875, 4
    %v3877 = vmax.f32 %v3875, %v3876
    %v3878 = vrot.slane %v3877, 2
    %v3879 = vmax.f32 %v3877, %v3878
    %v3880 = vrot.slane %v3879, 1
    %v3881 = vmax.f32 %v3879, %v3880
    %v3882 = vsel %vm1134, %v3765, -inf
    %v3883 = vrot.slane %v3882, 4
    %v3884 = vmax.f32 %v3882, %v3883
    %v3885 = vrot.slane %v3884, 2
    %v3886 = vmax.f32 %v3884, %v3885
    %v3887 = vrot.slane %v3886, 1
    %v3888 = vmax.f32 %v3886, %v3887
    %v3889 = vsel %vm1134, %v3744, -inf
    %v3890 = vrot.slane %v3889, 4
    %v3891 = vmax.f32 %v3889, %v3890
    %v3892 = vrot.slane %v3891, 2
    %v3893 = vmax.f32 %v3891, %v3892
    %v3894 = vrot.slane %v3893, 1
    %v3895 = vmax.f32 %v3893, %v3894
    %v3896 = vsel %vm1134, %v3766, -inf
    %v3897 = vrot.slane %v3896, 4
    %v3898 = vmax.f32 %v3896, %v3897
    %v3899 = vrot.slane %v3898, 2
    %v3900 = vmax.f32 %v3898, %v3899
    %v3901 = vrot.slane %v3900, 1
    %v3902 = vmax.f32 %v3900, %v3901
    %v3903 = vsel %vm1134, %v3767, -inf
    %v3904 = vrot.slane %v3903, 4
    %v3905 = vmax.f32 %v3903, %v3904
    %v3906 = vrot.slane %v3905, 2
    %v3907 = vmax.f32 %v3905, %v3906
    %v3908 = vrot.slane %v3907, 1
    %v3909 = vmax.f32 %v3907, %v3908
    %v3910 = vsel %vm1134, %v3768, -inf
    %v3911 = vrot.slane %v3910, 4
    %v3912 = vmax.f32 %v3910, %v3911
    %v3913 = vrot.slane %v3912, 2
    %v3914 = vmax.f32 %v3912, %v3913
    %v3915 = vrot.slane %v3914, 1
    %v3916 = vmax.f32 %v3914, %v3915
    %v3917 = vsel %vm1134, %v3745, -inf
    %v3918 = vrot.slane %v3917, 4
    %v3919 = vmax.f32 %v3917, %v3918
    %v3920 = vrot.slane %v3919, 2
    %v3921 = vmax.f32 %v3919, %v3920
    %v3922 = vrot.slane %v3921, 1
    %v3923 = vmax.f32 %v3921, %v3922
    %v3924 = vsel %vm1134, %v3769, -inf
    %v3925 = vrot.slane %v3924, 4
    %v3926 = vmax.f32 %v3924, %v3925
    %v3927 = vrot.slane %v3926, 2
    %v3928 = vmax.f32 %v3926, %v3927
    %v3929 = vrot.slane %v3928, 1
    %v3930 = vmax.f32 %v3928, %v3929
    %v3931 = vsel %vm1134, %v3770, -inf
    %v3932 = vrot.slane %v3931, 4
    %v3933 = vmax.f32 %v3931, %v3932
    %v3934 = vrot.slane %v3933, 2
    %v3935 = vmax.f32 %v3933, %v3934
    %v3936 = vrot.slane %v3935, 1
    %v3937 = vmax.f32 %v3935, %v3936
    %v3938 = vsel %vm1134, %v3771, -inf
    %v3939 = vrot.slane %v3938, 4
    %v3940 = vmax.f32 %v3938, %v3939
    %v3941 = vrot.slane %v3940, 2
    %v3942 = vmax.f32 %v3940, %v3941
    %v3943 = vrot.slane %v3942, 1
    %v3944 = vmax.f32 %v3942, %v3943
    %v3945 = vsel %vm1134, %v3746, -inf
    %v3946 = vrot.slane %v3945, 4
    %v3947 = vmax.f32 %v3945, %v3946
    %v3948 = vrot.slane %v3947, 2
    %v3949 = vmax.f32 %v3947, %v3948
    %v3950 = vrot.slane %v3949, 1
    %v3951 = vmax.f32 %v3949, %v3950
    %v3952 = vsel %vm1134, %v3772, -inf
    %v3953 = vrot.slane %v3952, 4
    %v3954 = vmax.f32 %v3952, %v3953
    %v3955 = vrot.slane %v3954, 2
    %v3956 = vmax.f32 %v3954, %v3955
    %v3957 = vrot.slane %v3956, 1
    %v3958 = vmax.f32 %v3956, %v3957
    %v3959 = vsel %vm1134, %v3773, -inf
    %v3960 = vrot.slane %v3959, 4
    %v3961 = vmax.f32 %v3959, %v3960
    %v3962 = vrot.slane %v3961, 2
    %v3963 = vmax.f32 %v3961, %v3962
    %v3964 = vrot.slane %v3963, 1
    %v3965 = vmax.f32 %v3963, %v3964
    %v3966 = vsel %vm1134, %v3774, -inf
    %v3967 = vrot.slane %v3966, 4
    %v3968 = vmax.f32 %v3966, %v3967
    %v3969 = vrot.slane %v3968, 2
    %v3970 = vmax.f32 %v3968, %v3969
    %v3971 = vrot.slane %v3970, 1
    %v3972 = vmax.f32 %v3970, %v3971
    %v3973 = vsel %vm1134, %v3747, -inf
    %v3974 = vrot.slane %v3973, 4
    %v3975 = vmax.f32 %v3973, %v3974
    %v3976 = vrot.slane %v3975, 2
    %v3977 = vmax.f32 %v3975, %v3976
    %v3978 = vrot.slane %v3977, 1
    %v3979 = vmax.f32 %v3977, %v3978
    %v3980 = vsel %vm1134, %v3775, -inf
    %v3981 = vrot.slane %v3980, 4
    %v3982 = vmax.f32 %v3980, %v3981
    %v3983 = vrot.slane %v3982, 2
    %v3984 = vmax.f32 %v3982, %v3983
    %v3985 = vrot.slane %v3984, 1
    %v3986 = vmax.f32 %v3984, %v3985
    %v3987 = vsel %vm1134, %v3776, -inf
    %v3988 = vrot.slane %v3987, 4
    %v3989 = vmax.f32 %v3987, %v3988
    %v3990 = vrot.slane %v3989, 2
    %v3991 = vmax.f32 %v3989, %v3990
    %v3992 = vrot.slane %v3991, 1
    %v3993 = vmax.f32 %v3991, %v3992
    %v3994 = vsel %vm1134, %v3777, -inf
    %v3995 = vrot.slane %v3994, 4
    %v3996 = vmax.f32 %v3994, %v3995
    %v3997 = vrot.slane %v3996, 2
    %v3998 = vmax.f32 %v3996, %v3997
    %v3999 = vrot.slane %v3998, 1
    %v4000 = vmax.f32 %v3998, %v3999
    %v4001 = vsel %vm1134, %v3748, -inf
    %v4002 = vrot.slane %v4001, 4
    %v4003 = vmax.f32 %v4001, %v4002
    %v4004 = vrot.slane %v4003, 2
    %v4005 = vmax.f32 %v4003, %v4004
    %v4006 = vrot.slane %v4005, 1
    %v4007 = vmax.f32 %v4005, %v4006
    %v4008 = vsel %vm1134, %v3778, -inf
    %v4009 = vrot.slane %v4008, 4
    %v4010 = vmax.f32 %v4008, %v4009
    %v4011 = vrot.slane %v4010, 2
    %v4012 = vmax.f32 %v4010, %v4011
    %v4013 = vrot.slane %v4012, 1
    %v4014 = vmax.f32 %v4012, %v4013
    %v4015 = vsel %vm1134, %v3779, -inf
    %v4016 = vrot.slane %v4015, 4
    %v4017 = vmax.f32 %v4015, %v4016
    %v4018 = vrot.slane %v4017, 2
    %v4019 = vmax.f32 %v4017, %v4018
    %v4020 = vrot.slane %v4019, 1
    %v4021 = vmax.f32 %v4019, %v4020
    %v4022 = vsel %vm1134, %v3780, -inf
    %v4023 = vrot.slane %v4022, 4
    %v4024 = vmax.f32 %v4022, %v4023
    %v4025 = vrot.slane %v4024, 2
    %v4026 = vmax.f32 %v4024, %v4025
    %v4027 = vrot.slane %v4026, 1
    %v4028 = vmax.f32 %v4026, %v4027
    %4029 = vst [vmem:[#allocation3] sm:$0x3f] 0.0
    %4030 = vst [vmem:[#allocation3 + $0x8] sm:$0x3f] 0.0
    %4031 = vst [vmem:[#allocation3 + $0x10] sm:$0x3f] 0.0
    %4032 = vst [vmem:[#allocation3 + $0x18] sm:$0x3f] 0.0
    %4033 = vst [vmem:[#allocation3 + $0x20] sm:$0x3f] 0.0
    %4034 = vst [vmem:[#allocation3 + $0x28] sm:$0x3f] 0.0
    %4035 = vst [vmem:[#allocation3 + $0x30] sm:$0x3f] 0.0
    %4036 = vst [vmem:[#allocation3 + $0x38] sm:$0x3f] 0.0
    %4037 = vst [vmem:[#allocation3 + $0x40] sm:$0x3f] 0.0
    %4038 = vst [vmem:[#allocation3 + $0x48] sm:$0x3f] 0.0
    %4039 = vst [vmem:[#allocation3 + $0x50] sm:$0x3f] 0.0
    %4040 = vst [vmem:[#allocation3 + $0x58] sm:$0x3f] 0.0
    %v4073 = vsel %vm2199, %v3818, %v3811
    %v4074 = vsel %vm2201, %v3825, %v4073
    %v4075 = vsel %vm2203, %v3832, %v4074
    %v4076 = vsel %vm2199, %v3846, %v3839
    %v4077 = vsel %vm2201, %v3853, %v4076
    %v4078 = vsel %vm2203, %v3860, %v4077
    %v4079 = vsel %vm2199, %v3874, %v3867
    %v4080 = vsel %vm2201, %v3881, %v4079
    %v4081 = vsel %vm2203, %v3888, %v4080
    %v4082 = vsel %vm2199, %v3902, %v3895
    %v4083 = vsel %vm2201, %v3909, %v4082
    %v4084 = vsel %vm2203, %v3916, %v4083
    %v4085 = vsel %vm2199, %v3930, %v3923
    %v4086 = vsel %vm2201, %v3937, %v4085
    %v4087 = vsel %vm2203, %v3944, %v4086
    %v4088 = vsel %vm2199, %v3958, %v3951
    %v4089 = vsel %vm2201, %v3965, %v4088
    %v4090 = vsel %vm2203, %v3972, %v4089
    %v4091 = vsel %vm2199, %v3986, %v3979
    %v4092 = vsel %vm2201, %v3993, %v4091
    %v4093 = vsel %vm2203, %v4000, %v4092
    %v4094 = vsel %vm2199, %v4014, %v4007
    %v4095 = vsel %vm2201, %v4021, %v4094
    %v4096 = vsel %vm2203, %v4028, %v4095
    %s4105 = scalar_lea.vmem [#allocation3], 8
    %4106 = vst [vmem:[%s4105 + $0x1] sm:$0xf] %v4075
    %4107 = vst [vmem:[%s4105 + $0x9] sm:$0xf] %v4078
    %4108 = vst [vmem:[%s4105 + $0x11] sm:$0xf] %v4081
    %4109 = vst [vmem:[%s4105 + $0x19] sm:$0xf] %v4084
    %4110 = vst [vmem:[%s4105 + $0x31] sm:$0xf] %v4087
    %4111 = vst [vmem:[%s4105 + $0x39] sm:$0xf] %v4090
    %4112 = vst [vmem:[%s4105 + $0x41] sm:$0xf] %v4093
    %4113 = vst [vmem:[%s4105 + $0x49] sm:$0xf] %v4096
    %v4114 = vld [vmem:[#allocation3] sm:$0xf]
    %v4115 = vld [vmem:[#allocation3 + $0x8] sm:$0xf]
    %v4116 = vld [vmem:[#allocation3 + $0x10] sm:$0xf]
    %v4117 = vld [vmem:[#allocation3 + $0x18] sm:$0xf]
    %v4118 = vld [vmem:[#allocation3 + $0x30] sm:$0xf]
    %v4119 = vld [vmem:[#allocation3 + $0x38] sm:$0xf]
    %v4120 = vld [vmem:[#allocation3 + $0x40] sm:$0xf]
    %v4121 = vld [vmem:[#allocation3 + $0x48] sm:$0xf]
    %4130 = vst [vmem:[#allocation1] ss:$2 sm:$0xff] %v4114
    %s4131 = scalar_lea.vmem [#allocation1], 1
    %4132 = vst [vmem:[%s4131] ss:$2 sm:$0xff] %v4115
    %s4133 = scalar_lea.vmem [#allocation1], 16
    %4134 = vst [vmem:[%s4133] ss:$2 sm:$0xff] %v4116
    %s4135 = scalar_lea.vmem [#allocation1], 17
    %4136 = vst [vmem:[%s4135] ss:$2 sm:$0xff] %v4117
    %s4137 = scalar_lea.vmem [#allocation1], 32
    %4138 = vst [vmem:[%s4137] ss:$2 sm:$0xff] %v4118
    %s4139 = scalar_lea.vmem [#allocation1], 33
    %4140 = vst [vmem:[%s4139] ss:$2 sm:$0xff] %v4119
    %s4141 = scalar_lea.vmem [#allocation1], 48
    %4142 = vst [vmem:[%s4141] ss:$2 sm:$0xff] %v4120
    %s4143 = scalar_lea.vmem [#allocation1], 49
    %4144 = vst [vmem:[%s4143] ss:$2 sm:$0xff] %v4121
    %v4145 = vld.sshfl [vmem:[#allocation1] sm:$0xff pattern:$0x75316420]
    %v4146 = vld.sshfl [vmem:[#allocation1 + $0x10] sm:$0xff pattern:$0x75316420]
    %v4147 = vld.sshfl [vmem:[#allocation1 + $0x20] sm:$0xff pattern:$0x75316420]
    %v4148 = vld.sshfl [vmem:[#allocation1 + $0x30] sm:$0xff pattern:$0x75316420]
    %v4153 = vpack.c.bf16 %v4146, %v4145
    %v4154 = vpack.c.bf16 %v4148, %v4147
    %v4155 = vld [vmem:[#allocation13] sm:$0xf]
    %v4156 = vld [vmem:[#allocation13 + $0x4] sm:$0xf]
    %v4157 = vld [vmem:[#allocation13 + $0x8] sm:$0xf]
    %v4158 = vld [vmem:[#allocation13 + $0xc] sm:$0xf]
    %v4159 = vld [vmem:[#allocation13 + $0x10] sm:$0xf]
    %v4160 = vld [vmem:[#allocation13 + $0x14] sm:$0xf]
    %v4161 = vld [vmem:[#allocation13 + $0x18] sm:$0xf]
    %v4162 = vld [vmem:[#allocation13 + $0x1c] sm:$0xf]
    %v4163 = vld [vmem:[#allocation13 + $0x20] sm:$0xf]
    %v4164 = vld [vmem:[#allocation13 + $0x24] sm:$0xf]
    %v4165 = vld [vmem:[#allocation13 + $0x28] sm:$0xf]
    %v4166 = vld [vmem:[#allocation13 + $0x2c] sm:$0xf]
    %v4167 = vld [vmem:[#allocation13 + $0x30] sm:$0xf]
    %v4168 = vld [vmem:[#allocation13 + $0x34] sm:$0xf]
    %v4169 = vld [vmem:[#allocation13 + $0x38] sm:$0xf]
    %v4170 = vld [vmem:[#allocation13 + $0x3c] sm:$0xf]
    %v4171 = vld [vmem:[#allocation3 + $0x1] sm:$0xf]
    %v4172 = vld [vmem:[#allocation3 + $0x9] sm:$0xf]
    %v4173 = vld [vmem:[#allocation3 + $0x11] sm:$0xf]
    %v4174 = vld [vmem:[#allocation3 + $0x19] sm:$0xf]
    %v4175 = vld [vmem:[#allocation3 + $0x31] sm:$0xf]
    %v4176 = vld [vmem:[#allocation3 + $0x39] sm:$0xf]
    %v4177 = vld [vmem:[#allocation3 + $0x41] sm:$0xf]
    %v4178 = vld [vmem:[#allocation3 + $0x49] sm:$0xf]
    %4187 = vst [vmem:[#allocation1] ss:$2 sm:$0xff] %v4171
    %s4188 = scalar_lea.vmem [#allocation1], 1
    %4189 = vst [vmem:[%s4188] ss:$2 sm:$0xff] %v4172
    %s4190 = scalar_lea.vmem [#allocation1], 16
    %4191 = vst [vmem:[%s4190] ss:$2 sm:$0xff] %v4173
    %s4192 = scalar_lea.vmem [#allocation1], 17
    %4193 = vst [vmem:[%s4192] ss:$2 sm:$0xff] %v4174
    %s4194 = scalar_lea.vmem [#allocation1], 32
    %4195 = vst [vmem:[%s4194] ss:$2 sm:$0xff] %v4175
    %s4196 = scalar_lea.vmem [#allocation1], 33
    %4197 = vst [vmem:[%s4196] ss:$2 sm:$0xff] %v4176
    %s4198 = scalar_lea.vmem [#allocation1], 48
    %4199 = vst [vmem:[%s4198] ss:$2 sm:$0xff] %v4177
    %s4200 = scalar_lea.vmem [#allocation1], 49
    %4201 = vst [vmem:[%s4200] ss:$2 sm:$0xff] %v4178
    %v4202 = vld.sshfl [vmem:[#allocation1] sm:$0xff pattern:$0x75316420]
    %v4203 = vld.sshfl [vmem:[#allocation1 + $0x10] sm:$0xff pattern:$0x75316420]
    %v4204 = vld.sshfl [vmem:[#allocation1 + $0x20] sm:$0xff pattern:$0x75316420]
    %v4205 = vld.sshfl [vmem:[#allocation1 + $0x30] sm:$0xff pattern:$0x75316420]
    %v4210 = vpack.c.bf16 %v4203, %v4202
    %v4211 = vpack.c.bf16 %v4205, %v4204
    %s4212 = scalar_lea.vmem [#allocation13], 64
    %v4213 = vld [vmem:[%s4212] sm:$0xf]
    %v4214 = vld [vmem:[%s4212 + $0x4] sm:$0xf]
    %v4215 = vld [vmem:[%s4212 + $0x8] sm:$0xf]
    %v4216 = vld [vmem:[%s4212 + $0xc] sm:$0xf]
    %v4217 = vld [vmem:[%s4212 + $0x10] sm:$0xf]
    %v4218 = vld [vmem:[%s4212 + $0x14] sm:$0xf]
    %v4219 = vld [vmem:[%s4212 + $0x18] sm:$0xf]
    %v4220 = vld [vmem:[%s4212 + $0x1c] sm:$0xf]
    %v4221 = vld [vmem:[%s4212 + $0x20] sm:$0xf]
    %v4222 = vld [vmem:[%s4212 + $0x24] sm:$0xf]
    %v4223 = vld [vmem:[%s4212 + $0x28] sm:$0xf]
    %v4224 = vld [vmem:[%s4212 + $0x2c] sm:$0xf]
    %v4225 = vld [vmem:[%s4212 + $0x30] sm:$0xf]
    %v4226 = vld [vmem:[%s4212 + $0x34] sm:$0xf]
    %v4227 = vld [vmem:[%s4212 + $0x38] sm:$0xf]
    %v4228 = vld [vmem:[%s4212 + $0x3c] sm:$0xf]
    %v4245 = vunpack.c.l.b16 %v4213
    %v4246 = vunpack.c.l.b16 %v4214
    %v4247 = vunpack.c.l.b16 %v4215
    %v4248 = vunpack.c.l.b16 %v4216
    %v4249 = vunpack.c.l.b16 %v4217
    %v4250 = vunpack.c.l.b16 %v4218
    %v4251 = vunpack.c.l.b16 %v4219
    %v4252 = vunpack.c.l.b16 %v4220
    %v4253 = vunpack.c.l.b16 %v4221
    %v4254 = vunpack.c.l.b16 %v4222
    %v4255 = vunpack.c.l.b16 %v4223
    %v4256 = vunpack.c.l.b16 %v4224
    %v4257 = vunpack.c.l.b16 %v4225
    %v4258 = vunpack.c.l.b16 %v4226
    %v4259 = vunpack.c.l.b16 %v4227
    %v4260 = vunpack.c.l.b16 %v4228
    %v4261 = vpack.c.b16 %v4246, %v4245
    %v4262 = vpack.c.b16 %v4248, %v4247
    %v4263 = vpack.c.b16 %v4250, %v4249
    %v4264 = vpack.c.b16 %v4252, %v4251
    %v4265 = vpack.c.b16 %v4254, %v4253
    %v4266 = vpack.c.b16 %v4256, %v4255
    %v4267 = vpack.c.b16 %v4258, %v4257
    %v4268 = vpack.c.b16 %v4260, %v4259
    %4277 = vmatpush.bf16.msra.mxu0 %v4268
    %4278 = vmatpush.bf16.msra.mxu0 %v4267
    %4279 = vmatpush.bf16.msra.mxu0 %v4266
    %4280 = vmatpush.bf16.msra.mxu0 %v4265
    %4281 = vmatpush.bf16.msra.mxu0 %v4264
    %4282 = vmatpush.bf16.msra.mxu0 %v4263
    %4283 = vmatpush.bf16.msra.mxu0 %v4262
    %4284 = vmatpush.bf16.msra.mxu0 %v4261
    %4285 = vmatmul.bf16.gmra.mxu0 %v4210
    %v4286 = vpop.f32.mrf.mxu0
    %v4287 = vadd.f32 0.0, %v4286
    %v4288 = vpop.f32.mrf.mxu0
    %v4289 = vadd.f32 0.0, %v4288
    %4290 = vmatmul.bf16.gmra.mxu0 %v4211
    %v4291 = vpop.f32.mrf.mxu0
    %v4292 = vadd.f32 0.0, %v4291
    %v4293 = vpop.f32.mrf.mxu0
    %v4294 = vadd.f32 0.0, %v4293
    %4295 = vdwg.mxu0
    %v4312 = vunpack.c.l.b16 %v4155
    %v4313 = vunpack.c.l.b16 %v4156
    %v4314 = vunpack.c.l.b16 %v4157
    %v4315 = vunpack.c.l.b16 %v4158
    %v4316 = vunpack.c.l.b16 %v4159
    %v4317 = vunpack.c.l.b16 %v4160
    %v4318 = vunpack.c.l.b16 %v4161
    %v4319 = vunpack.c.l.b16 %v4162
    %v4320 = vunpack.c.l.b16 %v4163
    %v4321 = vunpack.c.l.b16 %v4164
    %v4322 = vunpack.c.l.b16 %v4165
    %v4323 = vunpack.c.l.b16 %v4166
    %v4324 = vunpack.c.l.b16 %v4167
    %v4325 = vunpack.c.l.b16 %v4168
    %v4326 = vunpack.c.l.b16 %v4169
    %v4327 = vunpack.c.l.b16 %v4170
    %v4328 = vpack.c.b16 %v4313, %v4312
    %v4329 = vpack.c.b16 %v4315, %v4314
    %v4330 = vpack.c.b16 %v4317, %v4316
    %v4331 = vpack.c.b16 %v4319, %v4318
    %v4332 = vpack.c.b16 %v4321, %v4320
    %v4333 = vpack.c.b16 %v4323, %v4322
    %v4334 = vpack.c.b16 %v4325, %v4324
    %v4335 = vpack.c.b16 %v4327, %v4326
    %4344 = vmatpush.bf16.msra.mxu0 %v4335
    %4345 = vmatpush.bf16.msra.mxu0 %v4334
    %4346 = vmatpush.bf16.msra.mxu0 %v4333
    %4347 = vmatpush.bf16.msra.mxu0 %v4332
    %4348 = vmatpush.bf16.msra.mxu0 %v4331
    %4349 = vmatpush.bf16.msra.mxu0 %v4330
    %4350 = vmatpush.bf16.msra.mxu0 %v4329
    %4351 = vmatpush.bf16.msra.mxu0 %v4328
    %4352 = vmatmul.bf16.gmra.mxu0 %v4153
    %v4353 = vpop.f32.mrf.mxu0
    %v4354 = vadd.f32 %v4287, %v4353
    %v4355 = vpop.f32.mrf.mxu0
    %v4356 = vadd.f32 %v4289, %v4355
    %4357 = vmatmul.bf16.gmra.mxu0 %v4154
    %v4358 = vpop.f32.mrf.mxu0
    %v4359 = vadd.f32 %v4292, %v4358
    %v4360 = vpop.f32.mrf.mxu0
    %v4361 = vadd.f32 %v4294, %v4360
    %4362 = vdwg.mxu0
    %v4363 = vld [vmem:[#allocation3 + $0x2] sm:$0xf]
    %v4364 = vld [vmem:[#allocation3 + $0xa] sm:$0xf]
    %v4365 = vld [vmem:[#allocation3 + $0x12] sm:$0xf]
    %v4366 = vld [vmem:[#allocation3 + $0x1a] sm:$0xf]
    %v4367 = vld [vmem:[#allocation3 + $0x32] sm:$0xf]
    %v4368 = vld [vmem:[#allocation3 + $0x3a] sm:$0xf]
    %v4369 = vld [vmem:[#allocation3 + $0x42] sm:$0xf]
    %v4370 = vld [vmem:[#allocation3 + $0x4a] sm:$0xf]
    %4379 = vst [vmem:[#allocation1] ss:$2 sm:$0xff] %v4363
    %s4380 = scalar_lea.vmem [#allocation1], 1
    %4381 = vst [vmem:[%s4380] ss:$2 sm:$0xff] %v4364
    %s4382 = scalar_lea.vmem [#allocation1], 16
    %4383 = vst [vmem:[%s4382] ss:$2 sm:$0xff] %v4365
    %s4384 = scalar_lea.vmem [#allocation1], 17
    %4385 = vst [vmem:[%s4384] ss:$2 sm:$0xff] %v4366
    %s4386 = scalar_lea.vmem [#allocation1], 32
    %4387 = vst [vmem:[%s4386] ss:$2 sm:$0xff] %v4367
    %s4388 = scalar_lea.vmem [#allocation1], 33
    %4389 = vst [vmem:[%s4388] ss:$2 sm:$0xff] %v4368
    %s4390 = scalar_lea.vmem [#allocation1], 48
    %4391 = vst [vmem:[%s4390] ss:$2 sm:$0xff] %v4369
    %s4392 = scalar_lea.vmem [#allocation1], 49
    %4393 = vst [vmem:[%s4392] ss:$2 sm:$0xff] %v4370
    %v4394 = vld.sshfl [vmem:[#allocation1] sm:$0xff pattern:$0x75316420]
    %v4395 = vld.sshfl [vmem:[#allocation1 + $0x10] sm:$0xff pattern:$0x75316420]
    %v4396 = vld.sshfl [vmem:[#allocation1 + $0x20] sm:$0xff pattern:$0x75316420]
    %v4397 = vld.sshfl [vmem:[#allocation1 + $0x30] sm:$0xff pattern:$0x75316420]
    %v4402 = vpack.c.bf16 %v4395, %v4394
    %v4403 = vpack.c.bf16 %v4397, %v4396
    %s4404 = scalar_lea.vmem [#allocation13], 128
    %v4405 = vld [vmem:[%s4404] sm:$0xf]
    %v4406 = vld [vmem:[%s4404 + $0x4] sm:$0xf]
    %v4407 = vld [vmem:[%s4404 + $0x8] sm:$0xf]
    %v4408 = vld [vmem:[%s4404 + $0xc] sm:$0xf]
    %v4409 = vld [vmem:[%s4404 + $0x10] sm:$0xf]
    %v4410 = vld [vmem:[%s4404 + $0x14] sm:$0xf]
    %v4411 = vld [vmem:[%s4404 + $0x18] sm:$0xf]
    %v4412 = vld [vmem:[%s4404 + $0x1c] sm:$0xf]
    %v4413 = vld [vmem:[%s4404 + $0x20] sm:$0xf]
    %v4414 = vld [vmem:[%s4404 + $0x24] sm:$0xf]
    %v4415 = vld [vmem:[%s4404 + $0x28] sm:$0xf]
    %v4416 = vld [vmem:[%s4404 + $0x2c] sm:$0xf]
    %v4417 = vld [vmem:[%s4404 + $0x30] sm:$0xf]
    %v4418 = vld [vmem:[%s4404 + $0x34] sm:$0xf]
    %v4419 = vld [vmem:[%s4404 + $0x38] sm:$0xf]
    %v4420 = vld [vmem:[%s4404 + $0x3c] sm:$0xf]
    %v4437 = vunpack.c.l.b16 %v4405
    %v4438 = vunpack.c.l.b16 %v4406
    %v4439 = vunpack.c.l.b16 %v4407
    %v4440 = vunpack.c.l.b16 %v4408
    %v4441 = vunpack.c.l.b16 %v4409
    %v4442 = vunpack.c.l.b16 %v4410
    %v4443 = vunpack.c.l.b16 %v4411
    %v4444 = vunpack.c.l.b16 %v4412
    %v4445 = vunpack.c.l.b16 %v4413
    %v4446 = vunpack.c.l.b16 %v4414
    %v4447 = vunpack.c.l.b16 %v4415
    %v4448 = vunpack.c.l.b16 %v4416
    %v4449 = vunpack.c.l.b16 %v4417
    %v4450 = vunpack.c.l.b16 %v4418
    %v4451 = vunpack.c.l.b16 %v4419
    %v4452 = vunpack.c.l.b16 %v4420
    %v4453 = vpack.c.b16 %v4438, %v4437
    %v4454 = vpack.c.b16 %v4440, %v4439
    %v4455 = vpack.c.b16 %v4442, %v4441
    %v4456 = vpack.c.b16 %v4444, %v4443
    %v4457 = vpack.c.b16 %v4446, %v4445
    %v4458 = vpack.c.b16 %v4448, %v4447
    %v4459 = vpack.c.b16 %v4450, %v4449
    %v4460 = vpack.c.b16 %v4452, %v4451
    %4469 = vmatpush.bf16.msra.mxu0 %v4460
    %4470 = vmatpush.bf16.msra.mxu0 %v4459
    %4471 = vmatpush.bf16.msra.mxu0 %v4458
    %4472 = vmatpush.bf16.msra.mxu0 %v4457
    %4473 = vmatpush.bf16.msra.mxu0 %v4456
    %4474 = vmatpush.bf16.msra.mxu0 %v4455
    %4475 = vmatpush.bf16.msra.mxu0 %v4454
    %4476 = vmatpush.bf16.msra.mxu0 %v4453
    %4477 = vmatmul.bf16.gmra.mxu0 %v4402
    %v4478 = vpop.f32.mrf.mxu0
    %v4479 = vadd.f32 0.0, %v4478
    %v4480 = vpop.f32.mrf.mxu0
    %v4481 = vadd.f32 0.0, %v4480
    %4482 = vmatmul.bf16.gmra.mxu0 %v4403
    %v4483 = vpop.f32.mrf.mxu0
    %v4484 = vadd.f32 0.0, %v4483
    %v4485 = vpop.f32.mrf.mxu0
    %v4486 = vadd.f32 0.0, %v4485
    %4487 = vdwg.mxu0
    %v4488 = vadd.f32 %v4354, %v4479
    %v4489 = vadd.f32 %v4356, %v4481
    %v4490 = vadd.f32 %v4359, %v4484
    %v4491 = vadd.f32 %v4361, %v4486
    %v4492 = vld [vmem:[%s4105] sm:$0xf]
    %v4493 = vld [vmem:[%s4105 + $0x8] sm:$0xf]
    %v4494 = vld [vmem:[%s4105 + $0x10] sm:$0xf]
    %v4495 = vld [vmem:[%s4105 + $0x18] sm:$0xf]
    %v4496 = vld [vmem:[%s4105 + $0x30] sm:$0xf]
    %v4497 = vld [vmem:[%s4105 + $0x38] sm:$0xf]
    %v4498 = vld [vmem:[%s4105 + $0x40] sm:$0xf]
    %v4499 = vld [vmem:[%s4105 + $0x48] sm:$0xf]
    %4508 = vst [vmem:[#allocation1] ss:$2 sm:$0xff] %v4492
    %s4509 = scalar_lea.vmem [#allocation1], 1
    %4510 = vst [vmem:[%s4509] ss:$2 sm:$0xff] %v4493
    %s4511 = scalar_lea.vmem [#allocation1], 16
    %4512 = vst [vmem:[%s4511] ss:$2 sm:$0xff] %v4494
    %s4513 = scalar_lea.vmem [#allocation1], 17
    %4514 = vst [vmem:[%s4513] ss:$2 sm:$0xff] %v4495
    %s4515 = scalar_lea.vmem [#allocation1], 32
    %4516 = vst [vmem:[%s4515] ss:$2 sm:$0xff] %v4496
    %s4517 = scalar_lea.vmem [#allocation1], 33
    %4518 = vst [vmem:[%s4517] ss:$2 sm:$0xff] %v4497
    %s4519 = scalar_lea.vmem [#allocation1], 48
    %4520 = vst [vmem:[%s4519] ss:$2 sm:$0xff] %v4498
    %s4521 = scalar_lea.vmem [#allocation1], 49
    %4522 = vst [vmem:[%s4521] ss:$2 sm:$0xff] %v4499
    %v4523 = vld.sshfl [vmem:[#allocation1] sm:$0xff pattern:$0x75316420]
    %v4524 = vld.sshfl [vmem:[#allocation1 + $0x10] sm:$0xff pattern:$0x75316420]
    %v4525 = vld.sshfl [vmem:[#allocation1 + $0x20] sm:$0xff pattern:$0x75316420]
    %v4526 = vld.sshfl [vmem:[#allocation1 + $0x30] sm:$0xff pattern:$0x75316420]
    %v4531 = vpack.c.bf16 %v4524, %v4523
    %v4532 = vpack.c.bf16 %v4526, %v4525
    %s4533 = scalar_lea.vmem [#allocation13], 192
    %v4534 = vld [vmem:[%s4533] sm:$0xf]
    %v4535 = vld [vmem:[%s4533 + $0x4] sm:$0xf]
    %v4536 = vld [vmem:[%s4533 + $0x8] sm:$0xf]
    %v4537 = vld [vmem:[%s4533 + $0xc] sm:$0xf]
    %v4538 = vld [vmem:[%s4533 + $0x10] sm:$0xf]
    %v4539 = vld [vmem:[%s4533 + $0x14] sm:$0xf]
    %v4540 = vld [vmem:[%s4533 + $0x18] sm:$0xf]
    %v4541 = vld [vmem:[%s4533 + $0x1c] sm:$0xf]
    %v4542 = vld [vmem:[%s4533 + $0x20] sm:$0xf]
    %v4543 = vld [vmem:[%s4533 + $0x24] sm:$0xf]
    %v4544 = vld [vmem:[%s4533 + $0x28] sm:$0xf]
    %v4545 = vld [vmem:[%s4533 + $0x2c] sm:$0xf]
    %v4546 = vld [vmem:[%s4533 + $0x30] sm:$0xf]
    %v4547 = vld [vmem:[%s4533 + $0x34] sm:$0xf]
    %v4548 = vld [vmem:[%s4533 + $0x38] sm:$0xf]
    %v4549 = vld [vmem:[%s4533 + $0x3c] sm:$0xf]
    %v4566 = vunpack.c.l.b16 %v4534
    %v4567 = vunpack.c.l.b16 %v4535
    %v4568 = vunpack.c.l.b16 %v4536
    %v4569 = vunpack.c.l.b16 %v4537
    %v4570 = vunpack.c.l.b16 %v4538
    %v4571 = vunpack.c.l.b16 %v4539
    %v4572 = vunpack.c.l.b16 %v4540
    %v4573 = vunpack.c.l.b16 %v4541
    %v4574 = vunpack.c.l.b16 %v4542
    %v4575 = vunpack.c.l.b16 %v4543
    %v4576 = vunpack.c.l.b16 %v4544
    %v4577 = vunpack.c.l.b16 %v4545
    %v4578 = vunpack.c.l.b16 %v4546
    %v4579 = vunpack.c.l.b16 %v4547
    %v4580 = vunpack.c.l.b16 %v4548
    %v4581 = vunpack.c.l.b16 %v4549
    %v4582 = vpack.c.b16 %v4567, %v4566
    %v4583 = vpack.c.b16 %v4569, %v4568
    %v4584 = vpack.c.b16 %v4571, %v4570
    %v4585 = vpack.c.b16 %v4573, %v4572
    %v4586 = vpack.c.b16 %v4575, %v4574
    %v4587 = vpack.c.b16 %v4577, %v4576
    %v4588 = vpack.c.b16 %v4579, %v4578
    %v4589 = vpack.c.b16 %v4581, %v4580
    %4598 = vmatpush.bf16.msra.mxu0 %v4589
    %4599 = vmatpush.bf16.msra.mxu0 %v4588
    %4600 = vmatpush.bf16.msra.mxu0 %v4587
    %4601 = vmatpush.bf16.msra.mxu0 %v4586
    %4602 = vmatpush.bf16.msra.mxu0 %v4585
    %4603 = vmatpush.bf16.msra.mxu0 %v4584
    %4604 = vmatpush.bf16.msra.mxu0 %v4583
    %4605 = vmatpush.bf16.msra.mxu0 %v4582
    %4606 = vmatmul.bf16.gmra.mxu0 %v4531
    %v4607 = vpop.f32.mrf.mxu0
    %v4608 = vadd.f32 0.0, %v4607
    %v4609 = vpop.f32.mrf.mxu0
    %v4610 = vadd.f32 0.0, %v4609
    %4611 = vmatmul.bf16.gmra.mxu0 %v4532
    %v4612 = vpop.f32.mrf.mxu0
    %v4613 = vadd.f32 0.0, %v4612
    %v4614 = vpop.f32.mrf.mxu0
    %v4615 = vadd.f32 0.0, %v4614
    %4616 = vdwg.mxu0
    %v4617 = vadd.f32 %v4488, %v4608
    %v4618 = vadd.f32 %v4489, %v4610
    %v4619 = vadd.f32 %v4490, %v4613
    %v4620 = vadd.f32 %v4491, %v4615
    %v4621 = vld [vmem:[%s4105 + $0x1] sm:$0xf]
    %v4622 = vld [vmem:[%s4105 + $0x9] sm:$0xf]
    %v4623 = vld [vmem:[%s4105 + $0x11] sm:$0xf]
    %v4624 = vld [vmem:[%s4105 + $0x19] sm:$0xf]
    %v4625 = vld [vmem:[%s4105 + $0x31] sm:$0xf]
    %v4626 = vld [vmem:[%s4105 + $0x39] sm:$0xf]
    %v4627 = vld [vmem:[%s4105 + $0x41] sm:$0xf]
    %v4628 = vld [vmem:[%s4105 + $0x49] sm:$0xf]
    %4637 = vst [vmem:[#allocation1] ss:$2 sm:$0xff] %v4621
    %s4638 = scalar_lea.vmem [#allocation1], 1
    %4639 = vst [vmem:[%s4638] ss:$2 sm:$0xff] %v4622
    %s4640 = scalar_lea.vmem [#allocation1], 16
    %4641 = vst [vmem:[%s4640] ss:$2 sm:$0xff] %v4623
    %s4642 = scalar_lea.vmem [#allocation1], 17
    %4643 = vst [vmem:[%s4642] ss:$2 sm:$0xff] %v4624
    %s4644 = scalar_lea.vmem [#allocation1], 32
    %4645 = vst [vmem:[%s4644] ss:$2 sm:$0xff] %v4625
    %s4646 = scalar_lea.vmem [#allocation1], 33
    %4647 = vst [vmem:[%s4646] ss:$2 sm:$0xff] %v4626
    %s4648 = scalar_lea.vmem [#allocation1], 48
    %4649 = vst [vmem:[%s4648] ss:$2 sm:$0xff] %v4627
    %s4650 = scalar_lea.vmem [#allocation1], 49
    %4651 = vst [vmem:[%s4650] ss:$2 sm:$0xff] %v4628
    %v4652 = vld.sshfl [vmem:[#allocation1] sm:$0xff pattern:$0x75316420]
    %v4653 = vld.sshfl [vmem:[#allocation1 + $0x10] sm:$0xff pattern:$0x75316420]
    %v4654 = vld.sshfl [vmem:[#allocation1 + $0x20] sm:$0xff pattern:$0x75316420]
    %v4655 = vld.sshfl [vmem:[#allocation1 + $0x30] sm:$0xff pattern:$0x75316420]
    %v4660 = vpack.c.bf16 %v4653, %v4652
    %v4661 = vpack.c.bf16 %v4655, %v4654
    %s4662 = scalar_lea.vmem [#allocation13], 256
    %v4663 = vld [vmem:[%s4662] sm:$0xf]
    %v4664 = vld [vmem:[%s4662 + $0x4] sm:$0xf]
    %v4665 = vld [vmem:[%s4662 + $0x8] sm:$0xf]
    %v4666 = vld [vmem:[%s4662 + $0xc] sm:$0xf]
    %v4667 = vld [vmem:[%s4662 + $0x10] sm:$0xf]
    %v4668 = vld [vmem:[%s4662 + $0x14] sm:$0xf]
    %v4669 = vld [vmem:[%s4662 + $0x18] sm:$0xf]
    %v4670 = vld [vmem:[%s4662 + $0x1c] sm:$0xf]
    %v4671 = vld [vmem:[%s4662 + $0x20] sm:$0xf]
    %v4672 = vld [vmem:[%s4662 + $0x24] sm:$0xf]
    %v4673 = vld [vmem:[%s4662 + $0x28] sm:$0xf]
    %v4674 = vld [vmem:[%s4662 + $0x2c] sm:$0xf]
    %v4675 = vld [vmem:[%s4662 + $0x30] sm:$0xf]
    %v4676 = vld [vmem:[%s4662 + $0x34] sm:$0xf]
    %v4677 = vld [vmem:[%s4662 + $0x38] sm:$0xf]
    %v4678 = vld [vmem:[%s4662 + $0x3c] sm:$0xf]
    %v4695 = vunpack.c.l.b16 %v4663
    %v4696 = vunpack.c.l.b16 %v4664
    %v4697 = vunpack.c.l.b16 %v4665
    %v4698 = vunpack.c.l.b16 %v4666
    %v4699 = vunpack.c.l.b16 %v4667
    %v4700 = vunpack.c.l.b16 %v4668
    %v4701 = vunpack.c.l.b16 %v4669
    %v4702 = vunpack.c.l.b16 %v4670
    %v4703 = vunpack.c.l.b16 %v4671
    %v4704 = vunpack.c.l.b16 %v4672
    %v4705 = vunpack.c.l.b16 %v4673
    %v4706 = vunpack.c.l.b16 %v4674
    %v4707 = vunpack.c.l.b16 %v4675
    %v4708 = vunpack.c.l.b16 %v4676
    %v4709 = vunpack.c.l.b16 %v4677
    %v4710 = vunpack.c.l.b16 %v4678
    %v4711 = vpack.c.b16 %v4696, %v4695
    %v4712 = vpack.c.b16 %v4698, %v4697
    %v4713 = vpack.c.b16 %v4700, %v4699
    %v4714 = vpack.c.b16 %v4702, %v4701
    %v4715 = vpack.c.b16 %v4704, %v4703
    %v4716 = vpack.c.b16 %v4706, %v4705
    %v4717 = vpack.c.b16 %v4708, %v4707
    %v4718 = vpack.c.b16 %v4710, %v4709
    %4727 = vmatpush.bf16.msra.mxu0 %v4718
    %4728 = vmatpush.bf16.msra.mxu0 %v4717
    %4729 = vmatpush.bf16.msra.mxu0 %v4716
    %4730 = vmatpush.bf16.msra.mxu0 %v4715
    %4731 = vmatpush.bf16.msra.mxu0 %v4714
    %4732 = vmatpush.bf16.msra.mxu0 %v4713
    %4733 = vmatpush.bf16.msra.mxu0 %v4712
    %4734 = vmatpush.bf16.msra.mxu0 %v4711
    %4735 = vmatmul.bf16.gmra.mxu0 %v4660
    %v4736 = vpop.f32.mrf.mxu0
    %v4737 = vadd.f32 0.0, %v4736
    %v4738 = vpop.f32.mrf.mxu0
    %v4739 = vadd.f32 0.0, %v4738
    %4740 = vmatmul.bf16.gmra.mxu0 %v4661
    %v4741 = vpop.f32.mrf.mxu0
    %v4742 = vadd.f32 0.0, %v4741
    %v4743 = vpop.f32.mrf.mxu0
    %v4744 = vadd.f32 0.0, %v4743
    %4745 = vdwg.mxu0
    %v4746 = vadd.f32 %v4617, %v4737
    %v4747 = vadd.f32 %v4618, %v4739
    %v4748 = vadd.f32 %v4619, %v4742
    %v4749 = vadd.f32 %v4620, %v4744
    %v4750 = vld [vmem:[%s4105 + $0x2] sm:$0xf]
    %v4751 = vld [vmem:[%s4105 + $0xa] sm:$0xf]
    %v4752 = vld [vmem:[%s4105 + $0x12] sm:$0xf]
    %v4753 = vld [vmem:[%s4105 + $0x1a] sm:$0xf]
    %v4754 = vld [vmem:[%s4105 + $0x32] sm:$0xf]
    %v4755 = vld [vmem:[%s4105 + $0x3a] sm:$0xf]
    %v4756 = vld [vmem:[%s4105 + $0x42] sm:$0xf]
    %v4757 = vld [vmem:[%s4105 + $0x4a] sm:$0xf]
    %4766 = vst [vmem:[#allocation1] ss:$2 sm:$0xff] %v4750
    %s4767 = scalar_lea.vmem [#allocation1], 1
    %4768 = vst [vmem:[%s4767] ss:$2 sm:$0xff] %v4751
    %s4769 = scalar_lea.vmem [#allocation1], 16
    %4770 = vst [vmem:[%s4769] ss:$2 sm:$0xff] %v4752
    %s4771 = scalar_lea.vmem [#allocation1], 17
    %4772 = vst [vmem:[%s4771] ss:$2 sm:$0xff] %v4753
    %s4773 = scalar_lea.vmem [#allocation1], 32
    %4774 = vst [vmem:[%s4773] ss:$2 sm:$0xff] %v4754
    %s4775 = scalar_lea.vmem [#allocation1], 33
    %4776 = vst [vmem:[%s4775] ss:$2 sm:$0xff] %v4755
    %s4777 = scalar_lea.vmem [#allocation1], 48
    %4778 = vst [vmem:[%s4777] ss:$2 sm:$0xff] %v4756
    %s4779 = scalar_lea.vmem [#allocation1], 49
    %4780 = vst [vmem:[%s4779] ss:$2 sm:$0xff] %v4757
    %v4781 = vld.sshfl [vmem:[#allocation1] sm:$0xff pattern:$0x75316420]
    %v4782 = vld.sshfl [vmem:[#allocation1 + $0x10] sm:$0xff pattern:$0x75316420]
    %v4783 = vld.sshfl [vmem:[#allocation1 + $0x20] sm:$0xff pattern:$0x75316420]
    %v4784 = vld.sshfl [vmem:[#allocation1 + $0x30] sm:$0xff pattern:$0x75316420]
    %v4789 = vpack.c.bf16 %v4782, %v4781
    %v4790 = vpack.c.bf16 %v4784, %v4783
    %s4791 = scalar_lea.vmem [#allocation13], 320
    %v4792 = vld [vmem:[%s4791] sm:$0xf]
    %v4793 = vld [vmem:[%s4791 + $0x4] sm:$0xf]
    %v4794 = vld [vmem:[%s4791 + $0x8] sm:$0xf]
    %v4795 = vld [vmem:[%s4791 + $0xc] sm:$0xf]
    %v4796 = vld [vmem:[%s4791 + $0x10] sm:$0xf]
    %v4797 = vld [vmem:[%s4791 + $0x14] sm:$0xf]
    %v4798 = vld [vmem:[%s4791 + $0x18] sm:$0xf]
    %v4799 = vld [vmem:[%s4791 + $0x1c] sm:$0xf]
    %v4800 = vld [vmem:[%s4791 + $0x20] sm:$0xf]
    %v4801 = vld [vmem:[%s4791 + $0x24] sm:$0xf]
    %v4802 = vld [vmem:[%s4791 + $0x28] sm:$0xf]
    %v4803 = vld [vmem:[%s4791 + $0x2c] sm:$0xf]
    %v4804 = vld [vmem:[%s4791 + $0x30] sm:$0xf]
    %v4805 = vld [vmem:[%s4791 + $0x34] sm:$0xf]
    %v4806 = vld [vmem:[%s4791 + $0x38] sm:$0xf]
    %v4807 = vld [vmem:[%s4791 + $0x3c] sm:$0xf]
    %v4824 = vunpack.c.l.b16 %v4792
    %v4825 = vunpack.c.l.b16 %v4793
    %v4826 = vunpack.c.l.b16 %v4794
    %v4827 = vunpack.c.l.b16 %v4795
    %v4828 = vunpack.c.l.b16 %v4796
    %v4829 = vunpack.c.l.b16 %v4797
    %v4830 = vunpack.c.l.b16 %v4798
    %v4831 = vunpack.c.l.b16 %v4799
    %v4832 = vunpack.c.l.b16 %v4800
    %v4833 = vunpack.c.l.b16 %v4801
    %v4834 = vunpack.c.l.b16 %v4802
    %v4835 = vunpack.c.l.b16 %v4803
    %v4836 = vunpack.c.l.b16 %v4804
    %v4837 = vunpack.c.l.b16 %v4805
    %v4838 = vunpack.c.l.b16 %v4806
    %v4839 = vunpack.c.l.b16 %v4807
    %v4840 = vpack.c.b16 %v4825, %v4824
    %v4841 = vpack.c.b16 %v4827, %v4826
    %v4842 = vpack.c.b16 %v4829, %v4828
    %v4843 = vpack.c.b16 %v4831, %v4830
    %v4844 = vpack.c.b16 %v4833, %v4832
    %v4845 = vpack.c.b16 %v4835, %v4834
    %v4846 = vpack.c.b16 %v4837, %v4836
    %v4847 = vpack.c.b16 %v4839, %v4838
    %4856 = vmatpush.bf16.msra.mxu0 %v4847
    %4857 = vmatpush.bf16.msra.mxu0 %v4846
    %4858 = vmatpush.bf16.msra.mxu0 %v4845
    %4859 = vmatpush.bf16.msra.mxu0 %v4844
    %4860 = vmatpush.bf16.msra.mxu0 %v4843
    %4861 = vmatpush.bf16.msra.mxu0 %v4842
    %4862 = vmatpush.bf16.msra.mxu0 %v4841
    %4863 = vmatpush.bf16.msra.mxu0 %v4840
    %4864 = vmatmul.bf16.gmra.mxu0 %v4789
    %v4865 = vpop.f32.mrf.mxu0
    %v4866 = vadd.f32 0.0, %v4865
    %v4867 = vpop.f32.mrf.mxu0
    %v4868 = vadd.f32 0.0, %v4867
    %4869 = vmatmul.bf16.gmra.mxu0 %v4790
    %v4870 = vpop.f32.mrf.mxu0
    %v4871 = vadd.f32 0.0, %v4870
    %v4872 = vpop.f32.mrf.mxu0
    %v4873 = vadd.f32 0.0, %v4872
    %4874 = vdwg.mxu0
    %v4875 = vadd.f32 %v4746, %v4866
    %v4876 = vadd.f32 %v4747, %v4868
    %v4877 = vadd.f32 %v4748, %v4871
    %v4878 = vadd.f32 %v4749, %v4873
    %s4879 = scalar_lea.vmem [#allocation3], 16
    %v4880 = vld [vmem:[%s4879] sm:$0xf]
    %v4881 = vld [vmem:[%s4879 + $0x8] sm:$0xf]
    %v4882 = vld [vmem:[%s4879 + $0x10] sm:$0xf]
    %v4883 = vld [vmem:[%s4879 + $0x18] sm:$0xf]
    %v4884 = vld [vmem:[%s4879 + $0x30] sm:$0xf]
    %v4885 = vld [vmem:[%s4879 + $0x38] sm:$0xf]
    %v4886 = vld [vmem:[%s4879 + $0x40] sm:$0xf]
    %v4887 = vld [vmem:[%s4879 + $0x48] sm:$0xf]
    %4896 = vst [vmem:[#allocation1] ss:$2 sm:$0xff] %v4880
    %s4897 = scalar_lea.vmem [#allocation1], 1
    %4898 = vst [vmem:[%s4897] ss:$2 sm:$0xff] %v4881
    %s4899 = scalar_lea.vmem [#allocation1], 16
    %4900 = vst [vmem:[%s4899] ss:$2 sm:$0xff] %v4882
    %s4901 = scalar_lea.vmem [#allocation1], 17
    %4902 = vst [vmem:[%s4901] ss:$2 sm:$0xff] %v4883
    %s4903 = scalar_lea.vmem [#allocation1], 32
    %4904 = vst [vmem:[%s4903] ss:$2 sm:$0xff] %v4884
    %s4905 = scalar_lea.vmem [#allocation1], 33
    %4906 = vst [vmem:[%s4905] ss:$2 sm:$0xff] %v4885
    %s4907 = scalar_lea.vmem [#allocation1], 48
    %4908 = vst [vmem:[%s4907] ss:$2 sm:$0xff] %v4886
    %s4909 = scalar_lea.vmem [#allocation1], 49
    %4910 = vst [vmem:[%s4909] ss:$2 sm:$0xff] %v4887
    %v4911 = vld.sshfl [vmem:[#allocation1] sm:$0xff pattern:$0x75316420]
    %v4912 = vld.sshfl [vmem:[#allocation1 + $0x10] sm:$0xff pattern:$0x75316420]
    %v4913 = vld.sshfl [vmem:[#allocation1 + $0x20] sm:$0xff pattern:$0x75316420]
    %v4914 = vld.sshfl [vmem:[#allocation1 + $0x30] sm:$0xff pattern:$0x75316420]
    %v4919 = vpack.c.bf16 %v4912, %v4911
    %v4920 = vpack.c.bf16 %v4914, %v4913
    %s4921 = scalar_lea.vmem [#allocation13], 384
    %v4922 = vld [vmem:[%s4921] sm:$0xf]
    %v4923 = vld [vmem:[%s4921 + $0x4] sm:$0xf]
    %v4924 = vld [vmem:[%s4921 + $0x8] sm:$0xf]
    %v4925 = vld [vmem:[%s4921 + $0xc] sm:$0xf]
    %v4926 = vld [vmem:[%s4921 + $0x10] sm:$0xf]
    %v4927 = vld [vmem:[%s4921 + $0x14] sm:$0xf]
    %v4928 = vld [vmem:[%s4921 + $0x18] sm:$0xf]
    %v4929 = vld [vmem:[%s4921 + $0x1c] sm:$0xf]
    %v4930 = vld [vmem:[%s4921 + $0x20] sm:$0xf]
    %v4931 = vld [vmem:[%s4921 + $0x24] sm:$0xf]
    %v4932 = vld [vmem:[%s4921 + $0x28] sm:$0xf]
    %v4933 = vld [vmem:[%s4921 + $0x2c] sm:$0xf]
    %v4934 = vld [vmem:[%s4921 + $0x30] sm:$0xf]
    %v4935 = vld [vmem:[%s4921 + $0x34] sm:$0xf]
    %v4936 = vld [vmem:[%s4921 + $0x38] sm:$0xf]
    %v4937 = vld [vmem:[%s4921 + $0x3c] sm:$0xf]
    %v4954 = vunpack.c.l.b16 %v4922
    %v4955 = vunpack.c.l.b16 %v4923
    %v4956 = vunpack.c.l.b16 %v4924
    %v4957 = vunpack.c.l.b16 %v4925
    %v4958 = vunpack.c.l.b16 %v4926
    %v4959 = vunpack.c.l.b16 %v4927
    %v4960 = vunpack.c.l.b16 %v4928
    %v4961 = vunpack.c.l.b16 %v4929
    %v4962 = vunpack.c.l.b16 %v4930
    %v4963 = vunpack.c.l.b16 %v4931
    %v4964 = vunpack.c.l.b16 %v4932
    %v4965 = vunpack.c.l.b16 %v4933
    %v4966 = vunpack.c.l.b16 %v4934
    %v4967 = vunpack.c.l.b16 %v4935
    %v4968 = vunpack.c.l.b16 %v4936
    %v4969 = vunpack.c.l.b16 %v4937
    %v4970 = vpack.c.b16 %v4955, %v4954
    %v4971 = vpack.c.b16 %v4957, %v4956
    %v4972 = vpack.c.b16 %v4959, %v4958
    %v4973 = vpack.c.b16 %v4961, %v4960
    %v4974 = vpack.c.b16 %v4963, %v4962
    %v4975 = vpack.c.b16 %v4965, %v4964
    %v4976 = vpack.c.b16 %v4967, %v4966
    %v4977 = vpack.c.b16 %v4969, %v4968
    %4986 = vmatpush.bf16.msra.mxu0 %v4977
    %4987 = vmatpush.bf16.msra.mxu0 %v4976
    %4988 = vmatpush.bf16.msra.mxu0 %v4975
    %4989 = vmatpush.bf16.msra.mxu0 %v4974
    %4990 = vmatpush.bf16.msra.mxu0 %v4973
    %4991 = vmatpush.bf16.msra.mxu0 %v4972
    %4992 = vmatpush.bf16.msra.mxu0 %v4971
    %4993 = vmatpush.bf16.msra.mxu0 %v4970
    %4994 = vmatmul.bf16.gmra.mxu0 %v4919
    %v4995 = vpop.f32.mrf.mxu0
    %v4996 = vadd.f32 0.0, %v4995
    %v4997 = vpop.f32.mrf.mxu0
    %v4998 = vadd.f32 0.0, %v4997
    %4999 = vmatmul.bf16.gmra.mxu0 %v4920
    %v5000 = vpop.f32.mrf.mxu0
    %v5001 = vadd.f32 0.0, %v5000
    %v5002 = vpop.f32.mrf.mxu0
    %v5003 = vadd.f32 0.0, %v5002
    %5004 = vdwg.mxu0
    %v5005 = vadd.f32 %v4875, %v4996
    %v5006 = vadd.f32 %v4876, %v4998
    %v5007 = vadd.f32 %v4877, %v5001
    %v5008 = vadd.f32 %v4878, %v5003
    %v5009 = vld [vmem:[%s4879 + $0x1] sm:$0xf]
    %v5010 = vld [vmem:[%s4879 + $0x9] sm:$0xf]
    %v5011 = vld [vmem:[%s4879 + $0x11] sm:$0xf]
    %v5012 = vld [vmem:[%s4879 + $0x19] sm:$0xf]
    %v5013 = vld [vmem:[%s4879 + $0x31] sm:$0xf]
    %v5014 = vld [vmem:[%s4879 + $0x39] sm:$0xf]
    %v5015 = vld [vmem:[%s4879 + $0x41] sm:$0xf]
    %v5016 = vld [vmem:[%s4879 + $0x49] sm:$0xf]
    %5025 = vst [vmem:[#allocation1] ss:$2 sm:$0xff] %v5009
    %s5026 = scalar_lea.vmem [#allocation1], 1
    %5027 = vst [vmem:[%s5026] ss:$2 sm:$0xff] %v5010
    %s5028 = scalar_lea.vmem [#allocation1], 16
    %5029 = vst [vmem:[%s5028] ss:$2 sm:$0xff] %v5011
    %s5030 = scalar_lea.vmem [#allocation1], 17
    %5031 = vst [vmem:[%s5030] ss:$2 sm:$0xff] %v5012
    %s5032 = scalar_lea.vmem [#allocation1], 32
    %5033 = vst [vmem:[%s5032] ss:$2 sm:$0xff] %v5013
    %s5034 = scalar_lea.vmem [#allocation1], 33
    %5035 = vst [vmem:[%s5034] ss:$2 sm:$0xff] %v5014
    %s5036 = scalar_lea.vmem [#allocation1], 48
    %5037 = vst [vmem:[%s5036] ss:$2 sm:$0xff] %v5015
    %s5038 = scalar_lea.vmem [#allocation1], 49
    %5039 = vst [vmem:[%s5038] ss:$2 sm:$0xff] %v5016
    %v5040 = vld.sshfl [vmem:[#allocation1] sm:$0xff pattern:$0x75316420]
    %v5041 = vld.sshfl [vmem:[#allocation1 + $0x10] sm:$0xff pattern:$0x75316420]
    %v5042 = vld.sshfl [vmem:[#allocation1 + $0x20] sm:$0xff pattern:$0x75316420]
    %v5043 = vld.sshfl [vmem:[#allocation1 + $0x30] sm:$0xff pattern:$0x75316420]
    %v5048 = vpack.c.bf16 %v5041, %v5040
    %v5049 = vpack.c.bf16 %v5043, %v5042
    %s5050 = scalar_lea.vmem [#allocation13], 448
    %v5051 = vld [vmem:[%s5050] sm:$0xf]
    %v5052 = vld [vmem:[%s5050 + $0x4] sm:$0xf]
    %v5053 = vld [vmem:[%s5050 + $0x8] sm:$0xf]
    %v5054 = vld [vmem:[%s5050 + $0xc] sm:$0xf]
    %v5055 = vld [vmem:[%s5050 + $0x10] sm:$0xf]
    %v5056 = vld [vmem:[%s5050 + $0x14] sm:$0xf]
    %v5057 = vld [vmem:[%s5050 + $0x18] sm:$0xf]
    %v5058 = vld [vmem:[%s5050 + $0x1c] sm:$0xf]
    %v5059 = vld [vmem:[%s5050 + $0x20] sm:$0xf]
    %v5060 = vld [vmem:[%s5050 + $0x24] sm:$0xf]
    %v5061 = vld [vmem:[%s5050 + $0x28] sm:$0xf]
    %v5062 = vld [vmem:[%s5050 + $0x2c] sm:$0xf]
    %v5063 = vld [vmem:[%s5050 + $0x30] sm:$0xf]
    %v5064 = vld [vmem:[%s5050 + $0x34] sm:$0xf]
    %v5065 = vld [vmem:[%s5050 + $0x38] sm:$0xf]
    %v5066 = vld [vmem:[%s5050 + $0x3c] sm:$0xf]
    %v5083 = vunpack.c.l.b16 %v5051
    %v5084 = vunpack.c.l.b16 %v5052
    %v5085 = vunpack.c.l.b16 %v5053
    %v5086 = vunpack.c.l.b16 %v5054
    %v5087 = vunpack.c.l.b16 %v5055
    %v5088 = vunpack.c.l.b16 %v5056
    %v5089 = vunpack.c.l.b16 %v5057
    %v5090 = vunpack.c.l.b16 %v5058
    %v5091 = vunpack.c.l.b16 %v5059
    %v5092 = vunpack.c.l.b16 %v5060
    %v5093 = vunpack.c.l.b16 %v5061
    %v5094 = vunpack.c.l.b16 %v5062
    %v5095 = vunpack.c.l.b16 %v5063
    %v5096 = vunpack.c.l.b16 %v5064
    %v5097 = vunpack.c.l.b16 %v5065
    %v5098 = vunpack.c.l.b16 %v5066
    %v5099 = vpack.c.b16 %v5084, %v5083
    %v5100 = vpack.c.b16 %v5086, %v5085
    %v5101 = vpack.c.b16 %v5088, %v5087
    %v5102 = vpack.c.b16 %v5090, %v5089
    %v5103 = vpack.c.b16 %v5092, %v5091
    %v5104 = vpack.c.b16 %v5094, %v5093
    %v5105 = vpack.c.b16 %v5096, %v5095
    %v5106 = vpack.c.b16 %v5098, %v5097
    %5115 = vmatpush.bf16.msra.mxu0 %v5106
    %5116 = vmatpush.bf16.msra.mxu0 %v5105
    %5117 = vmatpush.bf16.msra.mxu0 %v5104
    %5118 = vmatpush.bf16.msra.mxu0 %v5103
    %5119 = vmatpush.bf16.msra.mxu0 %v5102
    %5120 = vmatpush.bf16.msra.mxu0 %v5101
    %5121 = vmatpush.bf16.msra.mxu0 %v5100
    %5122 = vmatpush.bf16.msra.mxu0 %v5099
    %5123 = vmatmul.bf16.gmra.mxu0 %v5048
    %v5124 = vpop.f32.mrf.mxu0
    %v5125 = vadd.f32 0.0, %v5124
    %v5126 = vpop.f32.mrf.mxu0
    %v5127 = vadd.f32 0.0, %v5126
    %5128 = vmatmul.bf16.gmra.mxu0 %v5049
    %v5129 = vpop.f32.mrf.mxu0
    %v5130 = vadd.f32 0.0, %v5129
    %v5131 = vpop.f32.mrf.mxu0
    %v5132 = vadd.f32 0.0, %v5131
    %5133 = vdwg.mxu0
    %v5134 = vadd.f32 %v5005, %v5125
    %v5135 = vadd.f32 %v5006, %v5127
    %v5136 = vadd.f32 %v5007, %v5130
    %v5137 = vadd.f32 %v5008, %v5132
    %v5138 = vld [vmem:[%s4879 + $0x2] sm:$0xf]
    %v5139 = vld [vmem:[%s4879 + $0xa] sm:$0xf]
    %v5140 = vld [vmem:[%s4879 + $0x12] sm:$0xf]
    %v5141 = vld [vmem:[%s4879 + $0x1a] sm:$0xf]
    %v5142 = vld [vmem:[%s4879 + $0x32] sm:$0xf]
    %v5143 = vld [vmem:[%s4879 + $0x3a] sm:$0xf]
    %v5144 = vld [vmem:[%s4879 + $0x42] sm:$0xf]
    %v5145 = vld [vmem:[%s4879 + $0x4a] sm:$0xf]
    %5154 = vst [vmem:[#allocation1] ss:$2 sm:$0xff] %v5138
    %s5155 = scalar_lea.vmem [#allocation1], 1
    %5156 = vst [vmem:[%s5155] ss:$2 sm:$0xff] %v5139
    %s5157 = scalar_lea.vmem [#allocation1], 16
    %5158 = vst [vmem:[%s5157] ss:$2 sm:$0xff] %v5140
    %s5159 = scalar_lea.vmem [#allocation1], 17
    %5160 = vst [vmem:[%s5159] ss:$2 sm:$0xff] %v5141
    %s5161 = scalar_lea.vmem [#allocation1], 32
    %5162 = vst [vmem:[%s5161] ss:$2 sm:$0xff] %v5142
    %s5163 = scalar_lea.vmem [#allocation1], 33
    %5164 = vst [vmem:[%s5163] ss:$2 sm:$0xff] %v5143
    %s5165 = scalar_lea.vmem [#allocation1], 48
    %5166 = vst [vmem:[%s5165] ss:$2 sm:$0xff] %v5144
    %s5167 = scalar_lea.vmem [#allocation1], 49
    %5168 = vst [vmem:[%s5167] ss:$2 sm:$0xff] %v5145
    %v5169 = vld.sshfl [vmem:[#allocation1] sm:$0xff pattern:$0x75316420]
    %v5170 = vld.sshfl [vmem:[#allocation1 + $0x10] sm:$0xff pattern:$0x75316420]
    %v5171 = vld.sshfl [vmem:[#allocation1 + $0x20] sm:$0xff pattern:$0x75316420]
    %v5172 = vld.sshfl [vmem:[#allocation1 + $0x30] sm:$0xff pattern:$0x75316420]
    %v5177 = vpack.c.bf16 %v5170, %v5169
    %v5178 = vpack.c.bf16 %v5172, %v5171
    %s5179 = scalar_lea.vmem [#allocation13], 512
    %v5180 = vld [vmem:[%s5179] sm:$0xf]
    %v5181 = vld [vmem:[%s5179 + $0x4] sm:$0xf]
    %v5182 = vld [vmem:[%s5179 + $0x8] sm:$0xf]
    %v5183 = vld [vmem:[%s5179 + $0xc] sm:$0xf]
    %v5184 = vld [vmem:[%s5179 + $0x10] sm:$0xf]
    %v5185 = vld [vmem:[%s5179 + $0x14] sm:$0xf]
    %v5186 = vld [vmem:[%s5179 + $0x18] sm:$0xf]
    %v5187 = vld [vmem:[%s5179 + $0x1c] sm:$0xf]
    %v5188 = vld [vmem:[%s5179 + $0x20] sm:$0xf]
    %v5189 = vld [vmem:[%s5179 + $0x24] sm:$0xf]
    %v5190 = vld [vmem:[%s5179 + $0x28] sm:$0xf]
    %v5191 = vld [vmem:[%s5179 + $0x2c] sm:$0xf]
    %v5192 = vld [vmem:[%s5179 + $0x30] sm:$0xf]
    %v5193 = vld [vmem:[%s5179 + $0x34] sm:$0xf]
    %v5194 = vld [vmem:[%s5179 + $0x38] sm:$0xf]
    %v5195 = vld [vmem:[%s5179 + $0x3c] sm:$0xf]
    %v5212 = vunpack.c.l.b16 %v5180
    %v5213 = vunpack.c.l.b16 %v5181
    %v5214 = vunpack.c.l.b16 %v5182
    %v5215 = vunpack.c.l.b16 %v5183
    %v5216 = vunpack.c.l.b16 %v5184
    %v5217 = vunpack.c.l.b16 %v5185
    %v5218 = vunpack.c.l.b16 %v5186
    %v5219 = vunpack.c.l.b16 %v5187
    %v5220 = vunpack.c.l.b16 %v5188
    %v5221 = vunpack.c.l.b16 %v5189
    %v5222 = vunpack.c.l.b16 %v5190
    %v5223 = vunpack.c.l.b16 %v5191
    %v5224 = vunpack.c.l.b16 %v5192
    %v5225 = vunpack.c.l.b16 %v5193
    %v5226 = vunpack.c.l.b16 %v5194
    %v5227 = vunpack.c.l.b16 %v5195
    %v5228 = vpack.c.b16 %v5213, %v5212
    %v5229 = vpack.c.b16 %v5215, %v5214
    %v5230 = vpack.c.b16 %v5217, %v5216
    %v5231 = vpack.c.b16 %v5219, %v5218
    %v5232 = vpack.c.b16 %v5221, %v5220
    %v5233 = vpack.c.b16 %v5223, %v5222
    %v5234 = vpack.c.b16 %v5225, %v5224
    %v5235 = vpack.c.b16 %v5227, %v5226
    %5244 = vmatpush.bf16.msra.mxu0 %v5235
    %5245 = vmatpush.bf16.msra.mxu0 %v5234
    %5246 = vmatpush.bf16.msra.mxu0 %v5233
    %5247 = vmatpush.bf16.msra.mxu0 %v5232
    %5248 = vmatpush.bf16.msra.mxu0 %v5231
    %5249 = vmatpush.bf16.msra.mxu0 %v5230
    %5250 = vmatpush.bf16.msra.mxu0 %v5229
    %5251 = vmatpush.bf16.msra.mxu0 %v5228
    %5252 = vmatmul.bf16.gmra.mxu0 %v5177
    %v5253 = vpop.f32.mrf.mxu0
    %v5254 = vadd.f32 0.0, %v5253
    %v5255 = vpop.f32.mrf.mxu0
    %v5256 = vadd.f32 0.0, %v5255
    %5257 = vmatmul.bf16.gmra.mxu0 %v5178
    %v5258 = vpop.f32.mrf.mxu0
    %v5259 = vadd.f32 0.0, %v5258
    %v5260 = vpop.f32.mrf.mxu0
    %v5261 = vadd.f32 0.0, %v5260
    %5262 = vdwg.mxu0
    %v5263 = vadd.f32 %v5134, %v5254
    %v5264 = vadd.f32 %v5135, %v5256
    %v5265 = vadd.f32 %v5136, %v5259
    %v5266 = vadd.f32 %v5137, %v5261
    %v5267 = vld [vmem:[#allocation14] sm:$0x1]
    %v5269 = vperm.slane %v5267, 0
    %v5271 = vadd.f32 %v5263, %v5269
    %v5272 = vadd.f32 %v5264, %v5269
    %v5273 = vadd.f32 %v5265, %v5269
    %v5274 = vadd.f32 %v5266, %v5269
    %v5275 = vmax.f32 %v5271, 0.0
    %v5276 = vmax.f32 %v5272, 0.0
    %v5277 = vmax.f32 %v5273, 0.0
    %v5278 = vmax.f32 %v5274, 0.0
    %v5283 = vrot.slane %v5275, 4
    %v5284 = vrot.slane %v5276, 4
    %v5285 = vrot.slane %v5277, 4
    %v5286 = vrot.slane %v5278, 4
    %vm5291 = vcmask 1043456
    %v5292 = vsel %vm5291, %v5275, -inf
    %v5293 = vsel %vm5291, %v5283, -inf
    %v5294 = vmax.f32 %v5292, %v5293
    %v5295 = vsel %vm5291, %v5276, -inf
    %v5296 = vsel %vm5291, %v5284, -inf
    %v5297 = vmax.f32 %v5295, %v5296
    %v5298 = vsel %vm5291, %v5277, -inf
    %v5299 = vsel %vm5291, %v5285, -inf
    %v5300 = vmax.f32 %v5298, %v5299
    %v5301 = vsel %vm5291, %v5278, -inf
    %v5302 = vsel %vm5291, %v5286, -inf
    %v5303 = vmax.f32 %v5301, %v5302
    %v5308 = vrot.slane %v5294, 2
    %v5309 = vrot.slane %v5297, 2
    %v5310 = vrot.slane %v5300, 2
    %v5311 = vrot.slane %v5303, 2
    %v5312 = vsel %vm1134, %v5294, %v5308
    %vm5313 = vcmask 1043458
    %v5314 = vsel %vm5313, %v5294, %v5308
    %v5315 = vrot.slane %v5314, 2
    %v5316 = vsel %vm1134, %v5297, %v5309
    %v5317 = vsel %vm5313, %v5297, %v5309
    %v5318 = vrot.slane %v5317, 2
    %v5319 = vsel %vm1134, %v5300, %v5310
    %v5320 = vsel %vm5313, %v5300, %v5310
    %v5321 = vrot.slane %v5320, 2
    %v5322 = vsel %vm1134, %v5303, %v5311
    %v5323 = vsel %vm5313, %v5303, %v5311
    %v5324 = vrot.slane %v5323, 2
    %v5333 = vsel %vm1134, %v5312, -inf
    %v5334 = vrot.slane %v5333, 4
    %v5335 = vmax.f32 %v5333, %v5334
    %v5336 = vrot.slane %v5335, 2
    %v5337 = vmax.f32 %v5335, %v5336
    %v5338 = vrot.slane %v5337, 1
    %v5339 = vmax.f32 %v5337, %v5338
    %v5340 = vsel %vm1134, %v5315, -inf
    %v5341 = vrot.slane %v5340, 4
    %v5342 = vmax.f32 %v5340, %v5341
    %v5343 = vrot.slane %v5342, 2
    %v5344 = vmax.f32 %v5342, %v5343
    %v5345 = vrot.slane %v5344, 1
    %v5346 = vmax.f32 %v5344, %v5345
    %v5347 = vsel %vm1134, %v5316, -inf
    %v5348 = vrot.slane %v5347, 4
    %v5349 = vmax.f32 %v5347, %v5348
    %v5350 = vrot.slane %v5349, 2
    %v5351 = vmax.f32 %v5349, %v5350
    %v5352 = vrot.slane %v5351, 1
    %v5353 = vmax.f32 %v5351, %v5352
    %v5354 = vsel %vm1134, %v5318, -inf
    %v5355 = vrot.slane %v5354, 4
    %v5356 = vmax.f32 %v5354, %v5355
    %v5357 = vrot.slane %v5356, 2
    %v5358 = vmax.f32 %v5356, %v5357
    %v5359 = vrot.slane %v5358, 1
    %v5360 = vmax.f32 %v5358, %v5359
    %v5361 = vsel %vm1134, %v5319, -inf
    %v5362 = vrot.slane %v5361, 4
    %v5363 = vmax.f32 %v5361, %v5362
    %v5364 = vrot.slane %v5363, 2
    %v5365 = vmax.f32 %v5363, %v5364
    %v5366 = vrot.slane %v5365, 1
    %v5367 = vmax.f32 %v5365, %v5366
    %v5368 = vsel %vm1134, %v5321, -inf
    %v5369 = vrot.slane %v5368, 4
    %v5370 = vmax.f32 %v5368, %v5369
    %v5371 = vrot.slane %v5370, 2
    %v5372 = vmax.f32 %v5370, %v5371
    %v5373 = vrot.slane %v5372, 1
    %v5374 = vmax.f32 %v5372, %v5373
    %v5375 = vsel %vm1134, %v5322, -inf
    %v5376 = vrot.slane %v5375, 4
    %v5377 = vmax.f32 %v5375, %v5376
    %v5378 = vrot.slane %v5377, 2
    %v5379 = vmax.f32 %v5377, %v5378
    %v5380 = vrot.slane %v5379, 1
    %v5381 = vmax.f32 %v5379, %v5380
    %v5382 = vsel %vm1134, %v5324, -inf
    %v5383 = vrot.slane %v5382, 4
    %v5384 = vmax.f32 %v5382, %v5383
    %v5385 = vrot.slane %v5384, 2
    %v5386 = vmax.f32 %v5384, %v5385
    %v5387 = vrot.slane %v5386, 1
    %v5388 = vmax.f32 %v5386, %v5387
    %5389 = vst [vmem:[#allocation4] sm:$0xf] 0.0
    %5390 = vst [vmem:[#allocation4 + $0x4] sm:$0xf] 0.0
    %5391 = vst [vmem:[#allocation4 + $0x8] sm:$0xf] 0.0
    %5392 = vst [vmem:[#allocation4 + $0xc] sm:$0xf] 0.0
    %5393 = vst [vmem:[#allocation4 + $0x10] sm:$0xf] 0.0
    %5394 = vst [vmem:[#allocation4 + $0x14] sm:$0xf] 0.0
    %5395 = vst [vmem:[#allocation4 + $0x18] sm:$0xf] 0.0
    %5396 = vst [vmem:[#allocation4 + $0x1c] sm:$0xf] 0.0
    %v5405 = vsel %vm2199, %v5346, %v5339
    %v5406 = vsel %vm2199, %v5360, %v5353
    %v5407 = vsel %vm2199, %v5374, %v5367
    %v5408 = vsel %vm2199, %v5388, %v5381
    %s5413 = scalar_lea.vmem [#allocation4], 4
    %5414 = vst [vmem:[%s5413 + $0x1] sm:$0x3] %v5405
    %5415 = vst [vmem:[%s5413 + $0x5] sm:$0x3] %v5406
    %5416 = vst [vmem:[%s5413 + $0x11] sm:$0x3] %v5407
    %5417 = vst [vmem:[%s5413 + $0x15] sm:$0x3] %v5408
    %v5418 = vld [vmem:[#allocation4] sm:$0x3]
    %v5419 = vld [vmem:[#allocation4 + $0x4] sm:$0x3]
    %v5420 = vld [vmem:[#allocation4 + $0x10] sm:$0x3]
    %v5421 = vld [vmem:[#allocation4 + $0x14] sm:$0x3]
    %5426 = vst [vmem:[#allocation1] ss:$4 sm:$0xff] %v5418
    %s5427 = scalar_lea.vmem [#allocation1], 1
    %5428 = vst [vmem:[%s5427] ss:$4 sm:$0xff] %v5419
    %s5429 = scalar_lea.vmem [#allocation1], 2
    %5430 = vst [vmem:[%s5429] ss:$4 sm:$0xff] %v5420
    %s5431 = scalar_lea.vmem [#allocation1], 3
    %5432 = vst [vmem:[%s5431] ss:$4 sm:$0xff] %v5421
    %v5433 = vld.sshfl [vmem:[#allocation1] sm:$0xff pattern:$0x73625140]
    %v5435 = vpack.c.bf16 %v5433, %v5433
    %v5436 = vld [vmem:[#allocation16] sm:$0xff]
    %v5437 = vld [vmem:[#allocation16 + $0x8] sm:$0xff]
    %v5438 = vld [vmem:[#allocation16 + $0x10] sm:$0xff]
    %v5439 = vld [vmem:[#allocation16 + $0x18] sm:$0xff]
    %v5440 = vld [vmem:[#allocation16 + $0x20] sm:$0xff]
    %v5441 = vld [vmem:[#allocation16 + $0x28] sm:$0xff]
    %v5442 = vld [vmem:[#allocation16 + $0x30] sm:$0xff]
    %v5443 = vld [vmem:[#allocation16 + $0x38] sm:$0xff]
    %v5444 = vld [vmem:[#allocation16 + $0x40] sm:$0xff]
    %v5445 = vld [vmem:[#allocation16 + $0x48] sm:$0xff]
    %v5446 = vld [vmem:[#allocation16 + $0x50] sm:$0xff]
    %v5447 = vld [vmem:[#allocation16 + $0x58] sm:$0xff]
    %v5448 = vld [vmem:[#allocation16 + $0x60] sm:$0xff]
    %v5449 = vld [vmem:[#allocation16 + $0x68] sm:$0xff]
    %v5450 = vld [vmem:[#allocation16 + $0x70] sm:$0xff]
    %v5451 = vld [vmem:[#allocation16 + $0x78] sm:$0xff]
    %v5452 = vld [vmem:[#allocation16 + $0x80] sm:$0xff]
    %v5453 = vld [vmem:[#allocation16 + $0x88] sm:$0xff]
    %v5454 = vld [vmem:[#allocation16 + $0x90] sm:$0xff]
    %v5455 = vld [vmem:[#allocation16 + $0x98] sm:$0xff]
    %v5456 = vld [vmem:[#allocation16 + $0xa0] sm:$0xff]
    %v5457 = vld [vmem:[#allocation16 + $0xa8] sm:$0xff]
    %v5458 = vld [vmem:[#allocation16 + $0xb0] sm:$0xff]
    %v5459 = vld [vmem:[#allocation16 + $0xb8] sm:$0xff]
    %v5460 = vld [vmem:[#allocation16 + $0xc0] sm:$0xff]
    %v5461 = vld [vmem:[#allocation16 + $0xc8] sm:$0xff]
    %v5462 = vld [vmem:[#allocation16 + $0xd0] sm:$0xff]
    %v5463 = vld [vmem:[#allocation16 + $0xd8] sm:$0xff]
    %v5464 = vld [vmem:[#allocation16 + $0xe0] sm:$0xff]
    %v5465 = vld [vmem:[#allocation16 + $0xe8] sm:$0xff]
    %v5466 = vld [vmem:[#allocation16 + $0xf0] sm:$0xff]
    %v5467 = vld [vmem:[#allocation16 + $0xf8] sm:$0xff]
    %v5468 = vld [vmem:[#allocation4 + $0x1] sm:$0x3]
    %v5469 = vld [vmem:[#allocation4 + $0x5] sm:$0x3]
    %v5470 = vld [vmem:[#allocation4 + $0x11] sm:$0x3]
    %v5471 = vld [vmem:[#allocation4 + $0x15] sm:$0x3]
    %5476 = vst [vmem:[#allocation1] ss:$4 sm:$0xff] %v5468
    %s5477 = scalar_lea.vmem [#allocation1], 1
    %5478 = vst [vmem:[%s5477] ss:$4 sm:$0xff] %v5469
    %s5479 = scalar_lea.vmem [#allocation1], 2
    %5480 = vst [vmem:[%s5479] ss:$4 sm:$0xff] %v5470
    %s5481 = scalar_lea.vmem [#allocation1], 3
    %5482 = vst [vmem:[%s5481] ss:$4 sm:$0xff] %v5471
    %v5483 = vld.sshfl [vmem:[#allocation1] sm:$0xff pattern:$0x73625140]
    %v5485 = vpack.c.bf16 %v5483, %v5483
    %s5486 = scalar_lea.vmem [#allocation16], 256
    %v5487 = vld [vmem:[%s5486] sm:$0xff]
    %v5488 = vld [vmem:[%s5486 + $0x8] sm:$0xff]
    %v5489 = vld [vmem:[%s5486 + $0x10] sm:$0xff]
    %v5490 = vld [vmem:[%s5486 + $0x18] sm:$0xff]
    %v5491 = vld [vmem:[%s5486 + $0x20] sm:$0xff]
    %v5492 = vld [vmem:[%s5486 + $0x28] sm:$0xff]
    %v5493 = vld [vmem:[%s5486 + $0x30] sm:$0xff]
    %v5494 = vld [vmem:[%s5486 + $0x38] sm:$0xff]
    %v5495 = vld [vmem:[%s5486 + $0x40] sm:$0xff]
    %v5496 = vld [vmem:[%s5486 + $0x48] sm:$0xff]
    %v5497 = vld [vmem:[%s5486 + $0x50] sm:$0xff]
    %v5498 = vld [vmem:[%s5486 + $0x58] sm:$0xff]
    %v5499 = vld [vmem:[%s5486 + $0x60] sm:$0xff]
    %v5500 = vld [vmem:[%s5486 + $0x68] sm:$0xff]
    %v5501 = vld [vmem:[%s5486 + $0x70] sm:$0xff]
    %v5502 = vld [vmem:[%s5486 + $0x78] sm:$0xff]
    %v5503 = vld [vmem:[%s5486 + $0x80] sm:$0xff]
    %v5504 = vld [vmem:[%s5486 + $0x88] sm:$0xff]
    %v5505 = vld [vmem:[%s5486 + $0x90] sm:$0xff]
    %v5506 = vld [vmem:[%s5486 + $0x98] sm:$0xff]
    %v5507 = vld [vmem:[%s5486 + $0xa0] sm:$0xff]
    %v5508 = vld [vmem:[%s5486 + $0xa8] sm:$0xff]
    %v5509 = vld [vmem:[%s5486 + $0xb0] sm:$0xff]
    %v5510 = vld [vmem:[%s5486 + $0xb8] sm:$0xff]
    %v5511 = vld [vmem:[%s5486 + $0xc0] sm:$0xff]
    %v5512 = vld [vmem:[%s5486 + $0xc8] sm:$0xff]
    %v5513 = vld [vmem:[%s5486 + $0xd0] sm:$0xff]
    %v5514 = vld [vmem:[%s5486 + $0xd8] sm:$0xff]
    %v5515 = vld [vmem:[%s5486 + $0xe0] sm:$0xff]
    %v5516 = vld [vmem:[%s5486 + $0xe8] sm:$0xff]
    %v5517 = vld [vmem:[%s5486 + $0xf0] sm:$0xff]
    %v5518 = vld [vmem:[%s5486 + $0xf8] sm:$0xff]
    %v5551 = vunpack.c.l.b16 %v5487
    %v5552 = vunpack.c.h.b16 %v5487
    %v5553 = vunpack.c.l.b16 %v5488
    %v5554 = vunpack.c.h.b16 %v5488
    %v5555 = vunpack.c.l.b16 %v5489
    %v5556 = vunpack.c.h.b16 %v5489
    %v5557 = vunpack.c.l.b16 %v5490
    %v5558 = vunpack.c.h.b16 %v5490
    %v5559 = vunpack.c.l.b16 %v5491
    %v5560 = vunpack.c.h.b16 %v5491
    %v5561 = vunpack.c.l.b16 %v5492
    %v5562 = vunpack.c.h.b16 %v5492
    %v5563 = vunpack.c.l.b16 %v5493
    %v5564 = vunpack.c.h.b16 %v5493
    %v5565 = vunpack.c.l.b16 %v5494
    %v5566 = vunpack.c.h.b16 %v5494
    %v5567 = vunpack.c.l.b16 %v5495
    %v5568 = vunpack.c.h.b16 %v5495
    %v5569 = vunpack.c.l.b16 %v5496
    %v5570 = vunpack.c.h.b16 %v5496
    %v5571 = vunpack.c.l.b16 %v5497
    %v5572 = vunpack.c.h.b16 %v5497
    %v5573 = vunpack.c.l.b16 %v5498
    %v5574 = vunpack.c.h.b16 %v5498
    %v5575 = vunpack.c.l.b16 %v5499
    %v5576 = vunpack.c.h.b16 %v5499
    %v5577 = vunpack.c.l.b16 %v5500
    %v5578 = vunpack.c.h.b16 %v5500
    %v5579 = vunpack.c.l.b16 %v5501
    %v5580 = vunpack.c.h.b16 %v5501
    %v5581 = vunpack.c.l.b16 %v5502
    %v5582 = vunpack.c.h.b16 %v5502
    %v5583 = vunpack.c.l.b16 %v5503
    %v5584 = vunpack.c.h.b16 %v5503
    %v5585 = vunpack.c.l.b16 %v5504
    %v5586 = vunpack.c.h.b16 %v5504
    %v5587 = vunpack.c.l.b16 %v5505
    %v5588 = vunpack.c.h.b16 %v5505
    %v5589 = vunpack.c.l.b16 %v5506
    %v5590 = vunpack.c.h.b16 %v5506
    %v5591 = vunpack.c.l.b16 %v5507
    %v5592 = vunpack.c.h.b16 %v5507
    %v5593 = vunpack.c.l.b16 %v5508
    %v5594 = vunpack.c.h.b16 %v5508
    %v5595 = vunpack.c.l.b16 %v5509
    %v5596 = vunpack.c.h.b16 %v5509
    %v5597 = vunpack.c.l.b16 %v5510
    %v5598 = vunpack.c.h.b16 %v5510
    %v5599 = vunpack.c.l.b16 %v5511
    %v5600 = vunpack.c.h.b16 %v5511
    %v5601 = vunpack.c.l.b16 %v5512
    %v5602 = vunpack.c.h.b16 %v5512
    %v5603 = vunpack.c.l.b16 %v5513
    %v5604 = vunpack.c.h.b16 %v5513
    %v5605 = vunpack.c.l.b16 %v5514
    %v5606 = vunpack.c.h.b16 %v5514
    %v5607 = vunpack.c.l.b16 %v5515
    %v5608 = vunpack.c.h.b16 %v5515
    %v5609 = vunpack.c.l.b16 %v5516
    %v5610 = vunpack.c.h.b16 %v5516
    %v5611 = vunpack.c.l.b16 %v5517
    %v5612 = vunpack.c.h.b16 %v5517
    %v5613 = vunpack.c.l.b16 %v5518
    %v5614 = vunpack.c.h.b16 %v5518
    %v5615 = vpack.c.b16 %v5555, %v5551
    %v5616 = vpack.c.b16 %v5556, %v5552
    %v5617 = vpack.c.b16 %v5557, %v5553
    %v5618 = vpack.c.b16 %v5558, %v5554
    %v5619 = vpack.c.b16 %v5563, %v5559
    %v5620 = vpack.c.b16 %v5564, %v5560
    %v5621 = vpack.c.b16 %v5565, %v5561
    %v5622 = vpack.c.b16 %v5566, %v5562
    %v5623 = vpack.c.b16 %v5571, %v5567
    %v5624 = vpack.c.b16 %v5572, %v5568
    %v5625 = vpack.c.b16 %v5573, %v5569
    %v5626 = vpack.c.b16 %v5574, %v5570
    %v5627 = vpack.c.b16 %v5579, %v5575
    %v5628 = vpack.c.b16 %v5580, %v5576
    %v5629 = vpack.c.b16 %v5581, %v5577
    %v5630 = vpack.c.b16 %v5582, %v5578
    %v5631 = vpack.c.b16 %v5587, %v5583
    %v5632 = vpack.c.b16 %v5588, %v5584
    %v5633 = vpack.c.b16 %v5589, %v5585
    %v5634 = vpack.c.b16 %v5590, %v5586
    %v5635 = vpack.c.b16 %v5595, %v5591
    %v5636 = vpack.c.b16 %v5596, %v5592
    %v5637 = vpack.c.b16 %v5597, %v5593
    %v5638 = vpack.c.b16 %v5598, %v5594
    %v5639 = vpack.c.b16 %v5603, %v5599
    %v5640 = vpack.c.b16 %v5604, %v5600
    %v5641 = vpack.c.b16 %v5605, %v5601
    %v5642 = vpack.c.b16 %v5606, %v5602
    %v5643 = vpack.c.b16 %v5611, %v5607
    %v5644 = vpack.c.b16 %v5612, %v5608
    %v5645 = vpack.c.b16 %v5613, %v5609
    %v5646 = vpack.c.b16 %v5614, %v5610
    %5679 = vmatpush.bf16.msra.mxu0 %v5643
    %5680 = vmatpush.bf16.msra.mxu0 %v5639
    %5681 = vmatpush.bf16.msra.mxu0 %v5635
    %5682 = vmatpush.bf16.msra.mxu0 %v5631
    %5683 = vmatpush.bf16.msra.mxu0 %v5627
    %5684 = vmatpush.bf16.msra.mxu0 %v5623
    %5685 = vmatpush.bf16.msra.mxu0 %v5619
    %5686 = vmatpush.bf16.msra.mxu0 %v5615
    %5687 = vmatmul.bf16.gmra.mxu0 %v5485
    %v5688 = vpop.f32.mrf.mxu0
    %v5689 = vadd.f32 0.0, %v5688
    %v5690 = vpop.f32.mrf.mxu0
    %5691 = vdwg.mxu0
    %5692 = vmatpush.bf16.msra.mxu0 %v5644
    %5693 = vmatpush.bf16.msra.mxu0 %v5640
    %5694 = vmatpush.bf16.msra.mxu0 %v5636
    %5695 = vmatpush.bf16.msra.mxu0 %v5632
    %5696 = vmatpush.bf16.msra.mxu0 %v5628
    %5697 = vmatpush.bf16.msra.mxu0 %v5624
    %5698 = vmatpush.bf16.msra.mxu0 %v5620
    %5699 = vmatpush.bf16.msra.mxu0 %v5616
    %5700 = vmatmul.bf16.gmra.mxu0 %v5485
    %v5701 = vpop.f32.mrf.mxu0
    %v5702 = vadd.f32 0.0, %v5701
    %v5703 = vpop.f32.mrf.mxu0
    %5704 = vdwg.mxu0
    %5705 = vmatpush.bf16.msra.mxu0 %v5645
    %5706 = vmatpush.bf16.msra.mxu0 %v5641
    %5707 = vmatpush.bf16.msra.mxu0 %v5637
    %5708 = vmatpush.bf16.msra.mxu0 %v5633
    %5709 = vmatpush.bf16.msra.mxu0 %v5629
    %5710 = vmatpush.bf16.msra.mxu0 %v5625
    %5711 = vmatpush.bf16.msra.mxu0 %v5621
    %5712 = vmatpush.bf16.msra.mxu0 %v5617
    %5713 = vmatmul.bf16.gmra.mxu0 %v5485
    %v5714 = vpop.f32.mrf.mxu0
    %v5715 = vadd.f32 0.0, %v5714
    %v5716 = vpop.f32.mrf.mxu0
    %5717 = vdwg.mxu0
    %5718 = vmatpush.bf16.msra.mxu0 %v5646
    %5719 = vmatpush.bf16.msra.mxu0 %v5642
    %5720 = vmatpush.bf16.msra.mxu0 %v5638
    %5721 = vmatpush.bf16.msra.mxu0 %v5634
    %5722 = vmatpush.bf16.msra.mxu0 %v5630
    %5723 = vmatpush.bf16.msra.mxu0 %v5626
    %5724 = vmatpush.bf16.msra.mxu0 %v5622
    %5725 = vmatpush.bf16.msra.mxu0 %v5618
    %5726 = vmatmul.bf16.gmra.mxu0 %v5485
    %v5727 = vpop.f32.mrf.mxu0
    %v5728 = vadd.f32 0.0, %v5727
    %v5729 = vpop.f32.mrf.mxu0
    %5730 = vdwg.mxu0
    %v5763 = vunpack.c.l.b16 %v5436
    %v5764 = vunpack.c.h.b16 %v5436
    %v5765 = vunpack.c.l.b16 %v5437
    %v5766 = vunpack.c.h.b16 %v5437
    %v5767 = vunpack.c.l.b16 %v5438
    %v5768 = vunpack.c.h.b16 %v5438
    %v5769 = vunpack.c.l.b16 %v5439
    %v5770 = vunpack.c.h.b16 %v5439
    %v5771 = vunpack.c.l.b16 %v5440
    %v5772 = vunpack.c.h.b16 %v5440
    %v5773 = vunpack.c.l.b16 %v5441
    %v5774 = vunpack.c.h.b16 %v5441
    %v5775 = vunpack.c.l.b16 %v5442
    %v5776 = vunpack.c.h.b16 %v5442
    %v5777 = vunpack.c.l.b16 %v5443
    %v5778 = vunpack.c.h.b16 %v5443
    %v5779 = vunpack.c.l.b16 %v5444
    %v5780 = vunpack.c.h.b16 %v5444
    %v5781 = vunpack.c.l.b16 %v5445
    %v5782 = vunpack.c.h.b16 %v5445
    %v5783 = vunpack.c.l.b16 %v5446
    %v5784 = vunpack.c.h.b16 %v5446
    %v5785 = vunpack.c.l.b16 %v5447
    %v5786 = vunpack.c.h.b16 %v5447
    %v5787 = vunpack.c.l.b16 %v5448
    %v5788 = vunpack.c.h.b16 %v5448
    %v5789 = vunpack.c.l.b16 %v5449
    %v5790 = vunpack.c.h.b16 %v5449
    %v5791 = vunpack.c.l.b16 %v5450
    %v5792 = vunpack.c.h.b16 %v5450
    %v5793 = vunpack.c.l.b16 %v5451
    %v5794 = vunpack.c.h.b16 %v5451
    %v5795 = vunpack.c.l.b16 %v5452
    %v5796 = vunpack.c.h.b16 %v5452
    %v5797 = vunpack.c.l.b16 %v5453
    %v5798 = vunpack.c.h.b16 %v5453
    %v5799 = vunpack.c.l.b16 %v5454
    %v5800 = vunpack.c.h.b16 %v5454
    %v5801 = vunpack.c.l.b16 %v5455
    %v5802 = vunpack.c.h.b16 %v5455
    %v5803 = vunpack.c.l.b16 %v5456
    %v5804 = vunpack.c.h.b16 %v5456
    %v5805 = vunpack.c.l.b16 %v5457
    %v5806 = vunpack.c.h.b16 %v5457
    %v5807 = vunpack.c.l.b16 %v5458
    %v5808 = vunpack.c.h.b16 %v5458
    %v5809 = vunpack.c.l.b16 %v5459
    %v5810 = vunpack.c.h.b16 %v5459
    %v5811 = vunpack.c.l.b16 %v5460
    %v5812 = vunpack.c.h.b16 %v5460
    %v5813 = vunpack.c.l.b16 %v5461
    %v5814 = vunpack.c.h.b16 %v5461
    %v5815 = vunpack.c.l.b16 %v5462
    %v5816 = vunpack.c.h.b16 %v5462
    %v5817 = vunpack.c.l.b16 %v5463
    %v5818 = vunpack.c.h.b16 %v5463
    %v5819 = vunpack.c.l.b16 %v5464
    %v5820 = vunpack.c.h.b16 %v5464
    %v5821 = vunpack.c.l.b16 %v5465
    %v5822 = vunpack.c.h.b16 %v5465
    %v5823 = vunpack.c.l.b16 %v5466
    %v5824 = vunpack.c.h.b16 %v5466
    %v5825 = vunpack.c.l.b16 %v5467
    %v5826 = vunpack.c.h.b16 %v5467
    %v5827 = vpack.c.b16 %v5767, %v5763
    %v5828 = vpack.c.b16 %v5768, %v5764
    %v5829 = vpack.c.b16 %v5769, %v5765
    %v5830 = vpack.c.b16 %v5770, %v5766
    %v5831 = vpack.c.b16 %v5775, %v5771
    %v5832 = vpack.c.b16 %v5776, %v5772
    %v5833 = vpack.c.b16 %v5777, %v5773
    %v5834 = vpack.c.b16 %v5778, %v5774
    %v5835 = vpack.c.b16 %v5783, %v5779
    %v5836 = vpack.c.b16 %v5784, %v5780
    %v5837 = vpack.c.b16 %v5785, %v5781
    %v5838 = vpack.c.b16 %v5786, %v5782
    %v5839 = vpack.c.b16 %v5791, %v5787
    %v5840 = vpack.c.b16 %v5792, %v5788
    %v5841 = vpack.c.b16 %v5793, %v5789
    %v5842 = vpack.c.b16 %v5794, %v5790
    %v5843 = vpack.c.b16 %v5799, %v5795
    %v5844 = vpack.c.b16 %v5800, %v5796
    %v5845 = vpack.c.b16 %v5801, %v5797
    %v5846 = vpack.c.b16 %v5802, %v5798
    %v5847 = vpack.c.b16 %v5807, %v5803
    %v5848 = vpack.c.b16 %v5808, %v5804
    %v5849 = vpack.c.b16 %v5809, %v5805
    %v5850 = vpack.c.b16 %v5810, %v5806
    %v5851 = vpack.c.b16 %v5815, %v5811
    %v5852 = vpack.c.b16 %v5816, %v5812
    %v5853 = vpack.c.b16 %v5817, %v5813
    %v5854 = vpack.c.b16 %v5818, %v5814
    %v5855 = vpack.c.b16 %v5823, %v5819
    %v5856 = vpack.c.b16 %v5824, %v5820
    %v5857 = vpack.c.b16 %v5825, %v5821
    %v5858 = vpack.c.b16 %v5826, %v5822
    %5891 = vmatpush.bf16.msra.mxu0 %v5855
    %5892 = vmatpush.bf16.msra.mxu0 %v5851
    %5893 = vmatpush.bf16.msra.mxu0 %v5847
    %5894 = vmatpush.bf16.msra.mxu0 %v5843
    %5895 = vmatpush.bf16.msra.mxu0 %v5839
    %5896 = vmatpush.bf16.msra.mxu0 %v5835
    %5897 = vmatpush.bf16.msra.mxu0 %v5831
    %5898 = vmatpush.bf16.msra.mxu0 %v5827
    %5899 = vmatmul.bf16.gmra.mxu0 %v5435
    %v5900 = vpop.f32.mrf.mxu0
    %v5901 = vadd.f32 %v5689, %v5900
    %v5902 = vpop.f32.mrf.mxu0
    %5903 = vdwg.mxu0
    %5904 = vmatpush.bf16.msra.mxu0 %v5856
    %5905 = vmatpush.bf16.msra.mxu0 %v5852
    %5906 = vmatpush.bf16.msra.mxu0 %v5848
    %5907 = vmatpush.bf16.msra.mxu0 %v5844
    %5908 = vmatpush.bf16.msra.mxu0 %v5840
    %5909 = vmatpush.bf16.msra.mxu0 %v5836
    %5910 = vmatpush.bf16.msra.mxu0 %v5832
    %5911 = vmatpush.bf16.msra.mxu0 %v5828
    %5912 = vmatmul.bf16.gmra.mxu0 %v5435
    %v5913 = vpop.f32.mrf.mxu0
    %v5914 = vadd.f32 %v5702, %v5913
    %v5915 = vpop.f32.mrf.mxu0
    %5916 = vdwg.mxu0
    %5917 = vmatpush.bf16.msra.mxu0 %v5857
    %5918 = vmatpush.bf16.msra.mxu0 %v5853
    %5919 = vmatpush.bf16.msra.mxu0 %v5849
    %5920 = vmatpush.bf16.msra.mxu0 %v5845
    %5921 = vmatpush.bf16.msra.mxu0 %v5841
    %5922 = vmatpush.bf16.msra.mxu0 %v5837
    %5923 = vmatpush.bf16.msra.mxu0 %v5833
    %5924 = vmatpush.bf16.msra.mxu0 %v5829
    %5925 = vmatmul.bf16.gmra.mxu0 %v5435
    %v5926 = vpop.f32.mrf.mxu0
    %v5927 = vadd.f32 %v5715, %v5926
    %v5928 = vpop.f32.mrf.mxu0
    %5929 = vdwg.mxu0
    %5930 = vmatpush.bf16.msra.mxu0 %v5858
    %5931 = vmatpush.bf16.msra.mxu0 %v5854
    %5932 = vmatpush.bf16.msra.mxu0 %v5850
    %5933 = vmatpush.bf16.msra.mxu0 %v5846
    %5934 = vmatpush.bf16.msra.mxu0 %v5842
    %5935 = vmatpush.bf16.msra.mxu0 %v5838
    %5936 = vmatpush.bf16.msra.mxu0 %v5834
    %5937 = vmatpush.bf16.msra.mxu0 %v5830
    %5938 = vmatmul.bf16.gmra.mxu0 %v5435
    %v5939 = vpop.f32.mrf.mxu0
    %v5940 = vadd.f32 %v5728, %v5939
    %v5941 = vpop.f32.mrf.mxu0
    %5942 = vdwg.mxu0
    %v5943 = vld [vmem:[#allocation4 + $0x2] sm:$0x3]
    %v5944 = vld [vmem:[#allocation4 + $0x6] sm:$0x3]
    %v5945 = vld [vmem:[#allocation4 + $0x12] sm:$0x3]
    %v5946 = vld [vmem:[#allocation4 + $0x16] sm:$0x3]
    %5951 = vst [vmem:[#allocation1] ss:$4 sm:$0xff] %v5943
    %s5952 = scalar_lea.vmem [#allocation1], 1
    %5953 = vst [vmem:[%s5952] ss:$4 sm:$0xff] %v5944
    %s5954 = scalar_lea.vmem [#allocation1], 2
    %5955 = vst [vmem:[%s5954] ss:$4 sm:$0xff] %v5945
    %s5956 = scalar_lea.vmem [#allocation1], 3
    %5957 = vst [vmem:[%s5956] ss:$4 sm:$0xff] %v5946
    %v5958 = vld.sshfl [vmem:[#allocation1] sm:$0xff pattern:$0x73625140]
    %v5960 = vpack.c.bf16 %v5958, %v5958
    %s5961 = scalar_lea.vmem [#allocation16], 512
    %v5962 = vld [vmem:[%s5961] sm:$0xff]
    %v5963 = vld [vmem:[%s5961 + $0x8] sm:$0xff]
    %v5964 = vld [vmem:[%s5961 + $0x10] sm:$0xff]
    %v5965 = vld [vmem:[%s5961 + $0x18] sm:$0xff]
    %v5966 = vld [vmem:[%s5961 + $0x20] sm:$0xff]
    %v5967 = vld [vmem:[%s5961 + $0x28] sm:$0xff]
    %v5968 = vld [vmem:[%s5961 + $0x30] sm:$0xff]
    %v5969 = vld [vmem:[%s5961 + $0x38] sm:$0xff]
    %v5970 = vld [vmem:[%s5961 + $0x40] sm:$0xff]
    %v5971 = vld [vmem:[%s5961 + $0x48] sm:$0xff]
    %v5972 = vld [vmem:[%s5961 + $0x50] sm:$0xff]
    %v5973 = vld [vmem:[%s5961 + $0x58] sm:$0xff]
    %v5974 = vld [vmem:[%s5961 + $0x60] sm:$0xff]
    %v5975 = vld [vmem:[%s5961 + $0x68] sm:$0xff]
    %v5976 = vld [vmem:[%s5961 + $0x70] sm:$0xff]
    %v5977 = vld [vmem:[%s5961 + $0x78] sm:$0xff]
    %v5978 = vld [vmem:[%s5961 + $0x80] sm:$0xff]
    %v5979 = vld [vmem:[%s5961 + $0x88] sm:$0xff]
    %v5980 = vld [vmem:[%s5961 + $0x90] sm:$0xff]
    %v5981 = vld [vmem:[%s5961 + $0x98] sm:$0xff]
    %v5982 = vld [vmem:[%s5961 + $0xa0] sm:$0xff]
    %v5983 = vld [vmem:[%s5961 + $0xa8] sm:$0xff]
    %v5984 = vld [vmem:[%s5961 + $0xb0] sm:$0xff]
    %v5985 = vld [vmem:[%s5961 + $0xb8] sm:$0xff]
    %v5986 = vld [vmem:[%s5961 + $0xc0] sm:$0xff]
    %v5987 = vld [vmem:[%s5961 + $0xc8] sm:$0xff]
    %v5988 = vld [vmem:[%s5961 + $0xd0] sm:$0xff]
    %v5989 = vld [vmem:[%s5961 + $0xd8] sm:$0xff]
    %v5990 = vld [vmem:[%s5961 + $0xe0] sm:$0xff]
    %v5991 = vld [vmem:[%s5961 + $0xe8] sm:$0xff]
    %v5992 = vld [vmem:[%s5961 + $0xf0] sm:$0xff]
    %v5993 = vld [vmem:[%s5961 + $0xf8] sm:$0xff]
    %v6026 = vunpack.c.l.b16 %v5962
    %v6027 = vunpack.c.h.b16 %v5962
    %v6028 = vunpack.c.l.b16 %v5963
    %v6029 = vunpack.c.h.b16 %v5963
    %v6030 = vunpack.c.l.b16 %v5964
    %v6031 = vunpack.c.h.b16 %v5964
    %v6032 = vunpack.c.l.b16 %v5965
    %v6033 = vunpack.c.h.b16 %v5965
    %v6034 = vunpack.c.l.b16 %v5966
    %v6035 = vunpack.c.h.b16 %v5966
    %v6036 = vunpack.c.l.b16 %v5967
    %v6037 = vunpack.c.h.b16 %v5967
    %v6038 = vunpack.c.l.b16 %v5968
    %v6039 = vunpack.c.h.b16 %v5968
    %v6040 = vunpack.c.l.b16 %v5969
    %v6041 = vunpack.c.h.b16 %v5969
    %v6042 = vunpack.c.l.b16 %v5970
    %v6043 = vunpack.c.h.b16 %v5970
    %v6044 = vunpack.c.l.b16 %v5971
    %v6045 = vunpack.c.h.b16 %v5971
    %v6046 = vunpack.c.l.b16 %v5972
    %v6047 = vunpack.c.h.b16 %v5972
    %v6048 = vunpack.c.l.b16 %v5973
    %v6049 = vunpack.c.h.b16 %v5973
    %v6050 = vunpack.c.l.b16 %v5974
    %v6051 = vunpack.c.h.b16 %v5974
    %v6052 = vunpack.c.l.b16 %v5975
    %v6053 = vunpack.c.h.b16 %v5975
    %v6054 = vunpack.c.l.b16 %v5976
    %v6055 = vunpack.c.h.b16 %v5976
    %v6056 = vunpack.c.l.b16 %v5977
    %v6057 = vunpack.c.h.b16 %v5977
    %v6058 = vunpack.c.l.b16 %v5978
    %v6059 = vunpack.c.h.b16 %v5978
    %v6060 = vunpack.c.l.b16 %v5979
    %v6061 = vunpack.c.h.b16 %v5979
    %v6062 = vunpack.c.l.b16 %v5980
    %v6063 = vunpack.c.h.b16 %v5980
    %v6064 = vunpack.c.l.b16 %v5981
    %v6065 = vunpack.c.h.b16 %v5981
    %v6066 = vunpack.c.l.b16 %v5982
    %v6067 = vunpack.c.h.b16 %v5982
    %v6068 = vunpack.c.l.b16 %v5983
    %v6069 = vunpack.c.h.b16 %v5983
    %v6070 = vunpack.c.l.b16 %v5984
    %v6071 = vunpack.c.h.b16 %v5984
    %v6072 = vunpack.c.l.b16 %v5985
    %v6073 = vunpack.c.h.b16 %v5985
    %v6074 = vunpack.c.l.b16 %v5986
    %v6075 = vunpack.c.h.b16 %v5986
    %v6076 = vunpack.c.l.b16 %v5987
    %v6077 = vunpack.c.h.b16 %v5987
    %v6078 = vunpack.c.l.b16 %v5988
    %v6079 = vunpack.c.h.b16 %v5988
    %v6080 = vunpack.c.l.b16 %v5989
    %v6081 = vunpack.c.h.b16 %v5989
    %v6082 = vunpack.c.l.b16 %v5990
    %v6083 = vunpack.c.h.b16 %v5990
    %v6084 = vunpack.c.l.b16 %v5991
    %v6085 = vunpack.c.h.b16 %v5991
    %v6086 = vunpack.c.l.b16 %v5992
    %v6087 = vunpack.c.h.b16 %v5992
    %v6088 = vunpack.c.l.b16 %v5993
    %v6089 = vunpack.c.h.b16 %v5993
    %v6090 = vpack.c.b16 %v6030, %v6026
    %v6091 = vpack.c.b16 %v6031, %v6027
    %v6092 = vpack.c.b16 %v6032, %v6028
    %v6093 = vpack.c.b16 %v6033, %v6029
    %v6094 = vpack.c.b16 %v6038, %v6034
    %v6095 = vpack.c.b16 %v6039, %v6035
    %v6096 = vpack.c.b16 %v6040, %v6036
    %v6097 = vpack.c.b16 %v6041, %v6037
    %v6098 = vpack.c.b16 %v6046, %v6042
    %v6099 = vpack.c.b16 %v6047, %v6043
    %v6100 = vpack.c.b16 %v6048, %v6044
    %v6101 = vpack.c.b16 %v6049, %v6045
    %v6102 = vpack.c.b16 %v6054, %v6050
    %v6103 = vpack.c.b16 %v6055, %v6051
    %v6104 = vpack.c.b16 %v6056, %v6052
    %v6105 = vpack.c.b16 %v6057, %v6053
    %v6106 = vpack.c.b16 %v6062, %v6058
    %v6107 = vpack.c.b16 %v6063, %v6059
    %v6108 = vpack.c.b16 %v6064, %v6060
    %v6109 = vpack.c.b16 %v6065, %v6061
    %v6110 = vpack.c.b16 %v6070, %v6066
    %v6111 = vpack.c.b16 %v6071, %v6067
    %v6112 = vpack.c.b16 %v6072, %v6068
    %v6113 = vpack.c.b16 %v6073, %v6069
    %v6114 = vpack.c.b16 %v6078, %v6074
    %v6115 = vpack.c.b16 %v6079, %v6075
    %v6116 = vpack.c.b16 %v6080, %v6076
    %v6117 = vpack.c.b16 %v6081, %v6077
    %v6118 = vpack.c.b16 %v6086, %v6082
    %v6119 = vpack.c.b16 %v6087, %v6083
    %v6120 = vpack.c.b16 %v6088, %v6084
    %v6121 = vpack.c.b16 %v6089, %v6085
    %6154 = vmatpush.bf16.msra.mxu0 %v6118
    %6155 = vmatpush.bf16.msra.mxu0 %v6114
    %6156 = vmatpush.bf16.msra.mxu0 %v6110
    %6157 = vmatpush.bf16.msra.mxu0 %v6106
    %6158 = vmatpush.bf16.msra.mxu0 %v6102
    %6159 = vmatpush.bf16.msra.mxu0 %v6098
    %6160 = vmatpush.bf16.msra.mxu0 %v6094
    %6161 = vmatpush.bf16.msra.mxu0 %v6090
    %6162 = vmatmul.bf16.gmra.mxu0 %v5960
    %v6163 = vpop.f32.mrf.mxu0
    %v6164 = vadd.f32 0.0, %v6163
    %v6165 = vpop.f32.mrf.mxu0
    %6166 = vdwg.mxu0
    %6167 = vmatpush.bf16.msra.mxu0 %v6119
    %6168 = vmatpush.bf16.msra.mxu0 %v6115
    %6169 = vmatpush.bf16.msra.mxu0 %v6111
    %6170 = vmatpush.bf16.msra.mxu0 %v6107
    %6171 = vmatpush.bf16.msra.mxu0 %v6103
    %6172 = vmatpush.bf16.msra.mxu0 %v6099
    %6173 = vmatpush.bf16.msra.mxu0 %v6095
    %6174 = vmatpush.bf16.msra.mxu0 %v6091
    %6175 = vmatmul.bf16.gmra.mxu0 %v5960
    %v6176 = vpop.f32.mrf.mxu0
    %v6177 = vadd.f32 0.0, %v6176
    %v6178 = vpop.f32.mrf.mxu0
    %6179 = vdwg.mxu0
    %6180 = vmatpush.bf16.msra.mxu0 %v6120
    %6181 = vmatpush.bf16.msra.mxu0 %v6116
    %6182 = vmatpush.bf16.msra.mxu0 %v6112
    %6183 = vmatpush.bf16.msra.mxu0 %v6108
    %6184 = vmatpush.bf16.msra.mxu0 %v6104
    %6185 = vmatpush.bf16.msra.mxu0 %v6100
    %6186 = vmatpush.bf16.msra.mxu0 %v6096
    %6187 = vmatpush.bf16.msra.mxu0 %v6092
    %6188 = vmatmul.bf16.gmra.mxu0 %v5960
    %v6189 = vpop.f32.mrf.mxu0
    %v6190 = vadd.f32 0.0, %v6189
    %v6191 = vpop.f32.mrf.mxu0
    %6192 = vdwg.mxu0
    %6193 = vmatpush.bf16.msra.mxu0 %v6121
    %6194 = vmatpush.bf16.msra.mxu0 %v6117
    %6195 = vmatpush.bf16.msra.mxu0 %v6113
    %6196 = vmatpush.bf16.msra.mxu0 %v6109
    %6197 = vmatpush.bf16.msra.mxu0 %v6105
    %6198 = vmatpush.bf16.msra.mxu0 %v6101
    %6199 = vmatpush.bf16.msra.mxu0 %v6097
    %6200 = vmatpush.bf16.msra.mxu0 %v6093
    %6201 = vmatmul.bf16.gmra.mxu0 %v5960
    %v6202 = vpop.f32.mrf.mxu0
    %v6203 = vadd.f32 0.0, %v6202
    %v6204 = vpop.f32.mrf.mxu0
    %6205 = vdwg.mxu0
    %v6206 = vadd.f32 %v5901, %v6164
    %v6207 = vadd.f32 %v5914, %v6177
    %v6208 = vadd.f32 %v5927, %v6190
    %v6209 = vadd.f32 %v5940, %v6203
    %v6210 = vld [vmem:[%s5413] sm:$0x3]
    %v6211 = vld [vmem:[%s5413 + $0x4] sm:$0x3]
    %v6212 = vld [vmem:[%s5413 + $0x10] sm:$0x3]
    %v6213 = vld [vmem:[%s5413 + $0x14] sm:$0x3]
    %6218 = vst [vmem:[#allocation1] ss:$4 sm:$0xff] %v6210
    %s6219 = scalar_lea.vmem [#allocation1], 1
    %6220 = vst [vmem:[%s6219] ss:$4 sm:$0xff] %v6211
    %s6221 = scalar_lea.vmem [#allocation1], 2
    %6222 = vst [vmem:[%s6221] ss:$4 sm:$0xff] %v6212
    %s6223 = scalar_lea.vmem [#allocation1], 3
    %6224 = vst [vmem:[%s6223] ss:$4 sm:$0xff] %v6213
    %v6225 = vld.sshfl [vmem:[#allocation1] sm:$0xff pattern:$0x73625140]
    %v6227 = vpack.c.bf16 %v6225, %v6225
    %s6228 = scalar_lea.vmem [#allocation16], 768
    %v6229 = vld [vmem:[%s6228] sm:$0xff]
    %v6230 = vld [vmem:[%s6228 + $0x8] sm:$0xff]
    %v6231 = vld [vmem:[%s6228 + $0x10] sm:$0xff]
    %v6232 = vld [vmem:[%s6228 + $0x18] sm:$0xff]
    %v6233 = vld [vmem:[%s6228 + $0x20] sm:$0xff]
    %v6234 = vld [vmem:[%s6228 + $0x28] sm:$0xff]
    %v6235 = vld [vmem:[%s6228 + $0x30] sm:$0xff]
    %v6236 = vld [vmem:[%s6228 + $0x38] sm:$0xff]
    %v6237 = vld [vmem:[%s6228 + $0x40] sm:$0xff]
    %v6238 = vld [vmem:[%s6228 + $0x48] sm:$0xff]
    %v6239 = vld [vmem:[%s6228 + $0x50] sm:$0xff]
    %v6240 = vld [vmem:[%s6228 + $0x58] sm:$0xff]
    %v6241 = vld [vmem:[%s6228 + $0x60] sm:$0xff]
    %v6242 = vld [vmem:[%s6228 + $0x68] sm:$0xff]
    %v6243 = vld [vmem:[%s6228 + $0x70] sm:$0xff]
    %v6244 = vld [vmem:[%s6228 + $0x78] sm:$0xff]
    %v6245 = vld [vmem:[%s6228 + $0x80] sm:$0xff]
    %v6246 = vld [vmem:[%s6228 + $0x88] sm:$0xff]
    %v6247 = vld [vmem:[%s6228 + $0x90] sm:$0xff]
    %v6248 = vld [vmem:[%s6228 + $0x98] sm:$0xff]
    %v6249 = vld [vmem:[%s6228 + $0xa0] sm:$0xff]
    %v6250 = vld [vmem:[%s6228 + $0xa8] sm:$0xff]
    %v6251 = vld [vmem:[%s6228 + $0xb0] sm:$0xff]
    %v6252 = vld [vmem:[%s6228 + $0xb8] sm:$0xff]
    %v6253 = vld [vmem:[%s6228 + $0xc0] sm:$0xff]
    %v6254 = vld [vmem:[%s6228 + $0xc8] sm:$0xff]
    %v6255 = vld [vmem:[%s6228 + $0xd0] sm:$0xff]
    %v6256 = vld [vmem:[%s6228 + $0xd8] sm:$0xff]
    %v6257 = vld [vmem:[%s6228 + $0xe0] sm:$0xff]
    %v6258 = vld [vmem:[%s6228 + $0xe8] sm:$0xff]
    %v6259 = vld [vmem:[%s6228 + $0xf0] sm:$0xff]
    %v6260 = vld [vmem:[%s6228 + $0xf8] sm:$0xff]
    %v6293 = vunpack.c.l.b16 %v6229
    %v6294 = vunpack.c.h.b16 %v6229
    %v6295 = vunpack.c.l.b16 %v6230
    %v6296 = vunpack.c.h.b16 %v6230
    %v6297 = vunpack.c.l.b16 %v6231
    %v6298 = vunpack.c.h.b16 %v6231
    %v6299 = vunpack.c.l.b16 %v6232
    %v6300 = vunpack.c.h.b16 %v6232
    %v6301 = vunpack.c.l.b16 %v6233
    %v6302 = vunpack.c.h.b16 %v6233
    %v6303 = vunpack.c.l.b16 %v6234
    %v6304 = vunpack.c.h.b16 %v6234
    %v6305 = vunpack.c.l.b16 %v6235
    %v6306 = vunpack.c.h.b16 %v6235
    %v6307 = vunpack.c.l.b16 %v6236
    %v6308 = vunpack.c.h.b16 %v6236
    %v6309 = vunpack.c.l.b16 %v6237
    %v6310 = vunpack.c.h.b16 %v6237
    %v6311 = vunpack.c.l.b16 %v6238
    %v6312 = vunpack.c.h.b16 %v6238
    %v6313 = vunpack.c.l.b16 %v6239
    %v6314 = vunpack.c.h.b16 %v6239
    %v6315 = vunpack.c.l.b16 %v6240
    %v6316 = vunpack.c.h.b16 %v6240
    %v6317 = vunpack.c.l.b16 %v6241
    %v6318 = vunpack.c.h.b16 %v6241
    %v6319 = vunpack.c.l.b16 %v6242
    %v6320 = vunpack.c.h.b16 %v6242
    %v6321 = vunpack.c.l.b16 %v6243
    %v6322 = vunpack.c.h.b16 %v6243
    %v6323 = vunpack.c.l.b16 %v6244
    %v6324 = vunpack.c.h.b16 %v6244
    %v6325 = vunpack.c.l.b16 %v6245
    %v6326 = vunpack.c.h.b16 %v6245
    %v6327 = vunpack.c.l.b16 %v6246
    %v6328 = vunpack.c.h.b16 %v6246
    %v6329 = vunpack.c.l.b16 %v6247
    %v6330 = vunpack.c.h.b16 %v6247
    %v6331 = vunpack.c.l.b16 %v6248
    %v6332 = vunpack.c.h.b16 %v6248
    %v6333 = vunpack.c.l.b16 %v6249
    %v6334 = vunpack.c.h.b16 %v6249
    %v6335 = vunpack.c.l.b16 %v6250
    %v6336 = vunpack.c.h.b16 %v6250
    %v6337 = vunpack.c.l.b16 %v6251
    %v6338 = vunpack.c.h.b16 %v6251
    %v6339 = vunpack.c.l.b16 %v6252
    %v6340 = vunpack.c.h.b16 %v6252
    %v6341 = vunpack.c.l.b16 %v6253
    %v6342 = vunpack.c.h.b16 %v6253
    %v6343 = vunpack.c.l.b16 %v6254
    %v6344 = vunpack.c.h.b16 %v6254
    %v6345 = vunpack.c.l.b16 %v6255
    %v6346 = vunpack.c.h.b16 %v6255
    %v6347 = vunpack.c.l.b16 %v6256
    %v6348 = vunpack.c.h.b16 %v6256
    %v6349 = vunpack.c.l.b16 %v6257
    %v6350 = vunpack.c.h.b16 %v6257
    %v6351 = vunpack.c.l.b16 %v6258
    %v6352 = vunpack.c.h.b16 %v6258
    %v6353 = vunpack.c.l.b16 %v6259
    %v6354 = vunpack.c.h.b16 %v6259
    %v6355 = vunpack.c.l.b16 %v6260
    %v6356 = vunpack.c.h.b16 %v6260
    %v6357 = vpack.c.b16 %v6297, %v6293
    %v6358 = vpack.c.b16 %v6298, %v6294
    %v6359 = vpack.c.b16 %v6299, %v6295
    %v6360 = vpack.c.b16 %v6300, %v6296
    %v6361 = vpack.c.b16 %v6305, %v6301
    %v6362 = vpack.c.b16 %v6306, %v6302
    %v6363 = vpack.c.b16 %v6307, %v6303
    %v6364 = vpack.c.b16 %v6308, %v6304
    %v6365 = vpack.c.b16 %v6313, %v6309
    %v6366 = vpack.c.b16 %v6314, %v6310
    %v6367 = vpack.c.b16 %v6315, %v6311
    %v6368 = vpack.c.b16 %v6316, %v6312
    %v6369 = vpack.c.b16 %v6321, %v6317
    %v6370 = vpack.c.b16 %v6322, %v6318
    %v6371 = vpack.c.b16 %v6323, %v6319
    %v6372 = vpack.c.b16 %v6324, %v6320
    %v6373 = vpack.c.b16 %v6329, %v6325
    %v6374 = vpack.c.b16 %v6330, %v6326
    %v6375 = vpack.c.b16 %v6331, %v6327
    %v6376 = vpack.c.b16 %v6332, %v6328
    %v6377 = vpack.c.b16 %v6337, %v6333
    %v6378 = vpack.c.b16 %v6338, %v6334
    %v6379 = vpack.c.b16 %v6339, %v6335
    %v6380 = vpack.c.b16 %v6340, %v6336
    %v6381 = vpack.c.b16 %v6345, %v6341
    %v6382 = vpack.c.b16 %v6346, %v6342
    %v6383 = vpack.c.b16 %v6347, %v6343
    %v6384 = vpack.c.b16 %v6348, %v6344
    %v6385 = vpack.c.b16 %v6353, %v6349
    %v6386 = vpack.c.b16 %v6354, %v6350
    %v6387 = vpack.c.b16 %v6355, %v6351
    %v6388 = vpack.c.b16 %v6356, %v6352
    %6421 = vmatpush.bf16.msra.mxu0 %v6385
    %6422 = vmatpush.bf16.msra.mxu0 %v6381
    %6423 = vmatpush.bf16.msra.mxu0 %v6377
    %6424 = vmatpush.bf16.msra.mxu0 %v6373
    %6425 = vmatpush.bf16.msra.mxu0 %v6369
    %6426 = vmatpush.bf16.msra.mxu0 %v6365
    %6427 = vmatpush.bf16.msra.mxu0 %v6361
    %6428 = vmatpush.bf16.msra.mxu0 %v6357
    %6429 = vmatmul.bf16.gmra.mxu0 %v6227
    %v6430 = vpop.f32.mrf.mxu0
    %v6431 = vadd.f32 0.0, %v6430
    %v6432 = vpop.f32.mrf.mxu0
    %6433 = vdwg.mxu0
    %6434 = vmatpush.bf16.msra.mxu0 %v6386
    %6435 = vmatpush.bf16.msra.mxu0 %v6382
    %6436 = vmatpush.bf16.msra.mxu0 %v6378
    %6437 = vmatpush.bf16.msra.mxu0 %v6374
    %6438 = vmatpush.bf16.msra.mxu0 %v6370
    %6439 = vmatpush.bf16.msra.mxu0 %v6366
    %6440 = vmatpush.bf16.msra.mxu0 %v6362
    %6441 = vmatpush.bf16.msra.mxu0 %v6358
    %6442 = vmatmul.bf16.gmra.mxu0 %v6227
    %v6443 = vpop.f32.mrf.mxu0
    %v6444 = vadd.f32 0.0, %v6443
    %v6445 = vpop.f32.mrf.mxu0
    %6446 = vdwg.mxu0
    %6447 = vmatpush.bf16.msra.mxu0 %v6387
    %6448 = vmatpush.bf16.msra.mxu0 %v6383
    %6449 = vmatpush.bf16.msra.mxu0 %v6379
    %6450 = vmatpush.bf16.msra.mxu0 %v6375
    %6451 = vmatpush.bf16.msra.mxu0 %v6371
    %6452 = vmatpush.bf16.msra.mxu0 %v6367
    %6453 = vmatpush.bf16.msra.mxu0 %v6363
    %6454 = vmatpush.bf16.msra.mxu0 %v6359
    %6455 = vmatmul.bf16.gmra.mxu0 %v6227
    %v6456 = vpop.f32.mrf.mxu0
    %v6457 = vadd.f32 0.0, %v6456
    %v6458 = vpop.f32.mrf.mxu0
    %6459 = vdwg.mxu0
    %6460 = vmatpush.bf16.msra.mxu0 %v6388
    %6461 = vmatpush.bf16.msra.mxu0 %v6384
    %6462 = vmatpush.bf16.msra.mxu0 %v6380
    %6463 = vmatpush.bf16.msra.mxu0 %v6376
    %6464 = vmatpush.bf16.msra.mxu0 %v6372
    %6465 = vmatpush.bf16.msra.mxu0 %v6368
    %6466 = vmatpush.bf16.msra.mxu0 %v6364
    %6467 = vmatpush.bf16.msra.mxu0 %v6360
    %6468 = vmatmul.bf16.gmra.mxu0 %v6227
    %v6469 = vpop.f32.mrf.mxu0
    %v6470 = vadd.f32 0.0, %v6469
    %v6471 = vpop.f32.mrf.mxu0
    %6472 = vdwg.mxu0
    %v6473 = vadd.f32 %v6206, %v6431
    %v6474 = vadd.f32 %v6207, %v6444
    %v6475 = vadd.f32 %v6208, %v6457
    %v6476 = vadd.f32 %v6209, %v6470
    %v6477 = vld [vmem:[%s5413 + $0x1] sm:$0x3]
    %v6478 = vld [vmem:[%s5413 + $0x5] sm:$0x3]
    %v6479 = vld [vmem:[%s5413 + $0x11] sm:$0x3]
    %v6480 = vld [vmem:[%s5413 + $0x15] sm:$0x3]
    %6485 = vst [vmem:[#allocation1] ss:$4 sm:$0xff] %v6477
    %s6486 = scalar_lea.vmem [#allocation1], 1
    %6487 = vst [vmem:[%s6486] ss:$4 sm:$0xff] %v6478
    %s6488 = scalar_lea.vmem [#allocation1], 2
    %6489 = vst [vmem:[%s6488] ss:$4 sm:$0xff] %v6479
    %s6490 = scalar_lea.vmem [#allocation1], 3
    %6491 = vst [vmem:[%s6490] ss:$4 sm:$0xff] %v6480
    %v6492 = vld.sshfl [vmem:[#allocation1] sm:$0xff pattern:$0x73625140]
    %v6494 = vpack.c.bf16 %v6492, %v6492
    %s6495 = scalar_lea.vmem [#allocation16], 1024
    %v6496 = vld [vmem:[%s6495] sm:$0xff]
    %v6497 = vld [vmem:[%s6495 + $0x8] sm:$0xff]
    %v6498 = vld [vmem:[%s6495 + $0x10] sm:$0xff]
    %v6499 = vld [vmem:[%s6495 + $0x18] sm:$0xff]
    %v6500 = vld [vmem:[%s6495 + $0x20] sm:$0xff]
    %v6501 = vld [vmem:[%s6495 + $0x28] sm:$0xff]
    %v6502 = vld [vmem:[%s6495 + $0x30] sm:$0xff]
    %v6503 = vld [vmem:[%s6495 + $0x38] sm:$0xff]
    %v6504 = vld [vmem:[%s6495 + $0x40] sm:$0xff]
    %v6505 = vld [vmem:[%s6495 + $0x48] sm:$0xff]
    %v6506 = vld [vmem:[%s6495 + $0x50] sm:$0xff]
    %v6507 = vld [vmem:[%s6495 + $0x58] sm:$0xff]
    %v6508 = vld [vmem:[%s6495 + $0x60] sm:$0xff]
    %v6509 = vld [vmem:[%s6495 + $0x68] sm:$0xff]
    %v6510 = vld [vmem:[%s6495 + $0x70] sm:$0xff]
    %v6511 = vld [vmem:[%s6495 + $0x78] sm:$0xff]
    %v6512 = vld [vmem:[%s6495 + $0x80] sm:$0xff]
    %v6513 = vld [vmem:[%s6495 + $0x88] sm:$0xff]
    %v6514 = vld [vmem:[%s6495 + $0x90] sm:$0xff]
    %v6515 = vld [vmem:[%s6495 + $0x98] sm:$0xff]
    %v6516 = vld [vmem:[%s6495 + $0xa0] sm:$0xff]
    %v6517 = vld [vmem:[%s6495 + $0xa8] sm:$0xff]
    %v6518 = vld [vmem:[%s6495 + $0xb0] sm:$0xff]
    %v6519 = vld [vmem:[%s6495 + $0xb8] sm:$0xff]
    %v6520 = vld [vmem:[%s6495 + $0xc0] sm:$0xff]
    %v6521 = vld [vmem:[%s6495 + $0xc8] sm:$0xff]
    %v6522 = vld [vmem:[%s6495 + $0xd0] sm:$0xff]
    %v6523 = vld [vmem:[%s6495 + $0xd8] sm:$0xff]
    %v6524 = vld [vmem:[%s6495 + $0xe0] sm:$0xff]
    %v6525 = vld [vmem:[%s6495 + $0xe8] sm:$0xff]
    %v6526 = vld [vmem:[%s6495 + $0xf0] sm:$0xff]
    %v6527 = vld [vmem:[%s6495 + $0xf8] sm:$0xff]
    %v6560 = vunpack.c.l.b16 %v6496
    %v6561 = vunpack.c.h.b16 %v6496
    %v6562 = vunpack.c.l.b16 %v6497
    %v6563 = vunpack.c.h.b16 %v6497
    %v6564 = vunpack.c.l.b16 %v6498
    %v6565 = vunpack.c.h.b16 %v6498
    %v6566 = vunpack.c.l.b16 %v6499
    %v6567 = vunpack.c.h.b16 %v6499
    %v6568 = vunpack.c.l.b16 %v6500
    %v6569 = vunpack.c.h.b16 %v6500
    %v6570 = vunpack.c.l.b16 %v6501
    %v6571 = vunpack.c.h.b16 %v6501
    %v6572 = vunpack.c.l.b16 %v6502
    %v6573 = vunpack.c.h.b16 %v6502
    %v6574 = vunpack.c.l.b16 %v6503
    %v6575 = vunpack.c.h.b16 %v6503
    %v6576 = vunpack.c.l.b16 %v6504
    %v6577 = vunpack.c.h.b16 %v6504
    %v6578 = vunpack.c.l.b16 %v6505
    %v6579 = vunpack.c.h.b16 %v6505
    %v6580 = vunpack.c.l.b16 %v6506
    %v6581 = vunpack.c.h.b16 %v6506
    %v6582 = vunpack.c.l.b16 %v6507
    %v6583 = vunpack.c.h.b16 %v6507
    %v6584 = vunpack.c.l.b16 %v6508
    %v6585 = vunpack.c.h.b16 %v6508
    %v6586 = vunpack.c.l.b16 %v6509
    %v6587 = vunpack.c.h.b16 %v6509
    %v6588 = vunpack.c.l.b16 %v6510
    %v6589 = vunpack.c.h.b16 %v6510
    %v6590 = vunpack.c.l.b16 %v6511
    %v6591 = vunpack.c.h.b16 %v6511
    %v6592 = vunpack.c.l.b16 %v6512
    %v6593 = vunpack.c.h.b16 %v6512
    %v6594 = vunpack.c.l.b16 %v6513
    %v6595 = vunpack.c.h.b16 %v6513
    %v6596 = vunpack.c.l.b16 %v6514
    %v6597 = vunpack.c.h.b16 %v6514
    %v6598 = vunpack.c.l.b16 %v6515
    %v6599 = vunpack.c.h.b16 %v6515
    %v6600 = vunpack.c.l.b16 %v6516
    %v6601 = vunpack.c.h.b16 %v6516
    %v6602 = vunpack.c.l.b16 %v6517
    %v6603 = vunpack.c.h.b16 %v6517
    %v6604 = vunpack.c.l.b16 %v6518
    %v6605 = vunpack.c.h.b16 %v6518
    %v6606 = vunpack.c.l.b16 %v6519
    %v6607 = vunpack.c.h.b16 %v6519
    %v6608 = vunpack.c.l.b16 %v6520
    %v6609 = vunpack.c.h.b16 %v6520
    %v6610 = vunpack.c.l.b16 %v6521
    %v6611 = vunpack.c.h.b16 %v6521
    %v6612 = vunpack.c.l.b16 %v6522
    %v6613 = vunpack.c.h.b16 %v6522
    %v6614 = vunpack.c.l.b16 %v6523
    %v6615 = vunpack.c.h.b16 %v6523
    %v6616 = vunpack.c.l.b16 %v6524
    %v6617 = vunpack.c.h.b16 %v6524
    %v6618 = vunpack.c.l.b16 %v6525
    %v6619 = vunpack.c.h.b16 %v6525
    %v6620 = vunpack.c.l.b16 %v6526
    %v6621 = vunpack.c.h.b16 %v6526
    %v6622 = vunpack.c.l.b16 %v6527
    %v6623 = vunpack.c.h.b16 %v6527
    %v6624 = vpack.c.b16 %v6564, %v6560
    %v6625 = vpack.c.b16 %v6565, %v6561
    %v6626 = vpack.c.b16 %v6566, %v6562
    %v6627 = vpack.c.b16 %v6567, %v6563
    %v6628 = vpack.c.b16 %v6572, %v6568
    %v6629 = vpack.c.b16 %v6573, %v6569
    %v6630 = vpack.c.b16 %v6574, %v6570
    %v6631 = vpack.c.b16 %v6575, %v6571
    %v6632 = vpack.c.b16 %v6580, %v6576
    %v6633 = vpack.c.b16 %v6581, %v6577
    %v6634 = vpack.c.b16 %v6582, %v6578
    %v6635 = vpack.c.b16 %v6583, %v6579
    %v6636 = vpack.c.b16 %v6588, %v6584
    %v6637 = vpack.c.b16 %v6589, %v6585
    %v6638 = vpack.c.b16 %v6590, %v6586
    %v6639 = vpack.c.b16 %v6591, %v6587
    %v6640 = vpack.c.b16 %v6596, %v6592
    %v6641 = vpack.c.b16 %v6597, %v6593
    %v6642 = vpack.c.b16 %v6598, %v6594
    %v6643 = vpack.c.b16 %v6599, %v6595
    %v6644 = vpack.c.b16 %v6604, %v6600
    %v6645 = vpack.c.b16 %v6605, %v6601
    %v6646 = vpack.c.b16 %v6606, %v6602
    %v6647 = vpack.c.b16 %v6607, %v6603
    %v6648 = vpack.c.b16 %v6612, %v6608
    %v6649 = vpack.c.b16 %v6613, %v6609
    %v6650 = vpack.c.b16 %v6614, %v6610
    %v6651 = vpack.c.b16 %v6615, %v6611
    %v6652 = vpack.c.b16 %v6620, %v6616
    %v6653 = vpack.c.b16 %v6621, %v6617
    %v6654 = vpack.c.b16 %v6622, %v6618
    %v6655 = vpack.c.b16 %v6623, %v6619
    %6688 = vmatpush.bf16.msra.mxu0 %v6652
    %6689 = vmatpush.bf16.msra.mxu0 %v6648
    %6690 = vmatpush.bf16.msra.mxu0 %v6644
    %6691 = vmatpush.bf16.msra.mxu0 %v6640
    %6692 = vmatpush.bf16.msra.mxu0 %v6636
    %6693 = vmatpush.bf16.msra.mxu0 %v6632
    %6694 = vmatpush.bf16.msra.mxu0 %v6628
    %6695 = vmatpush.bf16.msra.mxu0 %v6624
    %6696 = vmatmul.bf16.gmra.mxu0 %v6494
    %v6697 = vpop.f32.mrf.mxu0
    %v6698 = vadd.f32 0.0, %v6697
    %v6699 = vpop.f32.mrf.mxu0
    %6700 = vdwg.mxu0
    %6701 = vmatpush.bf16.msra.mxu0 %v6653
    %6702 = vmatpush.bf16.msra.mxu0 %v6649
    %6703 = vmatpush.bf16.msra.mxu0 %v6645
    %6704 = vmatpush.bf16.msra.mxu0 %v6641
    %6705 = vmatpush.bf16.msra.mxu0 %v6637
    %6706 = vmatpush.bf16.msra.mxu0 %v6633
    %6707 = vmatpush.bf16.msra.mxu0 %v6629
    %6708 = vmatpush.bf16.msra.mxu0 %v6625
    %6709 = vmatmul.bf16.gmra.mxu0 %v6494
    %v6710 = vpop.f32.mrf.mxu0
    %v6711 = vadd.f32 0.0, %v6710
    %v6712 = vpop.f32.mrf.mxu0
    %6713 = vdwg.mxu0
    %6714 = vmatpush.bf16.msra.mxu0 %v6654
    %6715 = vmatpush.bf16.msra.mxu0 %v6650
    %6716 = vmatpush.bf16.msra.mxu0 %v6646
    %6717 = vmatpush.bf16.msra.mxu0 %v6642
    %6718 = vmatpush.bf16.msra.mxu0 %v6638
    %6719 = vmatpush.bf16.msra.mxu0 %v6634
    %6720 = vmatpush.bf16.msra.mxu0 %v6630
    %6721 = vmatpush.bf16.msra.mxu0 %v6626
    %6722 = vmatmul.bf16.gmra.mxu0 %v6494
    %v6723 = vpop.f32.mrf.mxu0
    %v6724 = vadd.f32 0.0, %v6723
    %v6725 = vpop.f32.mrf.mxu0
    %6726 = vdwg.mxu0
    %6727 = vmatpush.bf16.msra.mxu0 %v6655
    %6728 = vmatpush.bf16.msra.mxu0 %v6651
    %6729 = vmatpush.bf16.msra.mxu0 %v6647
    %6730 = vmatpush.bf16.msra.mxu0 %v6643
    %6731 = vmatpush.bf16.msra.mxu0 %v6639
    %6732 = vmatpush.bf16.msra.mxu0 %v6635
    %6733 = vmatpush.bf16.msra.mxu0 %v6631
    %6734 = vmatpush.bf16.msra.mxu0 %v6627
    %6735 = vmatmul.bf16.gmra.mxu0 %v6494
    %v6736 = vpop.f32.mrf.mxu0
    %v6737 = vadd.f32 0.0, %v6736
    %v6738 = vpop.f32.mrf.mxu0
    %6739 = vdwg.mxu0
    %v6740 = vadd.f32 %v6473, %v6698
    %v6741 = vadd.f32 %v6474, %v6711
    %v6742 = vadd.f32 %v6475, %v6724
    %v6743 = vadd.f32 %v6476, %v6737
    %v6744 = vld [vmem:[%s5413 + $0x2] sm:$0x3]
    %v6745 = vld [vmem:[%s5413 + $0x6] sm:$0x3]
    %v6746 = vld [vmem:[%s5413 + $0x12] sm:$0x3]
    %v6747 = vld [vmem:[%s5413 + $0x16] sm:$0x3]
    %6752 = vst [vmem:[#allocation1] ss:$4 sm:$0xff] %v6744
    %s6753 = scalar_lea.vmem [#allocation1], 1
    %6754 = vst [vmem:[%s6753] ss:$4 sm:$0xff] %v6745
    %s6755 = scalar_lea.vmem [#allocation1], 2
    %6756 = vst [vmem:[%s6755] ss:$4 sm:$0xff] %v6746
    %s6757 = scalar_lea.vmem [#allocation1], 3
    %6758 = vst [vmem:[%s6757] ss:$4 sm:$0xff] %v6747
    %v6759 = vld.sshfl [vmem:[#allocation1] sm:$0xff pattern:$0x73625140]
    %v6761 = vpack.c.bf16 %v6759, %v6759
    %s6762 = scalar_lea.vmem [#allocation16], 1280
    %v6763 = vld [vmem:[%s6762] sm:$0xff]
    %v6764 = vld [vmem:[%s6762 + $0x8] sm:$0xff]
    %v6765 = vld [vmem:[%s6762 + $0x10] sm:$0xff]
    %v6766 = vld [vmem:[%s6762 + $0x18] sm:$0xff]
    %v6767 = vld [vmem:[%s6762 + $0x20] sm:$0xff]
    %v6768 = vld [vmem:[%s6762 + $0x28] sm:$0xff]
    %v6769 = vld [vmem:[%s6762 + $0x30] sm:$0xff]
    %v6770 = vld [vmem:[%s6762 + $0x38] sm:$0xff]
    %v6771 = vld [vmem:[%s6762 + $0x40] sm:$0xff]
    %v6772 = vld [vmem:[%s6762 + $0x48] sm:$0xff]
    %v6773 = vld [vmem:[%s6762 + $0x50] sm:$0xff]
    %v6774 = vld [vmem:[%s6762 + $0x58] sm:$0xff]
    %v6775 = vld [vmem:[%s6762 + $0x60] sm:$0xff]
    %v6776 = vld [vmem:[%s6762 + $0x68] sm:$0xff]
    %v6777 = vld [vmem:[%s6762 + $0x70] sm:$0xff]
    %v6778 = vld [vmem:[%s6762 + $0x78] sm:$0xff]
    %v6779 = vld [vmem:[%s6762 + $0x80] sm:$0xff]
    %v6780 = vld [vmem:[%s6762 + $0x88] sm:$0xff]
    %v6781 = vld [vmem:[%s6762 + $0x90] sm:$0xff]
    %v6782 = vld [vmem:[%s6762 + $0x98] sm:$0xff]
    %v6783 = vld [vmem:[%s6762 + $0xa0] sm:$0xff]
    %v6784 = vld [vmem:[%s6762 + $0xa8] sm:$0xff]
    %v6785 = vld [vmem:[%s6762 + $0xb0] sm:$0xff]
    %v6786 = vld [vmem:[%s6762 + $0xb8] sm:$0xff]
    %v6787 = vld [vmem:[%s6762 + $0xc0] sm:$0xff]
    %v6788 = vld [vmem:[%s6762 + $0xc8] sm:$0xff]
    %v6789 = vld [vmem:[%s6762 + $0xd0] sm:$0xff]
    %v6790 = vld [vmem:[%s6762 + $0xd8] sm:$0xff]
    %v6791 = vld [vmem:[%s6762 + $0xe0] sm:$0xff]
    %v6792 = vld [vmem:[%s6762 + $0xe8] sm:$0xff]
    %v6793 = vld [vmem:[%s6762 + $0xf0] sm:$0xff]
    %v6794 = vld [vmem:[%s6762 + $0xf8] sm:$0xff]
    %v6827 = vunpack.c.l.b16 %v6763
    %v6828 = vunpack.c.h.b16 %v6763
    %v6829 = vunpack.c.l.b16 %v6764
    %v6830 = vunpack.c.h.b16 %v6764
    %v6831 = vunpack.c.l.b16 %v6765
    %v6832 = vunpack.c.h.b16 %v6765
    %v6833 = vunpack.c.l.b16 %v6766
    %v6834 = vunpack.c.h.b16 %v6766
    %v6835 = vunpack.c.l.b16 %v6767
    %v6836 = vunpack.c.h.b16 %v6767
    %v6837 = vunpack.c.l.b16 %v6768
    %v6838 = vunpack.c.h.b16 %v6768
    %v6839 = vunpack.c.l.b16 %v6769
    %v6840 = vunpack.c.h.b16 %v6769
    %v6841 = vunpack.c.l.b16 %v6770
    %v6842 = vunpack.c.h.b16 %v6770
    %v6843 = vunpack.c.l.b16 %v6771
    %v6844 = vunpack.c.h.b16 %v6771
    %v6845 = vunpack.c.l.b16 %v6772
    %v6846 = vunpack.c.h.b16 %v6772
    %v6847 = vunpack.c.l.b16 %v6773
    %v6848 = vunpack.c.h.b16 %v6773
    %v6849 = vunpack.c.l.b16 %v6774
    %v6850 = vunpack.c.h.b16 %v6774
    %v6851 = vunpack.c.l.b16 %v6775
    %v6852 = vunpack.c.h.b16 %v6775
    %v6853 = vunpack.c.l.b16 %v6776
    %v6854 = vunpack.c.h.b16 %v6776
    %v6855 = vunpack.c.l.b16 %v6777
    %v6856 = vunpack.c.h.b16 %v6777
    %v6857 = vunpack.c.l.b16 %v6778
    %v6858 = vunpack.c.h.b16 %v6778
    %v6859 = vunpack.c.l.b16 %v6779
    %v6860 = vunpack.c.h.b16 %v6779
    %v6861 = vunpack.c.l.b16 %v6780
    %v6862 = vunpack.c.h.b16 %v6780
    %v6863 = vunpack.c.l.b16 %v6781
    %v6864 = vunpack.c.h.b16 %v6781
    %v6865 = vunpack.c.l.b16 %v6782
    %v6866 = vunpack.c.h.b16 %v6782
    %v6867 = vunpack.c.l.b16 %v6783
    %v6868 = vunpack.c.h.b16 %v6783
    %v6869 = vunpack.c.l.b16 %v6784
    %v6870 = vunpack.c.h.b16 %v6784
    %v6871 = vunpack.c.l.b16 %v6785
    %v6872 = vunpack.c.h.b16 %v6785
    %v6873 = vunpack.c.l.b16 %v6786
    %v6874 = vunpack.c.h.b16 %v6786
    %v6875 = vunpack.c.l.b16 %v6787
    %v6876 = vunpack.c.h.b16 %v6787
    %v6877 = vunpack.c.l.b16 %v6788
    %v6878 = vunpack.c.h.b16 %v6788
    %v6879 = vunpack.c.l.b16 %v6789
    %v6880 = vunpack.c.h.b16 %v6789
    %v6881 = vunpack.c.l.b16 %v6790
    %v6882 = vunpack.c.h.b16 %v6790
    %v6883 = vunpack.c.l.b16 %v6791
    %v6884 = vunpack.c.h.b16 %v6791
    %v6885 = vunpack.c.l.b16 %v6792
    %v6886 = vunpack.c.h.b16 %v6792
    %v6887 = vunpack.c.l.b16 %v6793
    %v6888 = vunpack.c.h.b16 %v6793
    %v6889 = vunpack.c.l.b16 %v6794
    %v6890 = vunpack.c.h.b16 %v6794
    %v6891 = vpack.c.b16 %v6831, %v6827
    %v6892 = vpack.c.b16 %v6832, %v6828
    %v6893 = vpack.c.b16 %v6833, %v6829
    %v6894 = vpack.c.b16 %v6834, %v6830
    %v6895 = vpack.c.b16 %v6839, %v6835
    %v6896 = vpack.c.b16 %v6840, %v6836
    %v6897 = vpack.c.b16 %v6841, %v6837
    %v6898 = vpack.c.b16 %v6842, %v6838
    %v6899 = vpack.c.b16 %v6847, %v6843
    %v6900 = vpack.c.b16 %v6848, %v6844
    %v6901 = vpack.c.b16 %v6849, %v6845
    %v6902 = vpack.c.b16 %v6850, %v6846
    %v6903 = vpack.c.b16 %v6855, %v6851
    %v6904 = vpack.c.b16 %v6856, %v6852
    %v6905 = vpack.c.b16 %v6857, %v6853
    %v6906 = vpack.c.b16 %v6858, %v6854
    %v6907 = vpack.c.b16 %v6863, %v6859
    %v6908 = vpack.c.b16 %v6864, %v6860
    %v6909 = vpack.c.b16 %v6865, %v6861
    %v6910 = vpack.c.b16 %v6866, %v6862
    %v6911 = vpack.c.b16 %v6871, %v6867
    %v6912 = vpack.c.b16 %v6872, %v6868
    %v6913 = vpack.c.b16 %v6873, %v6869
    %v6914 = vpack.c.b16 %v6874, %v6870
    %v6915 = vpack.c.b16 %v6879, %v6875
    %v6916 = vpack.c.b16 %v6880, %v6876
    %v6917 = vpack.c.b16 %v6881, %v6877
    %v6918 = vpack.c.b16 %v6882, %v6878
    %v6919 = vpack.c.b16 %v6887, %v6883
    %v6920 = vpack.c.b16 %v6888, %v6884
    %v6921 = vpack.c.b16 %v6889, %v6885
    %v6922 = vpack.c.b16 %v6890, %v6886
    %6955 = vmatpush.bf16.msra.mxu0 %v6919
    %6956 = vmatpush.bf16.msra.mxu0 %v6915
    %6957 = vmatpush.bf16.msra.mxu0 %v6911
    %6958 = vmatpush.bf16.msra.mxu0 %v6907
    %6959 = vmatpush.bf16.msra.mxu0 %v6903
    %6960 = vmatpush.bf16.msra.mxu0 %v6899
    %6961 = vmatpush.bf16.msra.mxu0 %v6895
    %6962 = vmatpush.bf16.msra.mxu0 %v6891
    %6963 = vmatmul.bf16.gmra.mxu0 %v6761
    %v6964 = vpop.f32.mrf.mxu0
    %v6965 = vadd.f32 0.0, %v6964
    %v6966 = vpop.f32.mrf.mxu0
    %6967 = vdwg.mxu0
    %6968 = vmatpush.bf16.msra.mxu0 %v6920
    %6969 = vmatpush.bf16.msra.mxu0 %v6916
    %6970 = vmatpush.bf16.msra.mxu0 %v6912
    %6971 = vmatpush.bf16.msra.mxu0 %v6908
    %6972 = vmatpush.bf16.msra.mxu0 %v6904
    %6973 = vmatpush.bf16.msra.mxu0 %v6900
    %6974 = vmatpush.bf16.msra.mxu0 %v6896
    %6975 = vmatpush.bf16.msra.mxu0 %v6892
    %6976 = vmatmul.bf16.gmra.mxu0 %v6761
    %v6977 = vpop.f32.mrf.mxu0
    %v6978 = vadd.f32 0.0, %v6977
    %v6979 = vpop.f32.mrf.mxu0
    %6980 = vdwg.mxu0
    %6981 = vmatpush.bf16.msra.mxu0 %v6921
    %6982 = vmatpush.bf16.msra.mxu0 %v6917
    %6983 = vmatpush.bf16.msra.mxu0 %v6913
    %6984 = vmatpush.bf16.msra.mxu0 %v6909
    %6985 = vmatpush.bf16.msra.mxu0 %v6905
    %6986 = vmatpush.bf16.msra.mxu0 %v6901
    %6987 = vmatpush.bf16.msra.mxu0 %v6897
    %6988 = vmatpush.bf16.msra.mxu0 %v6893
    %6989 = vmatmul.bf16.gmra.mxu0 %v6761
    %v6990 = vpop.f32.mrf.mxu0
    %v6991 = vadd.f32 0.0, %v6990
    %v6992 = vpop.f32.mrf.mxu0
    %6993 = vdwg.mxu0
    %6994 = vmatpush.bf16.msra.mxu0 %v6922
    %6995 = vmatpush.bf16.msra.mxu0 %v6918
    %6996 = vmatpush.bf16.msra.mxu0 %v6914
    %6997 = vmatpush.bf16.msra.mxu0 %v6910
    %6998 = vmatpush.bf16.msra.mxu0 %v6906
    %6999 = vmatpush.bf16.msra.mxu0 %v6902
    %7000 = vmatpush.bf16.msra.mxu0 %v6898
    %7001 = vmatpush.bf16.msra.mxu0 %v6894
    %7002 = vmatmul.bf16.gmra.mxu0 %v6761
    %v7003 = vpop.f32.mrf.mxu0
    %v7004 = vadd.f32 0.0, %v7003
    %v7005 = vpop.f32.mrf.mxu0
    %7006 = vdwg.mxu0
    %v7007 = vadd.f32 %v6740, %v6965
    %v7008 = vadd.f32 %v6741, %v6978
    %v7009 = vadd.f32 %v6742, %v6991
    %v7010 = vadd.f32 %v6743, %v7004
    %s7011 = scalar_lea.vmem [#allocation4], 8
    %v7012 = vld [vmem:[%s7011] sm:$0x3]
    %v7013 = vld [vmem:[%s7011 + $0x4] sm:$0x3]
    %v7014 = vld [vmem:[%s7011 + $0x10] sm:$0x3]
    %v7015 = vld [vmem:[%s7011 + $0x14] sm:$0x3]
    %7020 = vst [vmem:[#allocation1] ss:$4 sm:$0xff] %v7012
    %s7021 = scalar_lea.vmem [#allocation1], 1
    %7022 = vst [vmem:[%s7021] ss:$4 sm:$0xff] %v7013
    %s7023 = scalar_lea.vmem [#allocation1], 2
    %7024 = vst [vmem:[%s7023] ss:$4 sm:$0xff] %v7014
    %s7025 = scalar_lea.vmem [#allocation1], 3
    %7026 = vst [vmem:[%s7025] ss:$4 sm:$0xff] %v7015
    %v7027 = vld.sshfl [vmem:[#allocation1] sm:$0xff pattern:$0x73625140]
    %v7029 = vpack.c.bf16 %v7027, %v7027
    %s7030 = scalar_lea.vmem [#allocation16], 1536
    %v7031 = vld [vmem:[%s7030] sm:$0xff]
    %v7032 = vld [vmem:[%s7030 + $0x8] sm:$0xff]
    %v7033 = vld [vmem:[%s7030 + $0x10] sm:$0xff]
    %v7034 = vld [vmem:[%s7030 + $0x18] sm:$0xff]
    %v7035 = vld [vmem:[%s7030 + $0x20] sm:$0xff]
    %v7036 = vld [vmem:[%s7030 + $0x28] sm:$0xff]
    %v7037 = vld [vmem:[%s7030 + $0x30] sm:$0xff]
    %v7038 = vld [vmem:[%s7030 + $0x38] sm:$0xff]
    %v7039 = vld [vmem:[%s7030 + $0x40] sm:$0xff]
    %v7040 = vld [vmem:[%s7030 + $0x48] sm:$0xff]
    %v7041 = vld [vmem:[%s7030 + $0x50] sm:$0xff]
    %v7042 = vld [vmem:[%s7030 + $0x58] sm:$0xff]
    %v7043 = vld [vmem:[%s7030 + $0x60] sm:$0xff]
    %v7044 = vld [vmem:[%s7030 + $0x68] sm:$0xff]
    %v7045 = vld [vmem:[%s7030 + $0x70] sm:$0xff]
    %v7046 = vld [vmem:[%s7030 + $0x78] sm:$0xff]
    %v7047 = vld [vmem:[%s7030 + $0x80] sm:$0xff]
    %v7048 = vld [vmem:[%s7030 + $0x88] sm:$0xff]
    %v7049 = vld [vmem:[%s7030 + $0x90] sm:$0xff]
    %v7050 = vld [vmem:[%s7030 + $0x98] sm:$0xff]
    %v7051 = vld [vmem:[%s7030 + $0xa0] sm:$0xff]
    %v7052 = vld [vmem:[%s7030 + $0xa8] sm:$0xff]
    %v7053 = vld [vmem:[%s7030 + $0xb0] sm:$0xff]
    %v7054 = vld [vmem:[%s7030 + $0xb8] sm:$0xff]
    %v7055 = vld [vmem:[%s7030 + $0xc0] sm:$0xff]
    %v7056 = vld [vmem:[%s7030 + $0xc8] sm:$0xff]
    %v7057 = vld [vmem:[%s7030 + $0xd0] sm:$0xff]
    %v7058 = vld [vmem:[%s7030 + $0xd8] sm:$0xff]
    %v7059 = vld [vmem:[%s7030 + $0xe0] sm:$0xff]
    %v7060 = vld [vmem:[%s7030 + $0xe8] sm:$0xff]
    %v7061 = vld [vmem:[%s7030 + $0xf0] sm:$0xff]
    %v7062 = vld [vmem:[%s7030 + $0xf8] sm:$0xff]
    %v7095 = vunpack.c.l.b16 %v7031
    %v7096 = vunpack.c.h.b16 %v7031
    %v7097 = vunpack.c.l.b16 %v7032
    %v7098 = vunpack.c.h.b16 %v7032
    %v7099 = vunpack.c.l.b16 %v7033
    %v7100 = vunpack.c.h.b16 %v7033
    %v7101 = vunpack.c.l.b16 %v7034
    %v7102 = vunpack.c.h.b16 %v7034
    %v7103 = vunpack.c.l.b16 %v7035
    %v7104 = vunpack.c.h.b16 %v7035
    %v7105 = vunpack.c.l.b16 %v7036
    %v7106 = vunpack.c.h.b16 %v7036
    %v7107 = vunpack.c.l.b16 %v7037
    %v7108 = vunpack.c.h.b16 %v7037
    %v7109 = vunpack.c.l.b16 %v7038
    %v7110 = vunpack.c.h.b16 %v7038
    %v7111 = vunpack.c.l.b16 %v7039
    %v7112 = vunpack.c.h.b16 %v7039
    %v7113 = vunpack.c.l.b16 %v7040
    %v7114 = vunpack.c.h.b16 %v7040
    %v7115 = vunpack.c.l.b16 %v7041
    %v7116 = vunpack.c.h.b16 %v7041
    %v7117 = vunpack.c.l.b16 %v7042
    %v7118 = vunpack.c.h.b16 %v7042
    %v7119 = vunpack.c.l.b16 %v7043
    %v7120 = vunpack.c.h.b16 %v7043
    %v7121 = vunpack.c.l.b16 %v7044
    %v7122 = vunpack.c.h.b16 %v7044
    %v7123 = vunpack.c.l.b16 %v7045
    %v7124 = vunpack.c.h.b16 %v7045
    %v7125 = vunpack.c.l.b16 %v7046
    %v7126 = vunpack.c.h.b16 %v7046
    %v7127 = vunpack.c.l.b16 %v7047
    %v7128 = vunpack.c.h.b16 %v7047
    %v7129 = vunpack.c.l.b16 %v7048
    %v7130 = vunpack.c.h.b16 %v7048
    %v7131 = vunpack.c.l.b16 %v7049
    %v7132 = vunpack.c.h.b16 %v7049
    %v7133 = vunpack.c.l.b16 %v7050
    %v7134 = vunpack.c.h.b16 %v7050
    %v7135 = vunpack.c.l.b16 %v7051
    %v7136 = vunpack.c.h.b16 %v7051
    %v7137 = vunpack.c.l.b16 %v7052
    %v7138 = vunpack.c.h.b16 %v7052
    %v7139 = vunpack.c.l.b16 %v7053
    %v7140 = vunpack.c.h.b16 %v7053
    %v7141 = vunpack.c.l.b16 %v7054
    %v7142 = vunpack.c.h.b16 %v7054
    %v7143 = vunpack.c.l.b16 %v7055
    %v7144 = vunpack.c.h.b16 %v7055
    %v7145 = vunpack.c.l.b16 %v7056
    %v7146 = vunpack.c.h.b16 %v7056
    %v7147 = vunpack.c.l.b16 %v7057
    %v7148 = vunpack.c.h.b16 %v7057
    %v7149 = vunpack.c.l.b16 %v7058
    %v7150 = vunpack.c.h.b16 %v7058
    %v7151 = vunpack.c.l.b16 %v7059
    %v7152 = vunpack.c.h.b16 %v7059
    %v7153 = vunpack.c.l.b16 %v7060
    %v7154 = vunpack.c.h.b16 %v7060
    %v7155 = vunpack.c.l.b16 %v7061
    %v7156 = vunpack.c.h.b16 %v7061
    %v7157 = vunpack.c.l.b16 %v7062
    %v7158 = vunpack.c.h.b16 %v7062
    %v7159 = vpack.c.b16 %v7099, %v7095
    %v7160 = vpack.c.b16 %v7100, %v7096
    %v7161 = vpack.c.b16 %v7101, %v7097
    %v7162 = vpack.c.b16 %v7102, %v7098
    %v7163 = vpack.c.b16 %v7107, %v7103
    %v7164 = vpack.c.b16 %v7108, %v7104
    %v7165 = vpack.c.b16 %v7109, %v7105
    %v7166 = vpack.c.b16 %v7110, %v7106
    %v7167 = vpack.c.b16 %v7115, %v7111
    %v7168 = vpack.c.b16 %v7116, %v7112
    %v7169 = vpack.c.b16 %v7117, %v7113
    %v7170 = vpack.c.b16 %v7118, %v7114
    %v7171 = vpack.c.b16 %v7123, %v7119
    %v7172 = vpack.c.b16 %v7124, %v7120
    %v7173 = vpack.c.b16 %v7125, %v7121
    %v7174 = vpack.c.b16 %v7126, %v7122
    %v7175 = vpack.c.b16 %v7131, %v7127
    %v7176 = vpack.c.b16 %v7132, %v7128
    %v7177 = vpack.c.b16 %v7133, %v7129
    %v7178 = vpack.c.b16 %v7134, %v7130
    %v7179 = vpack.c.b16 %v7139, %v7135
    %v7180 = vpack.c.b16 %v7140, %v7136
    %v7181 = vpack.c.b16 %v7141, %v7137
    %v7182 = vpack.c.b16 %v7142, %v7138
    %v7183 = vpack.c.b16 %v7147, %v7143
    %v7184 = vpack.c.b16 %v7148, %v7144
    %v7185 = vpack.c.b16 %v7149, %v7145
    %v7186 = vpack.c.b16 %v7150, %v7146
    %v7187 = vpack.c.b16 %v7155, %v7151
    %v7188 = vpack.c.b16 %v7156, %v7152
    %v7189 = vpack.c.b16 %v7157, %v7153
    %v7190 = vpack.c.b16 %v7158, %v7154
    %7223 = vmatpush.bf16.msra.mxu0 %v7187
    %7224 = vmatpush.bf16.msra.mxu0 %v7183
    %7225 = vmatpush.bf16.msra.mxu0 %v7179
    %7226 = vmatpush.bf16.msra.mxu0 %v7175
    %7227 = vmatpush.bf16.msra.mxu0 %v7171
    %7228 = vmatpush.bf16.msra.mxu0 %v7167
    %7229 = vmatpush.bf16.msra.mxu0 %v7163
    %7230 = vmatpush.bf16.msra.mxu0 %v7159
    %7231 = vmatmul.bf16.gmra.mxu0 %v7029
    %v7232 = vpop.f32.mrf.mxu0
    %v7233 = vadd.f32 0.0, %v7232
    %v7234 = vpop.f32.mrf.mxu0
    %7235 = vdwg.mxu0
    %7236 = vmatpush.bf16.msra.mxu0 %v7188
    %7237 = vmatpush.bf16.msra.mxu0 %v7184
    %7238 = vmatpush.bf16.msra.mxu0 %v7180
    %7239 = vmatpush.bf16.msra.mxu0 %v7176
    %7240 = vmatpush.bf16.msra.mxu0 %v7172
    %7241 = vmatpush.bf16.msra.mxu0 %v7168
    %7242 = vmatpush.bf16.msra.mxu0 %v7164
    %7243 = vmatpush.bf16.msra.mxu0 %v7160
    %7244 = vmatmul.bf16.gmra.mxu0 %v7029
    %v7245 = vpop.f32.mrf.mxu0
    %v7246 = vadd.f32 0.0, %v7245
    %v7247 = vpop.f32.mrf.mxu0
    %7248 = vdwg.mxu0
    %7249 = vmatpush.bf16.msra.mxu0 %v7189
    %7250 = vmatpush.bf16.msra.mxu0 %v7185
    %7251 = vmatpush.bf16.msra.mxu0 %v7181
    %7252 = vmatpush.bf16.msra.mxu0 %v7177
    %7253 = vmatpush.bf16.msra.mxu0 %v7173
    %7254 = vmatpush.bf16.msra.mxu0 %v7169
    %7255 = vmatpush.bf16.msra.mxu0 %v7165
    %7256 = vmatpush.bf16.msra.mxu0 %v7161
    %7257 = vmatmul.bf16.gmra.mxu0 %v7029
    %v7258 = vpop.f32.mrf.mxu0
    %v7259 = vadd.f32 0.0, %v7258
    %v7260 = vpop.f32.mrf.mxu0
    %7261 = vdwg.mxu0
    %7262 = vmatpush.bf16.msra.mxu0 %v7190
    %7263 = vmatpush.bf16.msra.mxu0 %v7186
    %7264 = vmatpush.bf16.msra.mxu0 %v7182
    %7265 = vmatpush.bf16.msra.mxu0 %v7178
    %7266 = vmatpush.bf16.msra.mxu0 %v7174
    %7267 = vmatpush.bf16.msra.mxu0 %v7170
    %7268 = vmatpush.bf16.msra.mxu0 %v7166
    %7269 = vmatpush.bf16.msra.mxu0 %v7162
    %7270 = vmatmul.bf16.gmra.mxu0 %v7029
    %v7271 = vpop.f32.mrf.mxu0
    %v7272 = vadd.f32 0.0, %v7271
    %v7273 = vpop.f32.mrf.mxu0
    %7274 = vdwg.mxu0
    %v7275 = vadd.f32 %v7007, %v7233
    %v7276 = vadd.f32 %v7008, %v7246
    %v7277 = vadd.f32 %v7009, %v7259
    %v7278 = vadd.f32 %v7010, %v7272
    %v7279 = vld [vmem:[%s7011 + $0x1] sm:$0x3]
    %v7280 = vld [vmem:[%s7011 + $0x5] sm:$0x3]
    %v7281 = vld [vmem:[%s7011 + $0x11] sm:$0x3]
    %v7282 = vld [vmem:[%s7011 + $0x15] sm:$0x3]
    %7287 = vst [vmem:[#allocation1] ss:$4 sm:$0xff] %v7279
    %s7288 = scalar_lea.vmem [#allocation1], 1
    %7289 = vst [vmem:[%s7288] ss:$4 sm:$0xff] %v7280
    %s7290 = scalar_lea.vmem [#allocation1], 2
    %7291 = vst [vmem:[%s7290] ss:$4 sm:$0xff] %v7281
    %s7292 = scalar_lea.vmem [#allocation1], 3
    %7293 = vst [vmem:[%s7292] ss:$4 sm:$0xff] %v7282
    %v7294 = vld.sshfl [vmem:[#allocation1] sm:$0xff pattern:$0x73625140]
    %v7296 = vpack.c.bf16 %v7294, %v7294
    %s7297 = scalar_lea.vmem [#allocation16], 1792
    %v7298 = vld [vmem:[%s7297] sm:$0xff]
    %v7299 = vld [vmem:[%s7297 + $0x8] sm:$0xff]
    %v7300 = vld [vmem:[%s7297 + $0x10] sm:$0xff]
    %v7301 = vld [vmem:[%s7297 + $0x18] sm:$0xff]
    %v7302 = vld [vmem:[%s7297 + $0x20] sm:$0xff]
    %v7303 = vld [vmem:[%s7297 + $0x28] sm:$0xff]
    %v7304 = vld [vmem:[%s7297 + $0x30] sm:$0xff]
    %v7305 = vld [vmem:[%s7297 + $0x38] sm:$0xff]
    %v7306 = vld [vmem:[%s7297 + $0x40] sm:$0xff]
    %v7307 = vld [vmem:[%s7297 + $0x48] sm:$0xff]
    %v7308 = vld [vmem:[%s7297 + $0x50] sm:$0xff]
    %v7309 = vld [vmem:[%s7297 + $0x58] sm:$0xff]
    %v7310 = vld [vmem:[%s7297 + $0x60] sm:$0xff]
    %v7311 = vld [vmem:[%s7297 + $0x68] sm:$0xff]
    %v7312 = vld [vmem:[%s7297 + $0x70] sm:$0xff]
    %v7313 = vld [vmem:[%s7297 + $0x78] sm:$0xff]
    %v7314 = vld [vmem:[%s7297 + $0x80] sm:$0xff]
    %v7315 = vld [vmem:[%s7297 + $0x88] sm:$0xff]
    %v7316 = vld [vmem:[%s7297 + $0x90] sm:$0xff]
    %v7317 = vld [vmem:[%s7297 + $0x98] sm:$0xff]
    %v7318 = vld [vmem:[%s7297 + $0xa0] sm:$0xff]
    %v7319 = vld [vmem:[%s7297 + $0xa8] sm:$0xff]
    %v7320 = vld [vmem:[%s7297 + $0xb0] sm:$0xff]
    %v7321 = vld [vmem:[%s7297 + $0xb8] sm:$0xff]
    %v7322 = vld [vmem:[%s7297 + $0xc0] sm:$0xff]
    %v7323 = vld [vmem:[%s7297 + $0xc8] sm:$0xff]
    %v7324 = vld [vmem:[%s7297 + $0xd0] sm:$0xff]
    %v7325 = vld [vmem:[%s7297 + $0xd8] sm:$0xff]
    %v7326 = vld [vmem:[%s7297 + $0xe0] sm:$0xff]
    %v7327 = vld [vmem:[%s7297 + $0xe8] sm:$0xff]
    %v7328 = vld [vmem:[%s7297 + $0xf0] sm:$0xff]
    %v7329 = vld [vmem:[%s7297 + $0xf8] sm:$0xff]
    %v7362 = vunpack.c.l.b16 %v7298
    %v7363 = vunpack.c.h.b16 %v7298
    %v7364 = vunpack.c.l.b16 %v7299
    %v7365 = vunpack.c.h.b16 %v7299
    %v7366 = vunpack.c.l.b16 %v7300
    %v7367 = vunpack.c.h.b16 %v7300
    %v7368 = vunpack.c.l.b16 %v7301
    %v7369 = vunpack.c.h.b16 %v7301
    %v7370 = vunpack.c.l.b16 %v7302
    %v7371 = vunpack.c.h.b16 %v7302
    %v7372 = vunpack.c.l.b16 %v7303
    %v7373 = vunpack.c.h.b16 %v7303
    %v7374 = vunpack.c.l.b16 %v7304
    %v7375 = vunpack.c.h.b16 %v7304
    %v7376 = vunpack.c.l.b16 %v7305
    %v7377 = vunpack.c.h.b16 %v7305
    %v7378 = vunpack.c.l.b16 %v7306
    %v7379 = vunpack.c.h.b16 %v7306
    %v7380 = vunpack.c.l.b16 %v7307
    %v7381 = vunpack.c.h.b16 %v7307
    %v7382 = vunpack.c.l.b16 %v7308
    %v7383 = vunpack.c.h.b16 %v7308
    %v7384 = vunpack.c.l.b16 %v7309
    %v7385 = vunpack.c.h.b16 %v7309
    %v7386 = vunpack.c.l.b16 %v7310
    %v7387 = vunpack.c.h.b16 %v7310
    %v7388 = vunpack.c.l.b16 %v7311
    %v7389 = vunpack.c.h.b16 %v7311
    %v7390 = vunpack.c.l.b16 %v7312
    %v7391 = vunpack.c.h.b16 %v7312
    %v7392 = vunpack.c.l.b16 %v7313
    %v7393 = vunpack.c.h.b16 %v7313
    %v7394 = vunpack.c.l.b16 %v7314
    %v7395 = vunpack.c.h.b16 %v7314
    %v7396 = vunpack.c.l.b16 %v7315
    %v7397 = vunpack.c.h.b16 %v7315
    %v7398 = vunpack.c.l.b16 %v7316
    %v7399 = vunpack.c.h.b16 %v7316
    %v7400 = vunpack.c.l.b16 %v7317
    %v7401 = vunpack.c.h.b16 %v7317
    %v7402 = vunpack.c.l.b16 %v7318
    %v7403 = vunpack.c.h.b16 %v7318
    %v7404 = vunpack.c.l.b16 %v7319
    %v7405 = vunpack.c.h.b16 %v7319
    %v7406 = vunpack.c.l.b16 %v7320
    %v7407 = vunpack.c.h.b16 %v7320
    %v7408 = vunpack.c.l.b16 %v7321
    %v7409 = vunpack.c.h.b16 %v7321
    %v7410 = vunpack.c.l.b16 %v7322
    %v7411 = vunpack.c.h.b16 %v7322
    %v7412 = vunpack.c.l.b16 %v7323
    %v7413 = vunpack.c.h.b16 %v7323
    %v7414 = vunpack.c.l.b16 %v7324
    %v7415 = vunpack.c.h.b16 %v7324
    %v7416 = vunpack.c.l.b16 %v7325
    %v7417 = vunpack.c.h.b16 %v7325
    %v7418 = vunpack.c.l.b16 %v7326
    %v7419 = vunpack.c.h.b16 %v7326
    %v7420 = vunpack.c.l.b16 %v7327
    %v7421 = vunpack.c.h.b16 %v7327
    %v7422 = vunpack.c.l.b16 %v7328
    %v7423 = vunpack.c.h.b16 %v7328
    %v7424 = vunpack.c.l.b16 %v7329
    %v7425 = vunpack.c.h.b16 %v7329
    %v7426 = vpack.c.b16 %v7366, %v7362
    %v7427 = vpack.c.b16 %v7367, %v7363
    %v7428 = vpack.c.b16 %v7368, %v7364
    %v7429 = vpack.c.b16 %v7369, %v7365
    %v7430 = vpack.c.b16 %v7374, %v7370
    %v7431 = vpack.c.b16 %v7375, %v7371
    %v7432 = vpack.c.b16 %v7376, %v7372
    %v7433 = vpack.c.b16 %v7377, %v7373
    %v7434 = vpack.c.b16 %v7382, %v7378
    %v7435 = vpack.c.b16 %v7383, %v7379
    %v7436 = vpack.c.b16 %v7384, %v7380
    %v7437 = vpack.c.b16 %v7385, %v7381
    %v7438 = vpack.c.b16 %v7390, %v7386
    %v7439 = vpack.c.b16 %v7391, %v7387
    %v7440 = vpack.c.b16 %v7392, %v7388
    %v7441 = vpack.c.b16 %v7393, %v7389
    %v7442 = vpack.c.b16 %v7398, %v7394
    %v7443 = vpack.c.b16 %v7399, %v7395
    %v7444 = vpack.c.b16 %v7400, %v7396
    %v7445 = vpack.c.b16 %v7401, %v7397
    %v7446 = vpack.c.b16 %v7406, %v7402
    %v7447 = vpack.c.b16 %v7407, %v7403
    %v7448 = vpack.c.b16 %v7408, %v7404
    %v7449 = vpack.c.b16 %v7409, %v7405
    %v7450 = vpack.c.b16 %v7414, %v7410
    %v7451 = vpack.c.b16 %v7415, %v7411
    %v7452 = vpack.c.b16 %v7416, %v7412
    %v7453 = vpack.c.b16 %v7417, %v7413
    %v7454 = vpack.c.b16 %v7422, %v7418
    %v7455 = vpack.c.b16 %v7423, %v7419
    %v7456 = vpack.c.b16 %v7424, %v7420
    %v7457 = vpack.c.b16 %v7425, %v7421
    %7490 = vmatpush.bf16.msra.mxu0 %v7454
    %7491 = vmatpush.bf16.msra.mxu0 %v7450
    %7492 = vmatpush.bf16.msra.mxu0 %v7446
    %7493 = vmatpush.bf16.msra.mxu0 %v7442
    %7494 = vmatpush.bf16.msra.mxu0 %v7438
    %7495 = vmatpush.bf16.msra.mxu0 %v7434
    %7496 = vmatpush.bf16.msra.mxu0 %v7430
    %7497 = vmatpush.bf16.msra.mxu0 %v7426
    %7498 = vmatmul.bf16.gmra.mxu0 %v7296
    %v7499 = vpop.f32.mrf.mxu0
    %v7500 = vadd.f32 0.0, %v7499
    %v7501 = vpop.f32.mrf.mxu0
    %7502 = vdwg.mxu0
    %7503 = vmatpush.bf16.msra.mxu0 %v7455
    %7504 = vmatpush.bf16.msra.mxu0 %v7451
    %7505 = vmatpush.bf16.msra.mxu0 %v7447
    %7506 = vmatpush.bf16.msra.mxu0 %v7443
    %7507 = vmatpush.bf16.msra.mxu0 %v7439
    %7508 = vmatpush.bf16.msra.mxu0 %v7435
    %7509 = vmatpush.bf16.msra.mxu0 %v7431
    %7510 = vmatpush.bf16.msra.mxu0 %v7427
    %7511 = vmatmul.bf16.gmra.mxu0 %v7296
    %v7512 = vpop.f32.mrf.mxu0
    %v7513 = vadd.f32 0.0, %v7512
    %v7514 = vpop.f32.mrf.mxu0
    %7515 = vdwg.mxu0
    %7516 = vmatpush.bf16.msra.mxu0 %v7456
    %7517 = vmatpush.bf16.msra.mxu0 %v7452
    %7518 = vmatpush.bf16.msra.mxu0 %v7448
    %7519 = vmatpush.bf16.msra.mxu0 %v7444
    %7520 = vmatpush.bf16.msra.mxu0 %v7440
    %7521 = vmatpush.bf16.msra.mxu0 %v7436
    %7522 = vmatpush.bf16.msra.mxu0 %v7432
    %7523 = vmatpush.bf16.msra.mxu0 %v7428
    %7524 = vmatmul.bf16.gmra.mxu0 %v7296
    %v7525 = vpop.f32.mrf.mxu0
    %v7526 = vadd.f32 0.0, %v7525
    %v7527 = vpop.f32.mrf.mxu0
    %7528 = vdwg.mxu0
    %7529 = vmatpush.bf16.msra.mxu0 %v7457
    %7530 = vmatpush.bf16.msra.mxu0 %v7453
    %7531 = vmatpush.bf16.msra.mxu0 %v7449
    %7532 = vmatpush.bf16.msra.mxu0 %v7445
    %7533 = vmatpush.bf16.msra.mxu0 %v7441
    %7534 = vmatpush.bf16.msra.mxu0 %v7437
    %7535 = vmatpush.bf16.msra.mxu0 %v7433
    %7536 = vmatpush.bf16.msra.mxu0 %v7429
    %7537 = vmatmul.bf16.gmra.mxu0 %v7296
    %v7538 = vpop.f32.mrf.mxu0
    %v7539 = vadd.f32 0.0, %v7538
    %v7540 = vpop.f32.mrf.mxu0
    %7541 = vdwg.mxu0
    %v7542 = vadd.f32 %v7275, %v7500
    %v7543 = vadd.f32 %v7276, %v7513
    %v7544 = vadd.f32 %v7277, %v7526
    %v7545 = vadd.f32 %v7278, %v7539
    %v7546 = vld [vmem:[%s7011 + $0x2] sm:$0x3]
    %v7547 = vld [vmem:[%s7011 + $0x6] sm:$0x3]
    %v7548 = vld [vmem:[%s7011 + $0x12] sm:$0x3]
    %v7549 = vld [vmem:[%s7011 + $0x16] sm:$0x3]
    %7554 = vst [vmem:[#allocation1] ss:$4 sm:$0xff] %v7546
    %s7555 = scalar_lea.vmem [#allocation1], 1
    %7556 = vst [vmem:[%s7555] ss:$4 sm:$0xff] %v7547
    %s7557 = scalar_lea.vmem [#allocation1], 2
    %7558 = vst [vmem:[%s7557] ss:$4 sm:$0xff] %v7548
    %s7559 = scalar_lea.vmem [#allocation1], 3
    %7560 = vst [vmem:[%s7559] ss:$4 sm:$0xff] %v7549
    %v7561 = vld.sshfl [vmem:[#allocation1] sm:$0xff pattern:$0x73625140]
    %v7563 = vpack.c.bf16 %v7561, %v7561
    %s7564 = scalar_lea.vmem [#allocation16], 2048
    %v7565 = vld [vmem:[%s7564] sm:$0xff]
    %v7566 = vld [vmem:[%s7564 + $0x8] sm:$0xff]
    %v7567 = vld [vmem:[%s7564 + $0x10] sm:$0xff]
    %v7568 = vld [vmem:[%s7564 + $0x18] sm:$0xff]
    %v7569 = vld [vmem:[%s7564 + $0x20] sm:$0xff]
    %v7570 = vld [vmem:[%s7564 + $0x28] sm:$0xff]
    %v7571 = vld [vmem:[%s7564 + $0x30] sm:$0xff]
    %v7572 = vld [vmem:[%s7564 + $0x38] sm:$0xff]
    %v7573 = vld [vmem:[%s7564 + $0x40] sm:$0xff]
    %v7574 = vld [vmem:[%s7564 + $0x48] sm:$0xff]
    %v7575 = vld [vmem:[%s7564 + $0x50] sm:$0xff]
    %v7576 = vld [vmem:[%s7564 + $0x58] sm:$0xff]
    %v7577 = vld [vmem:[%s7564 + $0x60] sm:$0xff]
    %v7578 = vld [vmem:[%s7564 + $0x68] sm:$0xff]
    %v7579 = vld [vmem:[%s7564 + $0x70] sm:$0xff]
    %v7580 = vld [vmem:[%s7564 + $0x78] sm:$0xff]
    %v7581 = vld [vmem:[%s7564 + $0x80] sm:$0xff]
    %v7582 = vld [vmem:[%s7564 + $0x88] sm:$0xff]
    %v7583 = vld [vmem:[%s7564 + $0x90] sm:$0xff]
    %v7584 = vld [vmem:[%s7564 + $0x98] sm:$0xff]
    %v7585 = vld [vmem:[%s7564 + $0xa0] sm:$0xff]
    %v7586 = vld [vmem:[%s7564 + $0xa8] sm:$0xff]
    %v7587 = vld [vmem:[%s7564 + $0xb0] sm:$0xff]
    %v7588 = vld [vmem:[%s7564 + $0xb8] sm:$0xff]
    %v7589 = vld [vmem:[%s7564 + $0xc0] sm:$0xff]
    %v7590 = vld [vmem:[%s7564 + $0xc8] sm:$0xff]
    %v7591 = vld [vmem:[%s7564 + $0xd0] sm:$0xff]
    %v7592 = vld [vmem:[%s7564 + $0xd8] sm:$0xff]
    %v7593 = vld [vmem:[%s7564 + $0xe0] sm:$0xff]
    %v7594 = vld [vmem:[%s7564 + $0xe8] sm:$0xff]
    %v7595 = vld [vmem:[%s7564 + $0xf0] sm:$0xff]
    %v7596 = vld [vmem:[%s7564 + $0xf8] sm:$0xff]
    %v7629 = vunpack.c.l.b16 %v7565
    %v7630 = vunpack.c.h.b16 %v7565
    %v7631 = vunpack.c.l.b16 %v7566
    %v7632 = vunpack.c.h.b16 %v7566
    %v7633 = vunpack.c.l.b16 %v7567
    %v7634 = vunpack.c.h.b16 %v7567
    %v7635 = vunpack.c.l.b16 %v7568
    %v7636 = vunpack.c.h.b16 %v7568
    %v7637 = vunpack.c.l.b16 %v7569
    %v7638 = vunpack.c.h.b16 %v7569
    %v7639 = vunpack.c.l.b16 %v7570
    %v7640 = vunpack.c.h.b16 %v7570
    %v7641 = vunpack.c.l.b16 %v7571
    %v7642 = vunpack.c.h.b16 %v7571
    %v7643 = vunpack.c.l.b16 %v7572
    %v7644 = vunpack.c.h.b16 %v7572
    %v7645 = vunpack.c.l.b16 %v7573
    %v7646 = vunpack.c.h.b16 %v7573
    %v7647 = vunpack.c.l.b16 %v7574
    %v7648 = vunpack.c.h.b16 %v7574
    %v7649 = vunpack.c.l.b16 %v7575
    %v7650 = vunpack.c.h.b16 %v7575
    %v7651 = vunpack.c.l.b16 %v7576
    %v7652 = vunpack.c.h.b16 %v7576
    %v7653 = vunpack.c.l.b16 %v7577
    %v7654 = vunpack.c.h.b16 %v7577
    %v7655 = vunpack.c.l.b16 %v7578
    %v7656 = vunpack.c.h.b16 %v7578
    %v7657 = vunpack.c.l.b16 %v7579
    %v7658 = vunpack.c.h.b16 %v7579
    %v7659 = vunpack.c.l.b16 %v7580
    %v7660 = vunpack.c.h.b16 %v7580
    %v7661 = vunpack.c.l.b16 %v7581
    %v7662 = vunpack.c.h.b16 %v7581
    %v7663 = vunpack.c.l.b16 %v7582
    %v7664 = vunpack.c.h.b16 %v7582
    %v7665 = vunpack.c.l.b16 %v7583
    %v7666 = vunpack.c.h.b16 %v7583
    %v7667 = vunpack.c.l.b16 %v7584
    %v7668 = vunpack.c.h.b16 %v7584
    %v7669 = vunpack.c.l.b16 %v7585
    %v7670 = vunpack.c.h.b16 %v7585
    %v7671 = vunpack.c.l.b16 %v7586
    %v7672 = vunpack.c.h.b16 %v7586
    %v7673 = vunpack.c.l.b16 %v7587
    %v7674 = vunpack.c.h.b16 %v7587
    %v7675 = vunpack.c.l.b16 %v7588
    %v7676 = vunpack.c.h.b16 %v7588
    %v7677 = vunpack.c.l.b16 %v7589
    %v7678 = vunpack.c.h.b16 %v7589
    %v7679 = vunpack.c.l.b16 %v7590
    %v7680 = vunpack.c.h.b16 %v7590
    %v7681 = vunpack.c.l.b16 %v7591
    %v7682 = vunpack.c.h.b16 %v7591
    %v7683 = vunpack.c.l.b16 %v7592
    %v7684 = vunpack.c.h.b16 %v7592
    %v7685 = vunpack.c.l.b16 %v7593
    %v7686 = vunpack.c.h.b16 %v7593
    %v7687 = vunpack.c.l.b16 %v7594
    %v7688 = vunpack.c.h.b16 %v7594
    %v7689 = vunpack.c.l.b16 %v7595
    %v7690 = vunpack.c.h.b16 %v7595
    %v7691 = vunpack.c.l.b16 %v7596
    %v7692 = vunpack.c.h.b16 %v7596
    %v7693 = vpack.c.b16 %v7633, %v7629
    %v7694 = vpack.c.b16 %v7634, %v7630
    %v7695 = vpack.c.b16 %v7635, %v7631
    %v7696 = vpack.c.b16 %v7636, %v7632
    %v7697 = vpack.c.b16 %v7641, %v7637
    %v7698 = vpack.c.b16 %v7642, %v7638
    %v7699 = vpack.c.b16 %v7643, %v7639
    %v7700 = vpack.c.b16 %v7644, %v7640
    %v7701 = vpack.c.b16 %v7649, %v7645
    %v7702 = vpack.c.b16 %v7650, %v7646
    %v7703 = vpack.c.b16 %v7651, %v7647
    %v7704 = vpack.c.b16 %v7652, %v7648
    %v7705 = vpack.c.b16 %v7657, %v7653
    %v7706 = vpack.c.b16 %v7658, %v7654
    %v7707 = vpack.c.b16 %v7659, %v7655
    %v7708 = vpack.c.b16 %v7660, %v7656
    %v7709 = vpack.c.b16 %v7665, %v7661
    %v7710 = vpack.c.b16 %v7666, %v7662
    %v7711 = vpack.c.b16 %v7667, %v7663
    %v7712 = vpack.c.b16 %v7668, %v7664
    %v7713 = vpack.c.b16 %v7673, %v7669
    %v7714 = vpack.c.b16 %v7674, %v7670
    %v7715 = vpack.c.b16 %v7675, %v7671
    %v7716 = vpack.c.b16 %v7676, %v7672
    %v7717 = vpack.c.b16 %v7681, %v7677
    %v7718 = vpack.c.b16 %v7682, %v7678
    %v7719 = vpack.c.b16 %v7683, %v7679
    %v7720 = vpack.c.b16 %v7684, %v7680
    %v7721 = vpack.c.b16 %v7689, %v7685
    %v7722 = vpack.c.b16 %v7690, %v7686
    %v7723 = vpack.c.b16 %v7691, %v7687
    %v7724 = vpack.c.b16 %v7692, %v7688
    %7757 = vmatpush.bf16.msra.mxu0 %v7721
    %7758 = vmatpush.bf16.msra.mxu0 %v7717
    %7759 = vmatpush.bf16.msra.mxu0 %v7713
    %7760 = vmatpush.bf16.msra.mxu0 %v7709
    %7761 = vmatpush.bf16.msra.mxu0 %v7705
    %7762 = vmatpush.bf16.msra.mxu0 %v7701
    %7763 = vmatpush.bf16.msra.mxu0 %v7697
    %7764 = vmatpush.bf16.msra.mxu0 %v7693
    %7765 = vmatmul.bf16.gmra.mxu0 %v7563
    %v7766 = vpop.f32.mrf.mxu0
    %v7767 = vadd.f32 0.0, %v7766
    %v7768 = vpop.f32.mrf.mxu0
    %7769 = vdwg.mxu0
    %7770 = vmatpush.bf16.msra.mxu0 %v7722
    %7771 = vmatpush.bf16.msra.mxu0 %v7718
    %7772 = vmatpush.bf16.msra.mxu0 %v7714
    %7773 = vmatpush.bf16.msra.mxu0 %v7710
    %7774 = vmatpush.bf16.msra.mxu0 %v7706
    %7775 = vmatpush.bf16.msra.mxu0 %v7702
    %7776 = vmatpush.bf16.msra.mxu0 %v7698
    %7777 = vmatpush.bf16.msra.mxu0 %v7694
    %7778 = vmatmul.bf16.gmra.mxu0 %v7563
    %v7779 = vpop.f32.mrf.mxu0
    %v7780 = vadd.f32 0.0, %v7779
    %v7781 = vpop.f32.mrf.mxu0
    %7782 = vdwg.mxu0
    %7783 = vmatpush.bf16.msra.mxu0 %v7723
    %7784 = vmatpush.bf16.msra.mxu0 %v7719
    %7785 = vmatpush.bf16.msra.mxu0 %v7715
    %7786 = vmatpush.bf16.msra.mxu0 %v7711
    %7787 = vmatpush.bf16.msra.mxu0 %v7707
    %7788 = vmatpush.bf16.msra.mxu0 %v7703
    %7789 = vmatpush.bf16.msra.mxu0 %v7699
    %7790 = vmatpush.bf16.msra.mxu0 %v7695
    %7791 = vmatmul.bf16.gmra.mxu0 %v7563
    %v7792 = vpop.f32.mrf.mxu0
    %v7793 = vadd.f32 0.0, %v7792
    %v7794 = vpop.f32.mrf.mxu0
    %7795 = vdwg.mxu0
    %7796 = vmatpush.bf16.msra.mxu0 %v7724
    %7797 = vmatpush.bf16.msra.mxu0 %v7720
    %7798 = vmatpush.bf16.msra.mxu0 %v7716
    %7799 = vmatpush.bf16.msra.mxu0 %v7712
    %7800 = vmatpush.bf16.msra.mxu0 %v7708
    %7801 = vmatpush.bf16.msra.mxu0 %v7704
    %7802 = vmatpush.bf16.msra.mxu0 %v7700
    %7803 = vmatpush.bf16.msra.mxu0 %v7696
    %7804 = vmatmul.bf16.gmra.mxu0 %v7563
    %v7805 = vpop.f32.mrf.mxu0
    %v7806 = vadd.f32 0.0, %v7805
    %v7807 = vpop.f32.mrf.mxu0
    %7808 = vdwg.mxu0
    %v7809 = vadd.f32 %v7542, %v7767
    %v7810 = vadd.f32 %v7543, %v7780
    %v7811 = vadd.f32 %v7544, %v7793
    %v7812 = vadd.f32 %v7545, %v7806
    %v7813 = vld [vmem:[#allocation17] sm:$0xf]
    %v7815 = vperm.slane %v7813, 0
    %v7816 = vperm.slane %v7813, 1
    %v7817 = vperm.slane %v7813, 2
    %v7818 = vperm.slane %v7813, 3
    %v7823 = vadd.f32 %v7809, %v7815
    %v7824 = vadd.f32 %v7810, %v7816
    %v7825 = vadd.f32 %v7811, %v7817
    %v7826 = vadd.f32 %v7812, %v7818
    %v7827 = vmax.f32 %v7823, 0.0
    %v7828 = vmax.f32 %v7824, 0.0
    %v7829 = vmax.f32 %v7825, 0.0
    %v7830 = vmax.f32 %v7826, 0.0
    %v7835 = vrot.slane %v7828, 4
    %v7836 = vrot.slane %v7830, 4
    %v7837 = vsel %vm5291, %v7827, %v7835
    %v7838 = vsel %vm5291, %v7829, %v7836
    %v7839 = vsel %vm5291, %v7835, %v7827
    %v7840 = vrot.slane %v7839, 4
    %v7841 = vsel %vm5291, %v7836, %v7829
    %v7842 = vrot.slane %v7841, 4
    %7843 = vst [vmem:[#allocation1] ss:$2 sm:$0xff] %v7837
    %s7844 = scalar_lea.vmem [#allocation1], 16
    %7845 = vst [vmem:[%s7844] ss:$2 sm:$0xff] %v7838
    %v7846 = vld.sshfl [vmem:[#allocation1] sm:$0xff pattern:$0x75316420]
    %v7847 = vld.sshfl [vmem:[#allocation1 + $0x8] sm:$0xff pattern:$0x75316420]
    %v7848 = vld.sshfl [vmem:[#allocation1 + $0x10] sm:$0xff pattern:$0x75316420]
    %v7849 = vld.sshfl [vmem:[#allocation1 + $0x18] sm:$0xff pattern:$0x75316420]
    %s7850 = scalar_lea.vmem [#allocation1], 32
    %7851 = vst [vmem:[%s7850] ss:$2 sm:$0xff] %v7840
    %s7852 = scalar_lea.vmem [#allocation1], 48
    %7853 = vst [vmem:[%s7852] ss:$2 sm:$0xff] %v7842
    %v7854 = vld.sshfl [vmem:[#allocation1 + $0x20] sm:$0xff pattern:$0x75316420]
    %v7855 = vld.sshfl [vmem:[#allocation1 + $0x28] sm:$0xff pattern:$0x75316420]
    %v7856 = vld.sshfl [vmem:[#allocation1 + $0x30] sm:$0xff pattern:$0x75316420]
    %v7857 = vld.sshfl [vmem:[#allocation1 + $0x38] sm:$0xff pattern:$0x75316420]
    %v7866 = vsel %vm5291, %v7846, 0.0
    %v7867 = vrot.slane %v7866, 4
    %v7868 = vadd.f32 %v7866, %v7867
    %v7869 = vrot.slane %v7868, 2
    %v7870 = vadd.f32 %v7868, %v7869
    %v7871 = vrot.slane %v7870, 1
    %v7872 = vadd.f32 %v7870, %v7871
    %v7873 = vsel %vm5291, %v7847, 0.0
    %v7874 = vrot.slane %v7873, 4
    %v7875 = vadd.f32 %v7873, %v7874
    %v7876 = vrot.slane %v7875, 2
    %v7877 = vadd.f32 %v7875, %v7876
    %v7878 = vrot.slane %v7877, 1
    %v7879 = vadd.f32 %v7877, %v7878
    %v7880 = vsel %vm5291, %v7848, 0.0
    %v7881 = vrot.slane %v7880, 4
    %v7882 = vadd.f32 %v7880, %v7881
    %v7883 = vrot.slane %v7882, 2
    %v7884 = vadd.f32 %v7882, %v7883
    %v7885 = vrot.slane %v7884, 1
    %v7886 = vadd.f32 %v7884, %v7885
    %v7887 = vsel %vm5291, %v7849, 0.0
    %v7888 = vrot.slane %v7887, 4
    %v7889 = vadd.f32 %v7887, %v7888
    %v7890 = vrot.slane %v7889, 2
    %v7891 = vadd.f32 %v7889, %v7890
    %v7892 = vrot.slane %v7891, 1
    %v7893 = vadd.f32 %v7891, %v7892
    %v7894 = vsel %vm5291, %v7854, 0.0
    %v7895 = vrot.slane %v7894, 4
    %v7896 = vadd.f32 %v7894, %v7895
    %v7897 = vrot.slane %v7896, 2
    %v7898 = vadd.f32 %v7896, %v7897
    %v7899 = vrot.slane %v7898, 1
    %v7900 = vadd.f32 %v7898, %v7899
    %v7901 = vsel %vm5291, %v7855, 0.0
    %v7902 = vrot.slane %v7901, 4
    %v7903 = vadd.f32 %v7901, %v7902
    %v7904 = vrot.slane %v7903, 2
    %v7905 = vadd.f32 %v7903, %v7904
    %v7906 = vrot.slane %v7905, 1
    %v7907 = vadd.f32 %v7905, %v7906
    %v7908 = vsel %vm5291, %v7856, 0.0
    %v7909 = vrot.slane %v7908, 4
    %v7910 = vadd.f32 %v7908, %v7909
    %v7911 = vrot.slane %v7910, 2
    %v7912 = vadd.f32 %v7910, %v7911
    %v7913 = vrot.slane %v7912, 1
    %v7914 = vadd.f32 %v7912, %v7913
    %v7915 = vsel %vm5291, %v7857, 0.0
    %v7916 = vrot.slane %v7915, 4
    %v7917 = vadd.f32 %v7915, %v7916
    %v7918 = vrot.slane %v7917, 2
    %v7919 = vadd.f32 %v7917, %v7918
    %v7920 = vrot.slane %v7919, 1
    %v7921 = vadd.f32 %v7919, %v7920
    %v7922 = vrcp.pop 4.0
    %v7923 = vmul.f32 4.0, %v7922
    %v7924 = vsub.f32 1.0, %v7923
    %v7925 = vmul.f32 %v7922, %v7924
    %v7926 = vadd.f32 %v7922, %v7925
    %vm7927 = vweird.f32 %v7922
    %v7928 = vsel %vm7927, %v7922, %v7926
    %v7929 = vmul.f32 %v7872, %v7928
    %v7930 = vmul.f32 %v7879, %v7928
    %v7931 = vmul.f32 %v7886, %v7928
    %v7932 = vmul.f32 %v7893, %v7928
    %v7933 = vmul.f32 %v7900, %v7928
    %v7934 = vmul.f32 %v7907, %v7928
    %v7935 = vmul.f32 %v7914, %v7928
    %v7936 = vmul.f32 %v7921, %v7928
    %v7937 = vpack.c.bf16 %v7929, %v7929
    %v7938 = vpack.c.bf16 %v7930, %v7930
    %v7939 = vpack.c.bf16 %v7931, %v7931
    %v7940 = vpack.c.bf16 %v7932, %v7932
    %v7941 = vpack.c.bf16 %v7933, %v7933
    %v7942 = vpack.c.bf16 %v7934, %v7934
    %v7943 = vpack.c.bf16 %v7935, %v7935
    %v7944 = vpack.c.bf16 %v7936, %v7936
    %v7945 = vld [vmem:[#allocation19] sm:$0xff]
    %v7946 = vld [vmem:[#allocation19 + $0x8] sm:$0xff]
    %v7947 = vld [vmem:[#allocation19 + $0x10] sm:$0xff]
    %v7948 = vld [vmem:[#allocation19 + $0x18] sm:$0xff]
    %v7949 = vld [vmem:[#allocation19 + $0x20] sm:$0xff]
    %v7950 = vld [vmem:[#allocation19 + $0x28] sm:$0xff]
    %v7951 = vld [vmem:[#allocation19 + $0x30] sm:$0xff]
    %v7952 = vld [vmem:[#allocation19 + $0x38] sm:$0xff]
    %v7953 = vld [vmem:[#allocation19 + $0x40] sm:$0xff]
    %v7954 = vld [vmem:[#allocation19 + $0x48] sm:$0xff]
    %v7955 = vld [vmem:[#allocation19 + $0x50] sm:$0xff]
    %v7956 = vld [vmem:[#allocation19 + $0x58] sm:$0xff]
    %v7957 = vld [vmem:[#allocation19 + $0x60] sm:$0xff]
    %v7958 = vld [vmem:[#allocation19 + $0x68] sm:$0xff]
    %v7959 = vld [vmem:[#allocation19 + $0x70] sm:$0xff]
    %v7960 = vld [vmem:[#allocation19 + $0x78] sm:$0xff]
    %v7961 = vld [vmem:[#allocation19 + $0x80] sm:$0xff]
    %v7962 = vld [vmem:[#allocation19 + $0x88] sm:$0xff]
    %v7963 = vld [vmem:[#allocation19 + $0x90] sm:$0xff]
    %v7964 = vld [vmem:[#allocation19 + $0x98] sm:$0xff]
    %v7965 = vld [vmem:[#allocation19 + $0xa0] sm:$0xff]
    %v7966 = vld [vmem:[#allocation19 + $0xa8] sm:$0xff]
    %v7967 = vld [vmem:[#allocation19 + $0xb0] sm:$0xff]
    %v7968 = vld [vmem:[#allocation19 + $0xb8] sm:$0xff]
    %v7969 = vld [vmem:[#allocation19 + $0xc0] sm:$0xff]
    %v7970 = vld [vmem:[#allocation19 + $0xc8] sm:$0xff]
    %v7971 = vld [vmem:[#allocation19 + $0xd0] sm:$0xff]
    %v7972 = vld [vmem:[#allocation19 + $0xd8] sm:$0xff]
    %v7973 = vld [vmem:[#allocation19 + $0xe0] sm:$0xff]
    %v7974 = vld [vmem:[#allocation19 + $0xe8] sm:$0xff]
    %v7975 = vld [vmem:[#allocation19 + $0xf0] sm:$0xff]
    %v7976 = vld [vmem:[#allocation19 + $0xf8] sm:$0xff]
    %v7977 = vld [vmem:[#allocation19 + $0x100] sm:$0xff]
    %v7978 = vld [vmem:[#allocation19 + $0x108] sm:$0xff]
    %v7979 = vld [vmem:[#allocation19 + $0x110] sm:$0xff]
    %v7980 = vld [vmem:[#allocation19 + $0x118] sm:$0xff]
    %v7981 = vld [vmem:[#allocation19 + $0x120] sm:$0xff]
    %v7982 = vld [vmem:[#allocation19 + $0x128] sm:$0xff]
    %v7983 = vld [vmem:[#allocation19 + $0x130] sm:$0xff]
    %v7984 = vld [vmem:[#allocation19 + $0x138] sm:$0xff]
    %v7985 = vld [vmem:[#allocation19 + $0x140] sm:$0xff]
    %v7986 = vld [vmem:[#allocation19 + $0x148] sm:$0xff]
    %v7987 = vld [vmem:[#allocation19 + $0x150] sm:$0xff]
    %v7988 = vld [vmem:[#allocation19 + $0x158] sm:$0xff]
    %v7989 = vld [vmem:[#allocation19 + $0x160] sm:$0xff]
    %v7990 = vld [vmem:[#allocation19 + $0x168] sm:$0xff]
    %v7991 = vld [vmem:[#allocation19 + $0x170] sm:$0xff]
    %v7992 = vld [vmem:[#allocation19 + $0x178] sm:$0xff]
    %v7993 = vld [vmem:[#allocation19 + $0x180] sm:$0xff]
    %v7994 = vld [vmem:[#allocation19 + $0x188] sm:$0xff]
    %v7995 = vld [vmem:[#allocation19 + $0x190] sm:$0xff]
    %v7996 = vld [vmem:[#allocation19 + $0x198] sm:$0xff]
    %v7997 = vld [vmem:[#allocation19 + $0x1a0] sm:$0xff]
    %v7998 = vld [vmem:[#allocation19 + $0x1a8] sm:$0xff]
    %v7999 = vld [vmem:[#allocation19 + $0x1b0] sm:$0xff]
    %v8000 = vld [vmem:[#allocation19 + $0x1b8] sm:$0xff]
    %v8001 = vld [vmem:[#allocation19 + $0x1c0] sm:$0xff]
    %v8002 = vld [vmem:[#allocation19 + $0x1c8] sm:$0xff]
    %v8003 = vld [vmem:[#allocation19 + $0x1d0] sm:$0xff]
    %v8004 = vld [vmem:[#allocation19 + $0x1d8] sm:$0xff]
    %v8005 = vld [vmem:[#allocation19 + $0x1e0] sm:$0xff]
    %v8006 = vld [vmem:[#allocation19 + $0x1e8] sm:$0xff]
    %v8007 = vld [vmem:[#allocation19 + $0x1f0] sm:$0xff]
    %v8008 = vld [vmem:[#allocation19 + $0x1f8] sm:$0xff]
    %v8009 = vld [vmem:[#allocation19 + $0x200] sm:$0xff]
    %v8010 = vld [vmem:[#allocation19 + $0x208] sm:$0xff]
    %v8011 = vld [vmem:[#allocation19 + $0x210] sm:$0xff]
    %v8012 = vld [vmem:[#allocation19 + $0x218] sm:$0xff]
    %v8013 = vld [vmem:[#allocation19 + $0x220] sm:$0xff]
    %v8014 = vld [vmem:[#allocation19 + $0x228] sm:$0xff]
    %v8015 = vld [vmem:[#allocation19 + $0x230] sm:$0xff]
    %v8016 = vld [vmem:[#allocation19 + $0x238] sm:$0xff]
    %v8017 = vld [vmem:[#allocation19 + $0x240] sm:$0xff]
    %v8018 = vld [vmem:[#allocation19 + $0x248] sm:$0xff]
    %v8019 = vld [vmem:[#allocation19 + $0x250] sm:$0xff]
    %v8020 = vld [vmem:[#allocation19 + $0x258] sm:$0xff]
    %v8021 = vld [vmem:[#allocation19 + $0x260] sm:$0xff]
    %v8022 = vld [vmem:[#allocation19 + $0x268] sm:$0xff]
    %v8023 = vld [vmem:[#allocation19 + $0x270] sm:$0xff]
    %v8024 = vld [vmem:[#allocation19 + $0x278] sm:$0xff]
    %v8025 = vld [vmem:[#allocation19 + $0x280] sm:$0xff]
    %v8026 = vld [vmem:[#allocation19 + $0x288] sm:$0xff]
    %v8027 = vld [vmem:[#allocation19 + $0x290] sm:$0xff]
    %v8028 = vld [vmem:[#allocation19 + $0x298] sm:$0xff]
    %v8029 = vld [vmem:[#allocation19 + $0x2a0] sm:$0xff]
    %v8030 = vld [vmem:[#allocation19 + $0x2a8] sm:$0xff]
    %v8031 = vld [vmem:[#allocation19 + $0x2b0] sm:$0xff]
    %v8032 = vld [vmem:[#allocation19 + $0x2b8] sm:$0xff]
    %v8033 = vld [vmem:[#allocation19 + $0x2c0] sm:$0xff]
    %v8034 = vld [vmem:[#allocation19 + $0x2c8] sm:$0xff]
    %v8035 = vld [vmem:[#allocation19 + $0x2d0] sm:$0xff]
    %v8036 = vld [vmem:[#allocation19 + $0x2d8] sm:$0xff]
    %v8037 = vld [vmem:[#allocation19 + $0x2e0] sm:$0xff]
    %v8038 = vld [vmem:[#allocation19 + $0x2e8] sm:$0xff]
    %v8039 = vld [vmem:[#allocation19 + $0x2f0] sm:$0xff]
    %v8040 = vld [vmem:[#allocation19 + $0x2f8] sm:$0xff]
    %v8041 = vld [vmem:[#allocation19 + $0x300] sm:$0xff]
    %v8042 = vld [vmem:[#allocation19 + $0x308] sm:$0xff]
    %v8043 = vld [vmem:[#allocation19 + $0x310] sm:$0xff]
    %v8044 = vld [vmem:[#allocation19 + $0x318] sm:$0xff]
    %v8045 = vld [vmem:[#allocation19 + $0x320] sm:$0xff]
    %v8046 = vld [vmem:[#allocation19 + $0x328] sm:$0xff]
    %v8047 = vld [vmem:[#allocation19 + $0x330] sm:$0xff]
    %v8048 = vld [vmem:[#allocation19 + $0x338] sm:$0xff]
    %v8049 = vld [vmem:[#allocation19 + $0x340] sm:$0xff]
    %v8050 = vld [vmem:[#allocation19 + $0x348] sm:$0xff]
    %v8051 = vld [vmem:[#allocation19 + $0x350] sm:$0xff]
    %v8052 = vld [vmem:[#allocation19 + $0x358] sm:$0xff]
    %v8053 = vld [vmem:[#allocation19 + $0x360] sm:$0xff]
    %v8054 = vld [vmem:[#allocation19 + $0x368] sm:$0xff]
    %v8055 = vld [vmem:[#allocation19 + $0x370] sm:$0xff]
    %v8056 = vld [vmem:[#allocation19 + $0x378] sm:$0xff]
    %v8057 = vld [vmem:[#allocation19 + $0x380] sm:$0xff]
    %v8058 = vld [vmem:[#allocation19 + $0x388] sm:$0xff]
    %v8059 = vld [vmem:[#allocation19 + $0x390] sm:$0xff]
    %v8060 = vld [vmem:[#allocation19 + $0x398] sm:$0xff]
    %v8061 = vld [vmem:[#allocation19 + $0x3a0] sm:$0xff]
    %v8062 = vld [vmem:[#allocation19 + $0x3a8] sm:$0xff]
    %v8063 = vld [vmem:[#allocation19 + $0x3b0] sm:$0xff]
    %v8064 = vld [vmem:[#allocation19 + $0x3b8] sm:$0xff]
    %v8065 = vld [vmem:[#allocation19 + $0x3c0] sm:$0xff]
    %v8066 = vld [vmem:[#allocation19 + $0x3c8] sm:$0xff]
    %v8067 = vld [vmem:[#allocation19 + $0x3d0] sm:$0xff]
    %v8068 = vld [vmem:[#allocation19 + $0x3d8] sm:$0xff]
    %v8069 = vld [vmem:[#allocation19 + $0x3e0] sm:$0xff]
    %v8070 = vld [vmem:[#allocation19 + $0x3e8] sm:$0xff]
    %v8071 = vld [vmem:[#allocation19 + $0x3f0] sm:$0xff]
    %v8072 = vld [vmem:[#allocation19 + $0x3f8] sm:$0xff]
    %v8073 = vld [vmem:[#allocation20] sm:$0xf]
    %v8075 = vperm.slane %v8073, 0
    %v8076 = vperm.slane %v8073, 1
    %v8077 = vperm.slane %v8073, 2
    %v8078 = vperm.slane %v8073, 3
    %v8091 = vunpack.c.l.b16 %v7937
    %v8092 = vunpack.c.l.b16 %v7938
    %v8093 = vunpack.c.l.b16 %v7939
    %v8094 = vunpack.c.l.b16 %v7940
    %v8095 = vunpack.c.l.b16 %v7941
    %v8096 = vunpack.c.l.b16 %v7942
    %v8097 = vunpack.c.l.b16 %v7943
    %v8098 = vunpack.c.l.b16 %v7944
    %v8099 = vsel %vm2199, %v8095, %v8091
    %v8100 = vsel %vm2199, %v8096, %v8092
    %v8101 = vsel %vm2199, %v8097, %v8093
    %v8102 = vsel %vm2199, %v8098, %v8094
    %v8103 = vpack.c.b16 %v8099, %v8099
    %v8104 = vpack.c.b16 %v8100, %v8100
    %v8105 = vpack.c.b16 %v8101, %v8101
    %v8106 = vpack.c.b16 %v8102, %v8102
    %v8239 = vunpack.c.l.b16 %v7945
    %v8240 = vunpack.c.h.b16 %v7945
    %v8241 = vunpack.c.l.b16 %v7946
    %v8242 = vunpack.c.h.b16 %v7946
    %v8243 = vunpack.c.l.b16 %v7947
    %v8244 = vunpack.c.h.b16 %v7947
    %v8245 = vunpack.c.l.b16 %v7948
    %v8246 = vunpack.c.h.b16 %v7948
    %v8247 = vunpack.c.l.b16 %v7949
    %v8248 = vunpack.c.h.b16 %v7949
    %v8249 = vunpack.c.l.b16 %v7950
    %v8250 = vunpack.c.h.b16 %v7950
    %v8251 = vunpack.c.l.b16 %v7951
    %v8252 = vunpack.c.h.b16 %v7951
    %v8253 = vunpack.c.l.b16 %v7952
    %v8254 = vunpack.c.h.b16 %v7952
    %v8255 = vunpack.c.l.b16 %v7953
    %v8256 = vunpack.c.h.b16 %v7953
    %v8257 = vunpack.c.l.b16 %v7954
    %v8258 = vunpack.c.h.b16 %v7954
    %v8259 = vunpack.c.l.b16 %v7955
    %v8260 = vunpack.c.h.b16 %v7955
    %v8261 = vunpack.c.l.b16 %v7956
    %v8262 = vunpack.c.h.b16 %v7956
    %v8263 = vunpack.c.l.b16 %v7957
    %v8264 = vunpack.c.h.b16 %v7957
    %v8265 = vunpack.c.l.b16 %v7958
    %v8266 = vunpack.c.h.b16 %v7958
    %v8267 = vunpack.c.l.b16 %v7959
    %v8268 = vunpack.c.h.b16 %v7959
    %v8269 = vunpack.c.l.b16 %v7960
    %v8270 = vunpack.c.h.b16 %v7960
    %v8271 = vunpack.c.l.b16 %v7961
    %v8272 = vunpack.c.h.b16 %v7961
    %v8273 = vunpack.c.l.b16 %v7962
    %v8274 = vunpack.c.h.b16 %v7962
    %v8275 = vunpack.c.l.b16 %v7963
    %v8276 = vunpack.c.h.b16 %v7963
    %v8277 = vunpack.c.l.b16 %v7964
    %v8278 = vunpack.c.h.b16 %v7964
    %v8279 = vunpack.c.l.b16 %v7965
    %v8280 = vunpack.c.h.b16 %v7965
    %v8281 = vunpack.c.l.b16 %v7966
    %v8282 = vunpack.c.h.b16 %v7966
    %v8283 = vunpack.c.l.b16 %v7967
    %v8284 = vunpack.c.h.b16 %v7967
    %v8285 = vunpack.c.l.b16 %v7968
    %v8286 = vunpack.c.h.b16 %v7968
    %v8287 = vunpack.c.l.b16 %v7969
    %v8288 = vunpack.c.h.b16 %v7969
    %v8289 = vunpack.c.l.b16 %v7970
    %v8290 = vunpack.c.h.b16 %v7970
    %v8291 = vunpack.c.l.b16 %v7971
    %v8292 = vunpack.c.h.b16 %v7971
    %v8293 = vunpack.c.l.b16 %v7972
    %v8294 = vunpack.c.h.b16 %v7972
    %v8295 = vunpack.c.l.b16 %v7973
    %v8296 = vunpack.c.h.b16 %v7973
    %v8297 = vunpack.c.l.b16 %v7974
    %v8298 = vunpack.c.h.b16 %v7974
    %v8299 = vunpack.c.l.b16 %v7975
    %v8300 = vunpack.c.h.b16 %v7975
    %v8301 = vunpack.c.l.b16 %v7976
    %v8302 = vunpack.c.h.b16 %v7976
    %v8303 = vunpack.c.l.b16 %v7977
    %v8304 = vunpack.c.h.b16 %v7977
    %v8305 = vunpack.c.l.b16 %v7978
    %v8306 = vunpack.c.h.b16 %v7978
    %v8307 = vunpack.c.l.b16 %v7979
    %v8308 = vunpack.c.h.b16 %v7979
    %v8309 = vunpack.c.l.b16 %v7980
    %v8310 = vunpack.c.h.b16 %v7980
    %v8311 = vunpack.c.l.b16 %v7981
    %v8312 = vunpack.c.h.b16 %v7981
    %v8313 = vunpack.c.l.b16 %v7982
    %v8314 = vunpack.c.h.b16 %v7982
    %v8315 = vunpack.c.l.b16 %v7983
    %v8316 = vunpack.c.h.b16 %v7983
    %v8317 = vunpack.c.l.b16 %v7984
    %v8318 = vunpack.c.h.b16 %v7984
    %v8319 = vunpack.c.l.b16 %v7985
    %v8320 = vunpack.c.h.b16 %v7985
    %v8321 = vunpack.c.l.b16 %v7986
    %v8322 = vunpack.c.h.b16 %v7986
    %v8323 = vunpack.c.l.b16 %v7987
    %v8324 = vunpack.c.h.b16 %v7987
    %v8325 = vunpack.c.l.b16 %v7988
    %v8326 = vunpack.c.h.b16 %v7988
    %v8327 = vunpack.c.l.b16 %v7989
    %v8328 = vunpack.c.h.b16 %v7989
    %v8329 = vunpack.c.l.b16 %v7990
    %v8330 = vunpack.c.h.b16 %v7990
    %v8331 = vunpack.c.l.b16 %v7991
    %v8332 = vunpack.c.h.b16 %v7991
    %v8333 = vunpack.c.l.b16 %v7992
    %v8334 = vunpack.c.h.b16 %v7992
    %v8335 = vunpack.c.l.b16 %v7993
    %v8336 = vunpack.c.h.b16 %v7993
    %v8337 = vunpack.c.l.b16 %v7994
    %v8338 = vunpack.c.h.b16 %v7994
    %v8339 = vunpack.c.l.b16 %v7995
    %v8340 = vunpack.c.h.b16 %v7995
    %v8341 = vunpack.c.l.b16 %v7996
    %v8342 = vunpack.c.h.b16 %v7996
    %v8343 = vunpack.c.l.b16 %v7997
    %v8344 = vunpack.c.h.b16 %v7997
    %v8345 = vunpack.c.l.b16 %v7998
    %v8346 = vunpack.c.h.b16 %v7998
    %v8347 = vunpack.c.l.b16 %v7999
    %v8348 = vunpack.c.h.b16 %v7999
    %v8349 = vunpack.c.l.b16 %v8000
    %v8350 = vunpack.c.h.b16 %v8000
    %v8351 = vunpack.c.l.b16 %v8001
    %v8352 = vunpack.c.h.b16 %v8001
    %v8353 = vunpack.c.l.b16 %v8002
    %v8354 = vunpack.c.h.b16 %v8002
    %v8355 = vunpack.c.l.b16 %v8003
    %v8356 = vunpack.c.h.b16 %v8003
    %v8357 = vunpack.c.l.b16 %v8004
    %v8358 = vunpack.c.h.b16 %v8004
    %v8359 = vunpack.c.l.b16 %v8005
    %v8360 = vunpack.c.h.b16 %v8005
    %v8361 = vunpack.c.l.b16 %v8006
    %v8362 = vunpack.c.h.b16 %v8006
    %v8363 = vunpack.c.l.b16 %v8007
    %v8364 = vunpack.c.h.b16 %v8007
    %v8365 = vunpack.c.l.b16 %v8008
    %v8366 = vunpack.c.h.b16 %v8008
    %v8367 = vunpack.c.l.b16 %v8009
    %v8368 = vunpack.c.h.b16 %v8009
    %v8369 = vunpack.c.l.b16 %v8010
    %v8370 = vunpack.c.h.b16 %v8010
    %v8371 = vunpack.c.l.b16 %v8011
    %v8372 = vunpack.c.h.b16 %v8011
    %v8373 = vunpack.c.l.b16 %v8012
    %v8374 = vunpack.c.h.b16 %v8012
    %v8375 = vunpack.c.l.b16 %v8013
    %v8376 = vunpack.c.h.b16 %v8013
    %v8377 = vunpack.c.l.b16 %v8014
    %v8378 = vunpack.c.h.b16 %v8014
    %v8379 = vunpack.c.l.b16 %v8015
    %v8380 = vunpack.c.h.b16 %v8015
    %v8381 = vunpack.c.l.b16 %v8016
    %v8382 = vunpack.c.h.b16 %v8016
    %v8383 = vunpack.c.l.b16 %v8017
    %v8384 = vunpack.c.h.b16 %v8017
    %v8385 = vunpack.c.l.b16 %v8018
    %v8386 = vunpack.c.h.b16 %v8018
    %v8387 = vunpack.c.l.b16 %v8019
    %v8388 = vunpack.c.h.b16 %v8019
    %v8389 = vunpack.c.l.b16 %v8020
    %v8390 = vunpack.c.h.b16 %v8020
    %v8391 = vunpack.c.l.b16 %v8021
    %v8392 = vunpack.c.h.b16 %v8021
    %v8393 = vunpack.c.l.b16 %v8022
    %v8394 = vunpack.c.h.b16 %v8022
    %v8395 = vunpack.c.l.b16 %v8023
    %v8396 = vunpack.c.h.b16 %v8023
    %v8397 = vunpack.c.l.b16 %v8024
    %v8398 = vunpack.c.h.b16 %v8024
    %v8399 = vunpack.c.l.b16 %v8025
    %v8400 = vunpack.c.h.b16 %v8025
    %v8401 = vunpack.c.l.b16 %v8026
    %v8402 = vunpack.c.h.b16 %v8026
    %v8403 = vunpack.c.l.b16 %v8027
    %v8404 = vunpack.c.h.b16 %v8027
    %v8405 = vunpack.c.l.b16 %v8028
    %v8406 = vunpack.c.h.b16 %v8028
    %v8407 = vunpack.c.l.b16 %v8029
    %v8408 = vunpack.c.h.b16 %v8029
    %v8409 = vunpack.c.l.b16 %v8030
    %v8410 = vunpack.c.h.b16 %v8030
    %v8411 = vunpack.c.l.b16 %v8031
    %v8412 = vunpack.c.h.b16 %v8031
    %v8413 = vunpack.c.l.b16 %v8032
    %v8414 = vunpack.c.h.b16 %v8032
    %v8415 = vunpack.c.l.b16 %v8033
    %v8416 = vunpack.c.h.b16 %v8033
    %v8417 = vunpack.c.l.b16 %v8034
    %v8418 = vunpack.c.h.b16 %v8034
    %v8419 = vunpack.c.l.b16 %v8035
    %v8420 = vunpack.c.h.b16 %v8035
    %v8421 = vunpack.c.l.b16 %v8036
    %v8422 = vunpack.c.h.b16 %v8036
    %v8423 = vunpack.c.l.b16 %v8037
    %v8424 = vunpack.c.h.b16 %v8037
    %v8425 = vunpack.c.l.b16 %v8038
    %v8426 = vunpack.c.h.b16 %v8038
    %v8427 = vunpack.c.l.b16 %v8039
    %v8428 = vunpack.c.h.b16 %v8039
    %v8429 = vunpack.c.l.b16 %v8040
    %v8430 = vunpack.c.h.b16 %v8040
    %v8431 = vunpack.c.l.b16 %v8041
    %v8432 = vunpack.c.h.b16 %v8041
    %v8433 = vunpack.c.l.b16 %v8042
    %v8434 = vunpack.c.h.b16 %v8042
    %v8435 = vunpack.c.l.b16 %v8043
    %v8436 = vunpack.c.h.b16 %v8043
    %v8437 = vunpack.c.l.b16 %v8044
    %v8438 = vunpack.c.h.b16 %v8044
    %v8439 = vunpack.c.l.b16 %v8045
    %v8440 = vunpack.c.h.b16 %v8045
    %v8441 = vunpack.c.l.b16 %v8046
    %v8442 = vunpack.c.h.b16 %v8046
    %v8443 = vunpack.c.l.b16 %v8047
    %v8444 = vunpack.c.h.b16 %v8047
    %v8445 = vunpack.c.l.b16 %v8048
    %v8446 = vunpack.c.h.b16 %v8048
    %v8447 = vunpack.c.l.b16 %v8049
    %v8448 = vunpack.c.h.b16 %v8049
    %v8449 = vunpack.c.l.b16 %v8050
    %v8450 = vunpack.c.h.b16 %v8050
    %v8451 = vunpack.c.l.b16 %v8051
    %v8452 = vunpack.c.h.b16 %v8051
    %v8453 = vunpack.c.l.b16 %v8052
    %v8454 = vunpack.c.h.b16 %v8052
    %v8455 = vunpack.c.l.b16 %v8053
    %v8456 = vunpack.c.h.b16 %v8053
    %v8457 = vunpack.c.l.b16 %v8054
    %v8458 = vunpack.c.h.b16 %v8054
    %v8459 = vunpack.c.l.b16 %v8055
    %v8460 = vunpack.c.h.b16 %v8055
    %v8461 = vunpack.c.l.b16 %v8056
    %v8462 = vunpack.c.h.b16 %v8056
    %v8463 = vunpack.c.l.b16 %v8057
    %v8464 = vunpack.c.h.b16 %v8057
    %v8465 = vunpack.c.l.b16 %v8058
    %v8466 = vunpack.c.h.b16 %v8058
    %v8467 = vunpack.c.l.b16 %v8059
    %v8468 = vunpack.c.h.b16 %v8059
    %v8469 = vunpack.c.l.b16 %v8060
    %v8470 = vunpack.c.h.b16 %v8060
    %v8471 = vunpack.c.l.b16 %v8061
    %v8472 = vunpack.c.h.b16 %v8061
    %v8473 = vunpack.c.l.b16 %v8062
    %v8474 = vunpack.c.h.b16 %v8062
    %v8475 = vunpack.c.l.b16 %v8063
    %v8476 = vunpack.c.h.b16 %v8063
    %v8477 = vunpack.c.l.b16 %v8064
    %v8478 = vunpack.c.h.b16 %v8064
    %v8479 = vunpack.c.l.b16 %v8065
    %v8480 = vunpack.c.h.b16 %v8065
    %v8481 = vunpack.c.l.b16 %v8066
    %v8482 = vunpack.c.h.b16 %v8066
    %v8483 = vunpack.c.l.b16 %v8067
    %v8484 = vunpack.c.h.b16 %v8067
    %v8485 = vunpack.c.l.b16 %v8068
    %v8486 = vunpack.c.h.b16 %v8068
    %v8487 = vunpack.c.l.b16 %v8069
    %v8488 = vunpack.c.h.b16 %v8069
    %v8489 = vunpack.c.l.b16 %v8070
    %v8490 = vunpack.c.h.b16 %v8070
    %v8491 = vunpack.c.l.b16 %v8071
    %v8492 = vunpack.c.h.b16 %v8071
    %v8493 = vunpack.c.l.b16 %v8072
    %v8494 = vunpack.c.h.b16 %v8072
    %v8495 = vpack.c.b16 %v8243, %v8239
    %v8496 = vpack.c.b16 %v8244, %v8240
    %v8497 = vpack.c.b16 %v8245, %v8241
    %v8498 = vpack.c.b16 %v8246, %v8242
    %v8499 = vpack.c.b16 %v8251, %v8247
    %v8500 = vpack.c.b16 %v8252, %v8248
    %v8501 = vpack.c.b16 %v8253, %v8249
    %v8502 = vpack.c.b16 %v8254, %v8250
    %v8503 = vpack.c.b16 %v8259, %v8255
    %v8504 = vpack.c.b16 %v8260, %v8256
    %v8505 = vpack.c.b16 %v8261, %v8257
    %v8506 = vpack.c.b16 %v8262, %v8258
    %v8507 = vpack.c.b16 %v8267, %v8263
    %v8508 = vpack.c.b16 %v8268, %v8264
    %v8509 = vpack.c.b16 %v8269, %v8265
    %v8510 = vpack.c.b16 %v8270, %v8266
    %v8511 = vpack.c.b16 %v8275, %v8271
    %v8512 = vpack.c.b16 %v8276, %v8272
    %v8513 = vpack.c.b16 %v8277, %v8273
    %v8514 = vpack.c.b16 %v8278, %v8274
    %v8515 = vpack.c.b16 %v8283, %v8279
    %v8516 = vpack.c.b16 %v8284, %v8280
    %v8517 = vpack.c.b16 %v8285, %v8281
    %v8518 = vpack.c.b16 %v8286, %v8282
    %v8519 = vpack.c.b16 %v8291, %v8287
    %v8520 = vpack.c.b16 %v8292, %v8288
    %v8521 = vpack.c.b16 %v8293, %v8289
    %v8522 = vpack.c.b16 %v8294, %v8290
    %v8523 = vpack.c.b16 %v8299, %v8295
    %v8524 = vpack.c.b16 %v8300, %v8296
    %v8525 = vpack.c.b16 %v8301, %v8297
    %v8526 = vpack.c.b16 %v8302, %v8298
    %v8527 = vpack.c.b16 %v8307, %v8303
    %v8528 = vpack.c.b16 %v8308, %v8304
    %v8529 = vpack.c.b16 %v8309, %v8305
    %v8530 = vpack.c.b16 %v8310, %v8306
    %v8531 = vpack.c.b16 %v8315, %v8311
    %v8532 = vpack.c.b16 %v8316, %v8312
    %v8533 = vpack.c.b16 %v8317, %v8313
    %v8534 = vpack.c.b16 %v8318, %v8314
    %v8535 = vpack.c.b16 %v8323, %v8319
    %v8536 = vpack.c.b16 %v8324, %v8320
    %v8537 = vpack.c.b16 %v8325, %v8321
    %v8538 = vpack.c.b16 %v8326, %v8322
    %v8539 = vpack.c.b16 %v8331, %v8327
    %v8540 = vpack.c.b16 %v8332, %v8328
    %v8541 = vpack.c.b16 %v8333, %v8329
    %v8542 = vpack.c.b16 %v8334, %v8330
    %v8543 = vpack.c.b16 %v8339, %v8335
    %v8544 = vpack.c.b16 %v8340, %v8336
    %v8545 = vpack.c.b16 %v8341, %v8337
    %v8546 = vpack.c.b16 %v8342, %v8338
    %v8547 = vpack.c.b16 %v8347, %v8343
    %v8548 = vpack.c.b16 %v8348, %v8344
    %v8549 = vpack.c.b16 %v8349, %v8345
    %v8550 = vpack.c.b16 %v8350, %v8346
    %v8551 = vpack.c.b16 %v8355, %v8351
    %v8552 = vpack.c.b16 %v8356, %v8352
    %v8553 = vpack.c.b16 %v8357, %v8353
    %v8554 = vpack.c.b16 %v8358, %v8354
    %v8555 = vpack.c.b16 %v8363, %v8359
    %v8556 = vpack.c.b16 %v8364, %v8360
    %v8557 = vpack.c.b16 %v8365, %v8361
    %v8558 = vpack.c.b16 %v8366, %v8362
    %v8559 = vpack.c.b16 %v8371, %v8367
    %v8560 = vpack.c.b16 %v8372, %v8368
    %v8561 = vpack.c.b16 %v8373, %v8369
    %v8562 = vpack.c.b16 %v8374, %v8370
    %v8563 = vpack.c.b16 %v8379, %v8375
    %v8564 = vpack.c.b16 %v8380, %v8376
    %v8565 = vpack.c.b16 %v8381, %v8377
    %v8566 = vpack.c.b16 %v8382, %v8378
    %v8567 = vpack.c.b16 %v8387, %v8383
    %v8568 = vpack.c.b16 %v8388, %v8384
    %v8569 = vpack.c.b16 %v8389, %v8385
    %v8570 = vpack.c.b16 %v8390, %v8386
    %v8571 = vpack.c.b16 %v8395, %v8391
    %v8572 = vpack.c.b16 %v8396, %v8392
    %v8573 = vpack.c.b16 %v8397, %v8393
    %v8574 = vpack.c.b16 %v8398, %v8394
    %v8575 = vpack.c.b16 %v8403, %v8399
    %v8576 = vpack.c.b16 %v8404, %v8400
    %v8577 = vpack.c.b16 %v8405, %v8401
    %v8578 = vpack.c.b16 %v8406, %v8402
    %v8579 = vpack.c.b16 %v8411, %v8407
    %v8580 = vpack.c.b16 %v8412, %v8408
    %v8581 = vpack.c.b16 %v8413, %v8409
    %v8582 = vpack.c.b16 %v8414, %v8410
    %v8583 = vpack.c.b16 %v8419, %v8415
    %v8584 = vpack.c.b16 %v8420, %v8416
    %v8585 = vpack.c.b16 %v8421, %v8417
    %v8586 = vpack.c.b16 %v8422, %v8418
    %v8587 = vpack.c.b16 %v8427, %v8423
    %v8588 = vpack.c.b16 %v8428, %v8424
    %v8589 = vpack.c.b16 %v8429, %v8425
    %v8590 = vpack.c.b16 %v8430, %v8426
    %v8591 = vpack.c.b16 %v8435, %v8431
    %v8592 = vpack.c.b16 %v8436, %v8432
    %v8593 = vpack.c.b16 %v8437, %v8433
    %v8594 = vpack.c.b16 %v8438, %v8434
    %v8595 = vpack.c.b16 %v8443, %v8439
    %v8596 = vpack.c.b16 %v8444, %v8440
    %v8597 = vpack.c.b16 %v8445, %v8441
    %v8598 = vpack.c.b16 %v8446, %v8442
    %v8599 = vpack.c.b16 %v8451, %v8447
    %v8600 = vpack.c.b16 %v8452, %v8448
    %v8601 = vpack.c.b16 %v8453, %v8449
    %v8602 = vpack.c.b16 %v8454, %v8450
    %v8603 = vpack.c.b16 %v8459, %v8455
    %v8604 = vpack.c.b16 %v8460, %v8456
    %v8605 = vpack.c.b16 %v8461, %v8457
    %v8606 = vpack.c.b16 %v8462, %v8458
    %v8607 = vpack.c.b16 %v8467, %v8463
    %v8608 = vpack.c.b16 %v8468, %v8464
    %v8609 = vpack.c.b16 %v8469, %v8465
    %v8610 = vpack.c.b16 %v8470, %v8466
    %v8611 = vpack.c.b16 %v8475, %v8471
    %v8612 = vpack.c.b16 %v8476, %v8472
    %v8613 = vpack.c.b16 %v8477, %v8473
    %v8614 = vpack.c.b16 %v8478, %v8474
    %v8615 = vpack.c.b16 %v8483, %v8479
    %v8616 = vpack.c.b16 %v8484, %v8480
    %v8617 = vpack.c.b16 %v8485, %v8481
    %v8618 = vpack.c.b16 %v8486, %v8482
    %v8619 = vpack.c.b16 %v8491, %v8487
    %v8620 = vpack.c.b16 %v8492, %v8488
    %v8621 = vpack.c.b16 %v8493, %v8489
    %v8622 = vpack.c.b16 %v8494, %v8490
    %8751 = vmatpush.bf16.msra.mxu0 %v8523
    %8752 = vmatpush.bf16.msra.mxu0 %v8519
    %8753 = vmatpush.bf16.msra.mxu0 %v8515
    %8754 = vmatpush.bf16.msra.mxu0 %v8511
    %8755 = vmatpush.bf16.msra.mxu0 %v8507
    %8756 = vmatpush.bf16.msra.mxu0 %v8503
    %8757 = vmatpush.bf16.msra.mxu0 %v8499
    %8758 = vmatpush.bf16.msra.mxu0 %v8495
    %8759 = vmatmul.bf16.gmra.mxu0 %v8103
    %v8760 = vpop.f32.mrf.mxu0
    %v8761 = vadd.f32 %v8075, %v8760
    %v8762 = vpop.f32.mrf.mxu0
    %8763 = vdwg.mxu0
    %8764 = vmatpush.bf16.msra.mxu0 %v8555
    %8765 = vmatpush.bf16.msra.mxu0 %v8551
    %8766 = vmatpush.bf16.msra.mxu0 %v8547
    %8767 = vmatpush.bf16.msra.mxu0 %v8543
    %8768 = vmatpush.bf16.msra.mxu0 %v8539
    %8769 = vmatpush.bf16.msra.mxu0 %v8535
    %8770 = vmatpush.bf16.msra.mxu0 %v8531
    %8771 = vmatpush.bf16.msra.mxu0 %v8527
    %8772 = vmatmul.bf16.gmra.mxu0 %v8104
    %v8773 = vpop.f32.mrf.mxu0
    %v8774 = vadd.f32 %v8761, %v8773
    %v8775 = vpop.f32.mrf.mxu0
    %8776 = vdwg.mxu0
    %8777 = vmatpush.bf16.msra.mxu0 %v8587
    %8778 = vmatpush.bf16.msra.mxu0 %v8583
    %8779 = vmatpush.bf16.msra.mxu0 %v8579
    %8780 = vmatpush.bf16.msra.mxu0 %v8575
    %8781 = vmatpush.bf16.msra.mxu0 %v8571
    %8782 = vmatpush.bf16.msra.mxu0 %v8567
    %8783 = vmatpush.bf16.msra.mxu0 %v8563
    %8784 = vmatpush.bf16.msra.mxu0 %v8559
    %8785 = vmatmul.bf16.gmra.mxu0 %v8105
    %v8786 = vpop.f32.mrf.mxu0
    %v8787 = vadd.f32 %v8774, %v8786
    %v8788 = vpop.f32.mrf.mxu0
    %8789 = vdwg.mxu0
    %8790 = vmatpush.bf16.msra.mxu0 %v8619
    %8791 = vmatpush.bf16.msra.mxu0 %v8615
    %8792 = vmatpush.bf16.msra.mxu0 %v8611
    %8793 = vmatpush.bf16.msra.mxu0 %v8607
    %8794 = vmatpush.bf16.msra.mxu0 %v8603
    %8795 = vmatpush.bf16.msra.mxu0 %v8599
    %8796 = vmatpush.bf16.msra.mxu0 %v8595
    %8797 = vmatpush.bf16.msra.mxu0 %v8591
    %8798 = vmatmul.bf16.gmra.mxu0 %v8106
    %v8799 = vpop.f32.mrf.mxu0
    %v8800 = vadd.f32 %v8787, %v8799
    %v8801 = vpop.f32.mrf.mxu0
    %8802 = vdwg.mxu0
    %8803 = vmatpush.bf16.msra.mxu0 %v8524
    %8804 = vmatpush.bf16.msra.mxu0 %v8520
    %8805 = vmatpush.bf16.msra.mxu0 %v8516
    %8806 = vmatpush.bf16.msra.mxu0 %v8512
    %8807 = vmatpush.bf16.msra.mxu0 %v8508
    %8808 = vmatpush.bf16.msra.mxu0 %v8504
    %8809 = vmatpush.bf16.msra.mxu0 %v8500
    %8810 = vmatpush.bf16.msra.mxu0 %v8496
    %8811 = vmatmul.bf16.gmra.mxu0 %v8103
    %v8812 = vpop.f32.mrf.mxu0
    %v8813 = vadd.f32 %v8076, %v8812
    %v8814 = vpop.f32.mrf.mxu0
    %8815 = vdwg.mxu0
    %8816 = vmatpush.bf16.msra.mxu0 %v8556
    %8817 = vmatpush.bf16.msra.mxu0 %v8552
    %8818 = vmatpush.bf16.msra.mxu0 %v8548
    %8819 = vmatpush.bf16.msra.mxu0 %v8544
    %8820 = vmatpush.bf16.msra.mxu0 %v8540
    %8821 = vmatpush.bf16.msra.mxu0 %v8536
    %8822 = vmatpush.bf16.msra.mxu0 %v8532
    %8823 = vmatpush.bf16.msra.mxu0 %v8528
    %8824 = vmatmul.bf16.gmra.mxu0 %v8104
    %v8825 = vpop.f32.mrf.mxu0
    %v8826 = vadd.f32 %v8813, %v8825
    %v8827 = vpop.f32.mrf.mxu0
    %8828 = vdwg.mxu0
    %8829 = vmatpush.bf16.msra.mxu0 %v8588
    %8830 = vmatpush.bf16.msra.mxu0 %v8584
    %8831 = vmatpush.bf16.msra.mxu0 %v8580
    %8832 = vmatpush.bf16.msra.mxu0 %v8576
    %8833 = vmatpush.bf16.msra.mxu0 %v8572
    %8834 = vmatpush.bf16.msra.mxu0 %v8568
    %8835 = vmatpush.bf16.msra.mxu0 %v8564
    %8836 = vmatpush.bf16.msra.mxu0 %v8560
    %8837 = vmatmul.bf16.gmra.mxu0 %v8105
    %v8838 = vpop.f32.mrf.mxu0
    %v8839 = vadd.f32 %v8826, %v8838
    %v8840 = vpop.f32.mrf.mxu0
    %8841 = vdwg.mxu0
    %8842 = vmatpush.bf16.msra.mxu0 %v8620
    %8843 = vmatpush.bf16.msra.mxu0 %v8616
    %8844 = vmatpush.bf16.msra.mxu0 %v8612
    %8845 = vmatpush.bf16.msra.mxu0 %v8608
    %8846 = vmatpush.bf16.msra.mxu0 %v8604
    %8847 = vmatpush.bf16.msra.mxu0 %v8600
    %8848 = vmatpush.bf16.msra.mxu0 %v8596
    %8849 = vmatpush.bf16.msra.mxu0 %v8592
    %8850 = vmatmul.bf16.gmra.mxu0 %v8106
    %v8851 = vpop.f32.mrf.mxu0
    %v8852 = vadd.f32 %v8839, %v8851
    %v8853 = vpop.f32.mrf.mxu0
    %8854 = vdwg.mxu0
    %8855 = vmatpush.bf16.msra.mxu0 %v8525
    %8856 = vmatpush.bf16.msra.mxu0 %v8521
    %8857 = vmatpush.bf16.msra.mxu0 %v8517
    %8858 = vmatpush.bf16.msra.mxu0 %v8513
    %8859 = vmatpush.bf16.msra.mxu0 %v8509
    %8860 = vmatpush.bf16.msra.mxu0 %v8505
    %8861 = vmatpush.bf16.msra.mxu0 %v8501
    %8862 = vmatpush.bf16.msra.mxu0 %v8497
    %8863 = vmatmul.bf16.gmra.mxu0 %v8103
    %v8864 = vpop.f32.mrf.mxu0
    %v8865 = vadd.f32 %v8077, %v8864
    %v8866 = vpop.f32.mrf.mxu0
    %8867 = vdwg.mxu0
    %8868 = vmatpush.bf16.msra.mxu0 %v8557
    %8869 = vmatpush.bf16.msra.mxu0 %v8553
    %8870 = vmatpush.bf16.msra.mxu0 %v8549
    %8871 = vmatpush.bf16.msra.mxu0 %v8545
    %8872 = vmatpush.bf16.msra.mxu0 %v8541
    %8873 = vmatpush.bf16.msra.mxu0 %v8537
    %8874 = vmatpush.bf16.msra.mxu0 %v8533
    %8875 = vmatpush.bf16.msra.mxu0 %v8529
    %8876 = vmatmul.bf16.gmra.mxu0 %v8104
    %v8877 = vpop.f32.mrf.mxu0
    %v8878 = vadd.f32 %v8865, %v8877
    %v8879 = vpop.f32.mrf.mxu0
    %8880 = vdwg.mxu0
    %8881 = vmatpush.bf16.msra.mxu0 %v8589
    %8882 = vmatpush.bf16.msra.mxu0 %v8585
    %8883 = vmatpush.bf16.msra.mxu0 %v8581
    %8884 = vmatpush.bf16.msra.mxu0 %v8577
    %8885 = vmatpush.bf16.msra.mxu0 %v8573
    %8886 = vmatpush.bf16.msra.mxu0 %v8569
    %8887 = vmatpush.bf16.msra.mxu0 %v8565
    %8888 = vmatpush.bf16.msra.mxu0 %v8561
    %8889 = vmatmul.bf16.gmra.mxu0 %v8105
    %v8890 = vpop.f32.mrf.mxu0
    %v8891 = vadd.f32 %v8878, %v8890
    %v8892 = vpop.f32.mrf.mxu0
    %8893 = vdwg.mxu0
    %8894 = vmatpush.bf16.msra.mxu0 %v8621
    %8895 = vmatpush.bf16.msra.mxu0 %v8617
    %8896 = vmatpush.bf16.msra.mxu0 %v8613
    %8897 = vmatpush.bf16.msra.mxu0 %v8609
    %8898 = vmatpush.bf16.msra.mxu0 %v8605
    %8899 = vmatpush.bf16.msra.mxu0 %v8601
    %8900 = vmatpush.bf16.msra.mxu0 %v8597
    %8901 = vmatpush.bf16.msra.mxu0 %v8593
    %8902 = vmatmul.bf16.gmra.mxu0 %v8106
    %v8903 = vpop.f32.mrf.mxu0
    %v8904 = vadd.f32 %v8891, %v8903
    %v8905 = vpop.f32.mrf.mxu0
    %8906 = vdwg.mxu0
    %8907 = vmatpush.bf16.msra.mxu0 %v8526
    %8908 = vmatpush.bf16.msra.mxu0 %v8522
    %8909 = vmatpush.bf16.msra.mxu0 %v8518
    %8910 = vmatpush.bf16.msra.mxu0 %v8514
    %8911 = vmatpush.bf16.msra.mxu0 %v8510
    %8912 = vmatpush.bf16.msra.mxu0 %v8506
    %8913 = vmatpush.bf16.msra.mxu0 %v8502
    %8914 = vmatpush.bf16.msra.mxu0 %v8498
    %8915 = vmatmul.bf16.gmra.mxu0 %v8103
    %v8916 = vpop.f32.mrf.mxu0
    %v8917 = vadd.f32 %v8078, %v8916
    %v8918 = vpop.f32.mrf.mxu0
    %8919 = vdwg.mxu0
    %8920 = vmatpush.bf16.msra.mxu0 %v8558
    %8921 = vmatpush.bf16.msra.mxu0 %v8554
    %8922 = vmatpush.bf16.msra.mxu0 %v8550
    %8923 = vmatpush.bf16.msra.mxu0 %v8546
    %8924 = vmatpush.bf16.msra.mxu0 %v8542
    %8925 = vmatpush.bf16.msra.mxu0 %v8538
    %8926 = vmatpush.bf16.msra.mxu0 %v8534
    %8927 = vmatpush.bf16.msra.mxu0 %v8530
    %8928 = vmatmul.bf16.gmra.mxu0 %v8104
    %v8929 = vpop.f32.mrf.mxu0
    %v8930 = vadd.f32 %v8917, %v8929
    %v8931 = vpop.f32.mrf.mxu0
    %8932 = vdwg.mxu0
    %8933 = vmatpush.bf16.msra.mxu0 %v8590
    %8934 = vmatpush.bf16.msra.mxu0 %v8586
    %8935 = vmatpush.bf16.msra.mxu0 %v8582
    %8936 = vmatpush.bf16.msra.mxu0 %v8578
    %8937 = vmatpush.bf16.msra.mxu0 %v8574
    %8938 = vmatpush.bf16.msra.mxu0 %v8570
    %8939 = vmatpush.bf16.msra.mxu0 %v8566
    %8940 = vmatpush.bf16.msra.mxu0 %v8562
    %8941 = vmatmul.bf16.gmra.mxu0 %v8105
    %v8942 = vpop.f32.mrf.mxu0
    %v8943 = vadd.f32 %v8930, %v8942
    %v8944 = vpop.f32.mrf.mxu0
    %8945 = vdwg.mxu0
    %8946 = vmatpush.bf16.msra.mxu0 %v8622
    %8947 = vmatpush.bf16.msra.mxu0 %v8618
    %8948 = vmatpush.bf16.msra.mxu0 %v8614
    %8949 = vmatpush.bf16.msra.mxu0 %v8610
    %8950 = vmatpush.bf16.msra.mxu0 %v8606
    %8951 = vmatpush.bf16.msra.mxu0 %v8602
    %8952 = vmatpush.bf16.msra.mxu0 %v8598
    %8953 = vmatpush.bf16.msra.mxu0 %v8594
    %8954 = vmatmul.bf16.gmra.mxu0 %v8106
    %v8955 = vpop.f32.mrf.mxu0
    %v8956 = vadd.f32 %v8943, %v8955
    %v8957 = vpop.f32.mrf.mxu0
    %8958 = vdwg.mxu0
    %v8959 = vld [vmem:[#allocation22] sm:$0xf]
    %v8960 = vld [vmem:[#allocation23] sm:$0xf]
    %v8961 = vsel %vm1134, %v8800, 0.0
    %v8962 = vsel %vm1134, %v8852, 0.0
    %v8963 = vadd.f32 %v8961, %v8962
    %v8964 = vsel %vm1134, %v8904, 0.0
    %v8965 = vadd.f32 %v8963, %v8964
    %v8966 = vsel %vm1134, %v8956, 0.0
    %v8967 = vadd.f32 %v8965, %v8966
    %8968 = vadd.xlane.f32.xlu0 %v8967
    %v8969 = vpop.xlane.xlu0 %8968
    %v8970 = vrcp.pop 512.0
    %v8971 = vmul.f32 512.0, %v8970
    %v8972 = vsub.f32 1.0, %v8971
    %v8973 = vmul.f32 %v8970, %v8972
    %v8974 = vadd.f32 %v8970, %v8973
    %vm8975 = vweird.f32 %v8970
    %v8976 = vsel %vm8975, %v8970, %v8974
    %v8977 = vmul.f32 %v8969, %v8976
    %v8978 = vsub.f32 %v8800, %v8977
    %v8979 = vsub.f32 %v8852, %v8977
    %v8980 = vsub.f32 %v8904, %v8977
    %v8981 = vsub.f32 %v8956, %v8977
    %v8982 = vmul.f32 %v8978, %v8978
    %v8983 = vmul.f32 %v8979, %v8979
    %v8984 = vmul.f32 %v8980, %v8980
    %v8985 = vmul.f32 %v8981, %v8981
    %v8986 = vsel %vm1134, %v8982, 0.0
    %v8987 = vsel %vm1134, %v8983, 0.0
    %v8988 = vadd.f32 %v8986, %v8987
    %v8989 = vsel %vm1134, %v8984, 0.0
    %v8990 = vadd.f32 %v8988, %v8989
    %v8991 = vsel %vm1134, %v8985, 0.0
    %v8992 = vadd.f32 %v8990, %v8991
    %8993 = vadd.xlane.f32.xlu0 %v8992
    %v8994 = vpop.xlane.xlu0 %8993
    %v8995 = vmul.f32 %v8994, %v8976
    %v8996 = vadd.f32 %v8995, 1e-05
    %v8997 = vrsqrt.pop %v8996
    %v8998 = vmul.f32 %v8997, %v8996
    %v8999 = vmul.f32 %v8998, %v8997
    %v9000 = vmul.f32 0.5, %v8999
    %v9001 = vsub.f32 1.5, %v9000
    %v9002 = vmul.f32 %v8997, %v9001
    %vm9003 = vweird.f32 %v8996
    %vm9004 = vweird.f32 %v8997
    %vm9005 = vmor %vm9003, %vm9004
    %v9006 = vsel %vm9005, %v8997, %v9002
    %v9007 = vmul.f32 %v8978, %v9006
    %v9008 = vmul.f32 %v8979, %v9006
    %v9009 = vmul.f32 %v8980, %v9006
    %v9010 = vmul.f32 %v8981, %v9006
    %v9012 = vperm.slane %v8959, 0
    %v9013 = vperm.slane %v8959, 1
    %v9014 = vperm.slane %v8959, 2
    %v9015 = vperm.slane %v8959, 3
    %v9020 = vmul.f32 %v9007, %v9012
    %v9021 = vmul.f32 %v9008, %v9013
    %v9022 = vmul.f32 %v9009, %v9014
    %v9023 = vmul.f32 %v9010, %v9015
    %v9025 = vperm.slane %v8960, 0
    %v9026 = vperm.slane %v8960, 1
    %v9027 = vperm.slane %v8960, 2
    %v9028 = vperm.slane %v8960, 3
    %v9033 = vadd.f32 %v9020, %v9025
    %v9034 = vadd.f32 %v9021, %v9026
    %v9035 = vadd.f32 %v9022, %v9027
    %v9036 = vadd.f32 %v9023, %v9028
    %v9037 = vmax.f32 %v9033, 0.0
    %v9038 = vmax.f32 %v9034, 0.0
    %v9039 = vmax.f32 %v9035, 0.0
    %v9040 = vmax.f32 %v9036, 0.0
    %v9041 = vpack.c.bf16 %v9037, %v9037
    %v9042 = vpack.c.bf16 %v9038, %v9038
    %v9043 = vpack.c.bf16 %v9039, %v9039
    %v9044 = vpack.c.bf16 %v9040, %v9040
    %v9045 = vld [vmem:[#allocation25] sm:$0xff]
    %v9046 = vld [vmem:[#allocation25 + $0x8] sm:$0xff]
    %v9047 = vld [vmem:[#allocation25 + $0x10] sm:$0xff]
    %v9048 = vld [vmem:[#allocation25 + $0x18] sm:$0xff]
    %v9049 = vld [vmem:[#allocation25 + $0x20] sm:$0xff]
    %v9050 = vld [vmem:[#allocation25 + $0x28] sm:$0xff]
    %v9051 = vld [vmem:[#allocation25 + $0x30] sm:$0xff]
    %v9052 = vld [vmem:[#allocation25 + $0x38] sm:$0xff]
    %v9053 = vld [vmem:[#allocation25 + $0x40] sm:$0xff]
    %v9054 = vld [vmem:[#allocation25 + $0x48] sm:$0xff]
    %v9055 = vld [vmem:[#allocation25 + $0x50] sm:$0xff]
    %v9056 = vld [vmem:[#allocation25 + $0x58] sm:$0xff]
    %v9057 = vld [vmem:[#allocation25 + $0x60] sm:$0xff]
    %v9058 = vld [vmem:[#allocation25 + $0x68] sm:$0xff]
    %v9059 = vld [vmem:[#allocation25 + $0x70] sm:$0xff]
    %v9060 = vld [vmem:[#allocation25 + $0x78] sm:$0xff]
    %v9061 = vld [vmem:[#allocation25 + $0x80] sm:$0xff]
    %v9062 = vld [vmem:[#allocation25 + $0x88] sm:$0xff]
    %v9063 = vld [vmem:[#allocation25 + $0x90] sm:$0xff]
    %v9064 = vld [vmem:[#allocation25 + $0x98] sm:$0xff]
    %v9065 = vld [vmem:[#allocation25 + $0xa0] sm:$0xff]
    %v9066 = vld [vmem:[#allocation25 + $0xa8] sm:$0xff]
    %v9067 = vld [vmem:[#allocation25 + $0xb0] sm:$0xff]
    %v9068 = vld [vmem:[#allocation25 + $0xb8] sm:$0xff]
    %v9069 = vld [vmem:[#allocation25 + $0xc0] sm:$0xff]
    %v9070 = vld [vmem:[#allocation25 + $0xc8] sm:$0xff]
    %v9071 = vld [vmem:[#allocation25 + $0xd0] sm:$0xff]
    %v9072 = vld [vmem:[#allocation25 + $0xd8] sm:$0xff]
    %v9073 = vld [vmem:[#allocation25 + $0xe0] sm:$0xff]
    %v9074 = vld [vmem:[#allocation25 + $0xe8] sm:$0xff]
    %v9075 = vld [vmem:[#allocation25 + $0xf0] sm:$0xff]
    %v9076 = vld [vmem:[#allocation25 + $0xf8] sm:$0xff]
    %v9077 = vld [vmem:[#allocation25 + $0x100] sm:$0xff]
    %v9078 = vld [vmem:[#allocation25 + $0x108] sm:$0xff]
    %v9079 = vld [vmem:[#allocation25 + $0x110] sm:$0xff]
    %v9080 = vld [vmem:[#allocation25 + $0x118] sm:$0xff]
    %v9081 = vld [vmem:[#allocation25 + $0x120] sm:$0xff]
    %v9082 = vld [vmem:[#allocation25 + $0x128] sm:$0xff]
    %v9083 = vld [vmem:[#allocation25 + $0x130] sm:$0xff]
    %v9084 = vld [vmem:[#allocation25 + $0x138] sm:$0xff]
    %v9085 = vld [vmem:[#allocation25 + $0x140] sm:$0xff]
    %v9086 = vld [vmem:[#allocation25 + $0x148] sm:$0xff]
    %v9087 = vld [vmem:[#allocation25 + $0x150] sm:$0xff]
    %v9088 = vld [vmem:[#allocation25 + $0x158] sm:$0xff]
    %v9089 = vld [vmem:[#allocation25 + $0x160] sm:$0xff]
    %v9090 = vld [vmem:[#allocation25 + $0x168] sm:$0xff]
    %v9091 = vld [vmem:[#allocation25 + $0x170] sm:$0xff]
    %v9092 = vld [vmem:[#allocation25 + $0x178] sm:$0xff]
    %v9093 = vld [vmem:[#allocation25 + $0x180] sm:$0xff]
    %v9094 = vld [vmem:[#allocation25 + $0x188] sm:$0xff]
    %v9095 = vld [vmem:[#allocation25 + $0x190] sm:$0xff]
    %v9096 = vld [vmem:[#allocation25 + $0x198] sm:$0xff]
    %v9097 = vld [vmem:[#allocation25 + $0x1a0] sm:$0xff]
    %v9098 = vld [vmem:[#allocation25 + $0x1a8] sm:$0xff]
    %v9099 = vld [vmem:[#allocation25 + $0x1b0] sm:$0xff]
    %v9100 = vld [vmem:[#allocation25 + $0x1b8] sm:$0xff]
    %v9101 = vld [vmem:[#allocation25 + $0x1c0] sm:$0xff]
    %v9102 = vld [vmem:[#allocation25 + $0x1c8] sm:$0xff]
    %v9103 = vld [vmem:[#allocation25 + $0x1d0] sm:$0xff]
    %v9104 = vld [vmem:[#allocation25 + $0x1d8] sm:$0xff]
    %v9105 = vld [vmem:[#allocation25 + $0x1e0] sm:$0xff]
    %v9106 = vld [vmem:[#allocation25 + $0x1e8] sm:$0xff]
    %v9107 = vld [vmem:[#allocation25 + $0x1f0] sm:$0xff]
    %v9108 = vld [vmem:[#allocation25 + $0x1f8] sm:$0xff]
    %v9109 = vld [vmem:[#allocation25 + $0x200] sm:$0xff]
    %v9110 = vld [vmem:[#allocation25 + $0x208] sm:$0xff]
    %v9111 = vld [vmem:[#allocation25 + $0x210] sm:$0xff]
    %v9112 = vld [vmem:[#allocation25 + $0x218] sm:$0xff]
    %v9113 = vld [vmem:[#allocation25 + $0x220] sm:$0xff]
    %v9114 = vld [vmem:[#allocation25 + $0x228] sm:$0xff]
    %v9115 = vld [vmem:[#allocation25 + $0x230] sm:$0xff]
    %v9116 = vld [vmem:[#allocation25 + $0x238] sm:$0xff]
    %v9117 = vld [vmem:[#allocation25 + $0x240] sm:$0xff]
    %v9118 = vld [vmem:[#allocation25 + $0x248] sm:$0xff]
    %v9119 = vld [vmem:[#allocation25 + $0x250] sm:$0xff]
    %v9120 = vld [vmem:[#allocation25 + $0x258] sm:$0xff]
    %v9121 = vld [vmem:[#allocation25 + $0x260] sm:$0xff]
    %v9122 = vld [vmem:[#allocation25 + $0x268] sm:$0xff]
    %v9123 = vld [vmem:[#allocation25 + $0x270] sm:$0xff]
    %v9124 = vld [vmem:[#allocation25 + $0x278] sm:$0xff]
    %v9125 = vld [vmem:[#allocation25 + $0x280] sm:$0xff]
    %v9126 = vld [vmem:[#allocation25 + $0x288] sm:$0xff]
    %v9127 = vld [vmem:[#allocation25 + $0x290] sm:$0xff]
    %v9128 = vld [vmem:[#allocation25 + $0x298] sm:$0xff]
    %v9129 = vld [vmem:[#allocation25 + $0x2a0] sm:$0xff]
    %v9130 = vld [vmem:[#allocation25 + $0x2a8] sm:$0xff]
    %v9131 = vld [vmem:[#allocation25 + $0x2b0] sm:$0xff]
    %v9132 = vld [vmem:[#allocation25 + $0x2b8] sm:$0xff]
    %v9133 = vld [vmem:[#allocation25 + $0x2c0] sm:$0xff]
    %v9134 = vld [vmem:[#allocation25 + $0x2c8] sm:$0xff]
    %v9135 = vld [vmem:[#allocation25 + $0x2d0] sm:$0xff]
    %v9136 = vld [vmem:[#allocation25 + $0x2d8] sm:$0xff]
    %v9137 = vld [vmem:[#allocation25 + $0x2e0] sm:$0xff]
    %v9138 = vld [vmem:[#allocation25 + $0x2e8] sm:$0xff]
    %v9139 = vld [vmem:[#allocation25 + $0x2f0] sm:$0xff]
    %v9140 = vld [vmem:[#allocation25 + $0x2f8] sm:$0xff]
    %v9141 = vld [vmem:[#allocation25 + $0x300] sm:$0xff]
    %v9142 = vld [vmem:[#allocation25 + $0x308] sm:$0xff]
    %v9143 = vld [vmem:[#allocation25 + $0x310] sm:$0xff]
    %v9144 = vld [vmem:[#allocation25 + $0x318] sm:$0xff]
    %v9145 = vld [vmem:[#allocation25 + $0x320] sm:$0xff]
    %v9146 = vld [vmem:[#allocation25 + $0x328] sm:$0xff]
    %v9147 = vld [vmem:[#allocation25 + $0x330] sm:$0xff]
    %v9148 = vld [vmem:[#allocation25 + $0x338] sm:$0xff]
    %v9149 = vld [vmem:[#allocation25 + $0x340] sm:$0xff]
    %v9150 = vld [vmem:[#allocation25 + $0x348] sm:$0xff]
    %v9151 = vld [vmem:[#allocation25 + $0x350] sm:$0xff]
    %v9152 = vld [vmem:[#allocation25 + $0x358] sm:$0xff]
    %v9153 = vld [vmem:[#allocation25 + $0x360] sm:$0xff]
    %v9154 = vld [vmem:[#allocation25 + $0x368] sm:$0xff]
    %v9155 = vld [vmem:[#allocation25 + $0x370] sm:$0xff]
    %v9156 = vld [vmem:[#allocation25 + $0x378] sm:$0xff]
    %v9157 = vld [vmem:[#allocation25 + $0x380] sm:$0xff]
    %v9158 = vld [vmem:[#allocation25 + $0x388] sm:$0xff]
    %v9159 = vld [vmem:[#allocation25 + $0x390] sm:$0xff]
    %v9160 = vld [vmem:[#allocation25 + $0x398] sm:$0xff]
    %v9161 = vld [vmem:[#allocation25 + $0x3a0] sm:$0xff]
    %v9162 = vld [vmem:[#allocation25 + $0x3a8] sm:$0xff]
    %v9163 = vld [vmem:[#allocation25 + $0x3b0] sm:$0xff]
    %v9164 = vld [vmem:[#allocation25 + $0x3b8] sm:$0xff]
    %v9165 = vld [vmem:[#allocation25 + $0x3c0] sm:$0xff]
    %v9166 = vld [vmem:[#allocation25 + $0x3c8] sm:$0xff]
    %v9167 = vld [vmem:[#allocation25 + $0x3d0] sm:$0xff]
    %v9168 = vld [vmem:[#allocation25 + $0x3d8] sm:$0xff]
    %v9169 = vld [vmem:[#allocation25 + $0x3e0] sm:$0xff]
    %v9170 = vld [vmem:[#allocation25 + $0x3e8] sm:$0xff]
    %v9171 = vld [vmem:[#allocation25 + $0x3f0] sm:$0xff]
    %v9172 = vld [vmem:[#allocation25 + $0x3f8] sm:$0xff]
    %v9173 = vld [vmem:[#allocation26] sm:$0xf]
    %v9175 = vperm.slane %v9173, 0
    %v9176 = vperm.slane %v9173, 1
    %v9177 = vperm.slane %v9173, 2
    %v9178 = vperm.slane %v9173, 3
    %v9311 = vunpack.c.l.b16 %v9045
    %v9312 = vunpack.c.h.b16 %v9045
    %v9313 = vunpack.c.l.b16 %v9046
    %v9314 = vunpack.c.h.b16 %v9046
    %v9315 = vunpack.c.l.b16 %v9047
    %v9316 = vunpack.c.h.b16 %v9047
    %v9317 = vunpack.c.l.b16 %v9048
    %v9318 = vunpack.c.h.b16 %v9048
    %v9319 = vunpack.c.l.b16 %v9049
    %v9320 = vunpack.c.h.b16 %v9049
    %v9321 = vunpack.c.l.b16 %v9050
    %v9322 = vunpack.c.h.b16 %v9050
    %v9323 = vunpack.c.l.b16 %v9051
    %v9324 = vunpack.c.h.b16 %v9051
    %v9325 = vunpack.c.l.b16 %v9052
    %v9326 = vunpack.c.h.b16 %v9052
    %v9327 = vunpack.c.l.b16 %v9053
    %v9328 = vunpack.c.h.b16 %v9053
    %v9329 = vunpack.c.l.b16 %v9054
    %v9330 = vunpack.c.h.b16 %v9054
    %v9331 = vunpack.c.l.b16 %v9055
    %v9332 = vunpack.c.h.b16 %v9055
    %v9333 = vunpack.c.l.b16 %v9056
    %v9334 = vunpack.c.h.b16 %v9056
    %v9335 = vunpack.c.l.b16 %v9057
    %v9336 = vunpack.c.h.b16 %v9057
    %v9337 = vunpack.c.l.b16 %v9058
    %v9338 = vunpack.c.h.b16 %v9058
    %v9339 = vunpack.c.l.b16 %v9059
    %v9340 = vunpack.c.h.b16 %v9059
    %v9341 = vunpack.c.l.b16 %v9060
    %v9342 = vunpack.c.h.b16 %v9060
    %v9343 = vunpack.c.l.b16 %v9061
    %v9344 = vunpack.c.h.b16 %v9061
    %v9345 = vunpack.c.l.b16 %v9062
    %v9346 = vunpack.c.h.b16 %v9062
    %v9347 = vunpack.c.l.b16 %v9063
    %v9348 = vunpack.c.h.b16 %v9063
    %v9349 = vunpack.c.l.b16 %v9064
    %v9350 = vunpack.c.h.b16 %v9064
    %v9351 = vunpack.c.l.b16 %v9065
    %v9352 = vunpack.c.h.b16 %v9065
    %v9353 = vunpack.c.l.b16 %v9066
    %v9354 = vunpack.c.h.b16 %v9066
    %v9355 = vunpack.c.l.b16 %v9067
    %v9356 = vunpack.c.h.b16 %v9067
    %v9357 = vunpack.c.l.b16 %v9068
    %v9358 = vunpack.c.h.b16 %v9068
    %v9359 = vunpack.c.l.b16 %v9069
    %v9360 = vunpack.c.h.b16 %v9069
    %v9361 = vunpack.c.l.b16 %v9070
    %v9362 = vunpack.c.h.b16 %v9070
    %v9363 = vunpack.c.l.b16 %v9071
    %v9364 = vunpack.c.h.b16 %v9071
    %v9365 = vunpack.c.l.b16 %v9072
    %v9366 = vunpack.c.h.b16 %v9072
    %v9367 = vunpack.c.l.b16 %v9073
    %v9368 = vunpack.c.h.b16 %v9073
    %v9369 = vunpack.c.l.b16 %v9074
    %v9370 = vunpack.c.h.b16 %v9074
    %v9371 = vunpack.c.l.b16 %v9075
    %v9372 = vunpack.c.h.b16 %v9075
    %v9373 = vunpack.c.l.b16 %v9076
    %v9374 = vunpack.c.h.b16 %v9076
    %v9375 = vunpack.c.l.b16 %v9077
    %v9376 = vunpack.c.h.b16 %v9077
    %v9377 = vunpack.c.l.b16 %v9078
    %v9378 = vunpack.c.h.b16 %v9078
    %v9379 = vunpack.c.l.b16 %v9079
    %v9380 = vunpack.c.h.b16 %v9079
    %v9381 = vunpack.c.l.b16 %v9080
    %v9382 = vunpack.c.h.b16 %v9080
    %v9383 = vunpack.c.l.b16 %v9081
    %v9384 = vunpack.c.h.b16 %v9081
    %v9385 = vunpack.c.l.b16 %v9082
    %v9386 = vunpack.c.h.b16 %v9082
    %v9387 = vunpack.c.l.b16 %v9083
    %v9388 = vunpack.c.h.b16 %v9083
    %v9389 = vunpack.c.l.b16 %v9084
    %v9390 = vunpack.c.h.b16 %v9084
    %v9391 = vunpack.c.l.b16 %v9085
    %v9392 = vunpack.c.h.b16 %v9085
    %v9393 = vunpack.c.l.b16 %v9086
    %v9394 = vunpack.c.h.b16 %v9086
    %v9395 = vunpack.c.l.b16 %v9087
    %v9396 = vunpack.c.h.b16 %v9087
    %v9397 = vunpack.c.l.b16 %v9088
    %v9398 = vunpack.c.h.b16 %v9088
    %v9399 = vunpack.c.l.b16 %v9089
    %v9400 = vunpack.c.h.b16 %v9089
    %v9401 = vunpack.c.l.b16 %v9090
    %v9402 = vunpack.c.h.b16 %v9090
    %v9403 = vunpack.c.l.b16 %v9091
    %v9404 = vunpack.c.h.b16 %v9091
    %v9405 = vunpack.c.l.b16 %v9092
    %v9406 = vunpack.c.h.b16 %v9092
    %v9407 = vunpack.c.l.b16 %v9093
    %v9408 = vunpack.c.h.b16 %v9093
    %v9409 = vunpack.c.l.b16 %v9094
    %v9410 = vunpack.c.h.b16 %v9094
    %v9411 = vunpack.c.l.b16 %v9095
    %v9412 = vunpack.c.h.b16 %v9095
    %v9413 = vunpack.c.l.b16 %v9096
    %v9414 = vunpack.c.h.b16 %v9096
    %v9415 = vunpack.c.l.b16 %v9097
    %v9416 = vunpack.c.h.b16 %v9097
    %v9417 = vunpack.c.l.b16 %v9098
    %v9418 = vunpack.c.h.b16 %v9098
    %v9419 = vunpack.c.l.b16 %v9099
    %v9420 = vunpack.c.h.b16 %v9099
    %v9421 = vunpack.c.l.b16 %v9100
    %v9422 = vunpack.c.h.b16 %v9100
    %v9423 = vunpack.c.l.b16 %v9101
    %v9424 = vunpack.c.h.b16 %v9101
    %v9425 = vunpack.c.l.b16 %v9102
    %v9426 = vunpack.c.h.b16 %v9102
    %v9427 = vunpack.c.l.b16 %v9103
    %v9428 = vunpack.c.h.b16 %v9103
    %v9429 = vunpack.c.l.b16 %v9104
    %v9430 = vunpack.c.h.b16 %v9104
    %v9431 = vunpack.c.l.b16 %v9105
    %v9432 = vunpack.c.h.b16 %v9105
    %v9433 = vunpack.c.l.b16 %v9106
    %v9434 = vunpack.c.h.b16 %v9106
    %v9435 = vunpack.c.l.b16 %v9107
    %v9436 = vunpack.c.h.b16 %v9107
    %v9437 = vunpack.c.l.b16 %v9108
    %v9438 = vunpack.c.h.b16 %v9108
    %v9439 = vunpack.c.l.b16 %v9109
    %v9440 = vunpack.c.h.b16 %v9109
    %v9441 = vunpack.c.l.b16 %v9110
    %v9442 = vunpack.c.h.b16 %v9110
    %v9443 = vunpack.c.l.b16 %v9111
    %v9444 = vunpack.c.h.b16 %v9111
    %v9445 = vunpack.c.l.b16 %v9112
    %v9446 = vunpack.c.h.b16 %v9112
    %v9447 = vunpack.c.l.b16 %v9113
    %v9448 = vunpack.c.h.b16 %v9113
    %v9449 = vunpack.c.l.b16 %v9114
    %v9450 = vunpack.c.h.b16 %v9114
    %v9451 = vunpack.c.l.b16 %v9115
    %v9452 = vunpack.c.h.b16 %v9115
    %v9453 = vunpack.c.l.b16 %v9116
    %v9454 = vunpack.c.h.b16 %v9116
    %v9455 = vunpack.c.l.b16 %v9117
    %v9456 = vunpack.c.h.b16 %v9117
    %v9457 = vunpack.c.l.b16 %v9118
    %v9458 = vunpack.c.h.b16 %v9118
    %v9459 = vunpack.c.l.b16 %v9119
    %v9460 = vunpack.c.h.b16 %v9119
    %v9461 = vunpack.c.l.b16 %v9120
    %v9462 = vunpack.c.h.b16 %v9120
    %v9463 = vunpack.c.l.b16 %v9121
    %v9464 = vunpack.c.h.b16 %v9121
    %v9465 = vunpack.c.l.b16 %v9122
    %v9466 = vunpack.c.h.b16 %v9122
    %v9467 = vunpack.c.l.b16 %v9123
    %v9468 = vunpack.c.h.b16 %v9123
    %v9469 = vunpack.c.l.b16 %v9124
    %v9470 = vunpack.c.h.b16 %v9124
    %v9471 = vunpack.c.l.b16 %v9125
    %v9472 = vunpack.c.h.b16 %v9125
    %v9473 = vunpack.c.l.b16 %v9126
    %v9474 = vunpack.c.h.b16 %v9126
    %v9475 = vunpack.c.l.b16 %v9127
    %v9476 = vunpack.c.h.b16 %v9127
    %v9477 = vunpack.c.l.b16 %v9128
    %v9478 = vunpack.c.h.b16 %v9128
    %v9479 = vunpack.c.l.b16 %v9129
    %v9480 = vunpack.c.h.b16 %v9129
    %v9481 = vunpack.c.l.b16 %v9130
    %v9482 = vunpack.c.h.b16 %v9130
    %v9483 = vunpack.c.l.b16 %v9131
    %v9484 = vunpack.c.h.b16 %v9131
    %v9485 = vunpack.c.l.b16 %v9132
    %v9486 = vunpack.c.h.b16 %v9132
    %v9487 = vunpack.c.l.b16 %v9133
    %v9488 = vunpack.c.h.b16 %v9133
    %v9489 = vunpack.c.l.b16 %v9134
    %v9490 = vunpack.c.h.b16 %v9134
    %v9491 = vunpack.c.l.b16 %v9135
    %v9492 = vunpack.c.h.b16 %v9135
    %v9493 = vunpack.c.l.b16 %v9136
    %v9494 = vunpack.c.h.b16 %v9136
    %v9495 = vunpack.c.l.b16 %v9137
    %v9496 = vunpack.c.h.b16 %v9137
    %v9497 = vunpack.c.l.b16 %v9138
    %v9498 = vunpack.c.h.b16 %v9138
    %v9499 = vunpack.c.l.b16 %v9139
    %v9500 = vunpack.c.h.b16 %v9139
    %v9501 = vunpack.c.l.b16 %v9140
    %v9502 = vunpack.c.h.b16 %v9140
    %v9503 = vunpack.c.l.b16 %v9141
    %v9504 = vunpack.c.h.b16 %v9141
    %v9505 = vunpack.c.l.b16 %v9142
    %v9506 = vunpack.c.h.b16 %v9142
    %v9507 = vunpack.c.l.b16 %v9143
    %v9508 = vunpack.c.h.b16 %v9143
    %v9509 = vunpack.c.l.b16 %v9144
    %v9510 = vunpack.c.h.b16 %v9144
    %v9511 = vunpack.c.l.b16 %v9145
    %v9512 = vunpack.c.h.b16 %v9145
    %v9513 = vunpack.c.l.b16 %v9146
    %v9514 = vunpack.c.h.b16 %v9146
    %v9515 = vunpack.c.l.b16 %v9147
    %v9516 = vunpack.c.h.b16 %v9147
    %v9517 = vunpack.c.l.b16 %v9148
    %v9518 = vunpack.c.h.b16 %v9148
    %v9519 = vunpack.c.l.b16 %v9149
    %v9520 = vunpack.c.h.b16 %v9149
    %v9521 = vunpack.c.l.b16 %v9150
    %v9522 = vunpack.c.h.b16 %v9150
    %v9523 = vunpack.c.l.b16 %v9151
    %v9524 = vunpack.c.h.b16 %v9151
    %v9525 = vunpack.c.l.b16 %v9152
    %v9526 = vunpack.c.h.b16 %v9152
    %v9527 = vunpack.c.l.b16 %v9153
    %v9528 = vunpack.c.h.b16 %v9153
    %v9529 = vunpack.c.l.b16 %v9154
    %v9530 = vunpack.c.h.b16 %v9154
    %v9531 = vunpack.c.l.b16 %v9155
    %v9532 = vunpack.c.h.b16 %v9155
    %v9533 = vunpack.c.l.b16 %v9156
    %v9534 = vunpack.c.h.b16 %v9156
    %v9535 = vunpack.c.l.b16 %v9157
    %v9536 = vunpack.c.h.b16 %v9157
    %v9537 = vunpack.c.l.b16 %v9158
    %v9538 = vunpack.c.h.b16 %v9158
    %v9539 = vunpack.c.l.b16 %v9159
    %v9540 = vunpack.c.h.b16 %v9159
    %v9541 = vunpack.c.l.b16 %v9160
    %v9542 = vunpack.c.h.b16 %v9160
    %v9543 = vunpack.c.l.b16 %v9161
    %v9544 = vunpack.c.h.b16 %v9161
    %v9545 = vunpack.c.l.b16 %v9162
    %v9546 = vunpack.c.h.b16 %v9162
    %v9547 = vunpack.c.l.b16 %v9163
    %v9548 = vunpack.c.h.b16 %v9163
    %v9549 = vunpack.c.l.b16 %v9164
    %v9550 = vunpack.c.h.b16 %v9164
    %v9551 = vunpack.c.l.b16 %v9165
    %v9552 = vunpack.c.h.b16 %v9165
    %v9553 = vunpack.c.l.b16 %v9166
    %v9554 = vunpack.c.h.b16 %v9166
    %v9555 = vunpack.c.l.b16 %v9167
    %v9556 = vunpack.c.h.b16 %v9167
    %v9557 = vunpack.c.l.b16 %v9168
    %v9558 = vunpack.c.h.b16 %v9168
    %v9559 = vunpack.c.l.b16 %v9169
    %v9560 = vunpack.c.h.b16 %v9169
    %v9561 = vunpack.c.l.b16 %v9170
    %v9562 = vunpack.c.h.b16 %v9170
    %v9563 = vunpack.c.l.b16 %v9171
    %v9564 = vunpack.c.h.b16 %v9171
    %v9565 = vunpack.c.l.b16 %v9172
    %v9566 = vunpack.c.h.b16 %v9172
    %v9567 = vpack.c.b16 %v9315, %v9311
    %v9568 = vpack.c.b16 %v9316, %v9312
    %v9569 = vpack.c.b16 %v9317, %v9313
    %v9570 = vpack.c.b16 %v9318, %v9314
    %v9571 = vpack.c.b16 %v9323, %v9319
    %v9572 = vpack.c.b16 %v9324, %v9320
    %v9573 = vpack.c.b16 %v9325, %v9321
    %v9574 = vpack.c.b16 %v9326, %v9322
    %v9575 = vpack.c.b16 %v9331, %v9327
    %v9576 = vpack.c.b16 %v9332, %v9328
    %v9577 = vpack.c.b16 %v9333, %v9329
    %v9578 = vpack.c.b16 %v9334, %v9330
    %v9579 = vpack.c.b16 %v9339, %v9335
    %v9580 = vpack.c.b16 %v9340, %v9336
    %v9581 = vpack.c.b16 %v9341, %v9337
    %v9582 = vpack.c.b16 %v9342, %v9338
    %v9583 = vpack.c.b16 %v9347, %v9343
    %v9584 = vpack.c.b16 %v9348, %v9344
    %v9585 = vpack.c.b16 %v9349, %v9345
    %v9586 = vpack.c.b16 %v9350, %v9346
    %v9587 = vpack.c.b16 %v9355, %v9351
    %v9588 = vpack.c.b16 %v9356, %v9352
    %v9589 = vpack.c.b16 %v9357, %v9353
    %v9590 = vpack.c.b16 %v9358, %v9354
    %v9591 = vpack.c.b16 %v9363, %v9359
    %v9592 = vpack.c.b16 %v9364, %v9360
    %v9593 = vpack.c.b16 %v9365, %v9361
    %v9594 = vpack.c.b16 %v9366, %v9362
    %v9595 = vpack.c.b16 %v9371, %v9367
    %v9596 = vpack.c.b16 %v9372, %v9368
    %v9597 = vpack.c.b16 %v9373, %v9369
    %v9598 = vpack.c.b16 %v9374, %v9370
    %v9599 = vpack.c.b16 %v9379, %v9375
    %v9600 = vpack.c.b16 %v9380, %v9376
    %v9601 = vpack.c.b16 %v9381, %v9377
    %v9602 = vpack.c.b16 %v9382, %v9378
    %v9603 = vpack.c.b16 %v9387, %v9383
    %v9604 = vpack.c.b16 %v9388, %v9384
    %v9605 = vpack.c.b16 %v9389, %v9385
    %v9606 = vpack.c.b16 %v9390, %v9386
    %v9607 = vpack.c.b16 %v9395, %v9391
    %v9608 = vpack.c.b16 %v9396, %v9392
    %v9609 = vpack.c.b16 %v9397, %v9393
    %v9610 = vpack.c.b16 %v9398, %v9394
    %v9611 = vpack.c.b16 %v9403, %v9399
    %v9612 = vpack.c.b16 %v9404, %v9400
    %v9613 = vpack.c.b16 %v9405, %v9401
    %v9614 = vpack.c.b16 %v9406, %v9402
    %v9615 = vpack.c.b16 %v9411, %v9407
    %v9616 = vpack.c.b16 %v9412, %v9408
    %v9617 = vpack.c.b16 %v9413, %v9409
    %v9618 = vpack.c.b16 %v9414, %v9410
    %v9619 = vpack.c.b16 %v9419, %v9415
    %v9620 = vpack.c.b16 %v9420, %v9416
    %v9621 = vpack.c.b16 %v9421, %v9417
    %v9622 = vpack.c.b16 %v9422, %v9418
    %v9623 = vpack.c.b16 %v9427, %v9423
    %v9624 = vpack.c.b16 %v9428, %v9424
    %v9625 = vpack.c.b16 %v9429, %v9425
    %v9626 = vpack.c.b16 %v9430, %v9426
    %v9627 = vpack.c.b16 %v9435, %v9431
    %v9628 = vpack.c.b16 %v9436, %v9432
    %v9629 = vpack.c.b16 %v9437, %v9433
    %v9630 = vpack.c.b16 %v9438, %v9434
    %v9631 = vpack.c.b16 %v9443, %v9439
    %v9632 = vpack.c.b16 %v9444, %v9440
    %v9633 = vpack.c.b16 %v9445, %v9441
    %v9634 = vpack.c.b16 %v9446, %v9442
    %v9635 = vpack.c.b16 %v9451, %v9447
    %v9636 = vpack.c.b16 %v9452, %v9448
    %v9637 = vpack.c.b16 %v9453, %v9449
    %v9638 = vpack.c.b16 %v9454, %v9450
    %v9639 = vpack.c.b16 %v9459, %v9455
    %v9640 = vpack.c.b16 %v9460, %v9456
    %v9641 = vpack.c.b16 %v9461, %v9457
    %v9642 = vpack.c.b16 %v9462, %v9458
    %v9643 = vpack.c.b16 %v9467, %v9463
    %v9644 = vpack.c.b16 %v9468, %v9464
    %v9645 = vpack.c.b16 %v9469, %v9465
    %v9646 = vpack.c.b16 %v9470, %v9466
    %v9647 = vpack.c.b16 %v9475, %v9471
    %v9648 = vpack.c.b16 %v9476, %v9472
    %v9649 = vpack.c.b16 %v9477, %v9473
    %v9650 = vpack.c.b16 %v9478, %v9474
    %v9651 = vpack.c.b16 %v9483, %v9479
    %v9652 = vpack.c.b16 %v9484, %v9480
    %v9653 = vpack.c.b16 %v9485, %v9481
    %v9654 = vpack.c.b16 %v9486, %v9482
    %v9655 = vpack.c.b16 %v9491, %v9487
    %v9656 = vpack.c.b16 %v9492, %v9488
    %v9657 = vpack.c.b16 %v9493, %v9489
    %v9658 = vpack.c.b16 %v9494, %v9490
    %v9659 = vpack.c.b16 %v9499, %v9495
    %v9660 = vpack.c.b16 %v9500, %v9496
    %v9661 = vpack.c.b16 %v9501, %v9497
    %v9662 = vpack.c.b16 %v9502, %v9498
    %v9663 = vpack.c.b16 %v9507, %v9503
    %v9664 = vpack.c.b16 %v9508, %v9504
    %v9665 = vpack.c.b16 %v9509, %v9505
    %v9666 = vpack.c.b16 %v9510, %v9506
    %v9667 = vpack.c.b16 %v9515, %v9511
    %v9668 = vpack.c.b16 %v9516, %v9512
    %v9669 = vpack.c.b16 %v9517, %v9513
    %v9670 = vpack.c.b16 %v9518, %v9514
    %v9671 = vpack.c.b16 %v9523, %v9519
    %v9672 = vpack.c.b16 %v9524, %v9520
    %v9673 = vpack.c.b16 %v9525, %v9521
    %v9674 = vpack.c.b16 %v9526, %v9522
    %v9675 = vpack.c.b16 %v9531, %v9527
    %v9676 = vpack.c.b16 %v9532, %v9528
    %v9677 = vpack.c.b16 %v9533, %v9529
    %v9678 = vpack.c.b16 %v9534, %v9530
    %v9679 = vpack.c.b16 %v9539, %v9535
    %v9680 = vpack.c.b16 %v9540, %v9536
    %v9681 = vpack.c.b16 %v9541, %v9537
    %v9682 = vpack.c.b16 %v9542, %v9538
    %v9683 = vpack.c.b16 %v9547, %v9543
    %v9684 = vpack.c.b16 %v9548, %v9544
    %v9685 = vpack.c.b16 %v9549, %v9545
    %v9686 = vpack.c.b16 %v9550, %v9546
    %v9687 = vpack.c.b16 %v9555, %v9551
    %v9688 = vpack.c.b16 %v9556, %v9552
    %v9689 = vpack.c.b16 %v9557, %v9553
    %v9690 = vpack.c.b16 %v9558, %v9554
    %v9691 = vpack.c.b16 %v9563, %v9559
    %v9692 = vpack.c.b16 %v9564, %v9560
    %v9693 = vpack.c.b16 %v9565, %v9561
    %v9694 = vpack.c.b16 %v9566, %v9562
    %9823 = vmatpush.bf16.msra.mxu0 %v9595
    %9824 = vmatpush.bf16.msra.mxu0 %v9591
    %9825 = vmatpush.bf16.msra.mxu0 %v9587
    %9826 = vmatpush.bf16.msra.mxu0 %v9583
    %9827 = vmatpush.bf16.msra.mxu0 %v9579
    %9828 = vmatpush.bf16.msra.mxu0 %v9575
    %9829 = vmatpush.bf16.msra.mxu0 %v9571
    %9830 = vmatpush.bf16.msra.mxu0 %v9567
    %9831 = vmatmul.bf16.gmra.mxu0 %v9041
    %v9832 = vpop.f32.mrf.mxu0
    %v9833 = vadd.f32 %v9175, %v9832
    %v9834 = vpop.f32.mrf.mxu0
    %9835 = vdwg.mxu0
    %9836 = vmatpush.bf16.msra.mxu0 %v9627
    %9837 = vmatpush.bf16.msra.mxu0 %v9623
    %9838 = vmatpush.bf16.msra.mxu0 %v9619
    %9839 = vmatpush.bf16.msra.mxu0 %v9615
    %9840 = vmatpush.bf16.msra.mxu0 %v9611
    %9841 = vmatpush.bf16.msra.mxu0 %v9607
    %9842 = vmatpush.bf16.msra.mxu0 %v9603
    %9843 = vmatpush.bf16.msra.mxu0 %v9599
    %9844 = vmatmul.bf16.gmra.mxu0 %v9042
    %v9845 = vpop.f32.mrf.mxu0
    %v9846 = vadd.f32 %v9833, %v9845
    %v9847 = vpop.f32.mrf.mxu0
    %9848 = vdwg.mxu0
    %9849 = vmatpush.bf16.msra.mxu0 %v9659
    %9850 = vmatpush.bf16.msra.mxu0 %v9655
    %9851 = vmatpush.bf16.msra.mxu0 %v9651
    %9852 = vmatpush.bf16.msra.mxu0 %v9647
    %9853 = vmatpush.bf16.msra.mxu0 %v9643
    %9854 = vmatpush.bf16.msra.mxu0 %v9639
    %9855 = vmatpush.bf16.msra.mxu0 %v9635
    %9856 = vmatpush.bf16.msra.mxu0 %v9631
    %9857 = vmatmul.bf16.gmra.mxu0 %v9043
    %v9858 = vpop.f32.mrf.mxu0
    %v9859 = vadd.f32 %v9846, %v9858
    %v9860 = vpop.f32.mrf.mxu0
    %9861 = vdwg.mxu0
    %9862 = vmatpush.bf16.msra.mxu0 %v9691
    %9863 = vmatpush.bf16.msra.mxu0 %v9687
    %9864 = vmatpush.bf16.msra.mxu0 %v9683
    %9865 = vmatpush.bf16.msra.mxu0 %v9679
    %9866 = vmatpush.bf16.msra.mxu0 %v9675
    %9867 = vmatpush.bf16.msra.mxu0 %v9671
    %9868 = vmatpush.bf16.msra.mxu0 %v9667
    %9869 = vmatpush.bf16.msra.mxu0 %v9663
    %9870 = vmatmul.bf16.gmra.mxu0 %v9044
    %v9871 = vpop.f32.mrf.mxu0
    %v9872 = vadd.f32 %v9859, %v9871
    %v9873 = vpop.f32.mrf.mxu0
    %9874 = vdwg.mxu0
    %9875 = vmatpush.bf16.msra.mxu0 %v9596
    %9876 = vmatpush.bf16.msra.mxu0 %v9592
    %9877 = vmatpush.bf16.msra.mxu0 %v9588
    %9878 = vmatpush.bf16.msra.mxu0 %v9584
    %9879 = vmatpush.bf16.msra.mxu0 %v9580
    %9880 = vmatpush.bf16.msra.mxu0 %v9576
    %9881 = vmatpush.bf16.msra.mxu0 %v9572
    %9882 = vmatpush.bf16.msra.mxu0 %v9568
    %9883 = vmatmul.bf16.gmra.mxu0 %v9041
    %v9884 = vpop.f32.mrf.mxu0
    %v9885 = vadd.f32 %v9176, %v9884
    %v9886 = vpop.f32.mrf.mxu0
    %9887 = vdwg.mxu0
    %9888 = vmatpush.bf16.msra.mxu0 %v9628
    %9889 = vmatpush.bf16.msra.mxu0 %v9624
    %9890 = vmatpush.bf16.msra.mxu0 %v9620
    %9891 = vmatpush.bf16.msra.mxu0 %v9616
    %9892 = vmatpush.bf16.msra.mxu0 %v9612
    %9893 = vmatpush.bf16.msra.mxu0 %v9608
    %9894 = vmatpush.bf16.msra.mxu0 %v9604
    %9895 = vmatpush.bf16.msra.mxu0 %v9600
    %9896 = vmatmul.bf16.gmra.mxu0 %v9042
    %v9897 = vpop.f32.mrf.mxu0
    %v9898 = vadd.f32 %v9885, %v9897
    %v9899 = vpop.f32.mrf.mxu0
    %9900 = vdwg.mxu0
    %9901 = vmatpush.bf16.msra.mxu0 %v9660
    %9902 = vmatpush.bf16.msra.mxu0 %v9656
    %9903 = vmatpush.bf16.msra.mxu0 %v9652
    %9904 = vmatpush.bf16.msra.mxu0 %v9648
    %9905 = vmatpush.bf16.msra.mxu0 %v9644
    %9906 = vmatpush.bf16.msra.mxu0 %v9640
    %9907 = vmatpush.bf16.msra.mxu0 %v9636
    %9908 = vmatpush.bf16.msra.mxu0 %v9632
    %9909 = vmatmul.bf16.gmra.mxu0 %v9043
    %v9910 = vpop.f32.mrf.mxu0
    %v9911 = vadd.f32 %v9898, %v9910
    %v9912 = vpop.f32.mrf.mxu0
    %9913 = vdwg.mxu0
    %9914 = vmatpush.bf16.msra.mxu0 %v9692
    %9915 = vmatpush.bf16.msra.mxu0 %v9688
    %9916 = vmatpush.bf16.msra.mxu0 %v9684
    %9917 = vmatpush.bf16.msra.mxu0 %v9680
    %9918 = vmatpush.bf16.msra.mxu0 %v9676
    %9919 = vmatpush.bf16.msra.mxu0 %v9672
    %9920 = vmatpush.bf16.msra.mxu0 %v9668
    %9921 = vmatpush.bf16.msra.mxu0 %v9664
    %9922 = vmatmul.bf16.gmra.mxu0 %v9044
    %v9923 = vpop.f32.mrf.mxu0
    %v9924 = vadd.f32 %v9911, %v9923
    %v9925 = vpop.f32.mrf.mxu0
    %9926 = vdwg.mxu0
    %9927 = vmatpush.bf16.msra.mxu0 %v9597
    %9928 = vmatpush.bf16.msra.mxu0 %v9593
    %9929 = vmatpush.bf16.msra.mxu0 %v9589
    %9930 = vmatpush.bf16.msra.mxu0 %v9585
    %9931 = vmatpush.bf16.msra.mxu0 %v9581
    %9932 = vmatpush.bf16.msra.mxu0 %v9577
    %9933 = vmatpush.bf16.msra.mxu0 %v9573
    %9934 = vmatpush.bf16.msra.mxu0 %v9569
    %9935 = vmatmul.bf16.gmra.mxu0 %v9041
    %v9936 = vpop.f32.mrf.mxu0
    %v9937 = vadd.f32 %v9177, %v9936
    %v9938 = vpop.f32.mrf.mxu0
    %9939 = vdwg.mxu0
    %9940 = vmatpush.bf16.msra.mxu0 %v9629
    %9941 = vmatpush.bf16.msra.mxu0 %v9625
    %9942 = vmatpush.bf16.msra.mxu0 %v9621
    %9943 = vmatpush.bf16.msra.mxu0 %v9617
    %9944 = vmatpush.bf16.msra.mxu0 %v9613
    %9945 = vmatpush.bf16.msra.mxu0 %v9609
    %9946 = vmatpush.bf16.msra.mxu0 %v9605
    %9947 = vmatpush.bf16.msra.mxu0 %v9601
    %9948 = vmatmul.bf16.gmra.mxu0 %v9042
    %v9949 = vpop.f32.mrf.mxu0
    %v9950 = vadd.f32 %v9937, %v9949
    %v9951 = vpop.f32.mrf.mxu0
    %9952 = vdwg.mxu0
    %9953 = vmatpush.bf16.msra.mxu0 %v9661
    %9954 = vmatpush.bf16.msra.mxu0 %v9657
    %9955 = vmatpush.bf16.msra.mxu0 %v9653
    %9956 = vmatpush.bf16.msra.mxu0 %v9649
    %9957 = vmatpush.bf16.msra.mxu0 %v9645
    %9958 = vmatpush.bf16.msra.mxu0 %v9641
    %9959 = vmatpush.bf16.msra.mxu0 %v9637
    %9960 = vmatpush.bf16.msra.mxu0 %v9633
    %9961 = vmatmul.bf16.gmra.mxu0 %v9043
    %v9962 = vpop.f32.mrf.mxu0
    %v9963 = vadd.f32 %v9950, %v9962
    %v9964 = vpop.f32.mrf.mxu0
    %9965 = vdwg.mxu0
    %9966 = vmatpush.bf16.msra.mxu0 %v9693
    %9967 = vmatpush.bf16.msra.mxu0 %v9689
    %9968 = vmatpush.bf16.msra.mxu0 %v9685
    %9969 = vmatpush.bf16.msra.mxu0 %v9681
    %9970 = vmatpush.bf16.msra.mxu0 %v9677
    %9971 = vmatpush.bf16.msra.mxu0 %v9673
    %9972 = vmatpush.bf16.msra.mxu0 %v9669
    %9973 = vmatpush.bf16.msra.mxu0 %v9665
    %9974 = vmatmul.bf16.gmra.mxu0 %v9044
    %v9975 = vpop.f32.mrf.mxu0
    %v9976 = vadd.f32 %v9963, %v9975
    %v9977 = vpop.f32.mrf.mxu0
    %9978 = vdwg.mxu0
    %9979 = vmatpush.bf16.msra.mxu0 %v9598
    %9980 = vmatpush.bf16.msra.mxu0 %v9594
    %9981 = vmatpush.bf16.msra.mxu0 %v9590
    %9982 = vmatpush.bf16.msra.mxu0 %v9586
    %9983 = vmatpush.bf16.msra.mxu0 %v9582
    %9984 = vmatpush.bf16.msra.mxu0 %v9578
    %9985 = vmatpush.bf16.msra.mxu0 %v9574
    %9986 = vmatpush.bf16.msra.mxu0 %v9570
    %9987 = vmatmul.bf16.gmra.mxu0 %v9041
    %v9988 = vpop.f32.mrf.mxu0
    %v9989 = vadd.f32 %v9178, %v9988
    %v9990 = vpop.f32.mrf.mxu0
    %9991 = vdwg.mxu0
    %9992 = vmatpush.bf16.msra.mxu0 %v9630
    %9993 = vmatpush.bf16.msra.mxu0 %v9626
    %9994 = vmatpush.bf16.msra.mxu0 %v9622
    %9995 = vmatpush.bf16.msra.mxu0 %v9618
    %9996 = vmatpush.bf16.msra.mxu0 %v9614
    %9997 = vmatpush.bf16.msra.mxu0 %v9610
    %9998 = vmatpush.bf16.msra.mxu0 %v9606
    %9999 = vmatpush.bf16.msra.mxu0 %v9602
    %10000 = vmatmul.bf16.gmra.mxu0 %v9042
    %v10001 = vpop.f32.mrf.mxu0
    %v10002 = vadd.f32 %v9989, %v10001
    %v10003 = vpop.f32.mrf.mxu0
    %10004 = vdwg.mxu0
    %10005 = vmatpush.bf16.msra.mxu0 %v9662
    %10006 = vmatpush.bf16.msra.mxu0 %v9658
    %10007 = vmatpush.bf16.msra.mxu0 %v9654
    %10008 = vmatpush.bf16.msra.mxu0 %v9650
    %10009 = vmatpush.bf16.msra.mxu0 %v9646
    %10010 = vmatpush.bf16.msra.mxu0 %v9642
    %10011 = vmatpush.bf16.msra.mxu0 %v9638
    %10012 = vmatpush.bf16.msra.mxu0 %v9634
    %10013 = vmatmul.bf16.gmra.mxu0 %v9043
    %v10014 = vpop.f32.mrf.mxu0
    %v10015 = vadd.f32 %v10002, %v10014
    %v10016 = vpop.f32.mrf.mxu0
    %10017 = vdwg.mxu0
    %10018 = vmatpush.bf16.msra.mxu0 %v9694
    %10019 = vmatpush.bf16.msra.mxu0 %v9690
    %10020 = vmatpush.bf16.msra.mxu0 %v9686
    %10021 = vmatpush.bf16.msra.mxu0 %v9682
    %10022 = vmatpush.bf16.msra.mxu0 %v9678
    %10023 = vmatpush.bf16.msra.mxu0 %v9674
    %10024 = vmatpush.bf16.msra.mxu0 %v9670
    %10025 = vmatpush.bf16.msra.mxu0 %v9666
    %10026 = vmatmul.bf16.gmra.mxu0 %v9044
    %v10027 = vpop.f32.mrf.mxu0
    %v10028 = vadd.f32 %v10015, %v10027
    %v10029 = vpop.f32.mrf.mxu0
    %10030 = vdwg.mxu0
    %v10031 = vld [vmem:[#allocation28] sm:$0xf]
    %v10032 = vld [vmem:[#allocation29] sm:$0xf]
    %v10033 = vsel %vm1134, %v9872, 0.0
    %v10034 = vsel %vm1134, %v9924, 0.0
    %v10035 = vadd.f32 %v10033, %v10034
    %v10036 = vsel %vm1134, %v9976, 0.0
    %v10037 = vadd.f32 %v10035, %v10036
    %v10038 = vsel %vm1134, %v10028, 0.0
    %v10039 = vadd.f32 %v10037, %v10038
    %10040 = vadd.xlane.f32.xlu0 %v10039
    %v10041 = vpop.xlane.xlu0 %10040
    %v10042 = vmul.f32 %v10041, %v8976
    %v10043 = vsub.f32 %v9872, %v10042
    %v10044 = vsub.f32 %v9924, %v10042
    %v10045 = vsub.f32 %v9976, %v10042
    %v10046 = vsub.f32 %v10028, %v10042
    %v10047 = vmul.f32 %v10043, %v10043
    %v10048 = vmul.f32 %v10044, %v10044
    %v10049 = vmul.f32 %v10045, %v10045
    %v10050 = vmul.f32 %v10046, %v10046
    %v10051 = vsel %vm1134, %v10047, 0.0
    %v10052 = vsel %vm1134, %v10048, 0.0
    %v10053 = vadd.f32 %v10051, %v10052
    %v10054 = vsel %vm1134, %v10049, 0.0
    %v10055 = vadd.f32 %v10053, %v10054
    %v10056 = vsel %vm1134, %v10050, 0.0
    %v10057 = vadd.f32 %v10055, %v10056
    %10058 = vadd.xlane.f32.xlu0 %v10057
    %v10059 = vpop.xlane.xlu0 %10058
    %v10060 = vmul.f32 %v10059, %v8976
    %v10061 = vadd.f32 %v10060, 1e-05
    %v10062 = vrsqrt.pop %v10061
    %v10063 = vmul.f32 %v10062, %v10061
    %v10064 = vmul.f32 %v10063, %v10062
    %v10065 = vmul.f32 0.5, %v10064
    %v10066 = vsub.f32 1.5, %v10065
    %v10067 = vmul.f32 %v10062, %v10066
    %vm10068 = vweird.f32 %v10061
    %vm10069 = vweird.f32 %v10062
    %vm10070 = vmor %vm10068, %vm10069
    %v10071 = vsel %vm10070, %v10062, %v10067
    %v10072 = vmul.f32 %v10043, %v10071
    %v10073 = vmul.f32 %v10044, %v10071
    %v10074 = vmul.f32 %v10045, %v10071
    %v10075 = vmul.f32 %v10046, %v10071
    %v10077 = vperm.slane %v10031, 0
    %v10078 = vperm.slane %v10031, 1
    %v10079 = vperm.slane %v10031, 2
    %v10080 = vperm.slane %v10031, 3
    %v10085 = vmul.f32 %v10072, %v10077
    %v10086 = vmul.f32 %v10073, %v10078
    %v10087 = vmul.f32 %v10074, %v10079
    %v10088 = vmul.f32 %v10075, %v10080
    %v10090 = vperm.slane %v10032, 0
    %v10091 = vperm.slane %v10032, 1
    %v10092 = vperm.slane %v10032, 2
    %v10093 = vperm.slane %v10032, 3
    %v10098 = vadd.f32 %v10085, %v10090
    %v10099 = vadd.f32 %v10086, %v10091
    %v10100 = vadd.f32 %v10087, %v10092
    %v10101 = vadd.f32 %v10088, %v10093
    %v10102 = vmax.f32 %v10098, 0.0
    %v10103 = vmax.f32 %v10099, 0.0
    %v10104 = vmax.f32 %v10100, 0.0
    %v10105 = vmax.f32 %v10101, 0.0
    %v10106 = vpack.c.bf16 %v10102, %v10102
    %v10107 = vpack.c.bf16 %v10103, %v10103
    %v10108 = vpack.c.bf16 %v10104, %v10104
    %v10109 = vpack.c.bf16 %v10105, %v10105
    %v10110 = vld [vmem:[#allocation31] sm:$0xf]
    %v10111 = vld [vmem:[#allocation31 + $0x4] sm:$0xf]
    %v10112 = vld [vmem:[#allocation31 + $0x8] sm:$0xf]
    %v10113 = vld [vmem:[#allocation31 + $0xc] sm:$0xf]
    %v10114 = vld [vmem:[#allocation31 + $0x10] sm:$0xf]
    %v10115 = vld [vmem:[#allocation31 + $0x14] sm:$0xf]
    %v10116 = vld [vmem:[#allocation31 + $0x18] sm:$0xf]
    %v10117 = vld [vmem:[#allocation31 + $0x1c] sm:$0xf]
    %v10118 = vld [vmem:[#allocation31 + $0x20] sm:$0xf]
    %v10119 = vld [vmem:[#allocation31 + $0x24] sm:$0xf]
    %v10120 = vld [vmem:[#allocation31 + $0x28] sm:$0xf]
    %v10121 = vld [vmem:[#allocation31 + $0x2c] sm:$0xf]
    %v10122 = vld [vmem:[#allocation31 + $0x30] sm:$0xf]
    %v10123 = vld [vmem:[#allocation31 + $0x34] sm:$0xf]
    %v10124 = vld [vmem:[#allocation31 + $0x38] sm:$0xf]
    %v10125 = vld [vmem:[#allocation31 + $0x3c] sm:$0xf]
    %v10126 = vld [vmem:[#allocation31 + $0x40] sm:$0xf]
    %v10127 = vld [vmem:[#allocation31 + $0x44] sm:$0xf]
    %v10128 = vld [vmem:[#allocation31 + $0x48] sm:$0xf]
    %v10129 = vld [vmem:[#allocation31 + $0x4c] sm:$0xf]
    %v10130 = vld [vmem:[#allocation31 + $0x50] sm:$0xf]
    %v10131 = vld [vmem:[#allocation31 + $0x54] sm:$0xf]
    %v10132 = vld [vmem:[#allocation31 + $0x58] sm:$0xf]
    %v10133 = vld [vmem:[#allocation31 + $0x5c] sm:$0xf]
    %v10134 = vld [vmem:[#allocation31 + $0x60] sm:$0xf]
    %v10135 = vld [vmem:[#allocation31 + $0x64] sm:$0xf]
    %v10136 = vld [vmem:[#allocation31 + $0x68] sm:$0xf]
    %v10137 = vld [vmem:[#allocation31 + $0x6c] sm:$0xf]
    %v10138 = vld [vmem:[#allocation31 + $0x70] sm:$0xf]
    %v10139 = vld [vmem:[#allocation31 + $0x74] sm:$0xf]
    %v10140 = vld [vmem:[#allocation31 + $0x78] sm:$0xf]
    %v10141 = vld [vmem:[#allocation31 + $0x7c] sm:$0xf]
    %v10142 = vld [vmem:[#allocation31 + $0x80] sm:$0xf]
    %v10143 = vld [vmem:[#allocation31 + $0x84] sm:$0xf]
    %v10144 = vld [vmem:[#allocation31 + $0x88] sm:$0xf]
    %v10145 = vld [vmem:[#allocation31 + $0x8c] sm:$0xf]
    %v10146 = vld [vmem:[#allocation31 + $0x90] sm:$0xf]
    %v10147 = vld [vmem:[#allocation31 + $0x94] sm:$0xf]
    %v10148 = vld [vmem:[#allocation31 + $0x98] sm:$0xf]
    %v10149 = vld [vmem:[#allocation31 + $0x9c] sm:$0xf]
    %v10150 = vld [vmem:[#allocation31 + $0xa0] sm:$0xf]
    %v10151 = vld [vmem:[#allocation31 + $0xa4] sm:$0xf]
    %v10152 = vld [vmem:[#allocation31 + $0xa8] sm:$0xf]
    %v10153 = vld [vmem:[#allocation31 + $0xac] sm:$0xf]
    %v10154 = vld [vmem:[#allocation31 + $0xb0] sm:$0xf]
    %v10155 = vld [vmem:[#allocation31 + $0xb4] sm:$0xf]
    %v10156 = vld [vmem:[#allocation31 + $0xb8] sm:$0xf]
    %v10157 = vld [vmem:[#allocation31 + $0xbc] sm:$0xf]
    %v10158 = vld [vmem:[#allocation31 + $0xc0] sm:$0xf]
    %v10159 = vld [vmem:[#allocation31 + $0xc4] sm:$0xf]
    %v10160 = vld [vmem:[#allocation31 + $0xc8] sm:$0xf]
    %v10161 = vld [vmem:[#allocation31 + $0xcc] sm:$0xf]
    %v10162 = vld [vmem:[#allocation31 + $0xd0] sm:$0xf]
    %v10163 = vld [vmem:[#allocation31 + $0xd4] sm:$0xf]
    %v10164 = vld [vmem:[#allocation31 + $0xd8] sm:$0xf]
    %v10165 = vld [vmem:[#allocation31 + $0xdc] sm:$0xf]
    %v10166 = vld [vmem:[#allocation31 + $0xe0] sm:$0xf]
    %v10167 = vld [vmem:[#allocation31 + $0xe4] sm:$0xf]
    %v10168 = vld [vmem:[#allocation31 + $0xe8] sm:$0xf]
    %v10169 = vld [vmem:[#allocation31 + $0xec] sm:$0xf]
    %v10170 = vld [vmem:[#allocation31 + $0xf0] sm:$0xf]
    %v10171 = vld [vmem:[#allocation31 + $0xf4] sm:$0xf]
    %v10172 = vld [vmem:[#allocation31 + $0xf8] sm:$0xf]
    %v10173 = vld [vmem:[#allocation31 + $0xfc] sm:$0xf]
    %v10174 = vld [vmem:[#allocation32] sm:$0x1]
    %v10176 = vperm.slane %v10174, 0
    %v10242 = vunpack.c.l.b16 %v10110
    %v10243 = vunpack.c.l.b16 %v10111
    %v10244 = vunpack.c.l.b16 %v10112
    %v10245 = vunpack.c.l.b16 %v10113
    %v10246 = vunpack.c.l.b16 %v10114
    %v10247 = vunpack.c.l.b16 %v10115
    %v10248 = vunpack.c.l.b16 %v10116
    %v10249 = vunpack.c.l.b16 %v10117
    %v10250 = vunpack.c.l.b16 %v10118
    %v10251 = vunpack.c.l.b16 %v10119
    %v10252 = vunpack.c.l.b16 %v10120
    %v10253 = vunpack.c.l.b16 %v10121
    %v10254 = vunpack.c.l.b16 %v10122
    %v10255 = vunpack.c.l.b16 %v10123
    %v10256 = vunpack.c.l.b16 %v10124
    %v10257 = vunpack.c.l.b16 %v10125
    %v10258 = vunpack.c.l.b16 %v10126
    %v10259 = vunpack.c.l.b16 %v10127
    %v10260 = vunpack.c.l.b16 %v10128
    %v10261 = vunpack.c.l.b16 %v10129
    %v10262 = vunpack.c.l.b16 %v10130
    %v10263 = vunpack.c.l.b16 %v10131
    %v10264 = vunpack.c.l.b16 %v10132
    %v10265 = vunpack.c.l.b16 %v10133
    %v10266 = vunpack.c.l.b16 %v10134
    %v10267 = vunpack.c.l.b16 %v10135
    %v10268 = vunpack.c.l.b16 %v10136
    %v10269 = vunpack.c.l.b16 %v10137
    %v10270 = vunpack.c.l.b16 %v10138
    %v10271 = vunpack.c.l.b16 %v10139
    %v10272 = vunpack.c.l.b16 %v10140
    %v10273 = vunpack.c.l.b16 %v10141
    %v10274 = vunpack.c.l.b16 %v10142
    %v10275 = vunpack.c.l.b16 %v10143
    %v10276 = vunpack.c.l.b16 %v10144
    %v10277 = vunpack.c.l.b16 %v10145
    %v10278 = vunpack.c.l.b16 %v10146
    %v10279 = vunpack.c.l.b16 %v10147
    %v10280 = vunpack.c.l.b16 %v10148
    %v10281 = vunpack.c.l.b16 %v10149
    %v10282 = vunpack.c.l.b16 %v10150
    %v10283 = vunpack.c.l.b16 %v10151
    %v10284 = vunpack.c.l.b16 %v10152
    %v10285 = vunpack.c.l.b16 %v10153
    %v10286 = vunpack.c.l.b16 %v10154
    %v10287 = vunpack.c.l.b16 %v10155
    %v10288 = vunpack.c.l.b16 %v10156
    %v10289 = vunpack.c.l.b16 %v10157
    %v10290 = vunpack.c.l.b16 %v10158
    %v10291 = vunpack.c.l.b16 %v10159
    %v10292 = vunpack.c.l.b16 %v10160
    %v10293 = vunpack.c.l.b16 %v10161
    %v10294 = vunpack.c.l.b16 %v10162
    %v10295 = vunpack.c.l.b16 %v10163
    %v10296 = vunpack.c.l.b16 %v10164
    %v10297 = vunpack.c.l.b16 %v10165
    %v10298 = vunpack.c.l.b16 %v10166
    %v10299 = vunpack.c.l.b16 %v10167
    %v10300 = vunpack.c.l.b16 %v10168
    %v10301 = vunpack.c.l.b16 %v10169
    %v10302 = vunpack.c.l.b16 %v10170
    %v10303 = vunpack.c.l.b16 %v10171
    %v10304 = vunpack.c.l.b16 %v10172
    %v10305 = vunpack.c.l.b16 %v10173
    %v10306 = vpack.c.b16 %v10243, %v10242
    %v10307 = vpack.c.b16 %v10245, %v10244
    %v10308 = vpack.c.b16 %v10247, %v10246
    %v10309 = vpack.c.b16 %v10249, %v10248
    %v10310 = vpack.c.b16 %v10251, %v10250
    %v10311 = vpack.c.b16 %v10253, %v10252
    %v10312 = vpack.c.b16 %v10255, %v10254
    %v10313 = vpack.c.b16 %v10257, %v10256
    %v10314 = vpack.c.b16 %v10259, %v10258
    %v10315 = vpack.c.b16 %v10261, %v10260
    %v10316 = vpack.c.b16 %v10263, %v10262
    %v10317 = vpack.c.b16 %v10265, %v10264
    %v10318 = vpack.c.b16 %v10267, %v10266
    %v10319 = vpack.c.b16 %v10269, %v10268
    %v10320 = vpack.c.b16 %v10271, %v10270
    %v10321 = vpack.c.b16 %v10273, %v10272
    %v10322 = vpack.c.b16 %v10275, %v10274
    %v10323 = vpack.c.b16 %v10277, %v10276
    %v10324 = vpack.c.b16 %v10279, %v10278
    %v10325 = vpack.c.b16 %v10281, %v10280
    %v10326 = vpack.c.b16 %v10283, %v10282
    %v10327 = vpack.c.b16 %v10285, %v10284
    %v10328 = vpack.c.b16 %v10287, %v10286
    %v10329 = vpack.c.b16 %v10289, %v10288
    %v10330 = vpack.c.b16 %v10291, %v10290
    %v10331 = vpack.c.b16 %v10293, %v10292
    %v10332 = vpack.c.b16 %v10295, %v10294
    %v10333 = vpack.c.b16 %v10297, %v10296
    %v10334 = vpack.c.b16 %v10299, %v10298
    %v10335 = vpack.c.b16 %v10301, %v10300
    %v10336 = vpack.c.b16 %v10303, %v10302
    %v10337 = vpack.c.b16 %v10305, %v10304
    %10370 = vmatpush.bf16.msra.mxu0 %v10313
    %10371 = vmatpush.bf16.msra.mxu0 %v10312
    %10372 = vmatpush.bf16.msra.mxu0 %v10311
    %10373 = vmatpush.bf16.msra.mxu0 %v10310
    %10374 = vmatpush.bf16.msra.mxu0 %v10309
    %10375 = vmatpush.bf16.msra.mxu0 %v10308
    %10376 = vmatpush.bf16.msra.mxu0 %v10307
    %10377 = vmatpush.bf16.msra.mxu0 %v10306
    %10378 = vmatmul.bf16.gmra.mxu0 %v10106
    %v10379 = vpop.f32.mrf.mxu0
    %v10380 = vadd.f32 %v10176, %v10379
    %v10381 = vpop.f32.mrf.mxu0
    %10382 = vdwg.mxu0
    %10383 = vmatpush.bf16.msra.mxu0 %v10321
    %10384 = vmatpush.bf16.msra.mxu0 %v10320
    %10385 = vmatpush.bf16.msra.mxu0 %v10319
    %10386 = vmatpush.bf16.msra.mxu0 %v10318
    %10387 = vmatpush.bf16.msra.mxu0 %v10317
    %10388 = vmatpush.bf16.msra.mxu0 %v10316
    %10389 = vmatpush.bf16.msra.mxu0 %v10315
    %10390 = vmatpush.bf16.msra.mxu0 %v10314
    %10391 = vmatmul.bf16.gmra.mxu0 %v10107
    %v10392 = vpop.f32.mrf.mxu0
    %v10393 = vadd.f32 %v10380, %v10392
    %v10394 = vpop.f32.mrf.mxu0
    %10395 = vdwg.mxu0
    %10396 = vmatpush.bf16.msra.mxu0 %v10329
    %10397 = vmatpush.bf16.msra.mxu0 %v10328
    %10398 = vmatpush.bf16.msra.mxu0 %v10327
    %10399 = vmatpush.bf16.msra.mxu0 %v10326
    %10400 = vmatpush.bf16.msra.mxu0 %v10325
    %10401 = vmatpush.bf16.msra.mxu0 %v10324
    %10402 = vmatpush.bf16.msra.mxu0 %v10323
    %10403 = vmatpush.bf16.msra.mxu0 %v10322
    %10404 = vmatmul.bf16.gmra.mxu0 %v10108
    %v10405 = vpop.f32.mrf.mxu0
    %v10406 = vadd.f32 %v10393, %v10405
    %v10407 = vpop.f32.mrf.mxu0
    %10408 = vdwg.mxu0
    %10409 = vmatpush.bf16.msra.mxu0 %v10337
    %10410 = vmatpush.bf16.msra.mxu0 %v10336
    %10411 = vmatpush.bf16.msra.mxu0 %v10335
    %10412 = vmatpush.bf16.msra.mxu0 %v10334
    %10413 = vmatpush.bf16.msra.mxu0 %v10333
    %10414 = vmatpush.bf16.msra.mxu0 %v10332
    %10415 = vmatpush.bf16.msra.mxu0 %v10331
    %10416 = vmatpush.bf16.msra.mxu0 %v10330
    %10417 = vmatmul.bf16.gmra.mxu0 %v10109
    %v10418 = vpop.f32.mrf.mxu0
    %v10419 = vadd.f32 %v10406, %v10418
    %v10420 = vpop.f32.mrf.mxu0
    %10421 = vdwg.mxu0
    %10422 = vst [vmem:[#allocation34] sm:$0x3] %v10419
    // Predicated region
    $region150: #{vgg_forward.1} parent=1 // pred_check
      _
    $region151: #{vgg_forward.1} parent=1 // pred_check_branch
      %10424 = sbr.rel (0) target = $region153
    $region152: #{vgg_forward.1} parent=1 // pred_region
      %10426 = vsyncadd [#allocation7], 0
      %s10428 = sshll.u32 [#allocation34], 4
      %s10429 = int_to_ptr.vmem [resolvable:$true] %s10428
      %s10430 = sshll.u32 %s19, 4
      %s10431 = int_to_ptr.hbm [resolvable:$true] %s10430
      %10433 = dma.vmem_to_hbm [thread:$0]  %s10429, 32, %s10431, [#allocation7]
    $region153: #{vgg_forward.1} parent=1 // pred_fallthru
      _
    // Predicated region
    $region154: #{vgg_forward.1} parent=1 // pred_check
      _
    $region155: #{vgg_forward.1} parent=1 // pred_check_branch
      %10435 = sbr.rel (0) target = $region157
    $region156: #{vgg_forward.1} parent=1 // pred_region
      %10437 = dma.done [#allocation7], 32
    $region157: #{vgg_forward.1} parent=1 // pred_fallthru
      _
    %10438 = vsyncpa [#allocation6], 1
    %10439 = vsyncpa [#allocation9], 1
    %10440 = vsyncpa [#allocation12], 1
    %10441 = vsyncpa [#allocation15], 1
    %10442 = vsyncpa [#allocation18], 1
    %10443 = vsyncpa [#allocation21], 1
    %10444 = vsyncpa [#allocation24], 1
    %10445 = vsyncpa [#allocation27], 1
    %10446 = vsyncpa [#allocation30], 1
    %10447 = vsyncpa [#allocation33], 1
    %10448 = vsyncpa [#allocation7], 1

</llo_original>
